<compile_context>
chip_gen: v5e
topology: v5e:2x2
jax: 0.10.0
libtpu: 0.0.40
codegen_flags: <defaults>
</compile_context>

<pallas_src>
import functools

import jax
import jax.numpy as jnp
import numpy as np
from jax.experimental import pallas as pl
from jax.experimental.pallas import tpu as pltpu


def _window_attention_kernel(q_ref, kt_ref, v_ref, bias_ref, w_ref, pb_ref,
                             o_ref, *, scale, bb, h, mxu_dtype):
    g, n, d = q_ref.shape            # G = BB * H
    c = o_ref.shape[-1]

    # Scale Q (8x fewer elements than scaling the logits), cast for the MXU.
    q = (q_ref[...].astype(jnp.float32) * scale).astype(mxu_dtype)     # (G, N, D)
    kt = kt_ref[...].astype(mxu_dtype)                                  # (G, D, N)

    # Attention logits on the MXU with f32 accumulation: (G, N, N).
    attn = jnp.einsum('gnd,gdm->gnm', q, kt,
                      preferred_element_type=jnp.float32)

    # Add combined (relative-position bias + shifted-window mask), pre-tiled in the
    # wrapper to exactly (G, N, N): a single same-shape VPU add.
    attn = attn + bias_ref[...]

    # Numerically stable softmax over keys; the divide becomes an EUP reciprocal
    # (plus one Newton step to keep ~f32 accuracy) and a VPU multiply.
    attn = attn - jnp.max(attn, axis=-1, keepdims=True)
    p = jnp.exp(attn)
    s = jnp.sum(p, axis=-1, keepdims=True)
    r = pl.reciprocal(s, approx=True)
    r = r * (2.0 - s * r)
    p = p * r

    # Attention-weighted values: (G, N, D), f32 accumulation.
    pv = jnp.einsum('gnm,gmd->gnd', p.astype(mxu_dtype),
                    v_ref[...].astype(mxu_dtype),
                    preferred_element_type=jnp.float32)

    # Fused output projection + head sum:
    #   x[b, n, :] = sum_h pv[b, h, n, :] @ W[h] + proj_bias
    # as H unrolled (BB*N, D) @ (D, C) dots with a big M dimension, accumulated
    # with cheap VPU adds (no cross-sublane head reduction / concat).
    pv = pv.reshape(bb, h, n, d)
    x = jnp.dot(pv[:, 0].reshape(bb * n, d).astype(mxu_dtype),
                w_ref[0].astype(mxu_dtype),
                preferred_element_type=jnp.float32)
    for hh in range(1, h):
        x = x + jnp.dot(pv[:, hh].reshape(bb * n, d).astype(mxu_dtype),
                        w_ref[hh].astype(mxu_dtype),
                        preferred_element_type=jnp.float32)
    x = x + pb_ref[...]                                   # (1, C) broadcast
    o_ref[...] = x.reshape(bb, n, c).astype(o_ref.dtype)


def _pick_block_windows(b_, nw, max_windows):
    """Largest multiple of nW that divides b_ and is <= max(nW, max_windows)."""
    cap = max(nw, (max_windows // nw) * nw)
    bb = nw
    cand = nw
    while cand <= min(b_, cap):
        if b_ % cand == 0:
            bb = cand
        cand += nw
    return bb


def window_attention_pallas(qkv, rpi, mask, rpb_table, proj_w, proj_b,
                            num_heads, window_size, *,
                            mxu_dtype=None, max_block_windows=16):
    b_, n, c3 = qkv.shape
    c = c3 // 3
    h = num_heads
    d = c // h
    scale = float(d) ** -0.5

    if mask is None:
        mask = jnp.zeros((1, n, n), jnp.float32)
    nw = mask.shape[0]
    assert b_ % nw == 0, "num_windows must divide num_windows*batch"

    if mxu_dtype is None:
        mxu_dtype = qkv.dtype

    # ---- XLA glue: qkv split / layout, relative-position-bias gather ----------
    qkv_r = qkv.reshape(b_, n, 3, h, d).transpose(2, 0, 3, 1, 4)     # (3, b_, h, n, d)
    q = qkv_r[0].reshape(b_ * h, n, d)                               # (G_total, N, D)
    kt = qkv_r[1].transpose(0, 1, 3, 2).reshape(b_ * h, d, n)        # K^T, N on lanes
    v = qkv_r[2].reshape(b_ * h, n, d)

    bb = _pick_block_windows(b_, nw, max_block_windows)
    grid = (b_ // bb,)

    # bias[g] for g = window*H + head, tiled across the BB windows in one block
    # (block start is a multiple of nW, so windows cycle mod nW exactly).
    rpb = rpb_table[rpi.reshape(-1)].reshape(n, n, h).transpose(2, 0, 1)        # (H, N, N)
    bias = rpb[None].astype(jnp.float32) + mask[:, None].astype(jnp.float32)    # (nW, H, N, N)
    bias = jnp.broadcast_to(bias.reshape(1, nw * h, n, n),
                            (bb // nw, nw * h, n, n)).reshape(bb * h, n, n)

    w_r = proj_w.T.reshape(h, d, c)          # x @ proj_w.T, split per head
    pb = proj_b.reshape(1, c).astype(jnp.float32)

    kernel = functools.partial(_window_attention_kernel, scale=scale,
                               bb=bb, h=h, mxu_dtype=mxu_dtype)

    itemsize = qkv.dtype.itemsize
    cost = pl.CostEstimate(
        flops=int(4 * b_ * h * n * n * d + 2 * b_ * n * c * c),
        transcendentals=int(b_ * h * n * n + b_ * h * n),
        bytes_accessed=int(3 * b_ * h * n * d * itemsize
                           + (bb * h * n * n + h * d * c + c) * 4
                           + b_ * n * c * itemsize))

    out = pl.pallas_call(
        kernel,
        out_shape=jax.ShapeDtypeStruct((b_, n, c), qkv.dtype),
        grid=grid,
        in_specs=[
            pl.BlockSpec((bb * h, n, d), lambda i: (i, 0, 0)),      # Q
            pl.BlockSpec((bb * h, d, n), lambda i: (i, 0, 0)),      # K^T
            pl.BlockSpec((bb * h, n, d), lambda i: (i, 0, 0)),      # V
            pl.BlockSpec((bb * h, n, n), lambda i: (0, 0, 0)),      # rpb+mask (resident)
            pl.BlockSpec((h, d, c), lambda i: (0, 0, 0)),           # proj weight (resident)
            pl.BlockSpec((1, c), lambda i: (0, 0)),                 # proj bias  (resident)
        ],
        out_specs=pl.BlockSpec((bb, n, c), lambda i: (i, 0, 0)),
        compiler_params=pltpu.CompilerParams(
            dimension_semantics=("parallel",),
            vmem_limit_bytes=32 * 1024 * 1024),
        cost_estimate=cost,
    )(q, kt, v, bias, w_r, pb)
    return out


def window_attention_reference(qkv, rpi, mask, rpb_table, proj_w, proj_b,
                               num_heads, window_size):
    """Pure-JAX mirror of the PyTorch forward (for verification)."""
    b_, n, c3 = qkv.shape
    c = c3 // 3
    h = num_heads
    d = c // h
    scale = float(d) ** -0.5
    qkv_r = qkv.reshape(b_, n, 3, h, d).transpose(2, 0, 3, 1, 4)
    q, k, v = qkv_r[0] * scale, qkv_r[1], qkv_r[2]
    attn = jnp.einsum('bhnd,bhmd->bhnm', q, k)
    rpb = rpb_table[rpi.reshape(-1)].reshape(n, n, h).transpose(2, 0, 1)
    attn = attn + rpb[None]
    if mask is not None:
        nw = mask.shape[0]
        attn = attn.reshape(b_ // nw, nw, h, n, n) + mask[None, :, None, :, :]
        attn = attn.reshape(-1, h, n, n)
    attn = jax.nn.softmax(attn, axis=-1)
    x = jnp.einsum('bhnm,bhmd->bhnd', attn, v).transpose(0, 2, 1, 3).reshape(b_, n, c)
    return x @ proj_w.T + proj_b


def make_relative_position_index(window_size):
    wh, ww = window_size
    coords = np.stack(np.meshgrid(np.arange(wh), np.arange(ww), indexing='ij'))
    coords_flatten = coords.reshape(2, -1)
    rel = coords_flatten[:, :, None] - coords_flatten[:, None, :]
    rel = rel.transpose(1, 2, 0).astype(np.int32)
    rel[:, :, 0] += wh - 1
    rel[:, :, 1] += ww - 1
    rel[:, :, 0] *= 2 * ww - 1
    return jnp.asarray(rel.sum(-1))            # (wh*ww, wh*ww)


if __name__ == "__main__":
    # small, module-consistent shapes
    dim = 32
    window_size = (8, 8)
    num_heads = 4
    n = window_size[0] * window_size[1]         # 64 tokens per window
    nw = 4                                      # windows per image
    batch = 2
    b_ = batch * nw                             # num_windows * b

    key = jax.random.PRNGKey(0)
    k1, k2, k3, k4, k5 = jax.random.split(key, 5)

    # deterministic "parameters" (shapes match the module __init__)
    rpb_table = 0.02 * jax.random.normal(
        k1, ((2 * window_size[0] - 1) * (2 * window_size[1] - 1), num_heads),
        dtype=jnp.float32)                      # trunc_normal_(std=0.02) stand-in
    proj_w = 0.1 * jax.random.normal(k2, (dim, dim), dtype=jnp.float32)
    proj_b = 0.1 * jax.random.normal(k3, (dim,), dtype=jnp.float32)

    # inputs
    qkv = jax.random.normal(k4, (b_, n, dim * 3), dtype=jnp.float32)
    rpi = make_relative_position_index(window_size)
    # additive shifted-window mask: 0 where attend, large negative where masked
    mask_bits = jax.random.bernoulli(k5, 0.15, (nw, n, n))
    mask = jnp.where(mask_bits, jnp.float32(-1e9), jnp.float32(0.0))

    ref = window_attention_reference(qkv, rpi, mask, rpb_table, proj_w, proj_b,
                                     num_heads, window_size)
    ref = jax.block_until_ready(ref)

    # default path: matmuls in the input dtype (f32 here)
    out = window_attention_pallas(qkv, rpi, mask, rpb_table, proj_w, proj_b,
                                  num_heads, window_size)
    out = jax.block_until_ready(out)
    np.testing.assert_allclose(np.asarray(out), np.asarray(ref),
                               rtol=5e-4, atol=5e-4)

    # bf16-fed MXU variant (softmax / accumulation stay f32): looser check
    out_bf16 = window_attention_pallas(qkv, rpi, mask, rpb_table, proj_w, proj_b,
                                       num_heads, window_size,
                                       mxu_dtype=jnp.bfloat16)
    out_bf16 = jax.block_until_ready(out_bf16)
    np.testing.assert_allclose(np.asarray(out_bf16), np.asarray(ref),
                               rtol=5e-2, atol=5e-2)

    print("KERNEL_OK")
</pallas_src>

<mosaic_0001>
module attributes {stable_mosaic.version = 11 : i64} {
  func.func @_window_attention_kernel(%arg0: i32, %arg1: memref<32x64x8xf32, #tpu.memory_space<vmem>>, %arg2: memref<32x8x64xf32, #tpu.memory_space<vmem>>, %arg3: memref<32x64x8xf32, #tpu.memory_space<vmem>>, %arg4: memref<32x64x64xf32, #tpu.memory_space<vmem>>, %arg5: memref<4x8x32xf32, #tpu.memory_space<vmem>>, %arg6: memref<1x32xf32, #tpu.memory_space<vmem>>, %arg7: memref<8x64x32xf32, #tpu.memory_space<vmem>>) attributes {dimension_semantics = [#tpu.dimension_semantics<parallel>], iteration_bounds = array<i64: 1>, scalar_prefetch = 0 : i64, scratch_operands = 0 : i64, tpu.core_type = #tpu.core_type<tc>, window_params = [{transform_indices = @transform_0, window_bounds = array<i64: 32, 64, 8>}, {transform_indices = @transform_1, window_bounds = array<i64: 32, 8, 64>}, {transform_indices = @transform_2, window_bounds = array<i64: 32, 64, 8>}, {pipeline_mode = #tpu.pipeline_mode<synchronous>, transform_indices = @transform_3, window_bounds = array<i64: 32, 64, 64>}, {pipeline_mode = #tpu.pipeline_mode<synchronous>, transform_indices = @transform_4, window_bounds = array<i64: 4, 8, 32>}, {pipeline_mode = #tpu.pipeline_mode<synchronous>, transform_indices = @transform_5, window_bounds = array<i64: 1, 32>}, {transform_indices = @transform_6, window_bounds = array<i64: 8, 64, 32>}]} {
    %c0 = arith.constant 0 : index
    %c0_0 = arith.constant 0 : index
    %c0_1 = arith.constant 0 : index
    %0 = vector.load %arg1[%c0, %c0_0, %c0_1] : memref<32x64x8xf32, #tpu.memory_space<vmem>>, vector<32x64x8xf32>
    %cst = arith.constant 0.353553385 : f32
    %1 = vector.broadcast %cst : f32 to vector<32x64x8xf32>
    %2 = arith.mulf %0, %1 : vector<32x64x8xf32>
    %c0_2 = arith.constant 0 : index
    %c0_3 = arith.constant 0 : index
    %c0_4 = arith.constant 0 : index
    %3 = vector.load %arg2[%c0_2, %c0_3, %c0_4] : memref<32x8x64xf32, #tpu.memory_space<vmem>>, vector<32x8x64xf32>
    "tpu.trace_start"() <{level = 10 : i32, message = "gnd,gdm->gnm"}> : () -> ()
    %cst_5 = arith.constant dense<0.000000e+00> : vector<32x64x64xf32>
    %4 = tpu.matmul %2, %3, %cst_5 {dimension_numbers = #tpu.dot_dimension_numbers<[2], [1], [1], [2], [0, 0, 0, 1, 1, 2], [0], [0]>} : vector<32x64x8xf32>, vector<32x8x64xf32>, vector<32x64x64xf32> -> vector<32x64x64xf32>
    "tpu.trace_stop"() : () -> ()
    %c0_6 = arith.constant 0 : index
    %c0_7 = arith.constant 0 : index
    %c0_8 = arith.constant 0 : index
    %5 = vector.load %arg4[%c0_6, %c0_7, %c0_8] : memref<32x64x64xf32, #tpu.memory_space<vmem>>, vector<32x64x64xf32>
    %6 = arith.addf %4, %5 : vector<32x64x64xf32>
    %cst_9 = arith.constant dense<0xFF800000> : vector<32x64xf32>
    %7 = vector.multi_reduction <maximumf>, %6, %cst_9 [2] : vector<32x64x64xf32> to vector<32x64xf32>
    %8 = vector.shape_cast %7 : vector<32x64xf32> to vector<32x64x1xf32>
    %9 = vector.broadcast %8 : vector<32x64x1xf32> to vector<32x64x64xf32>
    %10 = arith.subf %6, %9 : vector<32x64x64xf32>
    %11 = math.exp %10 : vector<32x64x64xf32>
    %cst_10 = arith.constant dense<0.000000e+00> : vector<32x64xf32>
    %12 = vector.multi_reduction <add>, %11, %cst_10 [2] : vector<32x64x64xf32> to vector<32x64xf32>
    %13 = vector.shape_cast %12 : vector<32x64xf32> to vector<32x64x1xf32>
    %14 = tpu.reciprocal %13 {approx = true} : vector<32x64x1xf32> -> vector<32x64x1xf32>
    %15 = arith.mulf %13, %14 : vector<32x64x1xf32>
    %cst_11 = arith.constant 2.000000e+00 : f32
    %16 = vector.broadcast %cst_11 : f32 to vector<32x64x1xf32>
    %17 = arith.subf %16, %15 : vector<32x64x1xf32>
    %18 = arith.mulf %14, %17 : vector<32x64x1xf32>
    %19 = vector.broadcast %18 : vector<32x64x1xf32> to vector<32x64x64xf32>
    %20 = arith.mulf %11, %19 : vector<32x64x64xf32>
    %c0_12 = arith.constant 0 : index
    %c0_13 = arith.constant 0 : index
    %c0_14 = arith.constant 0 : index
    %21 = vector.load %arg3[%c0_12, %c0_13, %c0_14] : memref<32x64x8xf32, #tpu.memory_space<vmem>>, vector<32x64x8xf32>
    "tpu.trace_start"() <{level = 10 : i32, message = "gnm,gmd->gnd"}> : () -> ()
    %cst_15 = arith.constant dense<0.000000e+00> : vector<32x64x8xf32>
    %22 = tpu.matmul %20, %21, %cst_15 {dimension_numbers = #tpu.dot_dimension_numbers<[2], [1], [1], [2], [0, 0, 0, 1, 1, 2], [0], [0]>} : vector<32x64x64xf32>, vector<32x64x8xf32>, vector<32x64x8xf32> -> vector<32x64x8xf32>
    "tpu.trace_stop"() : () -> ()
    %23 = vector.shape_cast %22 : vector<32x64x8xf32> to vector<8x4x64x8xf32>
    %24 = vector.extract_strided_slice %23 {offsets = [0, 0, 0, 0], sizes = [8, 1, 64, 8], strides = [1, 1, 1, 1]} : vector<8x4x64x8xf32> to vector<8x1x64x8xf32>
    %25 = vector.shape_cast %24 : vector<8x1x64x8xf32> to vector<8x64x8xf32>
    %26 = vector.shape_cast %25 : vector<8x64x8xf32> to vector<512x8xf32>
    %c0_16 = arith.constant 0 : index
    %c0_17 = arith.constant 0 : index
    %c0_18 = arith.constant 0 : index
    %27 = vector.load %arg5[%c0_16, %c0_17, %c0_18] : memref<4x8x32xf32, #tpu.memory_space<vmem>>, vector<1x8x32xf32>
    %28 = vector.shape_cast %27 : vector<1x8x32xf32> to vector<8x32xf32>
    %cst_19 = arith.constant dense<0.000000e+00> : vector<512x32xf32>
    %29 = tpu.matmul %26, %28, %cst_19 {dimension_numbers = #tpu.dot_dimension_numbers<[1], [0], [0], [1], [0, 0, 1, 1], [], []>} : vector<512x8xf32>, vector<8x32xf32>, vector<512x32xf32> -> vector<512x32xf32>
    %30 = vector.extract_strided_slice %23 {offsets = [0, 1, 0, 0], sizes = [8, 1, 64, 8], strides = [1, 1, 1, 1]} : vector<8x4x64x8xf32> to vector<8x1x64x8xf32>
    %31 = vector.shape_cast %30 : vector<8x1x64x8xf32> to vector<8x64x8xf32>
    %32 = vector.shape_cast %31 : vector<8x64x8xf32> to vector<512x8xf32>
    %c1 = arith.constant 1 : index
    %c0_20 = arith.constant 0 : index
    %c0_21 = arith.constant 0 : index
    %33 = vector.load %arg5[%c1, %c0_20, %c0_21] : memref<4x8x32xf32, #tpu.memory_space<vmem>>, vector<1x8x32xf32>
    %34 = vector.shape_cast %33 : vector<1x8x32xf32> to vector<8x32xf32>
    %cst_22 = arith.constant dense<0.000000e+00> : vector<512x32xf32>
    %35 = tpu.matmul %32, %34, %cst_22 {dimension_numbers = #tpu.dot_dimension_numbers<[1], [0], [0], [1], [0, 0, 1, 1], [], []>} : vector<512x8xf32>, vector<8x32xf32>, vector<512x32xf32> -> vector<512x32xf32>
    %36 = arith.addf %29, %35 : vector<512x32xf32>
    %37 = vector.extract_strided_slice %23 {offsets = [0, 2, 0, 0], sizes = [8, 1, 64, 8], strides = [1, 1, 1, 1]} : vector<8x4x64x8xf32> to vector<8x1x64x8xf32>
    %38 = vector.shape_cast %37 : vector<8x1x64x8xf32> to vector<8x64x8xf32>
    %39 = vector.shape_cast %38 : vector<8x64x8xf32> to vector<512x8xf32>
    %c2 = arith.constant 2 : index
    %c0_23 = arith.constant 0 : index
    %c0_24 = arith.constant 0 : index
    %40 = vector.load %arg5[%c2, %c0_23, %c0_24] : memref<4x8x32xf32, #tpu.memory_space<vmem>>, vector<1x8x32xf32>
    %41 = vector.shape_cast %40 : vector<1x8x32xf32> to vector<8x32xf32>
    %cst_25 = arith.constant dense<0.000000e+00> : vector<512x32xf32>
    %42 = tpu.matmul %39, %41, %cst_25 {dimension_numbers = #tpu.dot_dimension_numbers<[1], [0], [0], [1], [0, 0, 1, 1], [], []>} : vector<512x8xf32>, vector<8x32xf32>, vector<512x32xf32> -> vector<512x32xf32>
    %43 = arith.addf %36, %42 : vector<512x32xf32>
    %44 = vector.extract_strided_slice %23 {offsets = [0, 3, 0, 0], sizes = [8, 1, 64, 8], strides = [1, 1, 1, 1]} : vector<8x4x64x8xf32> to vector<8x1x64x8xf32>
    %45 = vector.shape_cast %44 : vector<8x1x64x8xf32> to vector<8x64x8xf32>
    %46 = vector.shape_cast %45 : vector<8x64x8xf32> to vector<512x8xf32>
    %c3 = arith.constant 3 : index
    %c0_26 = arith.constant 0 : index
    %c0_27 = arith.constant 0 : index
    %47 = vector.load %arg5[%c3, %c0_26, %c0_27] : memref<4x8x32xf32, #tpu.memory_space<vmem>>, vector<1x8x32xf32>
    %48 = vector.shape_cast %47 : vector<1x8x32xf32> to vector<8x32xf32>
    %cst_28 = arith.constant dense<0.000000e+00> : vector<512x32xf32>
    %49 = tpu.matmul %46, %48, %cst_28 {dimension_numbers = #tpu.dot_dimension_numbers<[1], [0], [0], [1], [0, 0, 1, 1], [], []>} : vector<512x8xf32>, vector<8x32xf32>, vector<512x32xf32> -> vector<512x32xf32>
    %50 = arith.addf %43, %49 : vector<512x32xf32>
    %c0_29 = arith.constant 0 : index
    %c0_30 = arith.constant 0 : index
    %51 = vector.load %arg6[%c0_29, %c0_30] : memref<1x32xf32, #tpu.memory_space<vmem>>, vector<1x32xf32>
    %52 = vector.broadcast %51 : vector<1x32xf32> to vector<512x32xf32>
    %53 = arith.addf %50, %52 : vector<512x32xf32>
    %54 = vector.shape_cast %53 : vector<512x32xf32> to vector<8x64x32xf32>
    %c0_31 = arith.constant 0 : index
    %c0_32 = arith.constant 0 : index
    %c0_33 = arith.constant 0 : index
    %55 = vector.load %arg7[%c0_31, %c0_32, %c0_33] : memref<8x64x32xf32, #tpu.memory_space<vmem>>, vector<8x64x32xf32>
    tpu.vector_store %arg7[%c0_31, %c0_32, %c0_33], %54 {strides = array<i32>} : memref<8x64x32xf32, #tpu.memory_space<vmem>>, vector<8x64x32xf32>,
    return
  }
  func.func @transform_0(%arg0: i32) -> (i32, i32, i32) {
    %c0_i32 = arith.constant 0 : i32
    %c0_i32_0 = arith.constant 0 : i32
    %c0_i32_1 = arith.constant 0 : i32
    return %arg0, %c0_i32, %c0_i32_0 : i32, i32, i32
  }
  func.func @transform_1(%arg0: i32) -> (i32, i32, i32) {
    %c0_i32 = arith.constant 0 : i32
    %c0_i32_0 = arith.constant 0 : i32
    %c0_i32_1 = arith.constant 0 : i32
    return %arg0, %c0_i32, %c0_i32_0 : i32, i32, i32
  }
  func.func @transform_2(%arg0: i32) -> (i32, i32, i32) {
    %c0_i32 = arith.constant 0 : i32
    %c0_i32_0 = arith.constant 0 : i32
    %c0_i32_1 = arith.constant 0 : i32
    return %arg0, %c0_i32, %c0_i32_0 : i32, i32, i32
  }
  func.func @transform_3(%arg0: i32) -> (i32, i32, i32) {
    %c0_i32 = arith.constant 0 : i32
    %c0_i32_0 = arith.constant 0 : i32
    %c0_i32_1 = arith.constant 0 : i32
    %c0_i32_2 = arith.constant 0 : i32
    return %c0_i32, %c0_i32_0, %c0_i32_1 : i32, i32, i32
  }
  func.func @transform_4(%arg0: i32) -> (i32, i32, i32) {
    %c0_i32 = arith.constant 0 : i32
    %c0_i32_0 = arith.constant 0 : i32
    %c0_i32_1 = arith.constant 0 : i32
    %c0_i32_2 = arith.constant 0 : i32
    return %c0_i32, %c0_i32_0, %c0_i32_1 : i32, i32, i32
  }
  func.func @transform_5(%arg0: i32) -> (i32, i32) {
    %c0_i32 = arith.constant 0 : i32
    %c0_i32_0 = arith.constant 0 : i32
    %c0_i32_1 = arith.constant 0 : i32
    return %c0_i32, %c0_i32_0 : i32, i32
  }
  func.func @transform_6(%arg0: i32) -> (i32, i32, i32) {
    %c0_i32 = arith.constant 0 : i32
    %c0_i32_0 = arith.constant 0 : i32
    %c0_i32_1 = arith.constant 0 : i32
    return %arg0, %c0_i32, %c0_i32_0 : i32, i32, i32
  }
}

</mosaic_0001>

<llo_original>
// kernel: tpu_custom_call.1
$region0: #{tpu_custom_call.1}
  #allocation0 [shape = 'u32[]', space=smem, size = 0x4, offset = 0x4, fixed_abs, tag = 'smem constant byte address 0x4 - core index']
  #allocation1 [shape = 'u32[72,128]{1,0:T(1,128)}', space=vmem, size = 0x9000, scoped, tag = 'internal scratch']
  %s0 = inlined_call_operand.vmem [shape: f32[32,64,8], index: 0, kind: input, shape index: {}]
  %s1 = inlined_call_operand.vmem [shape: f32[32,8,64], index: 1, kind: input, shape index: {}]
  %s2 = inlined_call_operand.vmem [shape: f32[32,64,8], index: 2, kind: input, shape index: {}]
  %s3 = inlined_call_operand.vmem [shape: f32[32,64,64], index: 3, kind: input, shape index: {}]
  %s4 = inlined_call_operand.vmem [shape: f32[4,8,32], index: 4, kind: input, shape index: {}]
  %s5 = inlined_call_operand.vmem [shape: f32[1,32], index: 5, kind: input, shape index: {}]
  %s6 = inlined_call_operand.vmem [shape: f32[8,64,32], index: 6, kind: output, shape index: {}]
  %s7 = sld [smem:[#allocation0]]
  $region34: #{tpu_custom_call.1} parent=0
    _
  %s9 = ssub.s32 1, %s7
  %s10 = scalar_select 0, %s9, %s7
  // Predicated region
  $region2: #{tpu_custom_call.1} parent=0 // pred_check
    _
  $region3: #{tpu_custom_call.1} parent=0 // pred_check_branch
    %12 = sbr.rel (0) target = $region5
  $region4: #{tpu_custom_call.1} parent=0 // pred_region
    _
  $region5: #{tpu_custom_call.1} parent=0 // pred_fallthru
    _
  // Predicated region
  $region6: #{tpu_custom_call.1} parent=0 // pred_check
    _
  $region7: #{tpu_custom_call.1} parent=0 // pred_check_branch
    %14 = sbr.rel (0) target = $region9
  $region8: #{tpu_custom_call.1} parent=0 // pred_region
    _
  $region9: #{tpu_custom_call.1} parent=0 // pred_fallthru
    _
  // Predicated region
  $region10: #{tpu_custom_call.1} parent=0 // pred_check
    _
  $region11: #{tpu_custom_call.1} parent=0 // pred_check_branch
    %16 = sbr.rel (0) target = $region13
  $region12: #{tpu_custom_call.1} parent=0 // pred_region
    _
  $region13: #{tpu_custom_call.1} parent=0 // pred_fallthru
    _
  // Predicated region
  $region14: #{tpu_custom_call.1} parent=0 // pred_check
    _
  $region15: #{tpu_custom_call.1} parent=0 // pred_check_branch
    %18 = sbr.rel (0) target = $region17
  $region16: #{tpu_custom_call.1} parent=0 // pred_region
    _
  $region17: #{tpu_custom_call.1} parent=0 // pred_fallthru
    _
  // Predicated region
  $region18: #{tpu_custom_call.1} parent=0 // pred_check
    _
  $region19: #{tpu_custom_call.1} parent=0 // pred_check_branch
    %20 = sbr.rel (0) target = $region21
  $region20: #{tpu_custom_call.1} parent=0 // pred_region
    _
  $region21: #{tpu_custom_call.1} parent=0 // pred_fallthru
    _
  // Predicated region
  $region22: #{tpu_custom_call.1} parent=0 // pred_check
    _
  $region23: #{tpu_custom_call.1} parent=0 // pred_check_branch
    %22 = sbr.rel (0) target = $region25
  $region24: #{tpu_custom_call.1} parent=0 // pred_region
    _
  $region25: #{tpu_custom_call.1} parent=0 // pred_fallthru
    _
  %v23 = vld [vmem:[%s0] sm:$0xff]
  %v24 = vld [vmem:[%s0 + $0x8] sm:$0xff]
  %v25 = vld [vmem:[%s0 + $0x10] sm:$0xff]
  %v26 = vld [vmem:[%s0 + $0x18] sm:$0xff]
  %v27 = vld [vmem:[%s0 + $0x20] sm:$0xff]
  %v28 = vld [vmem:[%s0 + $0x28] sm:$0xff]
  %v29 = vld [vmem:[%s0 + $0x30] sm:$0xff]
  %v30 = vld [vmem:[%s0 + $0x38] sm:$0xff]
  %v31 = vld [vmem:[%s0 + $0x40] sm:$0xff]
  %v32 = vld [vmem:[%s0 + $0x48] sm:$0xff]
  %v33 = vld [vmem:[%s0 + $0x50] sm:$0xff]
  %v34 = vld [vmem:[%s0 + $0x58] sm:$0xff]
  %v35 = vld [vmem:[%s0 + $0x60] sm:$0xff]
  %v36 = vld [vmem:[%s0 + $0x68] sm:$0xff]
  %v37 = vld [vmem:[%s0 + $0x70] sm:$0xff]
  %v38 = vld [vmem:[%s0 + $0x78] sm:$0xff]
  %v39 = vld [vmem:[%s0 + $0x80] sm:$0xff]
  %v40 = vld [vmem:[%s0 + $0x88] sm:$0xff]
  %v41 = vld [vmem:[%s0 + $0x90] sm:$0xff]
  %v42 = vld [vmem:[%s0 + $0x98] sm:$0xff]
  %v43 = vld [vmem:[%s0 + $0xa0] sm:$0xff]
  %v44 = vld [vmem:[%s0 + $0xa8] sm:$0xff]
  %v45 = vld [vmem:[%s0 + $0xb0] sm:$0xff]
  %v46 = vld [vmem:[%s0 + $0xb8] sm:$0xff]
  %v47 = vld [vmem:[%s0 + $0xc0] sm:$0xff]
  %v48 = vld [vmem:[%s0 + $0xc8] sm:$0xff]
  %v49 = vld [vmem:[%s0 + $0xd0] sm:$0xff]
  %v50 = vld [vmem:[%s0 + $0xd8] sm:$0xff]
  %v51 = vld [vmem:[%s0 + $0xe0] sm:$0xff]
  %v52 = vld [vmem:[%s0 + $0xe8] sm:$0xff]
  %v53 = vld [vmem:[%s0 + $0xf0] sm:$0xff]
  %v54 = vld [vmem:[%s0 + $0xf8] sm:$0xff]
  %v55 = vld [vmem:[%s0 + $0x100] sm:$0xff]
  %v56 = vld [vmem:[%s0 + $0x108] sm:$0xff]
  %v57 = vld [vmem:[%s0 + $0x110] sm:$0xff]
  %v58 = vld [vmem:[%s0 + $0x118] sm:$0xff]
  %v59 = vld [vmem:[%s0 + $0x120] sm:$0xff]
  %v60 = vld [vmem:[%s0 + $0x128] sm:$0xff]
  %v61 = vld [vmem:[%s0 + $0x130] sm:$0xff]
  %v62 = vld [vmem:[%s0 + $0x138] sm:$0xff]
  %v63 = vld [vmem:[%s0 + $0x140] sm:$0xff]
  %v64 = vld [vmem:[%s0 + $0x148] sm:$0xff]
  %v65 = vld [vmem:[%s0 + $0x150] sm:$0xff]
  %v66 = vld [vmem:[%s0 + $0x158] sm:$0xff]
  %v67 = vld [vmem:[%s0 + $0x160] sm:$0xff]
  %v68 = vld [vmem:[%s0 + $0x168] sm:$0xff]
  %v69 = vld [vmem:[%s0 + $0x170] sm:$0xff]
  %v70 = vld [vmem:[%s0 + $0x178] sm:$0xff]
  %v71 = vld [vmem:[%s0 + $0x180] sm:$0xff]
  %v72 = vld [vmem:[%s0 + $0x188] sm:$0xff]
  %v73 = vld [vmem:[%s0 + $0x190] sm:$0xff]
  %v74 = vld [vmem:[%s0 + $0x198] sm:$0xff]
  %v75 = vld [vmem:[%s0 + $0x1a0] sm:$0xff]
  %v76 = vld [vmem:[%s0 + $0x1a8] sm:$0xff]
  %v77 = vld [vmem:[%s0 + $0x1b0] sm:$0xff]
  %v78 = vld [vmem:[%s0 + $0x1b8] sm:$0xff]
  %v79 = vld [vmem:[%s0 + $0x1c0] sm:$0xff]
  %v80 = vld [vmem:[%s0 + $0x1c8] sm:$0xff]
  %v81 = vld [vmem:[%s0 + $0x1d0] sm:$0xff]
  %v82 = vld [vmem:[%s0 + $0x1d8] sm:$0xff]
  %v83 = vld [vmem:[%s0 + $0x1e0] sm:$0xff]
  %v84 = vld [vmem:[%s0 + $0x1e8] sm:$0xff]
  %v85 = vld [vmem:[%s0 + $0x1f0] sm:$0xff]
  %v86 = vld [vmem:[%s0 + $0x1f8] sm:$0xff]
  %v87 = vld [vmem:[%s0 + $0x200] sm:$0xff]
  %v88 = vld [vmem:[%s0 + $0x208] sm:$0xff]
  %v89 = vld [vmem:[%s0 + $0x210] sm:$0xff]
  %v90 = vld [vmem:[%s0 + $0x218] sm:$0xff]
  %v91 = vld [vmem:[%s0 + $0x220] sm:$0xff]
  %v92 = vld [vmem:[%s0 + $0x228] sm:$0xff]
  %v93 = vld [vmem:[%s0 + $0x230] sm:$0xff]
  %v94 = vld [vmem:[%s0 + $0x238] sm:$0xff]
  %v95 = vld [vmem:[%s0 + $0x240] sm:$0xff]
  %v96 = vld [vmem:[%s0 + $0x248] sm:$0xff]
  %v97 = vld [vmem:[%s0 + $0x250] sm:$0xff]
  %v98 = vld [vmem:[%s0 + $0x258] sm:$0xff]
  %v99 = vld [vmem:[%s0 + $0x260] sm:$0xff]
  %v100 = vld [vmem:[%s0 + $0x268] sm:$0xff]
  %v101 = vld [vmem:[%s0 + $0x270] sm:$0xff]
  %v102 = vld [vmem:[%s0 + $0x278] sm:$0xff]
  %v103 = vld [vmem:[%s0 + $0x280] sm:$0xff]
  %v104 = vld [vmem:[%s0 + $0x288] sm:$0xff]
  %v105 = vld [vmem:[%s0 + $0x290] sm:$0xff]
  %v106 = vld [vmem:[%s0 + $0x298] sm:$0xff]
  %v107 = vld [vmem:[%s0 + $0x2a0] sm:$0xff]
  %v108 = vld [vmem:[%s0 + $0x2a8] sm:$0xff]
  %v109 = vld [vmem:[%s0 + $0x2b0] sm:$0xff]
  %v110 = vld [vmem:[%s0 + $0x2b8] sm:$0xff]
  %v111 = vld [vmem:[%s0 + $0x2c0] sm:$0xff]
  %v112 = vld [vmem:[%s0 + $0x2c8] sm:$0xff]
  %v113 = vld [vmem:[%s0 + $0x2d0] sm:$0xff]
  %v114 = vld [vmem:[%s0 + $0x2d8] sm:$0xff]
  %v115 = vld [vmem:[%s0 + $0x2e0] sm:$0xff]
  %v116 = vld [vmem:[%s0 + $0x2e8] sm:$0xff]
  %v117 = vld [vmem:[%s0 + $0x2f0] sm:$0xff]
  %v118 = vld [vmem:[%s0 + $0x2f8] sm:$0xff]
  %v119 = vld [vmem:[%s0 + $0x300] sm:$0xff]
  %v120 = vld [vmem:[%s0 + $0x308] sm:$0xff]
  %v121 = vld [vmem:[%s0 + $0x310] sm:$0xff]
  %v122 = vld [vmem:[%s0 + $0x318] sm:$0xff]
  %v123 = vld [vmem:[%s0 + $0x320] sm:$0xff]
  %v124 = vld [vmem:[%s0 + $0x328] sm:$0xff]
  %v125 = vld [vmem:[%s0 + $0x330] sm:$0xff]
  %v126 = vld [vmem:[%s0 + $0x338] sm:$0xff]
  %v127 = vld [vmem:[%s0 + $0x340] sm:$0xff]
  %v128 = vld [vmem:[%s0 + $0x348] sm:$0xff]
  %v129 = vld [vmem:[%s0 + $0x350] sm:$0xff]
  %v130 = vld [vmem:[%s0 + $0x358] sm:$0xff]
  %v131 = vld [vmem:[%s0 + $0x360] sm:$0xff]
  %v132 = vld [vmem:[%s0 + $0x368] sm:$0xff]
  %v133 = vld [vmem:[%s0 + $0x370] sm:$0xff]
  %v134 = vld [vmem:[%s0 + $0x378] sm:$0xff]
  %v135 = vld [vmem:[%s0 + $0x380] sm:$0xff]
  %v136 = vld [vmem:[%s0 + $0x388] sm:$0xff]
  %v137 = vld [vmem:[%s0 + $0x390] sm:$0xff]
  %v138 = vld [vmem:[%s0 + $0x398] sm:$0xff]
  %v139 = vld [vmem:[%s0 + $0x3a0] sm:$0xff]
  %v140 = vld [vmem:[%s0 + $0x3a8] sm:$0xff]
  %v141 = vld [vmem:[%s0 + $0x3b0] sm:$0xff]
  %v142 = vld [vmem:[%s0 + $0x3b8] sm:$0xff]
  %v143 = vld [vmem:[%s0 + $0x3c0] sm:$0xff]
  %v144 = vld [vmem:[%s0 + $0x3c8] sm:$0xff]
  %v145 = vld [vmem:[%s0 + $0x3d0] sm:$0xff]
  %v146 = vld [vmem:[%s0 + $0x3d8] sm:$0xff]
  %v147 = vld [vmem:[%s0 + $0x3e0] sm:$0xff]
  %v148 = vld [vmem:[%s0 + $0x3e8] sm:$0xff]
  %v149 = vld [vmem:[%s0 + $0x3f0] sm:$0xff]
  %v150 = vld [vmem:[%s0 + $0x3f8] sm:$0xff]
  %v151 = vld [vmem:[%s0 + $0x400] sm:$0xff]
  %v152 = vld [vmem:[%s0 + $0x408] sm:$0xff]
  %v153 = vld [vmem:[%s0 + $0x410] sm:$0xff]
  %v154 = vld [vmem:[%s0 + $0x418] sm:$0xff]
  %v155 = vld [vmem:[%s0 + $0x420] sm:$0xff]
  %v156 = vld [vmem:[%s0 + $0x428] sm:$0xff]
  %v157 = vld [vmem:[%s0 + $0x430] sm:$0xff]
  %v158 = vld [vmem:[%s0 + $0x438] sm:$0xff]
  %v159 = vld [vmem:[%s0 + $0x440] sm:$0xff]
  %v160 = vld [vmem:[%s0 + $0x448] sm:$0xff]
  %v161 = vld [vmem:[%s0 + $0x450] sm:$0xff]
  %v162 = vld [vmem:[%s0 + $0x458] sm:$0xff]
  %v163 = vld [vmem:[%s0 + $0x460] sm:$0xff]
  %v164 = vld [vmem:[%s0 + $0x468] sm:$0xff]
  %v165 = vld [vmem:[%s0 + $0x470] sm:$0xff]
  %v166 = vld [vmem:[%s0 + $0x478] sm:$0xff]
  %v167 = vld [vmem:[%s0 + $0x480] sm:$0xff]
  %v168 = vld [vmem:[%s0 + $0x488] sm:$0xff]
  %v169 = vld [vmem:[%s0 + $0x490] sm:$0xff]
  %v170 = vld [vmem:[%s0 + $0x498] sm:$0xff]
  %v171 = vld [vmem:[%s0 + $0x4a0] sm:$0xff]
  %v172 = vld [vmem:[%s0 + $0x4a8] sm:$0xff]
  %v173 = vld [vmem:[%s0 + $0x4b0] sm:$0xff]
  %v174 = vld [vmem:[%s0 + $0x4b8] sm:$0xff]
  %v175 = vld [vmem:[%s0 + $0x4c0] sm:$0xff]
  %v176 = vld [vmem:[%s0 + $0x4c8] sm:$0xff]
  %v177 = vld [vmem:[%s0 + $0x4d0] sm:$0xff]
  %v178 = vld [vmem:[%s0 + $0x4d8] sm:$0xff]
  %v179 = vld [vmem:[%s0 + $0x4e0] sm:$0xff]
  %v180 = vld [vmem:[%s0 + $0x4e8] sm:$0xff]
  %v181 = vld [vmem:[%s0 + $0x4f0] sm:$0xff]
  %v182 = vld [vmem:[%s0 + $0x4f8] sm:$0xff]
  %v183 = vld [vmem:[%s0 + $0x500] sm:$0xff]
  %v184 = vld [vmem:[%s0 + $0x508] sm:$0xff]
  %v185 = vld [vmem:[%s0 + $0x510] sm:$0xff]
  %v186 = vld [vmem:[%s0 + $0x518] sm:$0xff]
  %v187 = vld [vmem:[%s0 + $0x520] sm:$0xff]
  %v188 = vld [vmem:[%s0 + $0x528] sm:$0xff]
  %v189 = vld [vmem:[%s0 + $0x530] sm:$0xff]
  %v190 = vld [vmem:[%s0 + $0x538] sm:$0xff]
  %v191 = vld [vmem:[%s0 + $0x540] sm:$0xff]
  %v192 = vld [vmem:[%s0 + $0x548] sm:$0xff]
  %v193 = vld [vmem:[%s0 + $0x550] sm:$0xff]
  %v194 = vld [vmem:[%s0 + $0x558] sm:$0xff]
  %v195 = vld [vmem:[%s0 + $0x560] sm:$0xff]
  %v196 = vld [vmem:[%s0 + $0x568] sm:$0xff]
  %v197 = vld [vmem:[%s0 + $0x570] sm:$0xff]
  %v198 = vld [vmem:[%s0 + $0x578] sm:$0xff]
  %v199 = vld [vmem:[%s0 + $0x580] sm:$0xff]
  %v200 = vld [vmem:[%s0 + $0x588] sm:$0xff]
  %v201 = vld [vmem:[%s0 + $0x590] sm:$0xff]
  %v202 = vld [vmem:[%s0 + $0x598] sm:$0xff]
  %v203 = vld [vmem:[%s0 + $0x5a0] sm:$0xff]
  %v204 = vld [vmem:[%s0 + $0x5a8] sm:$0xff]
  %v205 = vld [vmem:[%s0 + $0x5b0] sm:$0xff]
  %v206 = vld [vmem:[%s0 + $0x5b8] sm:$0xff]
  %v207 = vld [vmem:[%s0 + $0x5c0] sm:$0xff]
  %v208 = vld [vmem:[%s0 + $0x5c8] sm:$0xff]
  %v209 = vld [vmem:[%s0 + $0x5d0] sm:$0xff]
  %v210 = vld [vmem:[%s0 + $0x5d8] sm:$0xff]
  %v211 = vld [vmem:[%s0 + $0x5e0] sm:$0xff]
  %v212 = vld [vmem:[%s0 + $0x5e8] sm:$0xff]
  %v213 = vld [vmem:[%s0 + $0x5f0] sm:$0xff]
  %v214 = vld [vmem:[%s0 + $0x5f8] sm:$0xff]
  %v215 = vld [vmem:[%s0 + $0x600] sm:$0xff]
  %v216 = vld [vmem:[%s0 + $0x608] sm:$0xff]
  %v217 = vld [vmem:[%s0 + $0x610] sm:$0xff]
  %v218 = vld [vmem:[%s0 + $0x618] sm:$0xff]
  %v219 = vld [vmem:[%s0 + $0x620] sm:$0xff]
  %v220 = vld [vmem:[%s0 + $0x628] sm:$0xff]
  %v221 = vld [vmem:[%s0 + $0x630] sm:$0xff]
  %v222 = vld [vmem:[%s0 + $0x638] sm:$0xff]
  %v223 = vld [vmem:[%s0 + $0x640] sm:$0xff]
  %v224 = vld [vmem:[%s0 + $0x648] sm:$0xff]
  %v225 = vld [vmem:[%s0 + $0x650] sm:$0xff]
  %v226 = vld [vmem:[%s0 + $0x658] sm:$0xff]
  %v227 = vld [vmem:[%s0 + $0x660] sm:$0xff]
  %v228 = vld [vmem:[%s0 + $0x668] sm:$0xff]
  %v229 = vld [vmem:[%s0 + $0x670] sm:$0xff]
  %v230 = vld [vmem:[%s0 + $0x678] sm:$0xff]
  %v231 = vld [vmem:[%s0 + $0x680] sm:$0xff]
  %v232 = vld [vmem:[%s0 + $0x688] sm:$0xff]
  %v233 = vld [vmem:[%s0 + $0x690] sm:$0xff]
  %v234 = vld [vmem:[%s0 + $0x698] sm:$0xff]
  %v235 = vld [vmem:[%s0 + $0x6a0] sm:$0xff]
  %v236 = vld [vmem:[%s0 + $0x6a8] sm:$0xff]
  %v237 = vld [vmem:[%s0 + $0x6b0] sm:$0xff]
  %v238 = vld [vmem:[%s0 + $0x6b8] sm:$0xff]
  %v239 = vld [vmem:[%s0 + $0x6c0] sm:$0xff]
  %v240 = vld [vmem:[%s0 + $0x6c8] sm:$0xff]
  %v241 = vld [vmem:[%s0 + $0x6d0] sm:$0xff]
  %v242 = vld [vmem:[%s0 + $0x6d8] sm:$0xff]
  %v243 = vld [vmem:[%s0 + $0x6e0] sm:$0xff]
  %v244 = vld [vmem:[%s0 + $0x6e8] sm:$0xff]
  %v245 = vld [vmem:[%s0 + $0x6f0] sm:$0xff]
  %v246 = vld [vmem:[%s0 + $0x6f8] sm:$0xff]
  %v247 = vld [vmem:[%s0 + $0x700] sm:$0xff]
  %v248 = vld [vmem:[%s0 + $0x708] sm:$0xff]
  %v249 = vld [vmem:[%s0 + $0x710] sm:$0xff]
  %v250 = vld [vmem:[%s0 + $0x718] sm:$0xff]
  %v251 = vld [vmem:[%s0 + $0x720] sm:$0xff]
  %v252 = vld [vmem:[%s0 + $0x728] sm:$0xff]
  %v253 = vld [vmem:[%s0 + $0x730] sm:$0xff]
  %v254 = vld [vmem:[%s0 + $0x738] sm:$0xff]
  %v255 = vld [vmem:[%s0 + $0x740] sm:$0xff]
  %v256 = vld [vmem:[%s0 + $0x748] sm:$0xff]
  %v257 = vld [vmem:[%s0 + $0x750] sm:$0xff]
  %v258 = vld [vmem:[%s0 + $0x758] sm:$0xff]
  %v259 = vld [vmem:[%s0 + $0x760] sm:$0xff]
  %v260 = vld [vmem:[%s0 + $0x768] sm:$0xff]
  %v261 = vld [vmem:[%s0 + $0x770] sm:$0xff]
  %v262 = vld [vmem:[%s0 + $0x778] sm:$0xff]
  %v263 = vld [vmem:[%s0 + $0x780] sm:$0xff]
  %v264 = vld [vmem:[%s0 + $0x788] sm:$0xff]
  %v265 = vld [vmem:[%s0 + $0x790] sm:$0xff]
  %v266 = vld [vmem:[%s0 + $0x798] sm:$0xff]
  %v267 = vld [vmem:[%s0 + $0x7a0] sm:$0xff]
  %v268 = vld [vmem:[%s0 + $0x7a8] sm:$0xff]
  %v269 = vld [vmem:[%s0 + $0x7b0] sm:$0xff]
  %v270 = vld [vmem:[%s0 + $0x7b8] sm:$0xff]
  %v271 = vld [vmem:[%s0 + $0x7c0] sm:$0xff]
  %v272 = vld [vmem:[%s0 + $0x7c8] sm:$0xff]
  %v273 = vld [vmem:[%s0 + $0x7d0] sm:$0xff]
  %v274 = vld [vmem:[%s0 + $0x7d8] sm:$0xff]
  %v275 = vld [vmem:[%s0 + $0x7e0] sm:$0xff]
  %v276 = vld [vmem:[%s0 + $0x7e8] sm:$0xff]
  %v277 = vld [vmem:[%s0 + $0x7f0] sm:$0xff]
  %v278 = vld [vmem:[%s0 + $0x7f8] sm:$0xff]
  %v279 = vmul.f32 %v23, 0.35355338
  %v280 = vmul.f32 %v24, 0.35355338
  %v281 = vmul.f32 %v25, 0.35355338
  %v282 = vmul.f32 %v26, 0.35355338
  %v283 = vmul.f32 %v27, 0.35355338
  %v284 = vmul.f32 %v28, 0.35355338
  %v285 = vmul.f32 %v29, 0.35355338
  %v286 = vmul.f32 %v30, 0.35355338
  %v287 = vmul.f32 %v31, 0.35355338
  %v288 = vmul.f32 %v32, 0.35355338
  %v289 = vmul.f32 %v33, 0.35355338
  %v290 = vmul.f32 %v34, 0.35355338
  %v291 = vmul.f32 %v35, 0.35355338
  %v292 = vmul.f32 %v36, 0.35355338
  %v293 = vmul.f32 %v37, 0.35355338
  %v294 = vmul.f32 %v38, 0.35355338
  %v295 = vmul.f32 %v39, 0.35355338
  %v296 = vmul.f32 %v40, 0.35355338
  %v297 = vmul.f32 %v41, 0.35355338
  %v298 = vmul.f32 %v42, 0.35355338
  %v299 = vmul.f32 %v43, 0.35355338
  %v300 = vmul.f32 %v44, 0.35355338
  %v301 = vmul.f32 %v45, 0.35355338
  %v302 = vmul.f32 %v46, 0.35355338
  %v303 = vmul.f32 %v47, 0.35355338
  %v304 = vmul.f32 %v48, 0.35355338
  %v305 = vmul.f32 %v49, 0.35355338
  %v306 = vmul.f32 %v50, 0.35355338
  %v307 = vmul.f32 %v51, 0.35355338
  %v308 = vmul.f32 %v52, 0.35355338
  %v309 = vmul.f32 %v53, 0.35355338
  %v310 = vmul.f32 %v54, 0.35355338
  %v311 = vmul.f32 %v55, 0.35355338
  %v312 = vmul.f32 %v56, 0.35355338
  %v313 = vmul.f32 %v57, 0.35355338
  %v314 = vmul.f32 %v58, 0.35355338
  %v315 = vmul.f32 %v59, 0.35355338
  %v316 = vmul.f32 %v60, 0.35355338
  %v317 = vmul.f32 %v61, 0.35355338
  %v318 = vmul.f32 %v62, 0.35355338
  %v319 = vmul.f32 %v63, 0.35355338
  %v320 = vmul.f32 %v64, 0.35355338
  %v321 = vmul.f32 %v65, 0.35355338
  %v322 = vmul.f32 %v66, 0.35355338
  %v323 = vmul.f32 %v67, 0.35355338
  %v324 = vmul.f32 %v68, 0.35355338
  %v325 = vmul.f32 %v69, 0.35355338
  %v326 = vmul.f32 %v70, 0.35355338
  %v327 = vmul.f32 %v71, 0.35355338
  %v328 = vmul.f32 %v72, 0.35355338
  %v329 = vmul.f32 %v73, 0.35355338
  %v330 = vmul.f32 %v74, 0.35355338
  %v331 = vmul.f32 %v75, 0.35355338
  %v332 = vmul.f32 %v76, 0.35355338
  %v333 = vmul.f32 %v77, 0.35355338
  %v334 = vmul.f32 %v78, 0.35355338
  %v335 = vmul.f32 %v79, 0.35355338
  %v336 = vmul.f32 %v80, 0.35355338
  %v337 = vmul.f32 %v81, 0.35355338
  %v338 = vmul.f32 %v82, 0.35355338
  %v339 = vmul.f32 %v83, 0.35355338
  %v340 = vmul.f32 %v84, 0.35355338
  %v341 = vmul.f32 %v85, 0.35355338
  %v342 = vmul.f32 %v86, 0.35355338
  %v343 = vmul.f32 %v87, 0.35355338
  %v344 = vmul.f32 %v88, 0.35355338
  %v345 = vmul.f32 %v89, 0.35355338
  %v346 = vmul.f32 %v90, 0.35355338
  %v347 = vmul.f32 %v91, 0.35355338
  %v348 = vmul.f32 %v92, 0.35355338
  %v349 = vmul.f32 %v93, 0.35355338
  %v350 = vmul.f32 %v94, 0.35355338
  %v351 = vmul.f32 %v95, 0.35355338
  %v352 = vmul.f32 %v96, 0.35355338
  %v353 = vmul.f32 %v97, 0.35355338
  %v354 = vmul.f32 %v98, 0.35355338
  %v355 = vmul.f32 %v99, 0.35355338
  %v356 = vmul.f32 %v100, 0.35355338
  %v357 = vmul.f32 %v101, 0.35355338
  %v358 = vmul.f32 %v102, 0.35355338
  %v359 = vmul.f32 %v103, 0.35355338
  %v360 = vmul.f32 %v104, 0.35355338
  %v361 = vmul.f32 %v105, 0.35355338
  %v362 = vmul.f32 %v106, 0.35355338
  %v363 = vmul.f32 %v107, 0.35355338
  %v364 = vmul.f32 %v108, 0.35355338
  %v365 = vmul.f32 %v109, 0.35355338
  %v366 = vmul.f32 %v110, 0.35355338
  %v367 = vmul.f32 %v111, 0.35355338
  %v368 = vmul.f32 %v112, 0.35355338
  %v369 = vmul.f32 %v113, 0.35355338
  %v370 = vmul.f32 %v114, 0.35355338
  %v371 = vmul.f32 %v115, 0.35355338
  %v372 = vmul.f32 %v116, 0.35355338
  %v373 = vmul.f32 %v117, 0.35355338
  %v374 = vmul.f32 %v118, 0.35355338
  %v375 = vmul.f32 %v119, 0.35355338
  %v376 = vmul.f32 %v120, 0.35355338
  %v377 = vmul.f32 %v121, 0.35355338
  %v378 = vmul.f32 %v122, 0.35355338
  %v379 = vmul.f32 %v123, 0.35355338
  %v380 = vmul.f32 %v124, 0.35355338
  %v381 = vmul.f32 %v125, 0.35355338
  %v382 = vmul.f32 %v126, 0.35355338
  %v383 = vmul.f32 %v127, 0.35355338
  %v384 = vmul.f32 %v128, 0.35355338
  %v385 = vmul.f32 %v129, 0.35355338
  %v386 = vmul.f32 %v130, 0.35355338
  %v387 = vmul.f32 %v131, 0.35355338
  %v388 = vmul.f32 %v132, 0.35355338
  %v389 = vmul.f32 %v133, 0.35355338
  %v390 = vmul.f32 %v134, 0.35355338
  %v391 = vmul.f32 %v135, 0.35355338
  %v392 = vmul.f32 %v136, 0.35355338
  %v393 = vmul.f32 %v137, 0.35355338
  %v394 = vmul.f32 %v138, 0.35355338
  %v395 = vmul.f32 %v139, 0.35355338
  %v396 = vmul.f32 %v140, 0.35355338
  %v397 = vmul.f32 %v141, 0.35355338
  %v398 = vmul.f32 %v142, 0.35355338
  %v399 = vmul.f32 %v143, 0.35355338
  %v400 = vmul.f32 %v144, 0.35355338
  %v401 = vmul.f32 %v145, 0.35355338
  %v402 = vmul.f32 %v146, 0.35355338
  %v403 = vmul.f32 %v147, 0.35355338
  %v404 = vmul.f32 %v148, 0.35355338
  %v405 = vmul.f32 %v149, 0.35355338
  %v406 = vmul.f32 %v150, 0.35355338
  %v407 = vmul.f32 %v151, 0.35355338
  %v408 = vmul.f32 %v152, 0.35355338
  %v409 = vmul.f32 %v153, 0.35355338
  %v410 = vmul.f32 %v154, 0.35355338
  %v411 = vmul.f32 %v155, 0.35355338
  %v412 = vmul.f32 %v156, 0.35355338
  %v413 = vmul.f32 %v157, 0.35355338
  %v414 = vmul.f32 %v158, 0.35355338
  %v415 = vmul.f32 %v159, 0.35355338
  %v416 = vmul.f32 %v160, 0.35355338
  %v417 = vmul.f32 %v161, 0.35355338
  %v418 = vmul.f32 %v162, 0.35355338
  %v419 = vmul.f32 %v163, 0.35355338
  %v420 = vmul.f32 %v164, 0.35355338
  %v421 = vmul.f32 %v165, 0.35355338
  %v422 = vmul.f32 %v166, 0.35355338
  %v423 = vmul.f32 %v167, 0.35355338
  %v424 = vmul.f32 %v168, 0.35355338
  %v425 = vmul.f32 %v169, 0.35355338
  %v426 = vmul.f32 %v170, 0.35355338
  %v427 = vmul.f32 %v171, 0.35355338
  %v428 = vmul.f32 %v172, 0.35355338
  %v429 = vmul.f32 %v173, 0.35355338
  %v430 = vmul.f32 %v174, 0.35355338
  %v431 = vmul.f32 %v175, 0.35355338
  %v432 = vmul.f32 %v176, 0.35355338
  %v433 = vmul.f32 %v177, 0.35355338
  %v434 = vmul.f32 %v178, 0.35355338
  %v435 = vmul.f32 %v179, 0.35355338
  %v436 = vmul.f32 %v180, 0.35355338
  %v437 = vmul.f32 %v181, 0.35355338
  %v438 = vmul.f32 %v182, 0.35355338
  %v439 = vmul.f32 %v183, 0.35355338
  %v440 = vmul.f32 %v184, 0.35355338
  %v441 = vmul.f32 %v185, 0.35355338
  %v442 = vmul.f32 %v186, 0.35355338
  %v443 = vmul.f32 %v187, 0.35355338
  %v444 = vmul.f32 %v188, 0.35355338
  %v445 = vmul.f32 %v189, 0.35355338
  %v446 = vmul.f32 %v190, 0.35355338
  %v447 = vmul.f32 %v191, 0.35355338
  %v448 = vmul.f32 %v192, 0.35355338
  %v449 = vmul.f32 %v193, 0.35355338
  %v450 = vmul.f32 %v194, 0.35355338
  %v451 = vmul.f32 %v195, 0.35355338
  %v452 = vmul.f32 %v196, 0.35355338
  %v453 = vmul.f32 %v197, 0.35355338
  %v454 = vmul.f32 %v198, 0.35355338
  %v455 = vmul.f32 %v199, 0.35355338
  %v456 = vmul.f32 %v200, 0.35355338
  %v457 = vmul.f32 %v201, 0.35355338
  %v458 = vmul.f32 %v202, 0.35355338
  %v459 = vmul.f32 %v203, 0.35355338
  %v460 = vmul.f32 %v204, 0.35355338
  %v461 = vmul.f32 %v205, 0.35355338
  %v462 = vmul.f32 %v206, 0.35355338
  %v463 = vmul.f32 %v207, 0.35355338
  %v464 = vmul.f32 %v208, 0.35355338
  %v465 = vmul.f32 %v209, 0.35355338
  %v466 = vmul.f32 %v210, 0.35355338
  %v467 = vmul.f32 %v211, 0.35355338
  %v468 = vmul.f32 %v212, 0.35355338
  %v469 = vmul.f32 %v213, 0.35355338
  %v470 = vmul.f32 %v214, 0.35355338
  %v471 = vmul.f32 %v215, 0.35355338
  %v472 = vmul.f32 %v216, 0.35355338
  %v473 = vmul.f32 %v217, 0.35355338
  %v474 = vmul.f32 %v218, 0.35355338
  %v475 = vmul.f32 %v219, 0.35355338
  %v476 = vmul.f32 %v220, 0.35355338
  %v477 = vmul.f32 %v221, 0.35355338
  %v478 = vmul.f32 %v222, 0.35355338
  %v479 = vmul.f32 %v223, 0.35355338
  %v480 = vmul.f32 %v224, 0.35355338
  %v481 = vmul.f32 %v225, 0.35355338
  %v482 = vmul.f32 %v226, 0.35355338
  %v483 = vmul.f32 %v227, 0.35355338
  %v484 = vmul.f32 %v228, 0.35355338
  %v485 = vmul.f32 %v229, 0.35355338
  %v486 = vmul.f32 %v230, 0.35355338
  %v487 = vmul.f32 %v231, 0.35355338
  %v488 = vmul.f32 %v232, 0.35355338
  %v489 = vmul.f32 %v233, 0.35355338
  %v490 = vmul.f32 %v234, 0.35355338
  %v491 = vmul.f32 %v235, 0.35355338
  %v492 = vmul.f32 %v236, 0.35355338
  %v493 = vmul.f32 %v237, 0.35355338
  %v494 = vmul.f32 %v238, 0.35355338
  %v495 = vmul.f32 %v239, 0.35355338
  %v496 = vmul.f32 %v240, 0.35355338
  %v497 = vmul.f32 %v241, 0.35355338
  %v498 = vmul.f32 %v242, 0.35355338
  %v499 = vmul.f32 %v243, 0.35355338
  %v500 = vmul.f32 %v244, 0.35355338
  %v501 = vmul.f32 %v245, 0.35355338
  %v502 = vmul.f32 %v246, 0.35355338
  %v503 = vmul.f32 %v247, 0.35355338
  %v504 = vmul.f32 %v248, 0.35355338
  %v505 = vmul.f32 %v249, 0.35355338
  %v506 = vmul.f32 %v250, 0.35355338
  %v507 = vmul.f32 %v251, 0.35355338
  %v508 = vmul.f32 %v252, 0.35355338
  %v509 = vmul.f32 %v253, 0.35355338
  %v510 = vmul.f32 %v254, 0.35355338
  %v511 = vmul.f32 %v255, 0.35355338
  %v512 = vmul.f32 %v256, 0.35355338
  %v513 = vmul.f32 %v257, 0.35355338
  %v514 = vmul.f32 %v258, 0.35355338
  %v515 = vmul.f32 %v259, 0.35355338
  %v516 = vmul.f32 %v260, 0.35355338
  %v517 = vmul.f32 %v261, 0.35355338
  %v518 = vmul.f32 %v262, 0.35355338
  %v519 = vmul.f32 %v263, 0.35355338
  %v520 = vmul.f32 %v264, 0.35355338
  %v521 = vmul.f32 %v265, 0.35355338
  %v522 = vmul.f32 %v266, 0.35355338
  %v523 = vmul.f32 %v267, 0.35355338
  %v524 = vmul.f32 %v268, 0.35355338
  %v525 = vmul.f32 %v269, 0.35355338
  %v526 = vmul.f32 %v270, 0.35355338
  %v527 = vmul.f32 %v271, 0.35355338
  %v528 = vmul.f32 %v272, 0.35355338
  %v529 = vmul.f32 %v273, 0.35355338
  %v530 = vmul.f32 %v274, 0.35355338
  %v531 = vmul.f32 %v275, 0.35355338
  %v532 = vmul.f32 %v276, 0.35355338
  %v533 = vmul.f32 %v277, 0.35355338
  %v534 = vmul.f32 %v278, 0.35355338
  %v535 = vld [vmem:[%s1] sm:$0xff]
  %v536 = vld [vmem:[%s1 + $0x8] sm:$0xff]
  %v537 = vld [vmem:[%s1 + $0x10] sm:$0xff]
  %v538 = vld [vmem:[%s1 + $0x18] sm:$0xff]
  %v539 = vld [vmem:[%s1 + $0x20] sm:$0xff]
  %v540 = vld [vmem:[%s1 + $0x28] sm:$0xff]
  %v541 = vld [vmem:[%s1 + $0x30] sm:$0xff]
  %v542 = vld [vmem:[%s1 + $0x38] sm:$0xff]
  %v543 = vld [vmem:[%s1 + $0x40] sm:$0xff]
  %v544 = vld [vmem:[%s1 + $0x48] sm:$0xff]
  %v545 = vld [vmem:[%s1 + $0x50] sm:$0xff]
  %v546 = vld [vmem:[%s1 + $0x58] sm:$0xff]
  %v547 = vld [vmem:[%s1 + $0x60] sm:$0xff]
  %v548 = vld [vmem:[%s1 + $0x68] sm:$0xff]
  %v549 = vld [vmem:[%s1 + $0x70] sm:$0xff]
  %v550 = vld [vmem:[%s1 + $0x78] sm:$0xff]
  %v551 = vld [vmem:[%s1 + $0x80] sm:$0xff]
  %v552 = vld [vmem:[%s1 + $0x88] sm:$0xff]
  %v553 = vld [vmem:[%s1 + $0x90] sm:$0xff]
  %v554 = vld [vmem:[%s1 + $0x98] sm:$0xff]
  %v555 = vld [vmem:[%s1 + $0xa0] sm:$0xff]
  %v556 = vld [vmem:[%s1 + $0xa8] sm:$0xff]
  %v557 = vld [vmem:[%s1 + $0xb0] sm:$0xff]
  %v558 = vld [vmem:[%s1 + $0xb8] sm:$0xff]
  %v559 = vld [vmem:[%s1 + $0xc0] sm:$0xff]
  %v560 = vld [vmem:[%s1 + $0xc8] sm:$0xff]
  %v561 = vld [vmem:[%s1 + $0xd0] sm:$0xff]
  %v562 = vld [vmem:[%s1 + $0xd8] sm:$0xff]
  %v563 = vld [vmem:[%s1 + $0xe0] sm:$0xff]
  %v564 = vld [vmem:[%s1 + $0xe8] sm:$0xff]
  %v565 = vld [vmem:[%s1 + $0xf0] sm:$0xff]
  %v566 = vld [vmem:[%s1 + $0xf8] sm:$0xff]
  %v567 = vld [vmem:[%s3] sm:$0xff]
  %v568 = vld [vmem:[%s3 + $0x8] sm:$0xff]
  %v569 = vld [vmem:[%s3 + $0x10] sm:$0xff]
  %v570 = vld [vmem:[%s3 + $0x18] sm:$0xff]
  %v571 = vld [vmem:[%s3 + $0x20] sm:$0xff]
  %v572 = vld [vmem:[%s3 + $0x28] sm:$0xff]
  %v573 = vld [vmem:[%s3 + $0x30] sm:$0xff]
  %v574 = vld [vmem:[%s3 + $0x38] sm:$0xff]
  %v575 = vld [vmem:[%s3 + $0x40] sm:$0xff]
  %v576 = vld [vmem:[%s3 + $0x48] sm:$0xff]
  %v577 = vld [vmem:[%s3 + $0x50] sm:$0xff]
  %v578 = vld [vmem:[%s3 + $0x58] sm:$0xff]
  %v579 = vld [vmem:[%s3 + $0x60] sm:$0xff]
  %v580 = vld [vmem:[%s3 + $0x68] sm:$0xff]
  %v581 = vld [vmem:[%s3 + $0x70] sm:$0xff]
  %v582 = vld [vmem:[%s3 + $0x78] sm:$0xff]
  %v583 = vld [vmem:[%s3 + $0x80] sm:$0xff]
  %v584 = vld [vmem:[%s3 + $0x88] sm:$0xff]
  %v585 = vld [vmem:[%s3 + $0x90] sm:$0xff]
  %v586 = vld [vmem:[%s3 + $0x98] sm:$0xff]
  %v587 = vld [vmem:[%s3 + $0xa0] sm:$0xff]
  %v588 = vld [vmem:[%s3 + $0xa8] sm:$0xff]
  %v589 = vld [vmem:[%s3 + $0xb0] sm:$0xff]
  %v590 = vld [vmem:[%s3 + $0xb8] sm:$0xff]
  %v591 = vld [vmem:[%s3 + $0xc0] sm:$0xff]
  %v592 = vld [vmem:[%s3 + $0xc8] sm:$0xff]
  %v593 = vld [vmem:[%s3 + $0xd0] sm:$0xff]
  %v594 = vld [vmem:[%s3 + $0xd8] sm:$0xff]
  %v595 = vld [vmem:[%s3 + $0xe0] sm:$0xff]
  %v596 = vld [vmem:[%s3 + $0xe8] sm:$0xff]
  %v597 = vld [vmem:[%s3 + $0xf0] sm:$0xff]
  %v598 = vld [vmem:[%s3 + $0xf8] sm:$0xff]
  %v599 = vld [vmem:[%s3 + $0x100] sm:$0xff]
  %v600 = vld [vmem:[%s3 + $0x108] sm:$0xff]
  %v601 = vld [vmem:[%s3 + $0x110] sm:$0xff]
  %v602 = vld [vmem:[%s3 + $0x118] sm:$0xff]
  %v603 = vld [vmem:[%s3 + $0x120] sm:$0xff]
  %v604 = vld [vmem:[%s3 + $0x128] sm:$0xff]
  %v605 = vld [vmem:[%s3 + $0x130] sm:$0xff]
  %v606 = vld [vmem:[%s3 + $0x138] sm:$0xff]
  %v607 = vld [vmem:[%s3 + $0x140] sm:$0xff]
  %v608 = vld [vmem:[%s3 + $0x148] sm:$0xff]
  %v609 = vld [vmem:[%s3 + $0x150] sm:$0xff]
  %v610 = vld [vmem:[%s3 + $0x158] sm:$0xff]
  %v611 = vld [vmem:[%s3 + $0x160] sm:$0xff]
  %v612 = vld [vmem:[%s3 + $0x168] sm:$0xff]
  %v613 = vld [vmem:[%s3 + $0x170] sm:$0xff]
  %v614 = vld [vmem:[%s3 + $0x178] sm:$0xff]
  %v615 = vld [vmem:[%s3 + $0x180] sm:$0xff]
  %v616 = vld [vmem:[%s3 + $0x188] sm:$0xff]
  %v617 = vld [vmem:[%s3 + $0x190] sm:$0xff]
  %v618 = vld [vmem:[%s3 + $0x198] sm:$0xff]
  %v619 = vld [vmem:[%s3 + $0x1a0] sm:$0xff]
  %v620 = vld [vmem:[%s3 + $0x1a8] sm:$0xff]
  %v621 = vld [vmem:[%s3 + $0x1b0] sm:$0xff]
  %v622 = vld [vmem:[%s3 + $0x1b8] sm:$0xff]
  %v623 = vld [vmem:[%s3 + $0x1c0] sm:$0xff]
  %v624 = vld [vmem:[%s3 + $0x1c8] sm:$0xff]
  %v625 = vld [vmem:[%s3 + $0x1d0] sm:$0xff]
  %v626 = vld [vmem:[%s3 + $0x1d8] sm:$0xff]
  %v627 = vld [vmem:[%s3 + $0x1e0] sm:$0xff]
  %v628 = vld [vmem:[%s3 + $0x1e8] sm:$0xff]
  %v629 = vld [vmem:[%s3 + $0x1f0] sm:$0xff]
  %v630 = vld [vmem:[%s3 + $0x1f8] sm:$0xff]
  %v631 = vld [vmem:[%s3 + $0x200] sm:$0xff]
  %v632 = vld [vmem:[%s3 + $0x208] sm:$0xff]
  %v633 = vld [vmem:[%s3 + $0x210] sm:$0xff]
  %v634 = vld [vmem:[%s3 + $0x218] sm:$0xff]
  %v635 = vld [vmem:[%s3 + $0x220] sm:$0xff]
  %v636 = vld [vmem:[%s3 + $0x228] sm:$0xff]
  %v637 = vld [vmem:[%s3 + $0x230] sm:$0xff]
  %v638 = vld [vmem:[%s3 + $0x238] sm:$0xff]
  %v639 = vld [vmem:[%s3 + $0x240] sm:$0xff]
  %v640 = vld [vmem:[%s3 + $0x248] sm:$0xff]
  %v641 = vld [vmem:[%s3 + $0x250] sm:$0xff]
  %v642 = vld [vmem:[%s3 + $0x258] sm:$0xff]
  %v643 = vld [vmem:[%s3 + $0x260] sm:$0xff]
  %v644 = vld [vmem:[%s3 + $0x268] sm:$0xff]
  %v645 = vld [vmem:[%s3 + $0x270] sm:$0xff]
  %v646 = vld [vmem:[%s3 + $0x278] sm:$0xff]
  %v647 = vld [vmem:[%s3 + $0x280] sm:$0xff]
  %v648 = vld [vmem:[%s3 + $0x288] sm:$0xff]
  %v649 = vld [vmem:[%s3 + $0x290] sm:$0xff]
  %v650 = vld [vmem:[%s3 + $0x298] sm:$0xff]
  %v651 = vld [vmem:[%s3 + $0x2a0] sm:$0xff]
  %v652 = vld [vmem:[%s3 + $0x2a8] sm:$0xff]
  %v653 = vld [vmem:[%s3 + $0x2b0] sm:$0xff]
  %v654 = vld [vmem:[%s3 + $0x2b8] sm:$0xff]
  %v655 = vld [vmem:[%s3 + $0x2c0] sm:$0xff]
  %v656 = vld [vmem:[%s3 + $0x2c8] sm:$0xff]
  %v657 = vld [vmem:[%s3 + $0x2d0] sm:$0xff]
  %v658 = vld [vmem:[%s3 + $0x2d8] sm:$0xff]
  %v659 = vld [vmem:[%s3 + $0x2e0] sm:$0xff]
  %v660 = vld [vmem:[%s3 + $0x2e8] sm:$0xff]
  %v661 = vld [vmem:[%s3 + $0x2f0] sm:$0xff]
  %v662 = vld [vmem:[%s3 + $0x2f8] sm:$0xff]
  %v663 = vld [vmem:[%s3 + $0x300] sm:$0xff]
  %v664 = vld [vmem:[%s3 + $0x308] sm:$0xff]
  %v665 = vld [vmem:[%s3 + $0x310] sm:$0xff]
  %v666 = vld [vmem:[%s3 + $0x318] sm:$0xff]
  %v667 = vld [vmem:[%s3 + $0x320] sm:$0xff]
  %v668 = vld [vmem:[%s3 + $0x328] sm:$0xff]
  %v669 = vld [vmem:[%s3 + $0x330] sm:$0xff]
  %v670 = vld [vmem:[%s3 + $0x338] sm:$0xff]
  %v671 = vld [vmem:[%s3 + $0x340] sm:$0xff]
  %v672 = vld [vmem:[%s3 + $0x348] sm:$0xff]
  %v673 = vld [vmem:[%s3 + $0x350] sm:$0xff]
  %v674 = vld [vmem:[%s3 + $0x358] sm:$0xff]
  %v675 = vld [vmem:[%s3 + $0x360] sm:$0xff]
  %v676 = vld [vmem:[%s3 + $0x368] sm:$0xff]
  %v677 = vld [vmem:[%s3 + $0x370] sm:$0xff]
  %v678 = vld [vmem:[%s3 + $0x378] sm:$0xff]
  %v679 = vld [vmem:[%s3 + $0x380] sm:$0xff]
  %v680 = vld [vmem:[%s3 + $0x388] sm:$0xff]
  %v681 = vld [vmem:[%s3 + $0x390] sm:$0xff]
  %v682 = vld [vmem:[%s3 + $0x398] sm:$0xff]
  %v683 = vld [vmem:[%s3 + $0x3a0] sm:$0xff]
  %v684 = vld [vmem:[%s3 + $0x3a8] sm:$0xff]
  %v685 = vld [vmem:[%s3 + $0x3b0] sm:$0xff]
  %v686 = vld [vmem:[%s3 + $0x3b8] sm:$0xff]
  %v687 = vld [vmem:[%s3 + $0x3c0] sm:$0xff]
  %v688 = vld [vmem:[%s3 + $0x3c8] sm:$0xff]
  %v689 = vld [vmem:[%s3 + $0x3d0] sm:$0xff]
  %v690 = vld [vmem:[%s3 + $0x3d8] sm:$0xff]
  %v691 = vld [vmem:[%s3 + $0x3e0] sm:$0xff]
  %v692 = vld [vmem:[%s3 + $0x3e8] sm:$0xff]
  %v693 = vld [vmem:[%s3 + $0x3f0] sm:$0xff]
  %v694 = vld [vmem:[%s3 + $0x3f8] sm:$0xff]
  %v695 = vld [vmem:[%s3 + $0x400] sm:$0xff]
  %v696 = vld [vmem:[%s3 + $0x408] sm:$0xff]
  %v697 = vld [vmem:[%s3 + $0x410] sm:$0xff]
  %v698 = vld [vmem:[%s3 + $0x418] sm:$0xff]
  %v699 = vld [vmem:[%s3 + $0x420] sm:$0xff]
  %v700 = vld [vmem:[%s3 + $0x428] sm:$0xff]
  %v701 = vld [vmem:[%s3 + $0x430] sm:$0xff]
  %v702 = vld [vmem:[%s3 + $0x438] sm:$0xff]
  %v703 = vld [vmem:[%s3 + $0x440] sm:$0xff]
  %v704 = vld [vmem:[%s3 + $0x448] sm:$0xff]
  %v705 = vld [vmem:[%s3 + $0x450] sm:$0xff]
  %v706 = vld [vmem:[%s3 + $0x458] sm:$0xff]
  %v707 = vld [vmem:[%s3 + $0x460] sm:$0xff]
  %v708 = vld [vmem:[%s3 + $0x468] sm:$0xff]
  %v709 = vld [vmem:[%s3 + $0x470] sm:$0xff]
  %v710 = vld [vmem:[%s3 + $0x478] sm:$0xff]
  %v711 = vld [vmem:[%s3 + $0x480] sm:$0xff]
  %v712 = vld [vmem:[%s3 + $0x488] sm:$0xff]
  %v713 = vld [vmem:[%s3 + $0x490] sm:$0xff]
  %v714 = vld [vmem:[%s3 + $0x498] sm:$0xff]
  %v715 = vld [vmem:[%s3 + $0x4a0] sm:$0xff]
  %v716 = vld [vmem:[%s3 + $0x4a8] sm:$0xff]
  %v717 = vld [vmem:[%s3 + $0x4b0] sm:$0xff]
  %v718 = vld [vmem:[%s3 + $0x4b8] sm:$0xff]
  %v719 = vld [vmem:[%s3 + $0x4c0] sm:$0xff]
  %v720 = vld [vmem:[%s3 + $0x4c8] sm:$0xff]
  %v721 = vld [vmem:[%s3 + $0x4d0] sm:$0xff]
  %v722 = vld [vmem:[%s3 + $0x4d8] sm:$0xff]
  %v723 = vld [vmem:[%s3 + $0x4e0] sm:$0xff]
  %v724 = vld [vmem:[%s3 + $0x4e8] sm:$0xff]
  %v725 = vld [vmem:[%s3 + $0x4f0] sm:$0xff]
  %v726 = vld [vmem:[%s3 + $0x4f8] sm:$0xff]
  %v727 = vld [vmem:[%s3 + $0x500] sm:$0xff]
  %v728 = vld [vmem:[%s3 + $0x508] sm:$0xff]
  %v729 = vld [vmem:[%s3 + $0x510] sm:$0xff]
  %v730 = vld [vmem:[%s3 + $0x518] sm:$0xff]
  %v731 = vld [vmem:[%s3 + $0x520] sm:$0xff]
  %v732 = vld [vmem:[%s3 + $0x528] sm:$0xff]
  %v733 = vld [vmem:[%s3 + $0x530] sm:$0xff]
  %v734 = vld [vmem:[%s3 + $0x538] sm:$0xff]
  %v735 = vld [vmem:[%s3 + $0x540] sm:$0xff]
  %v736 = vld [vmem:[%s3 + $0x548] sm:$0xff]
  %v737 = vld [vmem:[%s3 + $0x550] sm:$0xff]
  %v738 = vld [vmem:[%s3 + $0x558] sm:$0xff]
  %v739 = vld [vmem:[%s3 + $0x560] sm:$0xff]
  %v740 = vld [vmem:[%s3 + $0x568] sm:$0xff]
  %v741 = vld [vmem:[%s3 + $0x570] sm:$0xff]
  %v742 = vld [vmem:[%s3 + $0x578] sm:$0xff]
  %v743 = vld [vmem:[%s3 + $0x580] sm:$0xff]
  %v744 = vld [vmem:[%s3 + $0x588] sm:$0xff]
  %v745 = vld [vmem:[%s3 + $0x590] sm:$0xff]
  %v746 = vld [vmem:[%s3 + $0x598] sm:$0xff]
  %v747 = vld [vmem:[%s3 + $0x5a0] sm:$0xff]
  %v748 = vld [vmem:[%s3 + $0x5a8] sm:$0xff]
  %v749 = vld [vmem:[%s3 + $0x5b0] sm:$0xff]
  %v750 = vld [vmem:[%s3 + $0x5b8] sm:$0xff]
  %v751 = vld [vmem:[%s3 + $0x5c0] sm:$0xff]
  %v752 = vld [vmem:[%s3 + $0x5c8] sm:$0xff]
  %v753 = vld [vmem:[%s3 + $0x5d0] sm:$0xff]
  %v754 = vld [vmem:[%s3 + $0x5d8] sm:$0xff]
  %v755 = vld [vmem:[%s3 + $0x5e0] sm:$0xff]
  %v756 = vld [vmem:[%s3 + $0x5e8] sm:$0xff]
  %v757 = vld [vmem:[%s3 + $0x5f0] sm:$0xff]
  %v758 = vld [vmem:[%s3 + $0x5f8] sm:$0xff]
  %v759 = vld [vmem:[%s3 + $0x600] sm:$0xff]
  %v760 = vld [vmem:[%s3 + $0x608] sm:$0xff]
  %v761 = vld [vmem:[%s3 + $0x610] sm:$0xff]
  %v762 = vld [vmem:[%s3 + $0x618] sm:$0xff]
  %v763 = vld [vmem:[%s3 + $0x620] sm:$0xff]
  %v764 = vld [vmem:[%s3 + $0x628] sm:$0xff]
  %v765 = vld [vmem:[%s3 + $0x630] sm:$0xff]
  %v766 = vld [vmem:[%s3 + $0x638] sm:$0xff]
  %v767 = vld [vmem:[%s3 + $0x640] sm:$0xff]
  %v768 = vld [vmem:[%s3 + $0x648] sm:$0xff]
  %v769 = vld [vmem:[%s3 + $0x650] sm:$0xff]
  %v770 = vld [vmem:[%s3 + $0x658] sm:$0xff]
  %v771 = vld [vmem:[%s3 + $0x660] sm:$0xff]
  %v772 = vld [vmem:[%s3 + $0x668] sm:$0xff]
  %v773 = vld [vmem:[%s3 + $0x670] sm:$0xff]
  %v774 = vld [vmem:[%s3 + $0x678] sm:$0xff]
  %v775 = vld [vmem:[%s3 + $0x680] sm:$0xff]
  %v776 = vld [vmem:[%s3 + $0x688] sm:$0xff]
  %v777 = vld [vmem:[%s3 + $0x690] sm:$0xff]
  %v778 = vld [vmem:[%s3 + $0x698] sm:$0xff]
  %v779 = vld [vmem:[%s3 + $0x6a0] sm:$0xff]
  %v780 = vld [vmem:[%s3 + $0x6a8] sm:$0xff]
  %v781 = vld [vmem:[%s3 + $0x6b0] sm:$0xff]
  %v782 = vld [vmem:[%s3 + $0x6b8] sm:$0xff]
  %v783 = vld [vmem:[%s3 + $0x6c0] sm:$0xff]
  %v784 = vld [vmem:[%s3 + $0x6c8] sm:$0xff]
  %v785 = vld [vmem:[%s3 + $0x6d0] sm:$0xff]
  %v786 = vld [vmem:[%s3 + $0x6d8] sm:$0xff]
  %v787 = vld [vmem:[%s3 + $0x6e0] sm:$0xff]
  %v788 = vld [vmem:[%s3 + $0x6e8] sm:$0xff]
  %v789 = vld [vmem:[%s3 + $0x6f0] sm:$0xff]
  %v790 = vld [vmem:[%s3 + $0x6f8] sm:$0xff]
  %v791 = vld [vmem:[%s3 + $0x700] sm:$0xff]
  %v792 = vld [vmem:[%s3 + $0x708] sm:$0xff]
  %v793 = vld [vmem:[%s3 + $0x710] sm:$0xff]
  %v794 = vld [vmem:[%s3 + $0x718] sm:$0xff]
  %v795 = vld [vmem:[%s3 + $0x720] sm:$0xff]
  %v796 = vld [vmem:[%s3 + $0x728] sm:$0xff]
  %v797 = vld [vmem:[%s3 + $0x730] sm:$0xff]
  %v798 = vld [vmem:[%s3 + $0x738] sm:$0xff]
  %v799 = vld [vmem:[%s3 + $0x740] sm:$0xff]
  %v800 = vld [vmem:[%s3 + $0x748] sm:$0xff]
  %v801 = vld [vmem:[%s3 + $0x750] sm:$0xff]
  %v802 = vld [vmem:[%s3 + $0x758] sm:$0xff]
  %v803 = vld [vmem:[%s3 + $0x760] sm:$0xff]
  %v804 = vld [vmem:[%s3 + $0x768] sm:$0xff]
  %v805 = vld [vmem:[%s3 + $0x770] sm:$0xff]
  %v806 = vld [vmem:[%s3 + $0x778] sm:$0xff]
  %v807 = vld [vmem:[%s3 + $0x780] sm:$0xff]
  %v808 = vld [vmem:[%s3 + $0x788] sm:$0xff]
  %v809 = vld [vmem:[%s3 + $0x790] sm:$0xff]
  %v810 = vld [vmem:[%s3 + $0x798] sm:$0xff]
  %v811 = vld [vmem:[%s3 + $0x7a0] sm:$0xff]
  %v812 = vld [vmem:[%s3 + $0x7a8] sm:$0xff]
  %v813 = vld [vmem:[%s3 + $0x7b0] sm:$0xff]
  %v814 = vld [vmem:[%s3 + $0x7b8] sm:$0xff]
  %v815 = vld [vmem:[%s3 + $0x7c0] sm:$0xff]
  %v816 = vld [vmem:[%s3 + $0x7c8] sm:$0xff]
  %v817 = vld [vmem:[%s3 + $0x7d0] sm:$0xff]
  %v818 = vld [vmem:[%s3 + $0x7d8] sm:$0xff]
  %v819 = vld [vmem:[%s3 + $0x7e0] sm:$0xff]
  %v820 = vld [vmem:[%s3 + $0x7e8] sm:$0xff]
  %v821 = vld [vmem:[%s3 + $0x7f0] sm:$0xff]
  %v822 = vld [vmem:[%s3 + $0x7f8] sm:$0xff]
  %vm823 = vcmask 64512
  %v825 = vsel %vm823, %v279, 0
  %v828 = vsel %vm823, %v280, 0
  %v831 = vsel %vm823, %v281, 0
  %v834 = vsel %vm823, %v282, 0
  %v837 = vsel %vm823, %v283, 0
  %v840 = vsel %vm823, %v284, 0
  %v843 = vsel %vm823, %v285, 0
  %v846 = vsel %vm823, %v286, 0
  %848 = vmatpush.msra.mxu0 0.0
  %849 = vmatpush.msra.mxu0 0.0
  %850 = vmatpush.msra.mxu0 0.0
  %851 = vmatpush.msra.mxu0 0.0
  %852 = vmatpush.msra.mxu0 0.0
  %853 = vmatpush.msra.mxu0 0.0
  %854 = vmatpush.msra.mxu0 0.0
  %855 = vmatpush.msra.mxu0 0.0
  %856 = vmatpush.msra.mxu0 0.0
  %857 = vmatpush.msra.mxu0 0.0
  %858 = vmatpush.msra.mxu0 0.0
  %859 = vmatpush.msra.mxu0 0.0
  %860 = vmatpush.msra.mxu0 0.0
  %861 = vmatpush.msra.mxu0 0.0
  %862 = vmatpush.msra.mxu0 0.0
  %863 = vmatpush.msra.mxu0 %v535
  %864 = vmatmul.f32.gmra.mxu0 %v825
  %v865 = vpop.f32.mrf.mxu0
  %v866 = vadd.f32 %v567, %v865
  %867 = vmatmul.f32.gmra.mxu0 %v828
  %v868 = vpop.f32.mrf.mxu0
  %v869 = vadd.f32 %v568, %v868
  %870 = vmatmul.f32.gmra.mxu0 %v831
  %v871 = vpop.f32.mrf.mxu0
  %v872 = vadd.f32 %v569, %v871
  %873 = vmatmul.f32.gmra.mxu0 %v834
  %v874 = vpop.f32.mrf.mxu0
  %v875 = vadd.f32 %v570, %v874
  %876 = vmatmul.f32.gmra.mxu0 %v837
  %v877 = vpop.f32.mrf.mxu0
  %v878 = vadd.f32 %v571, %v877
  %879 = vmatmul.f32.gmra.mxu0 %v840
  %v880 = vpop.f32.mrf.mxu0
  %v881 = vadd.f32 %v572, %v880
  %882 = vmatmul.f32.gmra.mxu0 %v843
  %v883 = vpop.f32.mrf.mxu0
  %v884 = vadd.f32 %v573, %v883
  %885 = vmatmul.f32.gmra.mxu0 %v846
  %v886 = vpop.f32.mrf.mxu0
  %v887 = vadd.f32 %v574, %v886
  %888 = vdwg.mxu0
  %v890 = vsel %vm823, %v287, 0
  %v893 = vsel %vm823, %v288, 0
  %v896 = vsel %vm823, %v289, 0
  %v899 = vsel %vm823, %v290, 0
  %v902 = vsel %vm823, %v291, 0
  %v905 = vsel %vm823, %v292, 0
  %v908 = vsel %vm823, %v293, 0
  %v911 = vsel %vm823, %v294, 0
  %913 = vmatpush.msra.mxu0 0.0
  %914 = vmatpush.msra.mxu0 0.0
  %915 = vmatpush.msra.mxu0 0.0
  %916 = vmatpush.msra.mxu0 0.0
  %917 = vmatpush.msra.mxu0 0.0
  %918 = vmatpush.msra.mxu0 0.0
  %919 = vmatpush.msra.mxu0 0.0
  %920 = vmatpush.msra.mxu0 0.0
  %921 = vmatpush.msra.mxu0 0.0
  %922 = vmatpush.msra.mxu0 0.0
  %923 = vmatpush.msra.mxu0 0.0
  %924 = vmatpush.msra.mxu0 0.0
  %925 = vmatpush.msra.mxu0 0.0
  %926 = vmatpush.msra.mxu0 0.0
  %927 = vmatpush.msra.mxu0 0.0
  %928 = vmatpush.msra.mxu0 %v536
  %929 = vmatmul.f32.gmra.mxu0 %v890
  %v930 = vpop.f32.mrf.mxu0
  %v931 = vadd.f32 %v575, %v930
  %932 = vmatmul.f32.gmra.mxu0 %v893
  %v933 = vpop.f32.mrf.mxu0
  %v934 = vadd.f32 %v576, %v933
  %935 = vmatmul.f32.gmra.mxu0 %v896
  %v936 = vpop.f32.mrf.mxu0
  %v937 = vadd.f32 %v577, %v936
  %938 = vmatmul.f32.gmra.mxu0 %v899
  %v939 = vpop.f32.mrf.mxu0
  %v940 = vadd.f32 %v578, %v939
  %941 = vmatmul.f32.gmra.mxu0 %v902
  %v942 = vpop.f32.mrf.mxu0
  %v943 = vadd.f32 %v579, %v942
  %944 = vmatmul.f32.gmra.mxu0 %v905
  %v945 = vpop.f32.mrf.mxu0
  %v946 = vadd.f32 %v580, %v945
  %947 = vmatmul.f32.gmra.mxu0 %v908
  %v948 = vpop.f32.mrf.mxu0
  %v949 = vadd.f32 %v581, %v948
  %950 = vmatmul.f32.gmra.mxu0 %v911
  %v951 = vpop.f32.mrf.mxu0
  %v952 = vadd.f32 %v582, %v951
  %953 = vdwg.mxu0
  %v955 = vsel %vm823, %v295, 0
  %v958 = vsel %vm823, %v296, 0
  %v961 = vsel %vm823, %v297, 0
  %v964 = vsel %vm823, %v298, 0
  %v967 = vsel %vm823, %v299, 0
  %v970 = vsel %vm823, %v300, 0
  %v973 = vsel %vm823, %v301, 0
  %v976 = vsel %vm823, %v302, 0
  %978 = vmatpush.msra.mxu0 0.0
  %979 = vmatpush.msra.mxu0 0.0
  %980 = vmatpush.msra.mxu0 0.0
  %981 = vmatpush.msra.mxu0 0.0
  %982 = vmatpush.msra.mxu0 0.0
  %983 = vmatpush.msra.mxu0 0.0
  %984 = vmatpush.msra.mxu0 0.0
  %985 = vmatpush.msra.mxu0 0.0
  %986 = vmatpush.msra.mxu0 0.0
  %987 = vmatpush.msra.mxu0 0.0
  %988 = vmatpush.msra.mxu0 0.0
  %989 = vmatpush.msra.mxu0 0.0
  %990 = vmatpush.msra.mxu0 0.0
  %991 = vmatpush.msra.mxu0 0.0
  %992 = vmatpush.msra.mxu0 0.0
  %993 = vmatpush.msra.mxu0 %v537
  %994 = vmatmul.f32.gmra.mxu0 %v955
  %v995 = vpop.f32.mrf.mxu0
  %v996 = vadd.f32 %v583, %v995
  %997 = vmatmul.f32.gmra.mxu0 %v958
  %v998 = vpop.f32.mrf.mxu0
  %v999 = vadd.f32 %v584, %v998
  %1000 = vmatmul.f32.gmra.mxu0 %v961
  %v1001 = vpop.f32.mrf.mxu0
  %v1002 = vadd.f32 %v585, %v1001
  %1003 = vmatmul.f32.gmra.mxu0 %v964
  %v1004 = vpop.f32.mrf.mxu0
  %v1005 = vadd.f32 %v586, %v1004
  %1006 = vmatmul.f32.gmra.mxu0 %v967
  %v1007 = vpop.f32.mrf.mxu0
  %v1008 = vadd.f32 %v587, %v1007
  %1009 = vmatmul.f32.gmra.mxu0 %v970
  %v1010 = vpop.f32.mrf.mxu0
  %v1011 = vadd.f32 %v588, %v1010
  %1012 = vmatmul.f32.gmra.mxu0 %v973
  %v1013 = vpop.f32.mrf.mxu0
  %v1014 = vadd.f32 %v589, %v1013
  %1015 = vmatmul.f32.gmra.mxu0 %v976
  %v1016 = vpop.f32.mrf.mxu0
  %v1017 = vadd.f32 %v590, %v1016
  %1018 = vdwg.mxu0
  %v1020 = vsel %vm823, %v303, 0
  %v1023 = vsel %vm823, %v304, 0
  %v1026 = vsel %vm823, %v305, 0
  %v1029 = vsel %vm823, %v306, 0
  %v1032 = vsel %vm823, %v307, 0
  %v1035 = vsel %vm823, %v308, 0
  %v1038 = vsel %vm823, %v309, 0
  %v1041 = vsel %vm823, %v310, 0
  %1043 = vmatpush.msra.mxu0 0.0
  %1044 = vmatpush.msra.mxu0 0.0
  %1045 = vmatpush.msra.mxu0 0.0
  %1046 = vmatpush.msra.mxu0 0.0
  %1047 = vmatpush.msra.mxu0 0.0
  %1048 = vmatpush.msra.mxu0 0.0
  %1049 = vmatpush.msra.mxu0 0.0
  %1050 = vmatpush.msra.mxu0 0.0
  %1051 = vmatpush.msra.mxu0 0.0
  %1052 = vmatpush.msra.mxu0 0.0
  %1053 = vmatpush.msra.mxu0 0.0
  %1054 = vmatpush.msra.mxu0 0.0
  %1055 = vmatpush.msra.mxu0 0.0
  %1056 = vmatpush.msra.mxu0 0.0
  %1057 = vmatpush.msra.mxu0 0.0
  %1058 = vmatpush.msra.mxu0 %v538
  %1059 = vmatmul.f32.gmra.mxu0 %v1020
  %v1060 = vpop.f32.mrf.mxu0
  %v1061 = vadd.f32 %v591, %v1060
  %1062 = vmatmul.f32.gmra.mxu0 %v1023
  %v1063 = vpop.f32.mrf.mxu0
  %v1064 = vadd.f32 %v592, %v1063
  %1065 = vmatmul.f32.gmra.mxu0 %v1026
  %v1066 = vpop.f32.mrf.mxu0
  %v1067 = vadd.f32 %v593, %v1066
  %1068 = vmatmul.f32.gmra.mxu0 %v1029
  %v1069 = vpop.f32.mrf.mxu0
  %v1070 = vadd.f32 %v594, %v1069
  %1071 = vmatmul.f32.gmra.mxu0 %v1032
  %v1072 = vpop.f32.mrf.mxu0
  %v1073 = vadd.f32 %v595, %v1072
  %1074 = vmatmul.f32.gmra.mxu0 %v1035
  %v1075 = vpop.f32.mrf.mxu0
  %v1076 = vadd.f32 %v596, %v1075
  %1077 = vmatmul.f32.gmra.mxu0 %v1038
  %v1078 = vpop.f32.mrf.mxu0
  %v1079 = vadd.f32 %v597, %v1078
  %1080 = vmatmul.f32.gmra.mxu0 %v1041
  %v1081 = vpop.f32.mrf.mxu0
  %v1082 = vadd.f32 %v598, %v1081
  %1083 = vdwg.mxu0
  %v1085 = vsel %vm823, %v311, 0
  %v1088 = vsel %vm823, %v312, 0
  %v1091 = vsel %vm823, %v313, 0
  %v1094 = vsel %vm823, %v314, 0
  %v1097 = vsel %vm823, %v315, 0
  %v1100 = vsel %vm823, %v316, 0
  %v1103 = vsel %vm823, %v317, 0
  %v1106 = vsel %vm823, %v318, 0
  %1108 = vmatpush.msra.mxu0 0.0
  %1109 = vmatpush.msra.mxu0 0.0
  %1110 = vmatpush.msra.mxu0 0.0
  %1111 = vmatpush.msra.mxu0 0.0
  %1112 = vmatpush.msra.mxu0 0.0
  %1113 = vmatpush.msra.mxu0 0.0
  %1114 = vmatpush.msra.mxu0 0.0
  %1115 = vmatpush.msra.mxu0 0.0
  %1116 = vmatpush.msra.mxu0 0.0
  %1117 = vmatpush.msra.mxu0 0.0
  %1118 = vmatpush.msra.mxu0 0.0
  %1119 = vmatpush.msra.mxu0 0.0
  %1120 = vmatpush.msra.mxu0 0.0
  %1121 = vmatpush.msra.mxu0 0.0
  %1122 = vmatpush.msra.mxu0 0.0
  %1123 = vmatpush.msra.mxu0 %v539
  %1124 = vmatmul.f32.gmra.mxu0 %v1085
  %v1125 = vpop.f32.mrf.mxu0
  %v1126 = vadd.f32 %v599, %v1125
  %1127 = vmatmul.f32.gmra.mxu0 %v1088
  %v1128 = vpop.f32.mrf.mxu0
  %v1129 = vadd.f32 %v600, %v1128
  %1130 = vmatmul.f32.gmra.mxu0 %v1091
  %v1131 = vpop.f32.mrf.mxu0
  %v1132 = vadd.f32 %v601, %v1131
  %1133 = vmatmul.f32.gmra.mxu0 %v1094
  %v1134 = vpop.f32.mrf.mxu0
  %v1135 = vadd.f32 %v602, %v1134
  %1136 = vmatmul.f32.gmra.mxu0 %v1097
  %v1137 = vpop.f32.mrf.mxu0
  %v1138 = vadd.f32 %v603, %v1137
  %1139 = vmatmul.f32.gmra.mxu0 %v1100
  %v1140 = vpop.f32.mrf.mxu0
  %v1141 = vadd.f32 %v604, %v1140
  %1142 = vmatmul.f32.gmra.mxu0 %v1103
  %v1143 = vpop.f32.mrf.mxu0
  %v1144 = vadd.f32 %v605, %v1143
  %1145 = vmatmul.f32.gmra.mxu0 %v1106
  %v1146 = vpop.f32.mrf.mxu0
  %v1147 = vadd.f32 %v606, %v1146
  %1148 = vdwg.mxu0
  %v1150 = vsel %vm823, %v319, 0
  %v1153 = vsel %vm823, %v320, 0
  %v1156 = vsel %vm823, %v321, 0
  %v1159 = vsel %vm823, %v322, 0
  %v1162 = vsel %vm823, %v323, 0
  %v1165 = vsel %vm823, %v324, 0
  %v1168 = vsel %vm823, %v325, 0
  %v1171 = vsel %vm823, %v326, 0
  %1173 = vmatpush.msra.mxu0 0.0
  %1174 = vmatpush.msra.mxu0 0.0
  %1175 = vmatpush.msra.mxu0 0.0
  %1176 = vmatpush.msra.mxu0 0.0
  %1177 = vmatpush.msra.mxu0 0.0
  %1178 = vmatpush.msra.mxu0 0.0
  %1179 = vmatpush.msra.mxu0 0.0
  %1180 = vmatpush.msra.mxu0 0.0
  %1181 = vmatpush.msra.mxu0 0.0
  %1182 = vmatpush.msra.mxu0 0.0
  %1183 = vmatpush.msra.mxu0 0.0
  %1184 = vmatpush.msra.mxu0 0.0
  %1185 = vmatpush.msra.mxu0 0.0
  %1186 = vmatpush.msra.mxu0 0.0
  %1187 = vmatpush.msra.mxu0 0.0
  %1188 = vmatpush.msra.mxu0 %v540
  %1189 = vmatmul.f32.gmra.mxu0 %v1150
  %v1190 = vpop.f32.mrf.mxu0
  %v1191 = vadd.f32 %v607, %v1190
  %1192 = vmatmul.f32.gmra.mxu0 %v1153
  %v1193 = vpop.f32.mrf.mxu0
  %v1194 = vadd.f32 %v608, %v1193
  %1195 = vmatmul.f32.gmra.mxu0 %v1156
  %v1196 = vpop.f32.mrf.mxu0
  %v1197 = vadd.f32 %v609, %v1196
  %1198 = vmatmul.f32.gmra.mxu0 %v1159
  %v1199 = vpop.f32.mrf.mxu0
  %v1200 = vadd.f32 %v610, %v1199
  %1201 = vmatmul.f32.gmra.mxu0 %v1162
  %v1202 = vpop.f32.mrf.mxu0
  %v1203 = vadd.f32 %v611, %v1202
  %1204 = vmatmul.f32.gmra.mxu0 %v1165
  %v1205 = vpop.f32.mrf.mxu0
  %v1206 = vadd.f32 %v612, %v1205
  %1207 = vmatmul.f32.gmra.mxu0 %v1168
  %v1208 = vpop.f32.mrf.mxu0
  %v1209 = vadd.f32 %v613, %v1208
  %1210 = vmatmul.f32.gmra.mxu0 %v1171
  %v1211 = vpop.f32.mrf.mxu0
  %v1212 = vadd.f32 %v614, %v1211
  %1213 = vdwg.mxu0
  %v1215 = vsel %vm823, %v327, 0
  %v1218 = vsel %vm823, %v328, 0
  %v1221 = vsel %vm823, %v329, 0
  %v1224 = vsel %vm823, %v330, 0
  %v1227 = vsel %vm823, %v331, 0
  %v1230 = vsel %vm823, %v332, 0
  %v1233 = vsel %vm823, %v333, 0
  %v1236 = vsel %vm823, %v334, 0
  %1238 = vmatpush.msra.mxu0 0.0
  %1239 = vmatpush.msra.mxu0 0.0
  %1240 = vmatpush.msra.mxu0 0.0
  %1241 = vmatpush.msra.mxu0 0.0
  %1242 = vmatpush.msra.mxu0 0.0
  %1243 = vmatpush.msra.mxu0 0.0
  %1244 = vmatpush.msra.mxu0 0.0
  %1245 = vmatpush.msra.mxu0 0.0
  %1246 = vmatpush.msra.mxu0 0.0
  %1247 = vmatpush.msra.mxu0 0.0
  %1248 = vmatpush.msra.mxu0 0.0
  %1249 = vmatpush.msra.mxu0 0.0
  %1250 = vmatpush.msra.mxu0 0.0
  %1251 = vmatpush.msra.mxu0 0.0
  %1252 = vmatpush.msra.mxu0 0.0
  %1253 = vmatpush.msra.mxu0 %v541
  %1254 = vmatmul.f32.gmra.mxu0 %v1215
  %v1255 = vpop.f32.mrf.mxu0
  %v1256 = vadd.f32 %v615, %v1255
  %1257 = vmatmul.f32.gmra.mxu0 %v1218
  %v1258 = vpop.f32.mrf.mxu0
  %v1259 = vadd.f32 %v616, %v1258
  %1260 = vmatmul.f32.gmra.mxu0 %v1221
  %v1261 = vpop.f32.mrf.mxu0
  %v1262 = vadd.f32 %v617, %v1261
  %1263 = vmatmul.f32.gmra.mxu0 %v1224
  %v1264 = vpop.f32.mrf.mxu0
  %v1265 = vadd.f32 %v618, %v1264
  %1266 = vmatmul.f32.gmra.mxu0 %v1227
  %v1267 = vpop.f32.mrf.mxu0
  %v1268 = vadd.f32 %v619, %v1267
  %1269 = vmatmul.f32.gmra.mxu0 %v1230
  %v1270 = vpop.f32.mrf.mxu0
  %v1271 = vadd.f32 %v620, %v1270
  %1272 = vmatmul.f32.gmra.mxu0 %v1233
  %v1273 = vpop.f32.mrf.mxu0
  %v1274 = vadd.f32 %v621, %v1273
  %1275 = vmatmul.f32.gmra.mxu0 %v1236
  %v1276 = vpop.f32.mrf.mxu0
  %v1277 = vadd.f32 %v622, %v1276
  %1278 = vdwg.mxu0
  %v1280 = vsel %vm823, %v335, 0
  %v1283 = vsel %vm823, %v336, 0
  %v1286 = vsel %vm823, %v337, 0
  %v1289 = vsel %vm823, %v338, 0
  %v1292 = vsel %vm823, %v339, 0
  %v1295 = vsel %vm823, %v340, 0
  %v1298 = vsel %vm823, %v341, 0
  %v1301 = vsel %vm823, %v342, 0
  %1303 = vmatpush.msra.mxu0 0.0
  %1304 = vmatpush.msra.mxu0 0.0
  %1305 = vmatpush.msra.mxu0 0.0
  %1306 = vmatpush.msra.mxu0 0.0
  %1307 = vmatpush.msra.mxu0 0.0
  %1308 = vmatpush.msra.mxu0 0.0
  %1309 = vmatpush.msra.mxu0 0.0
  %1310 = vmatpush.msra.mxu0 0.0
  %1311 = vmatpush.msra.mxu0 0.0
  %1312 = vmatpush.msra.mxu0 0.0
  %1313 = vmatpush.msra.mxu0 0.0
  %1314 = vmatpush.msra.mxu0 0.0
  %1315 = vmatpush.msra.mxu0 0.0
  %1316 = vmatpush.msra.mxu0 0.0
  %1317 = vmatpush.msra.mxu0 0.0
  %1318 = vmatpush.msra.mxu0 %v542
  %1319 = vmatmul.f32.gmra.mxu0 %v1280
  %v1320 = vpop.f32.mrf.mxu0
  %v1321 = vadd.f32 %v623, %v1320
  %1322 = vmatmul.f32.gmra.mxu0 %v1283
  %v1323 = vpop.f32.mrf.mxu0
  %v1324 = vadd.f32 %v624, %v1323
  %1325 = vmatmul.f32.gmra.mxu0 %v1286
  %v1326 = vpop.f32.mrf.mxu0
  %v1327 = vadd.f32 %v625, %v1326
  %1328 = vmatmul.f32.gmra.mxu0 %v1289
  %v1329 = vpop.f32.mrf.mxu0
  %v1330 = vadd.f32 %v626, %v1329
  %1331 = vmatmul.f32.gmra.mxu0 %v1292
  %v1332 = vpop.f32.mrf.mxu0
  %v1333 = vadd.f32 %v627, %v1332
  %1334 = vmatmul.f32.gmra.mxu0 %v1295
  %v1335 = vpop.f32.mrf.mxu0
  %v1336 = vadd.f32 %v628, %v1335
  %1337 = vmatmul.f32.gmra.mxu0 %v1298
  %v1338 = vpop.f32.mrf.mxu0
  %v1339 = vadd.f32 %v629, %v1338
  %1340 = vmatmul.f32.gmra.mxu0 %v1301
  %v1341 = vpop.f32.mrf.mxu0
  %v1342 = vadd.f32 %v630, %v1341
  %1343 = vdwg.mxu0
  %v1345 = vsel %vm823, %v343, 0
  %v1348 = vsel %vm823, %v344, 0
  %v1351 = vsel %vm823, %v345, 0
  %v1354 = vsel %vm823, %v346, 0
  %v1357 = vsel %vm823, %v347, 0
  %v1360 = vsel %vm823, %v348, 0
  %v1363 = vsel %vm823, %v349, 0
  %v1366 = vsel %vm823, %v350, 0
  %1368 = vmatpush.msra.mxu0 0.0
  %1369 = vmatpush.msra.mxu0 0.0
  %1370 = vmatpush.msra.mxu0 0.0
  %1371 = vmatpush.msra.mxu0 0.0
  %1372 = vmatpush.msra.mxu0 0.0
  %1373 = vmatpush.msra.mxu0 0.0
  %1374 = vmatpush.msra.mxu0 0.0
  %1375 = vmatpush.msra.mxu0 0.0
  %1376 = vmatpush.msra.mxu0 0.0
  %1377 = vmatpush.msra.mxu0 0.0
  %1378 = vmatpush.msra.mxu0 0.0
  %1379 = vmatpush.msra.mxu0 0.0
  %1380 = vmatpush.msra.mxu0 0.0
  %1381 = vmatpush.msra.mxu0 0.0
  %1382 = vmatpush.msra.mxu0 0.0
  %1383 = vmatpush.msra.mxu0 %v543
  %1384 = vmatmul.f32.gmra.mxu0 %v1345
  %v1385 = vpop.f32.mrf.mxu0
  %v1386 = vadd.f32 %v631, %v1385
  %1387 = vmatmul.f32.gmra.mxu0 %v1348
  %v1388 = vpop.f32.mrf.mxu0
  %v1389 = vadd.f32 %v632, %v1388
  %1390 = vmatmul.f32.gmra.mxu0 %v1351
  %v1391 = vpop.f32.mrf.mxu0
  %v1392 = vadd.f32 %v633, %v1391
  %1393 = vmatmul.f32.gmra.mxu0 %v1354
  %v1394 = vpop.f32.mrf.mxu0
  %v1395 = vadd.f32 %v634, %v1394
  %1396 = vmatmul.f32.gmra.mxu0 %v1357
  %v1397 = vpop.f32.mrf.mxu0
  %v1398 = vadd.f32 %v635, %v1397
  %1399 = vmatmul.f32.gmra.mxu0 %v1360
  %v1400 = vpop.f32.mrf.mxu0
  %v1401 = vadd.f32 %v636, %v1400
  %1402 = vmatmul.f32.gmra.mxu0 %v1363
  %v1403 = vpop.f32.mrf.mxu0
  %v1404 = vadd.f32 %v637, %v1403
  %1405 = vmatmul.f32.gmra.mxu0 %v1366
  %v1406 = vpop.f32.mrf.mxu0
  %v1407 = vadd.f32 %v638, %v1406
  %1408 = vdwg.mxu0
  %v1410 = vsel %vm823, %v351, 0
  %v1413 = vsel %vm823, %v352, 0
  %v1416 = vsel %vm823, %v353, 0
  %v1419 = vsel %vm823, %v354, 0
  %v1422 = vsel %vm823, %v355, 0
  %v1425 = vsel %vm823, %v356, 0
  %v1428 = vsel %vm823, %v357, 0
  %v1431 = vsel %vm823, %v358, 0
  %1433 = vmatpush.msra.mxu0 0.0
  %1434 = vmatpush.msra.mxu0 0.0
  %1435 = vmatpush.msra.mxu0 0.0
  %1436 = vmatpush.msra.mxu0 0.0
  %1437 = vmatpush.msra.mxu0 0.0
  %1438 = vmatpush.msra.mxu0 0.0
  %1439 = vmatpush.msra.mxu0 0.0
  %1440 = vmatpush.msra.mxu0 0.0
  %1441 = vmatpush.msra.mxu0 0.0
  %1442 = vmatpush.msra.mxu0 0.0
  %1443 = vmatpush.msra.mxu0 0.0
  %1444 = vmatpush.msra.mxu0 0.0
  %1445 = vmatpush.msra.mxu0 0.0
  %1446 = vmatpush.msra.mxu0 0.0
  %1447 = vmatpush.msra.mxu0 0.0
  %1448 = vmatpush.msra.mxu0 %v544
  %1449 = vmatmul.f32.gmra.mxu0 %v1410
  %v1450 = vpop.f32.mrf.mxu0
  %v1451 = vadd.f32 %v639, %v1450
  %1452 = vmatmul.f32.gmra.mxu0 %v1413
  %v1453 = vpop.f32.mrf.mxu0
  %v1454 = vadd.f32 %v640, %v1453
  %1455 = vmatmul.f32.gmra.mxu0 %v1416
  %v1456 = vpop.f32.mrf.mxu0
  %v1457 = vadd.f32 %v641, %v1456
  %1458 = vmatmul.f32.gmra.mxu0 %v1419
  %v1459 = vpop.f32.mrf.mxu0
  %v1460 = vadd.f32 %v642, %v1459
  %1461 = vmatmul.f32.gmra.mxu0 %v1422
  %v1462 = vpop.f32.mrf.mxu0
  %v1463 = vadd.f32 %v643, %v1462
  %1464 = vmatmul.f32.gmra.mxu0 %v1425
  %v1465 = vpop.f32.mrf.mxu0
  %v1466 = vadd.f32 %v644, %v1465
  %1467 = vmatmul.f32.gmra.mxu0 %v1428
  %v1468 = vpop.f32.mrf.mxu0
  %v1469 = vadd.f32 %v645, %v1468
  %1470 = vmatmul.f32.gmra.mxu0 %v1431
  %v1471 = vpop.f32.mrf.mxu0
  %v1472 = vadd.f32 %v646, %v1471
  %1473 = vdwg.mxu0
  %v1475 = vsel %vm823, %v359, 0
  %v1478 = vsel %vm823, %v360, 0
  %v1481 = vsel %vm823, %v361, 0
  %v1484 = vsel %vm823, %v362, 0
  %v1487 = vsel %vm823, %v363, 0
  %v1490 = vsel %vm823, %v364, 0
  %v1493 = vsel %vm823, %v365, 0
  %v1496 = vsel %vm823, %v366, 0
  %1498 = vmatpush.msra.mxu0 0.0
  %1499 = vmatpush.msra.mxu0 0.0
  %1500 = vmatpush.msra.mxu0 0.0
  %1501 = vmatpush.msra.mxu0 0.0
  %1502 = vmatpush.msra.mxu0 0.0
  %1503 = vmatpush.msra.mxu0 0.0
  %1504 = vmatpush.msra.mxu0 0.0
  %1505 = vmatpush.msra.mxu0 0.0
  %1506 = vmatpush.msra.mxu0 0.0
  %1507 = vmatpush.msra.mxu0 0.0
  %1508 = vmatpush.msra.mxu0 0.0
  %1509 = vmatpush.msra.mxu0 0.0
  %1510 = vmatpush.msra.mxu0 0.0
  %1511 = vmatpush.msra.mxu0 0.0
  %1512 = vmatpush.msra.mxu0 0.0
  %1513 = vmatpush.msra.mxu0 %v545
  %1514 = vmatmul.f32.gmra.mxu0 %v1475
  %v1515 = vpop.f32.mrf.mxu0
  %v1516 = vadd.f32 %v647, %v1515
  %1517 = vmatmul.f32.gmra.mxu0 %v1478
  %v1518 = vpop.f32.mrf.mxu0
  %v1519 = vadd.f32 %v648, %v1518
  %1520 = vmatmul.f32.gmra.mxu0 %v1481
  %v1521 = vpop.f32.mrf.mxu0
  %v1522 = vadd.f32 %v649, %v1521
  %1523 = vmatmul.f32.gmra.mxu0 %v1484
  %v1524 = vpop.f32.mrf.mxu0
  %v1525 = vadd.f32 %v650, %v1524
  %1526 = vmatmul.f32.gmra.mxu0 %v1487
  %v1527 = vpop.f32.mrf.mxu0
  %v1528 = vadd.f32 %v651, %v1527
  %1529 = vmatmul.f32.gmra.mxu0 %v1490
  %v1530 = vpop.f32.mrf.mxu0
  %v1531 = vadd.f32 %v652, %v1530
  %1532 = vmatmul.f32.gmra.mxu0 %v1493
  %v1533 = vpop.f32.mrf.mxu0
  %v1534 = vadd.f32 %v653, %v1533
  %1535 = vmatmul.f32.gmra.mxu0 %v1496
  %v1536 = vpop.f32.mrf.mxu0
  %v1537 = vadd.f32 %v654, %v1536
  %1538 = vdwg.mxu0
  %v1540 = vsel %vm823, %v367, 0
  %v1543 = vsel %vm823, %v368, 0
  %v1546 = vsel %vm823, %v369, 0
  %v1549 = vsel %vm823, %v370, 0
  %v1552 = vsel %vm823, %v371, 0
  %v1555 = vsel %vm823, %v372, 0
  %v1558 = vsel %vm823, %v373, 0
  %v1561 = vsel %vm823, %v374, 0
  %1563 = vmatpush.msra.mxu0 0.0
  %1564 = vmatpush.msra.mxu0 0.0
  %1565 = vmatpush.msra.mxu0 0.0
  %1566 = vmatpush.msra.mxu0 0.0
  %1567 = vmatpush.msra.mxu0 0.0
  %1568 = vmatpush.msra.mxu0 0.0
  %1569 = vmatpush.msra.mxu0 0.0
  %1570 = vmatpush.msra.mxu0 0.0
  %1571 = vmatpush.msra.mxu0 0.0
  %1572 = vmatpush.msra.mxu0 0.0
  %1573 = vmatpush.msra.mxu0 0.0
  %1574 = vmatpush.msra.mxu0 0.0
  %1575 = vmatpush.msra.mxu0 0.0
  %1576 = vmatpush.msra.mxu0 0.0
  %1577 = vmatpush.msra.mxu0 0.0
  %1578 = vmatpush.msra.mxu0 %v546
  %1579 = vmatmul.f32.gmra.mxu0 %v1540
  %v1580 = vpop.f32.mrf.mxu0
  %v1581 = vadd.f32 %v655, %v1580
  %1582 = vmatmul.f32.gmra.mxu0 %v1543
  %v1583 = vpop.f32.mrf.mxu0
  %v1584 = vadd.f32 %v656, %v1583
  %1585 = vmatmul.f32.gmra.mxu0 %v1546
  %v1586 = vpop.f32.mrf.mxu0
  %v1587 = vadd.f32 %v657, %v1586
  %1588 = vmatmul.f32.gmra.mxu0 %v1549
  %v1589 = vpop.f32.mrf.mxu0
  %v1590 = vadd.f32 %v658, %v1589
  %1591 = vmatmul.f32.gmra.mxu0 %v1552
  %v1592 = vpop.f32.mrf.mxu0
  %v1593 = vadd.f32 %v659, %v1592
  %1594 = vmatmul.f32.gmra.mxu0 %v1555
  %v1595 = vpop.f32.mrf.mxu0
  %v1596 = vadd.f32 %v660, %v1595
  %1597 = vmatmul.f32.gmra.mxu0 %v1558
  %v1598 = vpop.f32.mrf.mxu0
  %v1599 = vadd.f32 %v661, %v1598
  %1600 = vmatmul.f32.gmra.mxu0 %v1561
  %v1601 = vpop.f32.mrf.mxu0
  %v1602 = vadd.f32 %v662, %v1601
  %1603 = vdwg.mxu0
  %v1605 = vsel %vm823, %v375, 0
  %v1608 = vsel %vm823, %v376, 0
  %v1611 = vsel %vm823, %v377, 0
  %v1614 = vsel %vm823, %v378, 0
  %v1617 = vsel %vm823, %v379, 0
  %v1620 = vsel %vm823, %v380, 0
  %v1623 = vsel %vm823, %v381, 0
  %v1626 = vsel %vm823, %v382, 0
  %1628 = vmatpush.msra.mxu0 0.0
  %1629 = vmatpush.msra.mxu0 0.0
  %1630 = vmatpush.msra.mxu0 0.0
  %1631 = vmatpush.msra.mxu0 0.0
  %1632 = vmatpush.msra.mxu0 0.0
  %1633 = vmatpush.msra.mxu0 0.0
  %1634 = vmatpush.msra.mxu0 0.0
  %1635 = vmatpush.msra.mxu0 0.0
  %1636 = vmatpush.msra.mxu0 0.0
  %1637 = vmatpush.msra.mxu0 0.0
  %1638 = vmatpush.msra.mxu0 0.0
  %1639 = vmatpush.msra.mxu0 0.0
  %1640 = vmatpush.msra.mxu0 0.0
  %1641 = vmatpush.msra.mxu0 0.0
  %1642 = vmatpush.msra.mxu0 0.0
  %1643 = vmatpush.msra.mxu0 %v547
  %1644 = vmatmul.f32.gmra.mxu0 %v1605
  %v1645 = vpop.f32.mrf.mxu0
  %v1646 = vadd.f32 %v663, %v1645
  %1647 = vmatmul.f32.gmra.mxu0 %v1608
  %v1648 = vpop.f32.mrf.mxu0
  %v1649 = vadd.f32 %v664, %v1648
  %1650 = vmatmul.f32.gmra.mxu0 %v1611
  %v1651 = vpop.f32.mrf.mxu0
  %v1652 = vadd.f32 %v665, %v1651
  %1653 = vmatmul.f32.gmra.mxu0 %v1614
  %v1654 = vpop.f32.mrf.mxu0
  %v1655 = vadd.f32 %v666, %v1654
  %1656 = vmatmul.f32.gmra.mxu0 %v1617
  %v1657 = vpop.f32.mrf.mxu0
  %v1658 = vadd.f32 %v667, %v1657
  %1659 = vmatmul.f32.gmra.mxu0 %v1620
  %v1660 = vpop.f32.mrf.mxu0
  %v1661 = vadd.f32 %v668, %v1660
  %1662 = vmatmul.f32.gmra.mxu0 %v1623
  %v1663 = vpop.f32.mrf.mxu0
  %v1664 = vadd.f32 %v669, %v1663
  %1665 = vmatmul.f32.gmra.mxu0 %v1626
  %v1666 = vpop.f32.mrf.mxu0
  %v1667 = vadd.f32 %v670, %v1666
  %1668 = vdwg.mxu0
  %v1670 = vsel %vm823, %v383, 0
  %v1673 = vsel %vm823, %v384, 0
  %v1676 = vsel %vm823, %v385, 0
  %v1679 = vsel %vm823, %v386, 0
  %v1682 = vsel %vm823, %v387, 0
  %v1685 = vsel %vm823, %v388, 0
  %v1688 = vsel %vm823, %v389, 0
  %v1691 = vsel %vm823, %v390, 0
  %1693 = vmatpush.msra.mxu0 0.0
  %1694 = vmatpush.msra.mxu0 0.0
  %1695 = vmatpush.msra.mxu0 0.0
  %1696 = vmatpush.msra.mxu0 0.0
  %1697 = vmatpush.msra.mxu0 0.0
  %1698 = vmatpush.msra.mxu0 0.0
  %1699 = vmatpush.msra.mxu0 0.0
  %1700 = vmatpush.msra.mxu0 0.0
  %1701 = vmatpush.msra.mxu0 0.0
  %1702 = vmatpush.msra.mxu0 0.0
  %1703 = vmatpush.msra.mxu0 0.0
  %1704 = vmatpush.msra.mxu0 0.0
  %1705 = vmatpush.msra.mxu0 0.0
  %1706 = vmatpush.msra.mxu0 0.0
  %1707 = vmatpush.msra.mxu0 0.0
  %1708 = vmatpush.msra.mxu0 %v548
  %1709 = vmatmul.f32.gmra.mxu0 %v1670
  %v1710 = vpop.f32.mrf.mxu0
  %v1711 = vadd.f32 %v671, %v1710
  %1712 = vmatmul.f32.gmra.mxu0 %v1673
  %v1713 = vpop.f32.mrf.mxu0
  %v1714 = vadd.f32 %v672, %v1713
  %1715 = vmatmul.f32.gmra.mxu0 %v1676
  %v1716 = vpop.f32.mrf.mxu0
  %v1717 = vadd.f32 %v673, %v1716
  %1718 = vmatmul.f32.gmra.mxu0 %v1679
  %v1719 = vpop.f32.mrf.mxu0
  %v1720 = vadd.f32 %v674, %v1719
  %1721 = vmatmul.f32.gmra.mxu0 %v1682
  %v1722 = vpop.f32.mrf.mxu0
  %v1723 = vadd.f32 %v675, %v1722
  %1724 = vmatmul.f32.gmra.mxu0 %v1685
  %v1725 = vpop.f32.mrf.mxu0
  %v1726 = vadd.f32 %v676, %v1725
  %1727 = vmatmul.f32.gmra.mxu0 %v1688
  %v1728 = vpop.f32.mrf.mxu0
  %v1729 = vadd.f32 %v677, %v1728
  %1730 = vmatmul.f32.gmra.mxu0 %v1691
  %v1731 = vpop.f32.mrf.mxu0
  %v1732 = vadd.f32 %v678, %v1731
  %1733 = vdwg.mxu0
  %v1735 = vsel %vm823, %v391, 0
  %v1738 = vsel %vm823, %v392, 0
  %v1741 = vsel %vm823, %v393, 0
  %v1744 = vsel %vm823, %v394, 0
  %v1747 = vsel %vm823, %v395, 0
  %v1750 = vsel %vm823, %v396, 0
  %v1753 = vsel %vm823, %v397, 0
  %v1756 = vsel %vm823, %v398, 0
  %1758 = vmatpush.msra.mxu0 0.0
  %1759 = vmatpush.msra.mxu0 0.0
  %1760 = vmatpush.msra.mxu0 0.0
  %1761 = vmatpush.msra.mxu0 0.0
  %1762 = vmatpush.msra.mxu0 0.0
  %1763 = vmatpush.msra.mxu0 0.0
  %1764 = vmatpush.msra.mxu0 0.0
  %1765 = vmatpush.msra.mxu0 0.0
  %1766 = vmatpush.msra.mxu0 0.0
  %1767 = vmatpush.msra.mxu0 0.0
  %1768 = vmatpush.msra.mxu0 0.0
  %1769 = vmatpush.msra.mxu0 0.0
  %1770 = vmatpush.msra.mxu0 0.0
  %1771 = vmatpush.msra.mxu0 0.0
  %1772 = vmatpush.msra.mxu0 0.0
  %1773 = vmatpush.msra.mxu0 %v549
  %1774 = vmatmul.f32.gmra.mxu0 %v1735
  %v1775 = vpop.f32.mrf.mxu0
  %v1776 = vadd.f32 %v679, %v1775
  %1777 = vmatmul.f32.gmra.mxu0 %v1738
  %v1778 = vpop.f32.mrf.mxu0
  %v1779 = vadd.f32 %v680, %v1778
  %1780 = vmatmul.f32.gmra.mxu0 %v1741
  %v1781 = vpop.f32.mrf.mxu0
  %v1782 = vadd.f32 %v681, %v1781
  %1783 = vmatmul.f32.gmra.mxu0 %v1744
  %v1784 = vpop.f32.mrf.mxu0
  %v1785 = vadd.f32 %v682, %v1784
  %1786 = vmatmul.f32.gmra.mxu0 %v1747
  %v1787 = vpop.f32.mrf.mxu0
  %v1788 = vadd.f32 %v683, %v1787
  %1789 = vmatmul.f32.gmra.mxu0 %v1750
  %v1790 = vpop.f32.mrf.mxu0
  %v1791 = vadd.f32 %v684, %v1790
  %1792 = vmatmul.f32.gmra.mxu0 %v1753
  %v1793 = vpop.f32.mrf.mxu0
  %v1794 = vadd.f32 %v685, %v1793
  %1795 = vmatmul.f32.gmra.mxu0 %v1756
  %v1796 = vpop.f32.mrf.mxu0
  %v1797 = vadd.f32 %v686, %v1796
  %1798 = vdwg.mxu0
  %v1800 = vsel %vm823, %v399, 0
  %v1803 = vsel %vm823, %v400, 0
  %v1806 = vsel %vm823, %v401, 0
  %v1809 = vsel %vm823, %v402, 0
  %v1812 = vsel %vm823, %v403, 0
  %v1815 = vsel %vm823, %v404, 0
  %v1818 = vsel %vm823, %v405, 0
  %v1821 = vsel %vm823, %v406, 0
  %1823 = vmatpush.msra.mxu0 0.0
  %1824 = vmatpush.msra.mxu0 0.0
  %1825 = vmatpush.msra.mxu0 0.0
  %1826 = vmatpush.msra.mxu0 0.0
  %1827 = vmatpush.msra.mxu0 0.0
  %1828 = vmatpush.msra.mxu0 0.0
  %1829 = vmatpush.msra.mxu0 0.0
  %1830 = vmatpush.msra.mxu0 0.0
  %1831 = vmatpush.msra.mxu0 0.0
  %1832 = vmatpush.msra.mxu0 0.0
  %1833 = vmatpush.msra.mxu0 0.0
  %1834 = vmatpush.msra.mxu0 0.0
  %1835 = vmatpush.msra.mxu0 0.0
  %1836 = vmatpush.msra.mxu0 0.0
  %1837 = vmatpush.msra.mxu0 0.0
  %1838 = vmatpush.msra.mxu0 %v550
  %1839 = vmatmul.f32.gmra.mxu0 %v1800
  %v1840 = vpop.f32.mrf.mxu0
  %v1841 = vadd.f32 %v687, %v1840
  %1842 = vmatmul.f32.gmra.mxu0 %v1803
  %v1843 = vpop.f32.mrf.mxu0
  %v1844 = vadd.f32 %v688, %v1843
  %1845 = vmatmul.f32.gmra.mxu0 %v1806
  %v1846 = vpop.f32.mrf.mxu0
  %v1847 = vadd.f32 %v689, %v1846
  %1848 = vmatmul.f32.gmra.mxu0 %v1809
  %v1849 = vpop.f32.mrf.mxu0
  %v1850 = vadd.f32 %v690, %v1849
  %1851 = vmatmul.f32.gmra.mxu0 %v1812
  %v1852 = vpop.f32.mrf.mxu0
  %v1853 = vadd.f32 %v691, %v1852
  %1854 = vmatmul.f32.gmra.mxu0 %v1815
  %v1855 = vpop.f32.mrf.mxu0
  %v1856 = vadd.f32 %v692, %v1855
  %1857 = vmatmul.f32.gmra.mxu0 %v1818
  %v1858 = vpop.f32.mrf.mxu0
  %v1859 = vadd.f32 %v693, %v1858
  %1860 = vmatmul.f32.gmra.mxu0 %v1821
  %v1861 = vpop.f32.mrf.mxu0
  %v1862 = vadd.f32 %v694, %v1861
  %1863 = vdwg.mxu0
  %v1865 = vsel %vm823, %v407, 0
  %v1868 = vsel %vm823, %v408, 0
  %v1871 = vsel %vm823, %v409, 0
  %v1874 = vsel %vm823, %v410, 0
  %v1877 = vsel %vm823, %v411, 0
  %v1880 = vsel %vm823, %v412, 0
  %v1883 = vsel %vm823, %v413, 0
  %v1886 = vsel %vm823, %v414, 0
  %1888 = vmatpush.msra.mxu0 0.0
  %1889 = vmatpush.msra.mxu0 0.0
  %1890 = vmatpush.msra.mxu0 0.0
  %1891 = vmatpush.msra.mxu0 0.0
  %1892 = vmatpush.msra.mxu0 0.0
  %1893 = vmatpush.msra.mxu0 0.0
  %1894 = vmatpush.msra.mxu0 0.0
  %1895 = vmatpush.msra.mxu0 0.0
  %1896 = vmatpush.msra.mxu0 0.0
  %1897 = vmatpush.msra.mxu0 0.0
  %1898 = vmatpush.msra.mxu0 0.0
  %1899 = vmatpush.msra.mxu0 0.0
  %1900 = vmatpush.msra.mxu0 0.0
  %1901 = vmatpush.msra.mxu0 0.0
  %1902 = vmatpush.msra.mxu0 0.0
  %1903 = vmatpush.msra.mxu0 %v551
  %1904 = vmatmul.f32.gmra.mxu0 %v1865
  %v1905 = vpop.f32.mrf.mxu0
  %v1906 = vadd.f32 %v695, %v1905
  %1907 = vmatmul.f32.gmra.mxu0 %v1868
  %v1908 = vpop.f32.mrf.mxu0
  %v1909 = vadd.f32 %v696, %v1908
  %1910 = vmatmul.f32.gmra.mxu0 %v1871
  %v1911 = vpop.f32.mrf.mxu0
  %v1912 = vadd.f32 %v697, %v1911
  %1913 = vmatmul.f32.gmra.mxu0 %v1874
  %v1914 = vpop.f32.mrf.mxu0
  %v1915 = vadd.f32 %v698, %v1914
  %1916 = vmatmul.f32.gmra.mxu0 %v1877
  %v1917 = vpop.f32.mrf.mxu0
  %v1918 = vadd.f32 %v699, %v1917
  %1919 = vmatmul.f32.gmra.mxu0 %v1880
  %v1920 = vpop.f32.mrf.mxu0
  %v1921 = vadd.f32 %v700, %v1920
  %1922 = vmatmul.f32.gmra.mxu0 %v1883
  %v1923 = vpop.f32.mrf.mxu0
  %v1924 = vadd.f32 %v701, %v1923
  %1925 = vmatmul.f32.gmra.mxu0 %v1886
  %v1926 = vpop.f32.mrf.mxu0
  %v1927 = vadd.f32 %v702, %v1926
  %1928 = vdwg.mxu0
  %v1930 = vsel %vm823, %v415, 0
  %v1933 = vsel %vm823, %v416, 0
  %v1936 = vsel %vm823, %v417, 0
  %v1939 = vsel %vm823, %v418, 0
  %v1942 = vsel %vm823, %v419, 0
  %v1945 = vsel %vm823, %v420, 0
  %v1948 = vsel %vm823, %v421, 0
  %v1951 = vsel %vm823, %v422, 0
  %1953 = vmatpush.msra.mxu0 0.0
  %1954 = vmatpush.msra.mxu0 0.0
  %1955 = vmatpush.msra.mxu0 0.0
  %1956 = vmatpush.msra.mxu0 0.0
  %1957 = vmatpush.msra.mxu0 0.0
  %1958 = vmatpush.msra.mxu0 0.0
  %1959 = vmatpush.msra.mxu0 0.0
  %1960 = vmatpush.msra.mxu0 0.0
  %1961 = vmatpush.msra.mxu0 0.0
  %1962 = vmatpush.msra.mxu0 0.0
  %1963 = vmatpush.msra.mxu0 0.0
  %1964 = vmatpush.msra.mxu0 0.0
  %1965 = vmatpush.msra.mxu0 0.0
  %1966 = vmatpush.msra.mxu0 0.0
  %1967 = vmatpush.msra.mxu0 0.0
  %1968 = vmatpush.msra.mxu0 %v552
  %1969 = vmatmul.f32.gmra.mxu0 %v1930
  %v1970 = vpop.f32.mrf.mxu0
  %v1971 = vadd.f32 %v703, %v1970
  %1972 = vmatmul.f32.gmra.mxu0 %v1933
  %v1973 = vpop.f32.mrf.mxu0
  %v1974 = vadd.f32 %v704, %v1973
  %1975 = vmatmul.f32.gmra.mxu0 %v1936
  %v1976 = vpop.f32.mrf.mxu0
  %v1977 = vadd.f32 %v705, %v1976
  %1978 = vmatmul.f32.gmra.mxu0 %v1939
  %v1979 = vpop.f32.mrf.mxu0
  %v1980 = vadd.f32 %v706, %v1979
  %1981 = vmatmul.f32.gmra.mxu0 %v1942
  %v1982 = vpop.f32.mrf.mxu0
  %v1983 = vadd.f32 %v707, %v1982
  %1984 = vmatmul.f32.gmra.mxu0 %v1945
  %v1985 = vpop.f32.mrf.mxu0
  %v1986 = vadd.f32 %v708, %v1985
  %1987 = vmatmul.f32.gmra.mxu0 %v1948
  %v1988 = vpop.f32.mrf.mxu0
  %v1989 = vadd.f32 %v709, %v1988
  %1990 = vmatmul.f32.gmra.mxu0 %v1951
  %v1991 = vpop.f32.mrf.mxu0
  %v1992 = vadd.f32 %v710, %v1991
  %1993 = vdwg.mxu0
  %v1995 = vsel %vm823, %v423, 0
  %v1998 = vsel %vm823, %v424, 0
  %v2001 = vsel %vm823, %v425, 0
  %v2004 = vsel %vm823, %v426, 0
  %v2007 = vsel %vm823, %v427, 0
  %v2010 = vsel %vm823, %v428, 0
  %v2013 = vsel %vm823, %v429, 0
  %v2016 = vsel %vm823, %v430, 0
  %2018 = vmatpush.msra.mxu0 0.0
  %2019 = vmatpush.msra.mxu0 0.0
  %2020 = vmatpush.msra.mxu0 0.0
  %2021 = vmatpush.msra.mxu0 0.0
  %2022 = vmatpush.msra.mxu0 0.0
  %2023 = vmatpush.msra.mxu0 0.0
  %2024 = vmatpush.msra.mxu0 0.0
  %2025 = vmatpush.msra.mxu0 0.0
  %2026 = vmatpush.msra.mxu0 0.0
  %2027 = vmatpush.msra.mxu0 0.0
  %2028 = vmatpush.msra.mxu0 0.0
  %2029 = vmatpush.msra.mxu0 0.0
  %2030 = vmatpush.msra.mxu0 0.0
  %2031 = vmatpush.msra.mxu0 0.0
  %2032 = vmatpush.msra.mxu0 0.0
  %2033 = vmatpush.msra.mxu0 %v553
  %2034 = vmatmul.f32.gmra.mxu0 %v1995
  %v2035 = vpop.f32.mrf.mxu0
  %v2036 = vadd.f32 %v711, %v2035
  %2037 = vmatmul.f32.gmra.mxu0 %v1998
  %v2038 = vpop.f32.mrf.mxu0
  %v2039 = vadd.f32 %v712, %v2038
  %2040 = vmatmul.f32.gmra.mxu0 %v2001
  %v2041 = vpop.f32.mrf.mxu0
  %v2042 = vadd.f32 %v713, %v2041
  %2043 = vmatmul.f32.gmra.mxu0 %v2004
  %v2044 = vpop.f32.mrf.mxu0
  %v2045 = vadd.f32 %v714, %v2044
  %2046 = vmatmul.f32.gmra.mxu0 %v2007
  %v2047 = vpop.f32.mrf.mxu0
  %v2048 = vadd.f32 %v715, %v2047
  %2049 = vmatmul.f32.gmra.mxu0 %v2010
  %v2050 = vpop.f32.mrf.mxu0
  %v2051 = vadd.f32 %v716, %v2050
  %2052 = vmatmul.f32.gmra.mxu0 %v2013
  %v2053 = vpop.f32.mrf.mxu0
  %v2054 = vadd.f32 %v717, %v2053
  %2055 = vmatmul.f32.gmra.mxu0 %v2016
  %v2056 = vpop.f32.mrf.mxu0
  %v2057 = vadd.f32 %v718, %v2056
  %2058 = vdwg.mxu0
  %v2060 = vsel %vm823, %v431, 0
  %v2063 = vsel %vm823, %v432, 0
  %v2066 = vsel %vm823, %v433, 0
  %v2069 = vsel %vm823, %v434, 0
  %v2072 = vsel %vm823, %v435, 0
  %v2075 = vsel %vm823, %v436, 0
  %v2078 = vsel %vm823, %v437, 0
  %v2081 = vsel %vm823, %v438, 0
  %2083 = vmatpush.msra.mxu0 0.0
  %2084 = vmatpush.msra.mxu0 0.0
  %2085 = vmatpush.msra.mxu0 0.0
  %2086 = vmatpush.msra.mxu0 0.0
  %2087 = vmatpush.msra.mxu0 0.0
  %2088 = vmatpush.msra.mxu0 0.0
  %2089 = vmatpush.msra.mxu0 0.0
  %2090 = vmatpush.msra.mxu0 0.0
  %2091 = vmatpush.msra.mxu0 0.0
  %2092 = vmatpush.msra.mxu0 0.0
  %2093 = vmatpush.msra.mxu0 0.0
  %2094 = vmatpush.msra.mxu0 0.0
  %2095 = vmatpush.msra.mxu0 0.0
  %2096 = vmatpush.msra.mxu0 0.0
  %2097 = vmatpush.msra.mxu0 0.0
  %2098 = vmatpush.msra.mxu0 %v554
  %2099 = vmatmul.f32.gmra.mxu0 %v2060
  %v2100 = vpop.f32.mrf.mxu0
  %v2101 = vadd.f32 %v719, %v2100
  %2102 = vmatmul.f32.gmra.mxu0 %v2063
  %v2103 = vpop.f32.mrf.mxu0
  %v2104 = vadd.f32 %v720, %v2103
  %2105 = vmatmul.f32.gmra.mxu0 %v2066
  %v2106 = vpop.f32.mrf.mxu0
  %v2107 = vadd.f32 %v721, %v2106
  %2108 = vmatmul.f32.gmra.mxu0 %v2069
  %v2109 = vpop.f32.mrf.mxu0
  %v2110 = vadd.f32 %v722, %v2109
  %2111 = vmatmul.f32.gmra.mxu0 %v2072
  %v2112 = vpop.f32.mrf.mxu0
  %v2113 = vadd.f32 %v723, %v2112
  %2114 = vmatmul.f32.gmra.mxu0 %v2075
  %v2115 = vpop.f32.mrf.mxu0
  %v2116 = vadd.f32 %v724, %v2115
  %2117 = vmatmul.f32.gmra.mxu0 %v2078
  %v2118 = vpop.f32.mrf.mxu0
  %v2119 = vadd.f32 %v725, %v2118
  %2120 = vmatmul.f32.gmra.mxu0 %v2081
  %v2121 = vpop.f32.mrf.mxu0
  %v2122 = vadd.f32 %v726, %v2121
  %2123 = vdwg.mxu0
  %v2125 = vsel %vm823, %v439, 0
  %v2128 = vsel %vm823, %v440, 0
  %v2131 = vsel %vm823, %v441, 0
  %v2134 = vsel %vm823, %v442, 0
  %v2137 = vsel %vm823, %v443, 0
  %v2140 = vsel %vm823, %v444, 0
  %v2143 = vsel %vm823, %v445, 0
  %v2146 = vsel %vm823, %v446, 0
  %2148 = vmatpush.msra.mxu0 0.0
  %2149 = vmatpush.msra.mxu0 0.0
  %2150 = vmatpush.msra.mxu0 0.0
  %2151 = vmatpush.msra.mxu0 0.0
  %2152 = vmatpush.msra.mxu0 0.0
  %2153 = vmatpush.msra.mxu0 0.0
  %2154 = vmatpush.msra.mxu0 0.0
  %2155 = vmatpush.msra.mxu0 0.0
  %2156 = vmatpush.msra.mxu0 0.0
  %2157 = vmatpush.msra.mxu0 0.0
  %2158 = vmatpush.msra.mxu0 0.0
  %2159 = vmatpush.msra.mxu0 0.0
  %2160 = vmatpush.msra.mxu0 0.0
  %2161 = vmatpush.msra.mxu0 0.0
  %2162 = vmatpush.msra.mxu0 0.0
  %2163 = vmatpush.msra.mxu0 %v555
  %2164 = vmatmul.f32.gmra.mxu0 %v2125
  %v2165 = vpop.f32.mrf.mxu0
  %v2166 = vadd.f32 %v727, %v2165
  %2167 = vmatmul.f32.gmra.mxu0 %v2128
  %v2168 = vpop.f32.mrf.mxu0
  %v2169 = vadd.f32 %v728, %v2168
  %2170 = vmatmul.f32.gmra.mxu0 %v2131
  %v2171 = vpop.f32.mrf.mxu0
  %v2172 = vadd.f32 %v729, %v2171
  %2173 = vmatmul.f32.gmra.mxu0 %v2134
  %v2174 = vpop.f32.mrf.mxu0
  %v2175 = vadd.f32 %v730, %v2174
  %2176 = vmatmul.f32.gmra.mxu0 %v2137
  %v2177 = vpop.f32.mrf.mxu0
  %v2178 = vadd.f32 %v731, %v2177
  %2179 = vmatmul.f32.gmra.mxu0 %v2140
  %v2180 = vpop.f32.mrf.mxu0
  %v2181 = vadd.f32 %v732, %v2180
  %2182 = vmatmul.f32.gmra.mxu0 %v2143
  %v2183 = vpop.f32.mrf.mxu0
  %v2184 = vadd.f32 %v733, %v2183
  %2185 = vmatmul.f32.gmra.mxu0 %v2146
  %v2186 = vpop.f32.mrf.mxu0
  %v2187 = vadd.f32 %v734, %v2186
  %2188 = vdwg.mxu0
  %v2190 = vsel %vm823, %v447, 0
  %v2193 = vsel %vm823, %v448, 0
  %v2196 = vsel %vm823, %v449, 0
  %v2199 = vsel %vm823, %v450, 0
  %v2202 = vsel %vm823, %v451, 0
  %v2205 = vsel %vm823, %v452, 0
  %v2208 = vsel %vm823, %v453, 0
  %v2211 = vsel %vm823, %v454, 0
  %2213 = vmatpush.msra.mxu0 0.0
  %2214 = vmatpush.msra.mxu0 0.0
  %2215 = vmatpush.msra.mxu0 0.0
  %2216 = vmatpush.msra.mxu0 0.0
  %2217 = vmatpush.msra.mxu0 0.0
  %2218 = vmatpush.msra.mxu0 0.0
  %2219 = vmatpush.msra.mxu0 0.0
  %2220 = vmatpush.msra.mxu0 0.0
  %2221 = vmatpush.msra.mxu0 0.0
  %2222 = vmatpush.msra.mxu0 0.0
  %2223 = vmatpush.msra.mxu0 0.0
  %2224 = vmatpush.msra.mxu0 0.0
  %2225 = vmatpush.msra.mxu0 0.0
  %2226 = vmatpush.msra.mxu0 0.0
  %2227 = vmatpush.msra.mxu0 0.0
  %2228 = vmatpush.msra.mxu0 %v556
  %2229 = vmatmul.f32.gmra.mxu0 %v2190
  %v2230 = vpop.f32.mrf.mxu0
  %v2231 = vadd.f32 %v735, %v2230
  %2232 = vmatmul.f32.gmra.mxu0 %v2193
  %v2233 = vpop.f32.mrf.mxu0
  %v2234 = vadd.f32 %v736, %v2233
  %2235 = vmatmul.f32.gmra.mxu0 %v2196
  %v2236 = vpop.f32.mrf.mxu0
  %v2237 = vadd.f32 %v737, %v2236
  %2238 = vmatmul.f32.gmra.mxu0 %v2199
  %v2239 = vpop.f32.mrf.mxu0
  %v2240 = vadd.f32 %v738, %v2239
  %2241 = vmatmul.f32.gmra.mxu0 %v2202
  %v2242 = vpop.f32.mrf.mxu0
  %v2243 = vadd.f32 %v739, %v2242
  %2244 = vmatmul.f32.gmra.mxu0 %v2205
  %v2245 = vpop.f32.mrf.mxu0
  %v2246 = vadd.f32 %v740, %v2245
  %2247 = vmatmul.f32.gmra.mxu0 %v2208
  %v2248 = vpop.f32.mrf.mxu0
  %v2249 = vadd.f32 %v741, %v2248
  %2250 = vmatmul.f32.gmra.mxu0 %v2211
  %v2251 = vpop.f32.mrf.mxu0
  %v2252 = vadd.f32 %v742, %v2251
  %2253 = vdwg.mxu0
  %v2255 = vsel %vm823, %v455, 0
  %v2258 = vsel %vm823, %v456, 0
  %v2261 = vsel %vm823, %v457, 0
  %v2264 = vsel %vm823, %v458, 0
  %v2267 = vsel %vm823, %v459, 0
  %v2270 = vsel %vm823, %v460, 0
  %v2273 = vsel %vm823, %v461, 0
  %v2276 = vsel %vm823, %v462, 0
  %2278 = vmatpush.msra.mxu0 0.0
  %2279 = vmatpush.msra.mxu0 0.0
  %2280 = vmatpush.msra.mxu0 0.0
  %2281 = vmatpush.msra.mxu0 0.0
  %2282 = vmatpush.msra.mxu0 0.0
  %2283 = vmatpush.msra.mxu0 0.0
  %2284 = vmatpush.msra.mxu0 0.0
  %2285 = vmatpush.msra.mxu0 0.0
  %2286 = vmatpush.msra.mxu0 0.0
  %2287 = vmatpush.msra.mxu0 0.0
  %2288 = vmatpush.msra.mxu0 0.0
  %2289 = vmatpush.msra.mxu0 0.0
  %2290 = vmatpush.msra.mxu0 0.0
  %2291 = vmatpush.msra.mxu0 0.0
  %2292 = vmatpush.msra.mxu0 0.0
  %2293 = vmatpush.msra.mxu0 %v557
  %2294 = vmatmul.f32.gmra.mxu0 %v2255
  %v2295 = vpop.f32.mrf.mxu0
  %v2296 = vadd.f32 %v743, %v2295
  %2297 = vmatmul.f32.gmra.mxu0 %v2258
  %v2298 = vpop.f32.mrf.mxu0
  %v2299 = vadd.f32 %v744, %v2298
  %2300 = vmatmul.f32.gmra.mxu0 %v2261
  %v2301 = vpop.f32.mrf.mxu0
  %v2302 = vadd.f32 %v745, %v2301
  %2303 = vmatmul.f32.gmra.mxu0 %v2264
  %v2304 = vpop.f32.mrf.mxu0
  %v2305 = vadd.f32 %v746, %v2304
  %2306 = vmatmul.f32.gmra.mxu0 %v2267
  %v2307 = vpop.f32.mrf.mxu0
  %v2308 = vadd.f32 %v747, %v2307
  %2309 = vmatmul.f32.gmra.mxu0 %v2270
  %v2310 = vpop.f32.mrf.mxu0
  %v2311 = vadd.f32 %v748, %v2310
  %2312 = vmatmul.f32.gmra.mxu0 %v2273
  %v2313 = vpop.f32.mrf.mxu0
  %v2314 = vadd.f32 %v749, %v2313
  %2315 = vmatmul.f32.gmra.mxu0 %v2276
  %v2316 = vpop.f32.mrf.mxu0
  %v2317 = vadd.f32 %v750, %v2316
  %2318 = vdwg.mxu0
  %v2320 = vsel %vm823, %v463, 0
  %v2323 = vsel %vm823, %v464, 0
  %v2326 = vsel %vm823, %v465, 0
  %v2329 = vsel %vm823, %v466, 0
  %v2332 = vsel %vm823, %v467, 0
  %v2335 = vsel %vm823, %v468, 0
  %v2338 = vsel %vm823, %v469, 0
  %v2341 = vsel %vm823, %v470, 0
  %2343 = vmatpush.msra.mxu0 0.0
  %2344 = vmatpush.msra.mxu0 0.0
  %2345 = vmatpush.msra.mxu0 0.0
  %2346 = vmatpush.msra.mxu0 0.0
  %2347 = vmatpush.msra.mxu0 0.0
  %2348 = vmatpush.msra.mxu0 0.0
  %2349 = vmatpush.msra.mxu0 0.0
  %2350 = vmatpush.msra.mxu0 0.0
  %2351 = vmatpush.msra.mxu0 0.0
  %2352 = vmatpush.msra.mxu0 0.0
  %2353 = vmatpush.msra.mxu0 0.0
  %2354 = vmatpush.msra.mxu0 0.0
  %2355 = vmatpush.msra.mxu0 0.0
  %2356 = vmatpush.msra.mxu0 0.0
  %2357 = vmatpush.msra.mxu0 0.0
  %2358 = vmatpush.msra.mxu0 %v558
  %2359 = vmatmul.f32.gmra.mxu0 %v2320
  %v2360 = vpop.f32.mrf.mxu0
  %v2361 = vadd.f32 %v751, %v2360
  %2362 = vmatmul.f32.gmra.mxu0 %v2323
  %v2363 = vpop.f32.mrf.mxu0
  %v2364 = vadd.f32 %v752, %v2363
  %2365 = vmatmul.f32.gmra.mxu0 %v2326
  %v2366 = vpop.f32.mrf.mxu0
  %v2367 = vadd.f32 %v753, %v2366
  %2368 = vmatmul.f32.gmra.mxu0 %v2329
  %v2369 = vpop.f32.mrf.mxu0
  %v2370 = vadd.f32 %v754, %v2369
  %2371 = vmatmul.f32.gmra.mxu0 %v2332
  %v2372 = vpop.f32.mrf.mxu0
  %v2373 = vadd.f32 %v755, %v2372
  %2374 = vmatmul.f32.gmra.mxu0 %v2335
  %v2375 = vpop.f32.mrf.mxu0
  %v2376 = vadd.f32 %v756, %v2375
  %2377 = vmatmul.f32.gmra.mxu0 %v2338
  %v2378 = vpop.f32.mrf.mxu0
  %v2379 = vadd.f32 %v757, %v2378
  %2380 = vmatmul.f32.gmra.mxu0 %v2341
  %v2381 = vpop.f32.mrf.mxu0
  %v2382 = vadd.f32 %v758, %v2381
  %2383 = vdwg.mxu0
  %v2385 = vsel %vm823, %v471, 0
  %v2388 = vsel %vm823, %v472, 0
  %v2391 = vsel %vm823, %v473, 0
  %v2394 = vsel %vm823, %v474, 0
  %v2397 = vsel %vm823, %v475, 0
  %v2400 = vsel %vm823, %v476, 0
  %v2403 = vsel %vm823, %v477, 0
  %v2406 = vsel %vm823, %v478, 0
  %2408 = vmatpush.msra.mxu0 0.0
  %2409 = vmatpush.msra.mxu0 0.0
  %2410 = vmatpush.msra.mxu0 0.0
  %2411 = vmatpush.msra.mxu0 0.0
  %2412 = vmatpush.msra.mxu0 0.0
  %2413 = vmatpush.msra.mxu0 0.0
  %2414 = vmatpush.msra.mxu0 0.0
  %2415 = vmatpush.msra.mxu0 0.0
  %2416 = vmatpush.msra.mxu0 0.0
  %2417 = vmatpush.msra.mxu0 0.0
  %2418 = vmatpush.msra.mxu0 0.0
  %2419 = vmatpush.msra.mxu0 0.0
  %2420 = vmatpush.msra.mxu0 0.0
  %2421 = vmatpush.msra.mxu0 0.0
  %2422 = vmatpush.msra.mxu0 0.0
  %2423 = vmatpush.msra.mxu0 %v559
  %2424 = vmatmul.f32.gmra.mxu0 %v2385
  %v2425 = vpop.f32.mrf.mxu0
  %v2426 = vadd.f32 %v759, %v2425
  %2427 = vmatmul.f32.gmra.mxu0 %v2388
  %v2428 = vpop.f32.mrf.mxu0
  %v2429 = vadd.f32 %v760, %v2428
  %2430 = vmatmul.f32.gmra.mxu0 %v2391
  %v2431 = vpop.f32.mrf.mxu0
  %v2432 = vadd.f32 %v761, %v2431
  %2433 = vmatmul.f32.gmra.mxu0 %v2394
  %v2434 = vpop.f32.mrf.mxu0
  %v2435 = vadd.f32 %v762, %v2434
  %2436 = vmatmul.f32.gmra.mxu0 %v2397
  %v2437 = vpop.f32.mrf.mxu0
  %v2438 = vadd.f32 %v763, %v2437
  %2439 = vmatmul.f32.gmra.mxu0 %v2400
  %v2440 = vpop.f32.mrf.mxu0
  %v2441 = vadd.f32 %v764, %v2440
  %2442 = vmatmul.f32.gmra.mxu0 %v2403
  %v2443 = vpop.f32.mrf.mxu0
  %v2444 = vadd.f32 %v765, %v2443
  %2445 = vmatmul.f32.gmra.mxu0 %v2406
  %v2446 = vpop.f32.mrf.mxu0
  %v2447 = vadd.f32 %v766, %v2446
  %2448 = vdwg.mxu0
  %v2450 = vsel %vm823, %v479, 0
  %v2453 = vsel %vm823, %v480, 0
  %v2456 = vsel %vm823, %v481, 0
  %v2459 = vsel %vm823, %v482, 0
  %v2462 = vsel %vm823, %v483, 0
  %v2465 = vsel %vm823, %v484, 0
  %v2468 = vsel %vm823, %v485, 0
  %v2471 = vsel %vm823, %v486, 0
  %2473 = vmatpush.msra.mxu0 0.0
  %2474 = vmatpush.msra.mxu0 0.0
  %2475 = vmatpush.msra.mxu0 0.0
  %2476 = vmatpush.msra.mxu0 0.0
  %2477 = vmatpush.msra.mxu0 0.0
  %2478 = vmatpush.msra.mxu0 0.0
  %2479 = vmatpush.msra.mxu0 0.0
  %2480 = vmatpush.msra.mxu0 0.0
  %2481 = vmatpush.msra.mxu0 0.0
  %2482 = vmatpush.msra.mxu0 0.0
  %2483 = vmatpush.msra.mxu0 0.0
  %2484 = vmatpush.msra.mxu0 0.0
  %2485 = vmatpush.msra.mxu0 0.0
  %2486 = vmatpush.msra.mxu0 0.0
  %2487 = vmatpush.msra.mxu0 0.0
  %2488 = vmatpush.msra.mxu0 %v560
  %2489 = vmatmul.f32.gmra.mxu0 %v2450
  %v2490 = vpop.f32.mrf.mxu0
  %v2491 = vadd.f32 %v767, %v2490
  %2492 = vmatmul.f32.gmra.mxu0 %v2453
  %v2493 = vpop.f32.mrf.mxu0
  %v2494 = vadd.f32 %v768, %v2493
  %2495 = vmatmul.f32.gmra.mxu0 %v2456
  %v2496 = vpop.f32.mrf.mxu0
  %v2497 = vadd.f32 %v769, %v2496
  %2498 = vmatmul.f32.gmra.mxu0 %v2459
  %v2499 = vpop.f32.mrf.mxu0
  %v2500 = vadd.f32 %v770, %v2499
  %2501 = vmatmul.f32.gmra.mxu0 %v2462
  %v2502 = vpop.f32.mrf.mxu0
  %v2503 = vadd.f32 %v771, %v2502
  %2504 = vmatmul.f32.gmra.mxu0 %v2465
  %v2505 = vpop.f32.mrf.mxu0
  %v2506 = vadd.f32 %v772, %v2505
  %2507 = vmatmul.f32.gmra.mxu0 %v2468
  %v2508 = vpop.f32.mrf.mxu0
  %v2509 = vadd.f32 %v773, %v2508
  %2510 = vmatmul.f32.gmra.mxu0 %v2471
  %v2511 = vpop.f32.mrf.mxu0
  %v2512 = vadd.f32 %v774, %v2511
  %2513 = vdwg.mxu0
  %v2515 = vsel %vm823, %v487, 0
  %v2518 = vsel %vm823, %v488, 0
  %v2521 = vsel %vm823, %v489, 0
  %v2524 = vsel %vm823, %v490, 0
  %v2527 = vsel %vm823, %v491, 0
  %v2530 = vsel %vm823, %v492, 0
  %v2533 = vsel %vm823, %v493, 0
  %v2536 = vsel %vm823, %v494, 0
  %2538 = vmatpush.msra.mxu0 0.0
  %2539 = vmatpush.msra.mxu0 0.0
  %2540 = vmatpush.msra.mxu0 0.0
  %2541 = vmatpush.msra.mxu0 0.0
  %2542 = vmatpush.msra.mxu0 0.0
  %2543 = vmatpush.msra.mxu0 0.0
  %2544 = vmatpush.msra.mxu0 0.0
  %2545 = vmatpush.msra.mxu0 0.0
  %2546 = vmatpush.msra.mxu0 0.0
  %2547 = vmatpush.msra.mxu0 0.0
  %2548 = vmatpush.msra.mxu0 0.0
  %2549 = vmatpush.msra.mxu0 0.0
  %2550 = vmatpush.msra.mxu0 0.0
  %2551 = vmatpush.msra.mxu0 0.0
  %2552 = vmatpush.msra.mxu0 0.0
  %2553 = vmatpush.msra.mxu0 %v561
  %2554 = vmatmul.f32.gmra.mxu0 %v2515
  %v2555 = vpop.f32.mrf.mxu0
  %v2556 = vadd.f32 %v775, %v2555
  %2557 = vmatmul.f32.gmra.mxu0 %v2518
  %v2558 = vpop.f32.mrf.mxu0
  %v2559 = vadd.f32 %v776, %v2558
  %2560 = vmatmul.f32.gmra.mxu0 %v2521
  %v2561 = vpop.f32.mrf.mxu0
  %v2562 = vadd.f32 %v777, %v2561
  %2563 = vmatmul.f32.gmra.mxu0 %v2524
  %v2564 = vpop.f32.mrf.mxu0
  %v2565 = vadd.f32 %v778, %v2564
  %2566 = vmatmul.f32.gmra.mxu0 %v2527
  %v2567 = vpop.f32.mrf.mxu0
  %v2568 = vadd.f32 %v779, %v2567
  %2569 = vmatmul.f32.gmra.mxu0 %v2530
  %v2570 = vpop.f32.mrf.mxu0
  %v2571 = vadd.f32 %v780, %v2570
  %2572 = vmatmul.f32.gmra.mxu0 %v2533
  %v2573 = vpop.f32.mrf.mxu0
  %v2574 = vadd.f32 %v781, %v2573
  %2575 = vmatmul.f32.gmra.mxu0 %v2536
  %v2576 = vpop.f32.mrf.mxu0
  %v2577 = vadd.f32 %v782, %v2576
  %2578 = vdwg.mxu0
  %v2580 = vsel %vm823, %v495, 0
  %v2583 = vsel %vm823, %v496, 0
  %v2586 = vsel %vm823, %v497, 0
  %v2589 = vsel %vm823, %v498, 0
  %v2592 = vsel %vm823, %v499, 0
  %v2595 = vsel %vm823, %v500, 0
  %v2598 = vsel %vm823, %v501, 0
  %v2601 = vsel %vm823, %v502, 0
  %2603 = vmatpush.msra.mxu0 0.0
  %2604 = vmatpush.msra.mxu0 0.0
  %2605 = vmatpush.msra.mxu0 0.0
  %2606 = vmatpush.msra.mxu0 0.0
  %2607 = vmatpush.msra.mxu0 0.0
  %2608 = vmatpush.msra.mxu0 0.0
  %2609 = vmatpush.msra.mxu0 0.0
  %2610 = vmatpush.msra.mxu0 0.0
  %2611 = vmatpush.msra.mxu0 0.0
  %2612 = vmatpush.msra.mxu0 0.0
  %2613 = vmatpush.msra.mxu0 0.0
  %2614 = vmatpush.msra.mxu0 0.0
  %2615 = vmatpush.msra.mxu0 0.0
  %2616 = vmatpush.msra.mxu0 0.0
  %2617 = vmatpush.msra.mxu0 0.0
  %2618 = vmatpush.msra.mxu0 %v562
  %2619 = vmatmul.f32.gmra.mxu0 %v2580
  %v2620 = vpop.f32.mrf.mxu0
  %v2621 = vadd.f32 %v783, %v2620
  %2622 = vmatmul.f32.gmra.mxu0 %v2583
  %v2623 = vpop.f32.mrf.mxu0
  %v2624 = vadd.f32 %v784, %v2623
  %2625 = vmatmul.f32.gmra.mxu0 %v2586
  %v2626 = vpop.f32.mrf.mxu0
  %v2627 = vadd.f32 %v785, %v2626
  %2628 = vmatmul.f32.gmra.mxu0 %v2589
  %v2629 = vpop.f32.mrf.mxu0
  %v2630 = vadd.f32 %v786, %v2629
  %2631 = vmatmul.f32.gmra.mxu0 %v2592
  %v2632 = vpop.f32.mrf.mxu0
  %v2633 = vadd.f32 %v787, %v2632
  %2634 = vmatmul.f32.gmra.mxu0 %v2595
  %v2635 = vpop.f32.mrf.mxu0
  %v2636 = vadd.f32 %v788, %v2635
  %2637 = vmatmul.f32.gmra.mxu0 %v2598
  %v2638 = vpop.f32.mrf.mxu0
  %v2639 = vadd.f32 %v789, %v2638
  %2640 = vmatmul.f32.gmra.mxu0 %v2601
  %v2641 = vpop.f32.mrf.mxu0
  %v2642 = vadd.f32 %v790, %v2641
  %2643 = vdwg.mxu0
  %v2645 = vsel %vm823, %v503, 0
  %v2648 = vsel %vm823, %v504, 0
  %v2651 = vsel %vm823, %v505, 0
  %v2654 = vsel %vm823, %v506, 0
  %v2657 = vsel %vm823, %v507, 0
  %v2660 = vsel %vm823, %v508, 0
  %v2663 = vsel %vm823, %v509, 0
  %v2666 = vsel %vm823, %v510, 0
  %2668 = vmatpush.msra.mxu0 0.0
  %2669 = vmatpush.msra.mxu0 0.0
  %2670 = vmatpush.msra.mxu0 0.0
  %2671 = vmatpush.msra.mxu0 0.0
  %2672 = vmatpush.msra.mxu0 0.0
  %2673 = vmatpush.msra.mxu0 0.0
  %2674 = vmatpush.msra.mxu0 0.0
  %2675 = vmatpush.msra.mxu0 0.0
  %2676 = vmatpush.msra.mxu0 0.0
  %2677 = vmatpush.msra.mxu0 0.0
  %2678 = vmatpush.msra.mxu0 0.0
  %2679 = vmatpush.msra.mxu0 0.0
  %2680 = vmatpush.msra.mxu0 0.0
  %2681 = vmatpush.msra.mxu0 0.0
  %2682 = vmatpush.msra.mxu0 0.0
  %2683 = vmatpush.msra.mxu0 %v563
  %2684 = vmatmul.f32.gmra.mxu0 %v2645
  %v2685 = vpop.f32.mrf.mxu0
  %v2686 = vadd.f32 %v791, %v2685
  %2687 = vmatmul.f32.gmra.mxu0 %v2648
  %v2688 = vpop.f32.mrf.mxu0
  %v2689 = vadd.f32 %v792, %v2688
  %2690 = vmatmul.f32.gmra.mxu0 %v2651
  %v2691 = vpop.f32.mrf.mxu0
  %v2692 = vadd.f32 %v793, %v2691
  %2693 = vmatmul.f32.gmra.mxu0 %v2654
  %v2694 = vpop.f32.mrf.mxu0
  %v2695 = vadd.f32 %v794, %v2694
  %2696 = vmatmul.f32.gmra.mxu0 %v2657
  %v2697 = vpop.f32.mrf.mxu0
  %v2698 = vadd.f32 %v795, %v2697
  %2699 = vmatmul.f32.gmra.mxu0 %v2660
  %v2700 = vpop.f32.mrf.mxu0
  %v2701 = vadd.f32 %v796, %v2700
  %2702 = vmatmul.f32.gmra.mxu0 %v2663
  %v2703 = vpop.f32.mrf.mxu0
  %v2704 = vadd.f32 %v797, %v2703
  %2705 = vmatmul.f32.gmra.mxu0 %v2666
  %v2706 = vpop.f32.mrf.mxu0
  %v2707 = vadd.f32 %v798, %v2706
  %2708 = vdwg.mxu0
  %v2710 = vsel %vm823, %v511, 0
  %v2713 = vsel %vm823, %v512, 0
  %v2716 = vsel %vm823, %v513, 0
  %v2719 = vsel %vm823, %v514, 0
  %v2722 = vsel %vm823, %v515, 0
  %v2725 = vsel %vm823, %v516, 0
  %v2728 = vsel %vm823, %v517, 0
  %v2731 = vsel %vm823, %v518, 0
  %2733 = vmatpush.msra.mxu0 0.0
  %2734 = vmatpush.msra.mxu0 0.0
  %2735 = vmatpush.msra.mxu0 0.0
  %2736 = vmatpush.msra.mxu0 0.0
  %2737 = vmatpush.msra.mxu0 0.0
  %2738 = vmatpush.msra.mxu0 0.0
  %2739 = vmatpush.msra.mxu0 0.0
  %2740 = vmatpush.msra.mxu0 0.0
  %2741 = vmatpush.msra.mxu0 0.0
  %2742 = vmatpush.msra.mxu0 0.0
  %2743 = vmatpush.msra.mxu0 0.0
  %2744 = vmatpush.msra.mxu0 0.0
  %2745 = vmatpush.msra.mxu0 0.0
  %2746 = vmatpush.msra.mxu0 0.0
  %2747 = vmatpush.msra.mxu0 0.0
  %2748 = vmatpush.msra.mxu0 %v564
  %2749 = vmatmul.f32.gmra.mxu0 %v2710
  %v2750 = vpop.f32.mrf.mxu0
  %v2751 = vadd.f32 %v799, %v2750
  %2752 = vmatmul.f32.gmra.mxu0 %v2713
  %v2753 = vpop.f32.mrf.mxu0
  %v2754 = vadd.f32 %v800, %v2753
  %2755 = vmatmul.f32.gmra.mxu0 %v2716
  %v2756 = vpop.f32.mrf.mxu0
  %v2757 = vadd.f32 %v801, %v2756
  %2758 = vmatmul.f32.gmra.mxu0 %v2719
  %v2759 = vpop.f32.mrf.mxu0
  %v2760 = vadd.f32 %v802, %v2759
  %2761 = vmatmul.f32.gmra.mxu0 %v2722
  %v2762 = vpop.f32.mrf.mxu0
  %v2763 = vadd.f32 %v803, %v2762
  %2764 = vmatmul.f32.gmra.mxu0 %v2725
  %v2765 = vpop.f32.mrf.mxu0
  %v2766 = vadd.f32 %v804, %v2765
  %2767 = vmatmul.f32.gmra.mxu0 %v2728
  %v2768 = vpop.f32.mrf.mxu0
  %v2769 = vadd.f32 %v805, %v2768
  %2770 = vmatmul.f32.gmra.mxu0 %v2731
  %v2771 = vpop.f32.mrf.mxu0
  %v2772 = vadd.f32 %v806, %v2771
  %2773 = vdwg.mxu0
  %v2775 = vsel %vm823, %v519, 0
  %v2778 = vsel %vm823, %v520, 0
  %v2781 = vsel %vm823, %v521, 0
  %v2784 = vsel %vm823, %v522, 0
  %v2787 = vsel %vm823, %v523, 0
  %v2790 = vsel %vm823, %v524, 0
  %v2793 = vsel %vm823, %v525, 0
  %v2796 = vsel %vm823, %v526, 0
  %2798 = vmatpush.msra.mxu0 0.0
  %2799 = vmatpush.msra.mxu0 0.0
  %2800 = vmatpush.msra.mxu0 0.0
  %2801 = vmatpush.msra.mxu0 0.0
  %2802 = vmatpush.msra.mxu0 0.0
  %2803 = vmatpush.msra.mxu0 0.0
  %2804 = vmatpush.msra.mxu0 0.0
  %2805 = vmatpush.msra.mxu0 0.0
  %2806 = vmatpush.msra.mxu0 0.0
  %2807 = vmatpush.msra.mxu0 0.0
  %2808 = vmatpush.msra.mxu0 0.0
  %2809 = vmatpush.msra.mxu0 0.0
  %2810 = vmatpush.msra.mxu0 0.0
  %2811 = vmatpush.msra.mxu0 0.0
  %2812 = vmatpush.msra.mxu0 0.0
  %2813 = vmatpush.msra.mxu0 %v565
  %2814 = vmatmul.f32.gmra.mxu0 %v2775
  %v2815 = vpop.f32.mrf.mxu0
  %v2816 = vadd.f32 %v807, %v2815
  %2817 = vmatmul.f32.gmra.mxu0 %v2778
  %v2818 = vpop.f32.mrf.mxu0
  %v2819 = vadd.f32 %v808, %v2818
  %2820 = vmatmul.f32.gmra.mxu0 %v2781
  %v2821 = vpop.f32.mrf.mxu0
  %v2822 = vadd.f32 %v809, %v2821
  %2823 = vmatmul.f32.gmra.mxu0 %v2784
  %v2824 = vpop.f32.mrf.mxu0
  %v2825 = vadd.f32 %v810, %v2824
  %2826 = vmatmul.f32.gmra.mxu0 %v2787
  %v2827 = vpop.f32.mrf.mxu0
  %v2828 = vadd.f32 %v811, %v2827
  %2829 = vmatmul.f32.gmra.mxu0 %v2790
  %v2830 = vpop.f32.mrf.mxu0
  %v2831 = vadd.f32 %v812, %v2830
  %2832 = vmatmul.f32.gmra.mxu0 %v2793
  %v2833 = vpop.f32.mrf.mxu0
  %v2834 = vadd.f32 %v813, %v2833
  %2835 = vmatmul.f32.gmra.mxu0 %v2796
  %v2836 = vpop.f32.mrf.mxu0
  %v2837 = vadd.f32 %v814, %v2836
  %2838 = vdwg.mxu0
  %v2840 = vsel %vm823, %v527, 0
  %v2843 = vsel %vm823, %v528, 0
  %v2846 = vsel %vm823, %v529, 0
  %v2849 = vsel %vm823, %v530, 0
  %v2852 = vsel %vm823, %v531, 0
  %v2855 = vsel %vm823, %v532, 0
  %v2858 = vsel %vm823, %v533, 0
  %v2861 = vsel %vm823, %v534, 0
  %2863 = vmatpush.msra.mxu0 0.0
  %2864 = vmatpush.msra.mxu0 0.0
  %2865 = vmatpush.msra.mxu0 0.0
  %2866 = vmatpush.msra.mxu0 0.0
  %2867 = vmatpush.msra.mxu0 0.0
  %2868 = vmatpush.msra.mxu0 0.0
  %2869 = vmatpush.msra.mxu0 0.0
  %2870 = vmatpush.msra.mxu0 0.0
  %2871 = vmatpush.msra.mxu0 0.0
  %2872 = vmatpush.msra.mxu0 0.0
  %2873 = vmatpush.msra.mxu0 0.0
  %2874 = vmatpush.msra.mxu0 0.0
  %2875 = vmatpush.msra.mxu0 0.0
  %2876 = vmatpush.msra.mxu0 0.0
  %2877 = vmatpush.msra.mxu0 0.0
  %2878 = vmatpush.msra.mxu0 %v566
  %2879 = vmatmul.f32.gmra.mxu0 %v2840
  %v2880 = vpop.f32.mrf.mxu0
  %v2881 = vadd.f32 %v815, %v2880
  %2882 = vmatmul.f32.gmra.mxu0 %v2843
  %v2883 = vpop.f32.mrf.mxu0
  %v2884 = vadd.f32 %v816, %v2883
  %2885 = vmatmul.f32.gmra.mxu0 %v2846
  %v2886 = vpop.f32.mrf.mxu0
  %v2887 = vadd.f32 %v817, %v2886
  %2888 = vmatmul.f32.gmra.mxu0 %v2849
  %v2889 = vpop.f32.mrf.mxu0
  %v2890 = vadd.f32 %v818, %v2889
  %2891 = vmatmul.f32.gmra.mxu0 %v2852
  %v2892 = vpop.f32.mrf.mxu0
  %v2893 = vadd.f32 %v819, %v2892
  %2894 = vmatmul.f32.gmra.mxu0 %v2855
  %v2895 = vpop.f32.mrf.mxu0
  %v2896 = vadd.f32 %v820, %v2895
  %2897 = vmatmul.f32.gmra.mxu0 %v2858
  %v2898 = vpop.f32.mrf.mxu0
  %v2899 = vadd.f32 %v821, %v2898
  %2900 = vmatmul.f32.gmra.mxu0 %v2861
  %v2901 = vpop.f32.mrf.mxu0
  %v2902 = vadd.f32 %v822, %v2901
  %2903 = vdwg.mxu0
  %vm2904 = vcmask 523264
  %v2905 = vsel %vm2904, %v866, -inf
  %2906 = vmax.xlane.f32.xlu0 %v2905
  %v2907 = vpop.xlane.xlu0 %2906
  %v2908 = vsel %vm2904, %v869, -inf
  %2909 = vmax.xlane.f32.xlu0 %v2908
  %v2910 = vpop.xlane.xlu0 %2909
  %v2911 = vsel %vm2904, %v872, -inf
  %2912 = vmax.xlane.f32.xlu0 %v2911
  %v2913 = vpop.xlane.xlu0 %2912
  %v2914 = vsel %vm2904, %v875, -inf
  %2915 = vmax.xlane.f32.xlu0 %v2914
  %v2916 = vpop.xlane.xlu0 %2915
  %v2917 = vsel %vm2904, %v878, -inf
  %2918 = vmax.xlane.f32.xlu0 %v2917
  %v2919 = vpop.xlane.xlu0 %2918
  %v2920 = vsel %vm2904, %v881, -inf
  %2921 = vmax.xlane.f32.xlu0 %v2920
  %v2922 = vpop.xlane.xlu0 %2921
  %v2923 = vsel %vm2904, %v884, -inf
  %2924 = vmax.xlane.f32.xlu0 %v2923
  %v2925 = vpop.xlane.xlu0 %2924
  %v2926 = vsel %vm2904, %v887, -inf
  %2927 = vmax.xlane.f32.xlu0 %v2926
  %v2928 = vpop.xlane.xlu0 %2927
  %v2929 = vsel %vm2904, %v931, -inf
  %2930 = vmax.xlane.f32.xlu0 %v2929
  %v2931 = vpop.xlane.xlu0 %2930
  %v2932 = vsel %vm2904, %v934, -inf
  %2933 = vmax.xlane.f32.xlu0 %v2932
  %v2934 = vpop.xlane.xlu0 %2933
  %v2935 = vsel %vm2904, %v937, -inf
  %2936 = vmax.xlane.f32.xlu0 %v2935
  %v2937 = vpop.xlane.xlu0 %2936
  %v2938 = vsel %vm2904, %v940, -inf
  %2939 = vmax.xlane.f32.xlu0 %v2938
  %v2940 = vpop.xlane.xlu0 %2939
  %v2941 = vsel %vm2904, %v943, -inf
  %2942 = vmax.xlane.f32.xlu0 %v2941
  %v2943 = vpop.xlane.xlu0 %2942
  %v2944 = vsel %vm2904, %v946, -inf
  %2945 = vmax.xlane.f32.xlu0 %v2944
  %v2946 = vpop.xlane.xlu0 %2945
  %v2947 = vsel %vm2904, %v949, -inf
  %2948 = vmax.xlane.f32.xlu0 %v2947
  %v2949 = vpop.xlane.xlu0 %2948
  %v2950 = vsel %vm2904, %v952, -inf
  %2951 = vmax.xlane.f32.xlu0 %v2950
  %v2952 = vpop.xlane.xlu0 %2951
  %v2953 = vsel %vm2904, %v996, -inf
  %2954 = vmax.xlane.f32.xlu0 %v2953
  %v2955 = vpop.xlane.xlu0 %2954
  %v2956 = vsel %vm2904, %v999, -inf
  %2957 = vmax.xlane.f32.xlu0 %v2956
  %v2958 = vpop.xlane.xlu0 %2957
  %v2959 = vsel %vm2904, %v1002, -inf
  %2960 = vmax.xlane.f32.xlu0 %v2959
  %v2961 = vpop.xlane.xlu0 %2960
  %v2962 = vsel %vm2904, %v1005, -inf
  %2963 = vmax.xlane.f32.xlu0 %v2962
  %v2964 = vpop.xlane.xlu0 %2963
  %v2965 = vsel %vm2904, %v1008, -inf
  %2966 = vmax.xlane.f32.xlu0 %v2965
  %v2967 = vpop.xlane.xlu0 %2966
  %v2968 = vsel %vm2904, %v1011, -inf
  %2969 = vmax.xlane.f32.xlu0 %v2968
  %v2970 = vpop.xlane.xlu0 %2969
  %v2971 = vsel %vm2904, %v1014, -inf
  %2972 = vmax.xlane.f32.xlu0 %v2971
  %v2973 = vpop.xlane.xlu0 %2972
  %v2974 = vsel %vm2904, %v1017, -inf
  %2975 = vmax.xlane.f32.xlu0 %v2974
  %v2976 = vpop.xlane.xlu0 %2975
  %v2977 = vsel %vm2904, %v1061, -inf
  %2978 = vmax.xlane.f32.xlu0 %v2977
  %v2979 = vpop.xlane.xlu0 %2978
  %v2980 = vsel %vm2904, %v1064, -inf
  %2981 = vmax.xlane.f32.xlu0 %v2980
  %v2982 = vpop.xlane.xlu0 %2981
  %v2983 = vsel %vm2904, %v1067, -inf
  %2984 = vmax.xlane.f32.xlu0 %v2983
  %v2985 = vpop.xlane.xlu0 %2984
  %v2986 = vsel %vm2904, %v1070, -inf
  %2987 = vmax.xlane.f32.xlu0 %v2986
  %v2988 = vpop.xlane.xlu0 %2987
  %v2989 = vsel %vm2904, %v1073, -inf
  %2990 = vmax.xlane.f32.xlu0 %v2989
  %v2991 = vpop.xlane.xlu0 %2990
  %v2992 = vsel %vm2904, %v1076, -inf
  %2993 = vmax.xlane.f32.xlu0 %v2992
  %v2994 = vpop.xlane.xlu0 %2993
  %v2995 = vsel %vm2904, %v1079, -inf
  %2996 = vmax.xlane.f32.xlu0 %v2995
  %v2997 = vpop.xlane.xlu0 %2996
  %v2998 = vsel %vm2904, %v1082, -inf
  %2999 = vmax.xlane.f32.xlu0 %v2998
  %v3000 = vpop.xlane.xlu0 %2999
  %v3001 = vsel %vm2904, %v1126, -inf
  %3002 = vmax.xlane.f32.xlu0 %v3001
  %v3003 = vpop.xlane.xlu0 %3002
  %v3004 = vsel %vm2904, %v1129, -inf
  %3005 = vmax.xlane.f32.xlu0 %v3004
  %v3006 = vpop.xlane.xlu0 %3005
  %v3007 = vsel %vm2904, %v1132, -inf
  %3008 = vmax.xlane.f32.xlu0 %v3007
  %v3009 = vpop.xlane.xlu0 %3008
  %v3010 = vsel %vm2904, %v1135, -inf
  %3011 = vmax.xlane.f32.xlu0 %v3010
  %v3012 = vpop.xlane.xlu0 %3011
  %v3013 = vsel %vm2904, %v1138, -inf
  %3014 = vmax.xlane.f32.xlu0 %v3013
  %v3015 = vpop.xlane.xlu0 %3014
  %v3016 = vsel %vm2904, %v1141, -inf
  %3017 = vmax.xlane.f32.xlu0 %v3016
  %v3018 = vpop.xlane.xlu0 %3017
  %v3019 = vsel %vm2904, %v1144, -inf
  %3020 = vmax.xlane.f32.xlu0 %v3019
  %v3021 = vpop.xlane.xlu0 %3020
  %v3022 = vsel %vm2904, %v1147, -inf
  %3023 = vmax.xlane.f32.xlu0 %v3022
  %v3024 = vpop.xlane.xlu0 %3023
  %v3025 = vsel %vm2904, %v1191, -inf
  %3026 = vmax.xlane.f32.xlu0 %v3025
  %v3027 = vpop.xlane.xlu0 %3026
  %v3028 = vsel %vm2904, %v1194, -inf
  %3029 = vmax.xlane.f32.xlu0 %v3028
  %v3030 = vpop.xlane.xlu0 %3029
  %v3031 = vsel %vm2904, %v1197, -inf
  %3032 = vmax.xlane.f32.xlu0 %v3031
  %v3033 = vpop.xlane.xlu0 %3032
  %v3034 = vsel %vm2904, %v1200, -inf
  %3035 = vmax.xlane.f32.xlu0 %v3034
  %v3036 = vpop.xlane.xlu0 %3035
  %v3037 = vsel %vm2904, %v1203, -inf
  %3038 = vmax.xlane.f32.xlu0 %v3037
  %v3039 = vpop.xlane.xlu0 %3038
  %v3040 = vsel %vm2904, %v1206, -inf
  %3041 = vmax.xlane.f32.xlu0 %v3040
  %v3042 = vpop.xlane.xlu0 %3041
  %v3043 = vsel %vm2904, %v1209, -inf
  %3044 = vmax.xlane.f32.xlu0 %v3043
  %v3045 = vpop.xlane.xlu0 %3044
  %v3046 = vsel %vm2904, %v1212, -inf
  %3047 = vmax.xlane.f32.xlu0 %v3046
  %v3048 = vpop.xlane.xlu0 %3047
  %v3049 = vsel %vm2904, %v1256, -inf
  %3050 = vmax.xlane.f32.xlu0 %v3049
  %v3051 = vpop.xlane.xlu0 %3050
  %v3052 = vsel %vm2904, %v1259, -inf
  %3053 = vmax.xlane.f32.xlu0 %v3052
  %v3054 = vpop.xlane.xlu0 %3053
  %v3055 = vsel %vm2904, %v1262, -inf
  %3056 = vmax.xlane.f32.xlu0 %v3055
  %v3057 = vpop.xlane.xlu0 %3056
  %v3058 = vsel %vm2904, %v1265, -inf
  %3059 = vmax.xlane.f32.xlu0 %v3058
  %v3060 = vpop.xlane.xlu0 %3059
  %v3061 = vsel %vm2904, %v1268, -inf
  %3062 = vmax.xlane.f32.xlu0 %v3061
  %v3063 = vpop.xlane.xlu0 %3062
  %v3064 = vsel %vm2904, %v1271, -inf
  %3065 = vmax.xlane.f32.xlu0 %v3064
  %v3066 = vpop.xlane.xlu0 %3065
  %v3067 = vsel %vm2904, %v1274, -inf
  %3068 = vmax.xlane.f32.xlu0 %v3067
  %v3069 = vpop.xlane.xlu0 %3068
  %v3070 = vsel %vm2904, %v1277, -inf
  %3071 = vmax.xlane.f32.xlu0 %v3070
  %v3072 = vpop.xlane.xlu0 %3071
  %v3073 = vsel %vm2904, %v1321, -inf
  %3074 = vmax.xlane.f32.xlu0 %v3073
  %v3075 = vpop.xlane.xlu0 %3074
  %v3076 = vsel %vm2904, %v1324, -inf
  %3077 = vmax.xlane.f32.xlu0 %v3076
  %v3078 = vpop.xlane.xlu0 %3077
  %v3079 = vsel %vm2904, %v1327, -inf
  %3080 = vmax.xlane.f32.xlu0 %v3079
  %v3081 = vpop.xlane.xlu0 %3080
  %v3082 = vsel %vm2904, %v1330, -inf
  %3083 = vmax.xlane.f32.xlu0 %v3082
  %v3084 = vpop.xlane.xlu0 %3083
  %v3085 = vsel %vm2904, %v1333, -inf
  %3086 = vmax.xlane.f32.xlu0 %v3085
  %v3087 = vpop.xlane.xlu0 %3086
  %v3088 = vsel %vm2904, %v1336, -inf
  %3089 = vmax.xlane.f32.xlu0 %v3088
  %v3090 = vpop.xlane.xlu0 %3089
  %v3091 = vsel %vm2904, %v1339, -inf
  %3092 = vmax.xlane.f32.xlu0 %v3091
  %v3093 = vpop.xlane.xlu0 %3092
  %v3094 = vsel %vm2904, %v1342, -inf
  %3095 = vmax.xlane.f32.xlu0 %v3094
  %v3096 = vpop.xlane.xlu0 %3095
  %v3097 = vsel %vm2904, %v1386, -inf
  %3098 = vmax.xlane.f32.xlu0 %v3097
  %v3099 = vpop.xlane.xlu0 %3098
  %v3100 = vsel %vm2904, %v1389, -inf
  %3101 = vmax.xlane.f32.xlu0 %v3100
  %v3102 = vpop.xlane.xlu0 %3101
  %v3103 = vsel %vm2904, %v1392, -inf
  %3104 = vmax.xlane.f32.xlu0 %v3103
  %v3105 = vpop.xlane.xlu0 %3104
  %v3106 = vsel %vm2904, %v1395, -inf
  %3107 = vmax.xlane.f32.xlu0 %v3106
  %v3108 = vpop.xlane.xlu0 %3107
  %v3109 = vsel %vm2904, %v1398, -inf
  %3110 = vmax.xlane.f32.xlu0 %v3109
  %v3111 = vpop.xlane.xlu0 %3110
  %v3112 = vsel %vm2904, %v1401, -inf
  %3113 = vmax.xlane.f32.xlu0 %v3112
  %v3114 = vpop.xlane.xlu0 %3113
  %v3115 = vsel %vm2904, %v1404, -inf
  %3116 = vmax.xlane.f32.xlu0 %v3115
  %v3117 = vpop.xlane.xlu0 %3116
  %v3118 = vsel %vm2904, %v1407, -inf
  %3119 = vmax.xlane.f32.xlu0 %v3118
  %v3120 = vpop.xlane.xlu0 %3119
  %v3121 = vsel %vm2904, %v1451, -inf
  %3122 = vmax.xlane.f32.xlu0 %v3121
  %v3123 = vpop.xlane.xlu0 %3122
  %v3124 = vsel %vm2904, %v1454, -inf
  %3125 = vmax.xlane.f32.xlu0 %v3124
  %v3126 = vpop.xlane.xlu0 %3125
  %v3127 = vsel %vm2904, %v1457, -inf
  %3128 = vmax.xlane.f32.xlu0 %v3127
  %v3129 = vpop.xlane.xlu0 %3128
  %v3130 = vsel %vm2904, %v1460, -inf
  %3131 = vmax.xlane.f32.xlu0 %v3130
  %v3132 = vpop.xlane.xlu0 %3131
  %v3133 = vsel %vm2904, %v1463, -inf
  %3134 = vmax.xlane.f32.xlu0 %v3133
  %v3135 = vpop.xlane.xlu0 %3134
  %v3136 = vsel %vm2904, %v1466, -inf
  %3137 = vmax.xlane.f32.xlu0 %v3136
  %v3138 = vpop.xlane.xlu0 %3137
  %v3139 = vsel %vm2904, %v1469, -inf
  %3140 = vmax.xlane.f32.xlu0 %v3139
  %v3141 = vpop.xlane.xlu0 %3140
  %v3142 = vsel %vm2904, %v1472, -inf
  %3143 = vmax.xlane.f32.xlu0 %v3142
  %v3144 = vpop.xlane.xlu0 %3143
  %v3145 = vsel %vm2904, %v1516, -inf
  %3146 = vmax.xlane.f32.xlu0 %v3145
  %v3147 = vpop.xlane.xlu0 %3146
  %v3148 = vsel %vm2904, %v1519, -inf
  %3149 = vmax.xlane.f32.xlu0 %v3148
  %v3150 = vpop.xlane.xlu0 %3149
  %v3151 = vsel %vm2904, %v1522, -inf
  %3152 = vmax.xlane.f32.xlu0 %v3151
  %v3153 = vpop.xlane.xlu0 %3152
  %v3154 = vsel %vm2904, %v1525, -inf
  %3155 = vmax.xlane.f32.xlu0 %v3154
  %v3156 = vpop.xlane.xlu0 %3155
  %v3157 = vsel %vm2904, %v1528, -inf
  %3158 = vmax.xlane.f32.xlu0 %v3157
  %v3159 = vpop.xlane.xlu0 %3158
  %v3160 = vsel %vm2904, %v1531, -inf
  %3161 = vmax.xlane.f32.xlu0 %v3160
  %v3162 = vpop.xlane.xlu0 %3161
  %v3163 = vsel %vm2904, %v1534, -inf
  %3164 = vmax.xlane.f32.xlu0 %v3163
  %v3165 = vpop.xlane.xlu0 %3164
  %v3166 = vsel %vm2904, %v1537, -inf
  %3167 = vmax.xlane.f32.xlu0 %v3166
  %v3168 = vpop.xlane.xlu0 %3167
  %v3169 = vsel %vm2904, %v1581, -inf
  %3170 = vmax.xlane.f32.xlu0 %v3169
  %v3171 = vpop.xlane.xlu0 %3170
  %v3172 = vsel %vm2904, %v1584, -inf
  %3173 = vmax.xlane.f32.xlu0 %v3172
  %v3174 = vpop.xlane.xlu0 %3173
  %v3175 = vsel %vm2904, %v1587, -inf
  %3176 = vmax.xlane.f32.xlu0 %v3175
  %v3177 = vpop.xlane.xlu0 %3176
  %v3178 = vsel %vm2904, %v1590, -inf
  %3179 = vmax.xlane.f32.xlu0 %v3178
  %v3180 = vpop.xlane.xlu0 %3179
  %v3181 = vsel %vm2904, %v1593, -inf
  %3182 = vmax.xlane.f32.xlu0 %v3181
  %v3183 = vpop.xlane.xlu0 %3182
  %v3184 = vsel %vm2904, %v1596, -inf
  %3185 = vmax.xlane.f32.xlu0 %v3184
  %v3186 = vpop.xlane.xlu0 %3185
  %v3187 = vsel %vm2904, %v1599, -inf
  %3188 = vmax.xlane.f32.xlu0 %v3187
  %v3189 = vpop.xlane.xlu0 %3188
  %v3190 = vsel %vm2904, %v1602, -inf
  %3191 = vmax.xlane.f32.xlu0 %v3190
  %v3192 = vpop.xlane.xlu0 %3191
  %v3193 = vsel %vm2904, %v1646, -inf
  %3194 = vmax.xlane.f32.xlu0 %v3193
  %v3195 = vpop.xlane.xlu0 %3194
  %v3196 = vsel %vm2904, %v1649, -inf
  %3197 = vmax.xlane.f32.xlu0 %v3196
  %v3198 = vpop.xlane.xlu0 %3197
  %v3199 = vsel %vm2904, %v1652, -inf
  %3200 = vmax.xlane.f32.xlu0 %v3199
  %v3201 = vpop.xlane.xlu0 %3200
  %v3202 = vsel %vm2904, %v1655, -inf
  %3203 = vmax.xlane.f32.xlu0 %v3202
  %v3204 = vpop.xlane.xlu0 %3203
  %v3205 = vsel %vm2904, %v1658, -inf
  %3206 = vmax.xlane.f32.xlu0 %v3205
  %v3207 = vpop.xlane.xlu0 %3206
  %v3208 = vsel %vm2904, %v1661, -inf
  %3209 = vmax.xlane.f32.xlu0 %v3208
  %v3210 = vpop.xlane.xlu0 %3209
  %v3211 = vsel %vm2904, %v1664, -inf
  %3212 = vmax.xlane.f32.xlu0 %v3211
  %v3213 = vpop.xlane.xlu0 %3212
  %v3214 = vsel %vm2904, %v1667, -inf
  %3215 = vmax.xlane.f32.xlu0 %v3214
  %v3216 = vpop.xlane.xlu0 %3215
  %v3217 = vsel %vm2904, %v1711, -inf
  %3218 = vmax.xlane.f32.xlu0 %v3217
  %v3219 = vpop.xlane.xlu0 %3218
  %v3220 = vsel %vm2904, %v1714, -inf
  %3221 = vmax.xlane.f32.xlu0 %v3220
  %v3222 = vpop.xlane.xlu0 %3221
  %v3223 = vsel %vm2904, %v1717, -inf
  %3224 = vmax.xlane.f32.xlu0 %v3223
  %v3225 = vpop.xlane.xlu0 %3224
  %v3226 = vsel %vm2904, %v1720, -inf
  %3227 = vmax.xlane.f32.xlu0 %v3226
  %v3228 = vpop.xlane.xlu0 %3227
  %v3229 = vsel %vm2904, %v1723, -inf
  %3230 = vmax.xlane.f32.xlu0 %v3229
  %v3231 = vpop.xlane.xlu0 %3230
  %v3232 = vsel %vm2904, %v1726, -inf
  %3233 = vmax.xlane.f32.xlu0 %v3232
  %v3234 = vpop.xlane.xlu0 %3233
  %v3235 = vsel %vm2904, %v1729, -inf
  %3236 = vmax.xlane.f32.xlu0 %v3235
  %v3237 = vpop.xlane.xlu0 %3236
  %v3238 = vsel %vm2904, %v1732, -inf
  %3239 = vmax.xlane.f32.xlu0 %v3238
  %v3240 = vpop.xlane.xlu0 %3239
  %v3241 = vsel %vm2904, %v1776, -inf
  %3242 = vmax.xlane.f32.xlu0 %v3241
  %v3243 = vpop.xlane.xlu0 %3242
  %v3244 = vsel %vm2904, %v1779, -inf
  %3245 = vmax.xlane.f32.xlu0 %v3244
  %v3246 = vpop.xlane.xlu0 %3245
  %v3247 = vsel %vm2904, %v1782, -inf
  %3248 = vmax.xlane.f32.xlu0 %v3247
  %v3249 = vpop.xlane.xlu0 %3248
  %v3250 = vsel %vm2904, %v1785, -inf
  %3251 = vmax.xlane.f32.xlu0 %v3250
  %v3252 = vpop.xlane.xlu0 %3251
  %v3253 = vsel %vm2904, %v1788, -inf
  %3254 = vmax.xlane.f32.xlu0 %v3253
  %v3255 = vpop.xlane.xlu0 %3254
  %v3256 = vsel %vm2904, %v1791, -inf
  %3257 = vmax.xlane.f32.xlu0 %v3256
  %v3258 = vpop.xlane.xlu0 %3257
  %v3259 = vsel %vm2904, %v1794, -inf
  %3260 = vmax.xlane.f32.xlu0 %v3259
  %v3261 = vpop.xlane.xlu0 %3260
  %v3262 = vsel %vm2904, %v1797, -inf
  %3263 = vmax.xlane.f32.xlu0 %v3262
  %v3264 = vpop.xlane.xlu0 %3263
  %v3265 = vsel %vm2904, %v1841, -inf
  %3266 = vmax.xlane.f32.xlu0 %v3265
  %v3267 = vpop.xlane.xlu0 %3266
  %v3268 = vsel %vm2904, %v1844, -inf
  %3269 = vmax.xlane.f32.xlu0 %v3268
  %v3270 = vpop.xlane.xlu0 %3269
  %v3271 = vsel %vm2904, %v1847, -inf
  %3272 = vmax.xlane.f32.xlu0 %v3271
  %v3273 = vpop.xlane.xlu0 %3272
  %v3274 = vsel %vm2904, %v1850, -inf
  %3275 = vmax.xlane.f32.xlu0 %v3274
  %v3276 = vpop.xlane.xlu0 %3275
  %v3277 = vsel %vm2904, %v1853, -inf
  %3278 = vmax.xlane.f32.xlu0 %v3277
  %v3279 = vpop.xlane.xlu0 %3278
  %v3280 = vsel %vm2904, %v1856, -inf
  %3281 = vmax.xlane.f32.xlu0 %v3280
  %v3282 = vpop.xlane.xlu0 %3281
  %v3283 = vsel %vm2904, %v1859, -inf
  %3284 = vmax.xlane.f32.xlu0 %v3283
  %v3285 = vpop.xlane.xlu0 %3284
  %v3286 = vsel %vm2904, %v1862, -inf
  %3287 = vmax.xlane.f32.xlu0 %v3286
  %v3288 = vpop.xlane.xlu0 %3287
  %v3289 = vsel %vm2904, %v1906, -inf
  %3290 = vmax.xlane.f32.xlu0 %v3289
  %v3291 = vpop.xlane.xlu0 %3290
  %v3292 = vsel %vm2904, %v1909, -inf
  %3293 = vmax.xlane.f32.xlu0 %v3292
  %v3294 = vpop.xlane.xlu0 %3293
  %v3295 = vsel %vm2904, %v1912, -inf
  %3296 = vmax.xlane.f32.xlu0 %v3295
  %v3297 = vpop.xlane.xlu0 %3296
  %v3298 = vsel %vm2904, %v1915, -inf
  %3299 = vmax.xlane.f32.xlu0 %v3298
  %v3300 = vpop.xlane.xlu0 %3299
  %v3301 = vsel %vm2904, %v1918, -inf
  %3302 = vmax.xlane.f32.xlu0 %v3301
  %v3303 = vpop.xlane.xlu0 %3302
  %v3304 = vsel %vm2904, %v1921, -inf
  %3305 = vmax.xlane.f32.xlu0 %v3304
  %v3306 = vpop.xlane.xlu0 %3305
  %v3307 = vsel %vm2904, %v1924, -inf
  %3308 = vmax.xlane.f32.xlu0 %v3307
  %v3309 = vpop.xlane.xlu0 %3308
  %v3310 = vsel %vm2904, %v1927, -inf
  %3311 = vmax.xlane.f32.xlu0 %v3310
  %v3312 = vpop.xlane.xlu0 %3311
  %v3313 = vsel %vm2904, %v1971, -inf
  %3314 = vmax.xlane.f32.xlu0 %v3313
  %v3315 = vpop.xlane.xlu0 %3314
  %v3316 = vsel %vm2904, %v1974, -inf
  %3317 = vmax.xlane.f32.xlu0 %v3316
  %v3318 = vpop.xlane.xlu0 %3317
  %v3319 = vsel %vm2904, %v1977, -inf
  %3320 = vmax.xlane.f32.xlu0 %v3319
  %v3321 = vpop.xlane.xlu0 %3320
  %v3322 = vsel %vm2904, %v1980, -inf
  %3323 = vmax.xlane.f32.xlu0 %v3322
  %v3324 = vpop.xlane.xlu0 %3323
  %v3325 = vsel %vm2904, %v1983, -inf
  %3326 = vmax.xlane.f32.xlu0 %v3325
  %v3327 = vpop.xlane.xlu0 %3326
  %v3328 = vsel %vm2904, %v1986, -inf
  %3329 = vmax.xlane.f32.xlu0 %v3328
  %v3330 = vpop.xlane.xlu0 %3329
  %v3331 = vsel %vm2904, %v1989, -inf
  %3332 = vmax.xlane.f32.xlu0 %v3331
  %v3333 = vpop.xlane.xlu0 %3332
  %v3334 = vsel %vm2904, %v1992, -inf
  %3335 = vmax.xlane.f32.xlu0 %v3334
  %v3336 = vpop.xlane.xlu0 %3335
  %v3337 = vsel %vm2904, %v2036, -inf
  %3338 = vmax.xlane.f32.xlu0 %v3337
  %v3339 = vpop.xlane.xlu0 %3338
  %v3340 = vsel %vm2904, %v2039, -inf
  %3341 = vmax.xlane.f32.xlu0 %v3340
  %v3342 = vpop.xlane.xlu0 %3341
  %v3343 = vsel %vm2904, %v2042, -inf
  %3344 = vmax.xlane.f32.xlu0 %v3343
  %v3345 = vpop.xlane.xlu0 %3344
  %v3346 = vsel %vm2904, %v2045, -inf
  %3347 = vmax.xlane.f32.xlu0 %v3346
  %v3348 = vpop.xlane.xlu0 %3347
  %v3349 = vsel %vm2904, %v2048, -inf
  %3350 = vmax.xlane.f32.xlu0 %v3349
  %v3351 = vpop.xlane.xlu0 %3350
  %v3352 = vsel %vm2904, %v2051, -inf
  %3353 = vmax.xlane.f32.xlu0 %v3352
  %v3354 = vpop.xlane.xlu0 %3353
  %v3355 = vsel %vm2904, %v2054, -inf
  %3356 = vmax.xlane.f32.xlu0 %v3355
  %v3357 = vpop.xlane.xlu0 %3356
  %v3358 = vsel %vm2904, %v2057, -inf
  %3359 = vmax.xlane.f32.xlu0 %v3358
  %v3360 = vpop.xlane.xlu0 %3359
  %v3361 = vsel %vm2904, %v2101, -inf
  %3362 = vmax.xlane.f32.xlu0 %v3361
  %v3363 = vpop.xlane.xlu0 %3362
  %v3364 = vsel %vm2904, %v2104, -inf
  %3365 = vmax.xlane.f32.xlu0 %v3364
  %v3366 = vpop.xlane.xlu0 %3365
  %v3367 = vsel %vm2904, %v2107, -inf
  %3368 = vmax.xlane.f32.xlu0 %v3367
  %v3369 = vpop.xlane.xlu0 %3368
  %v3370 = vsel %vm2904, %v2110, -inf
  %3371 = vmax.xlane.f32.xlu0 %v3370
  %v3372 = vpop.xlane.xlu0 %3371
  %v3373 = vsel %vm2904, %v2113, -inf
  %3374 = vmax.xlane.f32.xlu0 %v3373
  %v3375 = vpop.xlane.xlu0 %3374
  %v3376 = vsel %vm2904, %v2116, -inf
  %3377 = vmax.xlane.f32.xlu0 %v3376
  %v3378 = vpop.xlane.xlu0 %3377
  %v3379 = vsel %vm2904, %v2119, -inf
  %3380 = vmax.xlane.f32.xlu0 %v3379
  %v3381 = vpop.xlane.xlu0 %3380
  %v3382 = vsel %vm2904, %v2122, -inf
  %3383 = vmax.xlane.f32.xlu0 %v3382
  %v3384 = vpop.xlane.xlu0 %3383
  %v3385 = vsel %vm2904, %v2166, -inf
  %3386 = vmax.xlane.f32.xlu0 %v3385
  %v3387 = vpop.xlane.xlu0 %3386
  %v3388 = vsel %vm2904, %v2169, -inf
  %3389 = vmax.xlane.f32.xlu0 %v3388
  %v3390 = vpop.xlane.xlu0 %3389
  %v3391 = vsel %vm2904, %v2172, -inf
  %3392 = vmax.xlane.f32.xlu0 %v3391
  %v3393 = vpop.xlane.xlu0 %3392
  %v3394 = vsel %vm2904, %v2175, -inf
  %3395 = vmax.xlane.f32.xlu0 %v3394
  %v3396 = vpop.xlane.xlu0 %3395
  %v3397 = vsel %vm2904, %v2178, -inf
  %3398 = vmax.xlane.f32.xlu0 %v3397
  %v3399 = vpop.xlane.xlu0 %3398
  %v3400 = vsel %vm2904, %v2181, -inf
  %3401 = vmax.xlane.f32.xlu0 %v3400
  %v3402 = vpop.xlane.xlu0 %3401
  %v3403 = vsel %vm2904, %v2184, -inf
  %3404 = vmax.xlane.f32.xlu0 %v3403
  %v3405 = vpop.xlane.xlu0 %3404
  %v3406 = vsel %vm2904, %v2187, -inf
  %3407 = vmax.xlane.f32.xlu0 %v3406
  %v3408 = vpop.xlane.xlu0 %3407
  %v3409 = vsel %vm2904, %v2231, -inf
  %3410 = vmax.xlane.f32.xlu0 %v3409
  %v3411 = vpop.xlane.xlu0 %3410
  %v3412 = vsel %vm2904, %v2234, -inf
  %3413 = vmax.xlane.f32.xlu0 %v3412
  %v3414 = vpop.xlane.xlu0 %3413
  %v3415 = vsel %vm2904, %v2237, -inf
  %3416 = vmax.xlane.f32.xlu0 %v3415
  %v3417 = vpop.xlane.xlu0 %3416
  %v3418 = vsel %vm2904, %v2240, -inf
  %3419 = vmax.xlane.f32.xlu0 %v3418
  %v3420 = vpop.xlane.xlu0 %3419
  %v3421 = vsel %vm2904, %v2243, -inf
  %3422 = vmax.xlane.f32.xlu0 %v3421
  %v3423 = vpop.xlane.xlu0 %3422
  %v3424 = vsel %vm2904, %v2246, -inf
  %3425 = vmax.xlane.f32.xlu0 %v3424
  %v3426 = vpop.xlane.xlu0 %3425
  %v3427 = vsel %vm2904, %v2249, -inf
  %3428 = vmax.xlane.f32.xlu0 %v3427
  %v3429 = vpop.xlane.xlu0 %3428
  %v3430 = vsel %vm2904, %v2252, -inf
  %3431 = vmax.xlane.f32.xlu0 %v3430
  %v3432 = vpop.xlane.xlu0 %3431
  %v3433 = vsel %vm2904, %v2296, -inf
  %3434 = vmax.xlane.f32.xlu0 %v3433
  %v3435 = vpop.xlane.xlu0 %3434
  %v3436 = vsel %vm2904, %v2299, -inf
  %3437 = vmax.xlane.f32.xlu0 %v3436
  %v3438 = vpop.xlane.xlu0 %3437
  %v3439 = vsel %vm2904, %v2302, -inf
  %3440 = vmax.xlane.f32.xlu0 %v3439
  %v3441 = vpop.xlane.xlu0 %3440
  %v3442 = vsel %vm2904, %v2305, -inf
  %3443 = vmax.xlane.f32.xlu0 %v3442
  %v3444 = vpop.xlane.xlu0 %3443
  %v3445 = vsel %vm2904, %v2308, -inf
  %3446 = vmax.xlane.f32.xlu0 %v3445
  %v3447 = vpop.xlane.xlu0 %3446
  %v3448 = vsel %vm2904, %v2311, -inf
  %3449 = vmax.xlane.f32.xlu0 %v3448
  %v3450 = vpop.xlane.xlu0 %3449
  %v3451 = vsel %vm2904, %v2314, -inf
  %3452 = vmax.xlane.f32.xlu0 %v3451
  %v3453 = vpop.xlane.xlu0 %3452
  %v3454 = vsel %vm2904, %v2317, -inf
  %3455 = vmax.xlane.f32.xlu0 %v3454
  %v3456 = vpop.xlane.xlu0 %3455
  %v3457 = vsel %vm2904, %v2361, -inf
  %3458 = vmax.xlane.f32.xlu0 %v3457
  %v3459 = vpop.xlane.xlu0 %3458
  %v3460 = vsel %vm2904, %v2364, -inf
  %3461 = vmax.xlane.f32.xlu0 %v3460
  %v3462 = vpop.xlane.xlu0 %3461
  %v3463 = vsel %vm2904, %v2367, -inf
  %3464 = vmax.xlane.f32.xlu0 %v3463
  %v3465 = vpop.xlane.xlu0 %3464
  %v3466 = vsel %vm2904, %v2370, -inf
  %3467 = vmax.xlane.f32.xlu0 %v3466
  %v3468 = vpop.xlane.xlu0 %3467
  %v3469 = vsel %vm2904, %v2373, -inf
  %3470 = vmax.xlane.f32.xlu0 %v3469
  %v3471 = vpop.xlane.xlu0 %3470
  %v3472 = vsel %vm2904, %v2376, -inf
  %3473 = vmax.xlane.f32.xlu0 %v3472
  %v3474 = vpop.xlane.xlu0 %3473
  %v3475 = vsel %vm2904, %v2379, -inf
  %3476 = vmax.xlane.f32.xlu0 %v3475
  %v3477 = vpop.xlane.xlu0 %3476
  %v3478 = vsel %vm2904, %v2382, -inf
  %3479 = vmax.xlane.f32.xlu0 %v3478
  %v3480 = vpop.xlane.xlu0 %3479
  %v3481 = vsel %vm2904, %v2426, -inf
  %3482 = vmax.xlane.f32.xlu0 %v3481
  %v3483 = vpop.xlane.xlu0 %3482
  %v3484 = vsel %vm2904, %v2429, -inf
  %3485 = vmax.xlane.f32.xlu0 %v3484
  %v3486 = vpop.xlane.xlu0 %3485
  %v3487 = vsel %vm2904, %v2432, -inf
  %3488 = vmax.xlane.f32.xlu0 %v3487
  %v3489 = vpop.xlane.xlu0 %3488
  %v3490 = vsel %vm2904, %v2435, -inf
  %3491 = vmax.xlane.f32.xlu0 %v3490
  %v3492 = vpop.xlane.xlu0 %3491
  %v3493 = vsel %vm2904, %v2438, -inf
  %3494 = vmax.xlane.f32.xlu0 %v3493
  %v3495 = vpop.xlane.xlu0 %3494
  %v3496 = vsel %vm2904, %v2441, -inf
  %3497 = vmax.xlane.f32.xlu0 %v3496
  %v3498 = vpop.xlane.xlu0 %3497
  %v3499 = vsel %vm2904, %v2444, -inf
  %3500 = vmax.xlane.f32.xlu0 %v3499
  %v3501 = vpop.xlane.xlu0 %3500
  %v3502 = vsel %vm2904, %v2447, -inf
  %3503 = vmax.xlane.f32.xlu0 %v3502
  %v3504 = vpop.xlane.xlu0 %3503
  %v3505 = vsel %vm2904, %v2491, -inf
  %3506 = vmax.xlane.f32.xlu0 %v3505
  %v3507 = vpop.xlane.xlu0 %3506
  %v3508 = vsel %vm2904, %v2494, -inf
  %3509 = vmax.xlane.f32.xlu0 %v3508
  %v3510 = vpop.xlane.xlu0 %3509
  %v3511 = vsel %vm2904, %v2497, -inf
  %3512 = vmax.xlane.f32.xlu0 %v3511
  %v3513 = vpop.xlane.xlu0 %3512
  %v3514 = vsel %vm2904, %v2500, -inf
  %3515 = vmax.xlane.f32.xlu0 %v3514
  %v3516 = vpop.xlane.xlu0 %3515
  %v3517 = vsel %vm2904, %v2503, -inf
  %3518 = vmax.xlane.f32.xlu0 %v3517
  %v3519 = vpop.xlane.xlu0 %3518
  %v3520 = vsel %vm2904, %v2506, -inf
  %3521 = vmax.xlane.f32.xlu0 %v3520
  %v3522 = vpop.xlane.xlu0 %3521
  %v3523 = vsel %vm2904, %v2509, -inf
  %3524 = vmax.xlane.f32.xlu0 %v3523
  %v3525 = vpop.xlane.xlu0 %3524
  %v3526 = vsel %vm2904, %v2512, -inf
  %3527 = vmax.xlane.f32.xlu0 %v3526
  %v3528 = vpop.xlane.xlu0 %3527
  %v3529 = vsel %vm2904, %v2556, -inf
  %3530 = vmax.xlane.f32.xlu0 %v3529
  %v3531 = vpop.xlane.xlu0 %3530
  %v3532 = vsel %vm2904, %v2559, -inf
  %3533 = vmax.xlane.f32.xlu0 %v3532
  %v3534 = vpop.xlane.xlu0 %3533
  %v3535 = vsel %vm2904, %v2562, -inf
  %3536 = vmax.xlane.f32.xlu0 %v3535
  %v3537 = vpop.xlane.xlu0 %3536
  %v3538 = vsel %vm2904, %v2565, -inf
  %3539 = vmax.xlane.f32.xlu0 %v3538
  %v3540 = vpop.xlane.xlu0 %3539
  %v3541 = vsel %vm2904, %v2568, -inf
  %3542 = vmax.xlane.f32.xlu0 %v3541
  %v3543 = vpop.xlane.xlu0 %3542
  %v3544 = vsel %vm2904, %v2571, -inf
  %3545 = vmax.xlane.f32.xlu0 %v3544
  %v3546 = vpop.xlane.xlu0 %3545
  %v3547 = vsel %vm2904, %v2574, -inf
  %3548 = vmax.xlane.f32.xlu0 %v3547
  %v3549 = vpop.xlane.xlu0 %3548
  %v3550 = vsel %vm2904, %v2577, -inf
  %3551 = vmax.xlane.f32.xlu0 %v3550
  %v3552 = vpop.xlane.xlu0 %3551
  %v3553 = vsel %vm2904, %v2621, -inf
  %3554 = vmax.xlane.f32.xlu0 %v3553
  %v3555 = vpop.xlane.xlu0 %3554
  %v3556 = vsel %vm2904, %v2624, -inf
  %3557 = vmax.xlane.f32.xlu0 %v3556
  %v3558 = vpop.xlane.xlu0 %3557
  %v3559 = vsel %vm2904, %v2627, -inf
  %3560 = vmax.xlane.f32.xlu0 %v3559
  %v3561 = vpop.xlane.xlu0 %3560
  %v3562 = vsel %vm2904, %v2630, -inf
  %3563 = vmax.xlane.f32.xlu0 %v3562
  %v3564 = vpop.xlane.xlu0 %3563
  %v3565 = vsel %vm2904, %v2633, -inf
  %3566 = vmax.xlane.f32.xlu0 %v3565
  %v3567 = vpop.xlane.xlu0 %3566
  %v3568 = vsel %vm2904, %v2636, -inf
  %3569 = vmax.xlane.f32.xlu0 %v3568
  %v3570 = vpop.xlane.xlu0 %3569
  %v3571 = vsel %vm2904, %v2639, -inf
  %3572 = vmax.xlane.f32.xlu0 %v3571
  %v3573 = vpop.xlane.xlu0 %3572
  %v3574 = vsel %vm2904, %v2642, -inf
  %3575 = vmax.xlane.f32.xlu0 %v3574
  %v3576 = vpop.xlane.xlu0 %3575
  %v3577 = vsel %vm2904, %v2686, -inf
  %3578 = vmax.xlane.f32.xlu0 %v3577
  %v3579 = vpop.xlane.xlu0 %3578
  %v3580 = vsel %vm2904, %v2689, -inf
  %3581 = vmax.xlane.f32.xlu0 %v3580
  %v3582 = vpop.xlane.xlu0 %3581
  %v3583 = vsel %vm2904, %v2692, -inf
  %3584 = vmax.xlane.f32.xlu0 %v3583
  %v3585 = vpop.xlane.xlu0 %3584
  %v3586 = vsel %vm2904, %v2695, -inf
  %3587 = vmax.xlane.f32.xlu0 %v3586
  %v3588 = vpop.xlane.xlu0 %3587
  %v3589 = vsel %vm2904, %v2698, -inf
  %3590 = vmax.xlane.f32.xlu0 %v3589
  %v3591 = vpop.xlane.xlu0 %3590
  %v3592 = vsel %vm2904, %v2701, -inf
  %3593 = vmax.xlane.f32.xlu0 %v3592
  %v3594 = vpop.xlane.xlu0 %3593
  %v3595 = vsel %vm2904, %v2704, -inf
  %3596 = vmax.xlane.f32.xlu0 %v3595
  %v3597 = vpop.xlane.xlu0 %3596
  %v3598 = vsel %vm2904, %v2707, -inf
  %3599 = vmax.xlane.f32.xlu0 %v3598
  %v3600 = vpop.xlane.xlu0 %3599
  %v3601 = vsel %vm2904, %v2751, -inf
  %3602 = vmax.xlane.f32.xlu0 %v3601
  %v3603 = vpop.xlane.xlu0 %3602
  %v3604 = vsel %vm2904, %v2754, -inf
  %3605 = vmax.xlane.f32.xlu0 %v3604
  %v3606 = vpop.xlane.xlu0 %3605
  %v3607 = vsel %vm2904, %v2757, -inf
  %3608 = vmax.xlane.f32.xlu0 %v3607
  %v3609 = vpop.xlane.xlu0 %3608
  %v3610 = vsel %vm2904, %v2760, -inf
  %3611 = vmax.xlane.f32.xlu0 %v3610
  %v3612 = vpop.xlane.xlu0 %3611
  %v3613 = vsel %vm2904, %v2763, -inf
  %3614 = vmax.xlane.f32.xlu0 %v3613
  %v3615 = vpop.xlane.xlu0 %3614
  %v3616 = vsel %vm2904, %v2766, -inf
  %3617 = vmax.xlane.f32.xlu0 %v3616
  %v3618 = vpop.xlane.xlu0 %3617
  %v3619 = vsel %vm2904, %v2769, -inf
  %3620 = vmax.xlane.f32.xlu0 %v3619
  %v3621 = vpop.xlane.xlu0 %3620
  %v3622 = vsel %vm2904, %v2772, -inf
  %3623 = vmax.xlane.f32.xlu0 %v3622
  %v3624 = vpop.xlane.xlu0 %3623
  %v3625 = vsel %vm2904, %v2816, -inf
  %3626 = vmax.xlane.f32.xlu0 %v3625
  %v3627 = vpop.xlane.xlu0 %3626
  %v3628 = vsel %vm2904, %v2819, -inf
  %3629 = vmax.xlane.f32.xlu0 %v3628
  %v3630 = vpop.xlane.xlu0 %3629
  %v3631 = vsel %vm2904, %v2822, -inf
  %3632 = vmax.xlane.f32.xlu0 %v3631
  %v3633 = vpop.xlane.xlu0 %3632
  %v3634 = vsel %vm2904, %v2825, -inf
  %3635 = vmax.xlane.f32.xlu0 %v3634
  %v3636 = vpop.xlane.xlu0 %3635
  %v3637 = vsel %vm2904, %v2828, -inf
  %3638 = vmax.xlane.f32.xlu0 %v3637
  %v3639 = vpop.xlane.xlu0 %3638
  %v3640 = vsel %vm2904, %v2831, -inf
  %3641 = vmax.xlane.f32.xlu0 %v3640
  %v3642 = vpop.xlane.xlu0 %3641
  %v3643 = vsel %vm2904, %v2834, -inf
  %3644 = vmax.xlane.f32.xlu0 %v3643
  %v3645 = vpop.xlane.xlu0 %3644
  %v3646 = vsel %vm2904, %v2837, -inf
  %3647 = vmax.xlane.f32.xlu0 %v3646
  %v3648 = vpop.xlane.xlu0 %3647
  %v3649 = vsel %vm2904, %v2881, -inf
  %3650 = vmax.xlane.f32.xlu0 %v3649
  %v3651 = vpop.xlane.xlu0 %3650
  %v3652 = vsel %vm2904, %v2884, -inf
  %3653 = vmax.xlane.f32.xlu0 %v3652
  %v3654 = vpop.xlane.xlu0 %3653
  %v3655 = vsel %vm2904, %v2887, -inf
  %3656 = vmax.xlane.f32.xlu0 %v3655
  %v3657 = vpop.xlane.xlu0 %3656
  %v3658 = vsel %vm2904, %v2890, -inf
  %3659 = vmax.xlane.f32.xlu0 %v3658
  %v3660 = vpop.xlane.xlu0 %3659
  %v3661 = vsel %vm2904, %v2893, -inf
  %3662 = vmax.xlane.f32.xlu0 %v3661
  %v3663 = vpop.xlane.xlu0 %3662
  %v3664 = vsel %vm2904, %v2896, -inf
  %3665 = vmax.xlane.f32.xlu0 %v3664
  %v3666 = vpop.xlane.xlu0 %3665
  %v3667 = vsel %vm2904, %v2899, -inf
  %3668 = vmax.xlane.f32.xlu0 %v3667
  %v3669 = vpop.xlane.xlu0 %3668
  %v3670 = vsel %vm2904, %v2902, -inf
  %3671 = vmax.xlane.f32.xlu0 %v3670
  %v3672 = vpop.xlane.xlu0 %3671
  %v3673 = vsub.f32 %v866, %v2907
  %v3674 = vsub.f32 %v869, %v2910
  %v3675 = vsub.f32 %v872, %v2913
  %v3676 = vsub.f32 %v875, %v2916
  %v3677 = vsub.f32 %v878, %v2919
  %v3678 = vsub.f32 %v881, %v2922
  %v3679 = vsub.f32 %v884, %v2925
  %v3680 = vsub.f32 %v887, %v2928
  %v3681 = vsub.f32 %v931, %v2931
  %v3682 = vsub.f32 %v934, %v2934
  %v3683 = vsub.f32 %v937, %v2937
  %v3684 = vsub.f32 %v940, %v2940
  %v3685 = vsub.f32 %v943, %v2943
  %v3686 = vsub.f32 %v946, %v2946
  %v3687 = vsub.f32 %v949, %v2949
  %v3688 = vsub.f32 %v952, %v2952
  %v3689 = vsub.f32 %v996, %v2955
  %v3690 = vsub.f32 %v999, %v2958
  %v3691 = vsub.f32 %v1002, %v2961
  %v3692 = vsub.f32 %v1005, %v2964
  %v3693 = vsub.f32 %v1008, %v2967
  %v3694 = vsub.f32 %v1011, %v2970
  %v3695 = vsub.f32 %v1014, %v2973
  %v3696 = vsub.f32 %v1017, %v2976
  %v3697 = vsub.f32 %v1061, %v2979
  %v3698 = vsub.f32 %v1064, %v2982
  %v3699 = vsub.f32 %v1067, %v2985
  %v3700 = vsub.f32 %v1070, %v2988
  %v3701 = vsub.f32 %v1073, %v2991
  %v3702 = vsub.f32 %v1076, %v2994
  %v3703 = vsub.f32 %v1079, %v2997
  %v3704 = vsub.f32 %v1082, %v3000
  %v3705 = vsub.f32 %v1126, %v3003
  %v3706 = vsub.f32 %v1129, %v3006
  %v3707 = vsub.f32 %v1132, %v3009
  %v3708 = vsub.f32 %v1135, %v3012
  %v3709 = vsub.f32 %v1138, %v3015
  %v3710 = vsub.f32 %v1141, %v3018
  %v3711 = vsub.f32 %v1144, %v3021
  %v3712 = vsub.f32 %v1147, %v3024
  %v3713 = vsub.f32 %v1191, %v3027
  %v3714 = vsub.f32 %v1194, %v3030
  %v3715 = vsub.f32 %v1197, %v3033
  %v3716 = vsub.f32 %v1200, %v3036
  %v3717 = vsub.f32 %v1203, %v3039
  %v3718 = vsub.f32 %v1206, %v3042
  %v3719 = vsub.f32 %v1209, %v3045
  %v3720 = vsub.f32 %v1212, %v3048
  %v3721 = vsub.f32 %v1256, %v3051
  %v3722 = vsub.f32 %v1259, %v3054
  %v3723 = vsub.f32 %v1262, %v3057
  %v3724 = vsub.f32 %v1265, %v3060
  %v3725 = vsub.f32 %v1268, %v3063
  %v3726 = vsub.f32 %v1271, %v3066
  %v3727 = vsub.f32 %v1274, %v3069
  %v3728 = vsub.f32 %v1277, %v3072
  %v3729 = vsub.f32 %v1321, %v3075
  %v3730 = vsub.f32 %v1324, %v3078
  %v3731 = vsub.f32 %v1327, %v3081
  %v3732 = vsub.f32 %v1330, %v3084
  %v3733 = vsub.f32 %v1333, %v3087
  %v3734 = vsub.f32 %v1336, %v3090
  %v3735 = vsub.f32 %v1339, %v3093
  %v3736 = vsub.f32 %v1342, %v3096
  %v3737 = vsub.f32 %v1386, %v3099
  %v3738 = vsub.f32 %v1389, %v3102
  %v3739 = vsub.f32 %v1392, %v3105
  %v3740 = vsub.f32 %v1395, %v3108
  %v3741 = vsub.f32 %v1398, %v3111
  %v3742 = vsub.f32 %v1401, %v3114
  %v3743 = vsub.f32 %v1404, %v3117
  %v3744 = vsub.f32 %v1407, %v3120
  %v3745 = vsub.f32 %v1451, %v3123
  %v3746 = vsub.f32 %v1454, %v3126
  %v3747 = vsub.f32 %v1457, %v3129
  %v3748 = vsub.f32 %v1460, %v3132
  %v3749 = vsub.f32 %v1463, %v3135
  %v3750 = vsub.f32 %v1466, %v3138
  %v3751 = vsub.f32 %v1469, %v3141
  %v3752 = vsub.f32 %v1472, %v3144
  %v3753 = vsub.f32 %v1516, %v3147
  %v3754 = vsub.f32 %v1519, %v3150
  %v3755 = vsub.f32 %v1522, %v3153
  %v3756 = vsub.f32 %v1525, %v3156
  %v3757 = vsub.f32 %v1528, %v3159
  %v3758 = vsub.f32 %v1531, %v3162
  %v3759 = vsub.f32 %v1534, %v3165
  %v3760 = vsub.f32 %v1537, %v3168
  %v3761 = vsub.f32 %v1581, %v3171
  %v3762 = vsub.f32 %v1584, %v3174
  %v3763 = vsub.f32 %v1587, %v3177
  %v3764 = vsub.f32 %v1590, %v3180
  %v3765 = vsub.f32 %v1593, %v3183
  %v3766 = vsub.f32 %v1596, %v3186
  %v3767 = vsub.f32 %v1599, %v3189
  %v3768 = vsub.f32 %v1602, %v3192
  %v3769 = vsub.f32 %v1646, %v3195
  %v3770 = vsub.f32 %v1649, %v3198
  %v3771 = vsub.f32 %v1652, %v3201
  %v3772 = vsub.f32 %v1655, %v3204
  %v3773 = vsub.f32 %v1658, %v3207
  %v3774 = vsub.f32 %v1661, %v3210
  %v3775 = vsub.f32 %v1664, %v3213
  %v3776 = vsub.f32 %v1667, %v3216
  %v3777 = vsub.f32 %v1711, %v3219
  %v3778 = vsub.f32 %v1714, %v3222
  %v3779 = vsub.f32 %v1717, %v3225
  %v3780 = vsub.f32 %v1720, %v3228
  %v3781 = vsub.f32 %v1723, %v3231
  %v3782 = vsub.f32 %v1726, %v3234
  %v3783 = vsub.f32 %v1729, %v3237
  %v3784 = vsub.f32 %v1732, %v3240
  %v3785 = vsub.f32 %v1776, %v3243
  %v3786 = vsub.f32 %v1779, %v3246
  %v3787 = vsub.f32 %v1782, %v3249
  %v3788 = vsub.f32 %v1785, %v3252
  %v3789 = vsub.f32 %v1788, %v3255
  %v3790 = vsub.f32 %v1791, %v3258
  %v3791 = vsub.f32 %v1794, %v3261
  %v3792 = vsub.f32 %v1797, %v3264
  %v3793 = vsub.f32 %v1841, %v3267
  %v3794 = vsub.f32 %v1844, %v3270
  %v3795 = vsub.f32 %v1847, %v3273
  %v3796 = vsub.f32 %v1850, %v3276
  %v3797 = vsub.f32 %v1853, %v3279
  %v3798 = vsub.f32 %v1856, %v3282
  %v3799 = vsub.f32 %v1859, %v3285
  %v3800 = vsub.f32 %v1862, %v3288
  %v3801 = vsub.f32 %v1906, %v3291
  %v3802 = vsub.f32 %v1909, %v3294
  %v3803 = vsub.f32 %v1912, %v3297
  %v3804 = vsub.f32 %v1915, %v3300
  %v3805 = vsub.f32 %v1918, %v3303
  %v3806 = vsub.f32 %v1921, %v3306
  %v3807 = vsub.f32 %v1924, %v3309
  %v3808 = vsub.f32 %v1927, %v3312
  %v3809 = vsub.f32 %v1971, %v3315
  %v3810 = vsub.f32 %v1974, %v3318
  %v3811 = vsub.f32 %v1977, %v3321
  %v3812 = vsub.f32 %v1980, %v3324
  %v3813 = vsub.f32 %v1983, %v3327
  %v3814 = vsub.f32 %v1986, %v3330
  %v3815 = vsub.f32 %v1989, %v3333
  %v3816 = vsub.f32 %v1992, %v3336
  %v3817 = vsub.f32 %v2036, %v3339
  %v3818 = vsub.f32 %v2039, %v3342
  %v3819 = vsub.f32 %v2042, %v3345
  %v3820 = vsub.f32 %v2045, %v3348
  %v3821 = vsub.f32 %v2048, %v3351
  %v3822 = vsub.f32 %v2051, %v3354
  %v3823 = vsub.f32 %v2054, %v3357
  %v3824 = vsub.f32 %v2057, %v3360
  %v3825 = vsub.f32 %v2101, %v3363
  %v3826 = vsub.f32 %v2104, %v3366
  %v3827 = vsub.f32 %v2107, %v3369
  %v3828 = vsub.f32 %v2110, %v3372
  %v3829 = vsub.f32 %v2113, %v3375
  %v3830 = vsub.f32 %v2116, %v3378
  %v3831 = vsub.f32 %v2119, %v3381
  %v3832 = vsub.f32 %v2122, %v3384
  %v3833 = vsub.f32 %v2166, %v3387
  %v3834 = vsub.f32 %v2169, %v3390
  %v3835 = vsub.f32 %v2172, %v3393
  %v3836 = vsub.f32 %v2175, %v3396
  %v3837 = vsub.f32 %v2178, %v3399
  %v3838 = vsub.f32 %v2181, %v3402
  %v3839 = vsub.f32 %v2184, %v3405
  %v3840 = vsub.f32 %v2187, %v3408
  %v3841 = vsub.f32 %v2231, %v3411
  %v3842 = vsub.f32 %v2234, %v3414
  %v3843 = vsub.f32 %v2237, %v3417
  %v3844 = vsub.f32 %v2240, %v3420
  %v3845 = vsub.f32 %v2243, %v3423
  %v3846 = vsub.f32 %v2246, %v3426
  %v3847 = vsub.f32 %v2249, %v3429
  %v3848 = vsub.f32 %v2252, %v3432
  %v3849 = vsub.f32 %v2296, %v3435
  %v3850 = vsub.f32 %v2299, %v3438
  %v3851 = vsub.f32 %v2302, %v3441
  %v3852 = vsub.f32 %v2305, %v3444
  %v3853 = vsub.f32 %v2308, %v3447
  %v3854 = vsub.f32 %v2311, %v3450
  %v3855 = vsub.f32 %v2314, %v3453
  %v3856 = vsub.f32 %v2317, %v3456
  %v3857 = vsub.f32 %v2361, %v3459
  %v3858 = vsub.f32 %v2364, %v3462
  %v3859 = vsub.f32 %v2367, %v3465
  %v3860 = vsub.f32 %v2370, %v3468
  %v3861 = vsub.f32 %v2373, %v3471
  %v3862 = vsub.f32 %v2376, %v3474
  %v3863 = vsub.f32 %v2379, %v3477
  %v3864 = vsub.f32 %v2382, %v3480
  %v3865 = vsub.f32 %v2426, %v3483
  %v3866 = vsub.f32 %v2429, %v3486
  %v3867 = vsub.f32 %v2432, %v3489
  %v3868 = vsub.f32 %v2435, %v3492
  %v3869 = vsub.f32 %v2438, %v3495
  %v3870 = vsub.f32 %v2441, %v3498
  %v3871 = vsub.f32 %v2444, %v3501
  %v3872 = vsub.f32 %v2447, %v3504
  %v3873 = vsub.f32 %v2491, %v3507
  %v3874 = vsub.f32 %v2494, %v3510
  %v3875 = vsub.f32 %v2497, %v3513
  %v3876 = vsub.f32 %v2500, %v3516
  %v3877 = vsub.f32 %v2503, %v3519
  %v3878 = vsub.f32 %v2506, %v3522
  %v3879 = vsub.f32 %v2509, %v3525
  %v3880 = vsub.f32 %v2512, %v3528
  %v3881 = vsub.f32 %v2556, %v3531
  %v3882 = vsub.f32 %v2559, %v3534
  %v3883 = vsub.f32 %v2562, %v3537
  %v3884 = vsub.f32 %v2565, %v3540
  %v3885 = vsub.f32 %v2568, %v3543
  %v3886 = vsub.f32 %v2571, %v3546
  %v3887 = vsub.f32 %v2574, %v3549
  %v3888 = vsub.f32 %v2577, %v3552
  %v3889 = vsub.f32 %v2621, %v3555
  %v3890 = vsub.f32 %v2624, %v3558
  %v3891 = vsub.f32 %v2627, %v3561
  %v3892 = vsub.f32 %v2630, %v3564
  %v3893 = vsub.f32 %v2633, %v3567
  %v3894 = vsub.f32 %v2636, %v3570
  %v3895 = vsub.f32 %v2639, %v3573
  %v3896 = vsub.f32 %v2642, %v3576
  %v3897 = vsub.f32 %v2686, %v3579
  %v3898 = vsub.f32 %v2689, %v3582
  %v3899 = vsub.f32 %v2692, %v3585
  %v3900 = vsub.f32 %v2695, %v3588
  %v3901 = vsub.f32 %v2698, %v3591
  %v3902 = vsub.f32 %v2701, %v3594
  %v3903 = vsub.f32 %v2704, %v3597
  %v3904 = vsub.f32 %v2707, %v3600
  %v3905 = vsub.f32 %v2751, %v3603
  %v3906 = vsub.f32 %v2754, %v3606
  %v3907 = vsub.f32 %v2757, %v3609
  %v3908 = vsub.f32 %v2760, %v3612
  %v3909 = vsub.f32 %v2763, %v3615
  %v3910 = vsub.f32 %v2766, %v3618
  %v3911 = vsub.f32 %v2769, %v3621
  %v3912 = vsub.f32 %v2772, %v3624
  %v3913 = vsub.f32 %v2816, %v3627
  %v3914 = vsub.f32 %v2819, %v3630
  %v3915 = vsub.f32 %v2822, %v3633
  %v3916 = vsub.f32 %v2825, %v3636
  %v3917 = vsub.f32 %v2828, %v3639
  %v3918 = vsub.f32 %v2831, %v3642
  %v3919 = vsub.f32 %v2834, %v3645
  %v3920 = vsub.f32 %v2837, %v3648
  %v3921 = vsub.f32 %v2881, %v3651
  %v3922 = vsub.f32 %v2884, %v3654
  %v3923 = vsub.f32 %v2887, %v3657
  %v3924 = vsub.f32 %v2890, %v3660
  %v3925 = vsub.f32 %v2893, %v3663
  %v3926 = vsub.f32 %v2896, %v3666
  %v3927 = vsub.f32 %v2899, %v3669
  %v3928 = vsub.f32 %v2902, %v3672
  %v3929 = vmul.f32 %v3673, 1.442695
  %v3930 = vpow.pop %v3929
  %v3931 = vmul.f32 %v3674, 1.442695
  %v3932 = vpow.pop %v3931
  %v3933 = vmul.f32 %v3675, 1.442695
  %v3934 = vpow.pop %v3933
  %v3935 = vmul.f32 %v3676, 1.442695
  %v3936 = vpow.pop %v3935
  %v3937 = vmul.f32 %v3677, 1.442695
  %v3938 = vpow.pop %v3937
  %v3939 = vmul.f32 %v3678, 1.442695
  %v3940 = vpow.pop %v3939
  %v3941 = vmul.f32 %v3679, 1.442695
  %v3942 = vpow.pop %v3941
  %v3943 = vmul.f32 %v3680, 1.442695
  %v3944 = vpow.pop %v3943
  %v3945 = vmul.f32 %v3681, 1.442695
  %v3946 = vpow.pop %v3945
  %v3947 = vmul.f32 %v3682, 1.442695
  %v3948 = vpow.pop %v3947
  %v3949 = vmul.f32 %v3683, 1.442695
  %v3950 = vpow.pop %v3949
  %v3951 = vmul.f32 %v3684, 1.442695
  %v3952 = vpow.pop %v3951
  %v3953 = vmul.f32 %v3685, 1.442695
  %v3954 = vpow.pop %v3953
  %v3955 = vmul.f32 %v3686, 1.442695
  %v3956 = vpow.pop %v3955
  %v3957 = vmul.f32 %v3687, 1.442695
  %v3958 = vpow.pop %v3957
  %v3959 = vmul.f32 %v3688, 1.442695
  %v3960 = vpow.pop %v3959
  %v3961 = vmul.f32 %v3689, 1.442695
  %v3962 = vpow.pop %v3961
  %v3963 = vmul.f32 %v3690, 1.442695
  %v3964 = vpow.pop %v3963
  %v3965 = vmul.f32 %v3691, 1.442695
  %v3966 = vpow.pop %v3965
  %v3967 = vmul.f32 %v3692, 1.442695
  %v3968 = vpow.pop %v3967
  %v3969 = vmul.f32 %v3693, 1.442695
  %v3970 = vpow.pop %v3969
  %v3971 = vmul.f32 %v3694, 1.442695
  %v3972 = vpow.pop %v3971
  %v3973 = vmul.f32 %v3695, 1.442695
  %v3974 = vpow.pop %v3973
  %v3975 = vmul.f32 %v3696, 1.442695
  %v3976 = vpow.pop %v3975
  %v3977 = vmul.f32 %v3697, 1.442695
  %v3978 = vpow.pop %v3977
  %v3979 = vmul.f32 %v3698, 1.442695
  %v3980 = vpow.pop %v3979
  %v3981 = vmul.f32 %v3699, 1.442695
  %v3982 = vpow.pop %v3981
  %v3983 = vmul.f32 %v3700, 1.442695
  %v3984 = vpow.pop %v3983
  %v3985 = vmul.f32 %v3701, 1.442695
  %v3986 = vpow.pop %v3985
  %v3987 = vmul.f32 %v3702, 1.442695
  %v3988 = vpow.pop %v3987
  %v3989 = vmul.f32 %v3703, 1.442695
  %v3990 = vpow.pop %v3989
  %v3991 = vmul.f32 %v3704, 1.442695
  %v3992 = vpow.pop %v3991
  %v3993 = vmul.f32 %v3705, 1.442695
  %v3994 = vpow.pop %v3993
  %v3995 = vmul.f32 %v3706, 1.442695
  %v3996 = vpow.pop %v3995
  %v3997 = vmul.f32 %v3707, 1.442695
  %v3998 = vpow.pop %v3997
  %v3999 = vmul.f32 %v3708, 1.442695
  %v4000 = vpow.pop %v3999
  %v4001 = vmul.f32 %v3709, 1.442695
  %v4002 = vpow.pop %v4001
  %v4003 = vmul.f32 %v3710, 1.442695
  %v4004 = vpow.pop %v4003
  %v4005 = vmul.f32 %v3711, 1.442695
  %v4006 = vpow.pop %v4005
  %v4007 = vmul.f32 %v3712, 1.442695
  %v4008 = vpow.pop %v4007
  %v4009 = vmul.f32 %v3713, 1.442695
  %v4010 = vpow.pop %v4009
  %v4011 = vmul.f32 %v3714, 1.442695
  %v4012 = vpow.pop %v4011
  %v4013 = vmul.f32 %v3715, 1.442695
  %v4014 = vpow.pop %v4013
  %v4015 = vmul.f32 %v3716, 1.442695
  %v4016 = vpow.pop %v4015
  %v4017 = vmul.f32 %v3717, 1.442695
  %v4018 = vpow.pop %v4017
  %v4019 = vmul.f32 %v3718, 1.442695
  %v4020 = vpow.pop %v4019
  %v4021 = vmul.f32 %v3719, 1.442695
  %v4022 = vpow.pop %v4021
  %v4023 = vmul.f32 %v3720, 1.442695
  %v4024 = vpow.pop %v4023
  %v4025 = vmul.f32 %v3721, 1.442695
  %v4026 = vpow.pop %v4025
  %v4027 = vmul.f32 %v3722, 1.442695
  %v4028 = vpow.pop %v4027
  %v4029 = vmul.f32 %v3723, 1.442695
  %v4030 = vpow.pop %v4029
  %v4031 = vmul.f32 %v3724, 1.442695
  %v4032 = vpow.pop %v4031
  %v4033 = vmul.f32 %v3725, 1.442695
  %v4034 = vpow.pop %v4033
  %v4035 = vmul.f32 %v3726, 1.442695
  %v4036 = vpow.pop %v4035
  %v4037 = vmul.f32 %v3727, 1.442695
  %v4038 = vpow.pop %v4037
  %v4039 = vmul.f32 %v3728, 1.442695
  %v4040 = vpow.pop %v4039
  %v4041 = vmul.f32 %v3729, 1.442695
  %v4042 = vpow.pop %v4041
  %v4043 = vmul.f32 %v3730, 1.442695
  %v4044 = vpow.pop %v4043
  %v4045 = vmul.f32 %v3731, 1.442695
  %v4046 = vpow.pop %v4045
  %v4047 = vmul.f32 %v3732, 1.442695
  %v4048 = vpow.pop %v4047
  %v4049 = vmul.f32 %v3733, 1.442695
  %v4050 = vpow.pop %v4049
  %v4051 = vmul.f32 %v3734, 1.442695
  %v4052 = vpow.pop %v4051
  %v4053 = vmul.f32 %v3735, 1.442695
  %v4054 = vpow.pop %v4053
  %v4055 = vmul.f32 %v3736, 1.442695
  %v4056 = vpow.pop %v4055
  %v4057 = vmul.f32 %v3737, 1.442695
  %v4058 = vpow.pop %v4057
  %v4059 = vmul.f32 %v3738, 1.442695
  %v4060 = vpow.pop %v4059
  %v4061 = vmul.f32 %v3739, 1.442695
  %v4062 = vpow.pop %v4061
  %v4063 = vmul.f32 %v3740, 1.442695
  %v4064 = vpow.pop %v4063
  %v4065 = vmul.f32 %v3741, 1.442695
  %v4066 = vpow.pop %v4065
  %v4067 = vmul.f32 %v3742, 1.442695
  %v4068 = vpow.pop %v4067
  %v4069 = vmul.f32 %v3743, 1.442695
  %v4070 = vpow.pop %v4069
  %v4071 = vmul.f32 %v3744, 1.442695
  %v4072 = vpow.pop %v4071
  %v4073 = vmul.f32 %v3745, 1.442695
  %v4074 = vpow.pop %v4073
  %v4075 = vmul.f32 %v3746, 1.442695
  %v4076 = vpow.pop %v4075
  %v4077 = vmul.f32 %v3747, 1.442695
  %v4078 = vpow.pop %v4077
  %v4079 = vmul.f32 %v3748, 1.442695
  %v4080 = vpow.pop %v4079
  %v4081 = vmul.f32 %v3749, 1.442695
  %v4082 = vpow.pop %v4081
  %v4083 = vmul.f32 %v3750, 1.442695
  %v4084 = vpow.pop %v4083
  %v4085 = vmul.f32 %v3751, 1.442695
  %v4086 = vpow.pop %v4085
  %v4087 = vmul.f32 %v3752, 1.442695
  %v4088 = vpow.pop %v4087
  %v4089 = vmul.f32 %v3753, 1.442695
  %v4090 = vpow.pop %v4089
  %v4091 = vmul.f32 %v3754, 1.442695
  %v4092 = vpow.pop %v4091
  %v4093 = vmul.f32 %v3755, 1.442695
  %v4094 = vpow.pop %v4093
  %v4095 = vmul.f32 %v3756, 1.442695
  %v4096 = vpow.pop %v4095
  %v4097 = vmul.f32 %v3757, 1.442695
  %v4098 = vpow.pop %v4097
  %v4099 = vmul.f32 %v3758, 1.442695
  %v4100 = vpow.pop %v4099
  %v4101 = vmul.f32 %v3759, 1.442695
  %v4102 = vpow.pop %v4101
  %v4103 = vmul.f32 %v3760, 1.442695
  %v4104 = vpow.pop %v4103
  %v4105 = vmul.f32 %v3761, 1.442695
  %v4106 = vpow.pop %v4105
  %v4107 = vmul.f32 %v3762, 1.442695
  %v4108 = vpow.pop %v4107
  %v4109 = vmul.f32 %v3763, 1.442695
  %v4110 = vpow.pop %v4109
  %v4111 = vmul.f32 %v3764, 1.442695
  %v4112 = vpow.pop %v4111
  %v4113 = vmul.f32 %v3765, 1.442695
  %v4114 = vpow.pop %v4113
  %v4115 = vmul.f32 %v3766, 1.442695
  %v4116 = vpow.pop %v4115
  %v4117 = vmul.f32 %v3767, 1.442695
  %v4118 = vpow.pop %v4117
  %v4119 = vmul.f32 %v3768, 1.442695
  %v4120 = vpow.pop %v4119
  %v4121 = vmul.f32 %v3769, 1.442695
  %v4122 = vpow.pop %v4121
  %v4123 = vmul.f32 %v3770, 1.442695
  %v4124 = vpow.pop %v4123
  %v4125 = vmul.f32 %v3771, 1.442695
  %v4126 = vpow.pop %v4125
  %v4127 = vmul.f32 %v3772, 1.442695
  %v4128 = vpow.pop %v4127
  %v4129 = vmul.f32 %v3773, 1.442695
  %v4130 = vpow.pop %v4129
  %v4131 = vmul.f32 %v3774, 1.442695
  %v4132 = vpow.pop %v4131
  %v4133 = vmul.f32 %v3775, 1.442695
  %v4134 = vpow.pop %v4133
  %v4135 = vmul.f32 %v3776, 1.442695
  %v4136 = vpow.pop %v4135
  %v4137 = vmul.f32 %v3777, 1.442695
  %v4138 = vpow.pop %v4137
  %v4139 = vmul.f32 %v3778, 1.442695
  %v4140 = vpow.pop %v4139
  %v4141 = vmul.f32 %v3779, 1.442695
  %v4142 = vpow.pop %v4141
  %v4143 = vmul.f32 %v3780, 1.442695
  %v4144 = vpow.pop %v4143
  %v4145 = vmul.f32 %v3781, 1.442695
  %v4146 = vpow.pop %v4145
  %v4147 = vmul.f32 %v3782, 1.442695
  %v4148 = vpow.pop %v4147
  %v4149 = vmul.f32 %v3783, 1.442695
  %v4150 = vpow.pop %v4149
  %v4151 = vmul.f32 %v3784, 1.442695
  %v4152 = vpow.pop %v4151
  %v4153 = vmul.f32 %v3785, 1.442695
  %v4154 = vpow.pop %v4153
  %v4155 = vmul.f32 %v3786, 1.442695
  %v4156 = vpow.pop %v4155
  %v4157 = vmul.f32 %v3787, 1.442695
  %v4158 = vpow.pop %v4157
  %v4159 = vmul.f32 %v3788, 1.442695
  %v4160 = vpow.pop %v4159
  %v4161 = vmul.f32 %v3789, 1.442695
  %v4162 = vpow.pop %v4161
  %v4163 = vmul.f32 %v3790, 1.442695
  %v4164 = vpow.pop %v4163
  %v4165 = vmul.f32 %v3791, 1.442695
  %v4166 = vpow.pop %v4165
  %v4167 = vmul.f32 %v3792, 1.442695
  %v4168 = vpow.pop %v4167
  %v4169 = vmul.f32 %v3793, 1.442695
  %v4170 = vpow.pop %v4169
  %v4171 = vmul.f32 %v3794, 1.442695
  %v4172 = vpow.pop %v4171
  %v4173 = vmul.f32 %v3795, 1.442695
  %v4174 = vpow.pop %v4173
  %v4175 = vmul.f32 %v3796, 1.442695
  %v4176 = vpow.pop %v4175
  %v4177 = vmul.f32 %v3797, 1.442695
  %v4178 = vpow.pop %v4177
  %v4179 = vmul.f32 %v3798, 1.442695
  %v4180 = vpow.pop %v4179
  %v4181 = vmul.f32 %v3799, 1.442695
  %v4182 = vpow.pop %v4181
  %v4183 = vmul.f32 %v3800, 1.442695
  %v4184 = vpow.pop %v4183
  %v4185 = vmul.f32 %v3801, 1.442695
  %v4186 = vpow.pop %v4185
  %v4187 = vmul.f32 %v3802, 1.442695
  %v4188 = vpow.pop %v4187
  %v4189 = vmul.f32 %v3803, 1.442695
  %v4190 = vpow.pop %v4189
  %v4191 = vmul.f32 %v3804, 1.442695
  %v4192 = vpow.pop %v4191
  %v4193 = vmul.f32 %v3805, 1.442695
  %v4194 = vpow.pop %v4193
  %v4195 = vmul.f32 %v3806, 1.442695
  %v4196 = vpow.pop %v4195
  %v4197 = vmul.f32 %v3807, 1.442695
  %v4198 = vpow.pop %v4197
  %v4199 = vmul.f32 %v3808, 1.442695
  %v4200 = vpow.pop %v4199
  %v4201 = vmul.f32 %v3809, 1.442695
  %v4202 = vpow.pop %v4201
  %v4203 = vmul.f32 %v3810, 1.442695
  %v4204 = vpow.pop %v4203
  %v4205 = vmul.f32 %v3811, 1.442695
  %v4206 = vpow.pop %v4205
  %v4207 = vmul.f32 %v3812, 1.442695
  %v4208 = vpow.pop %v4207
  %v4209 = vmul.f32 %v3813, 1.442695
  %v4210 = vpow.pop %v4209
  %v4211 = vmul.f32 %v3814, 1.442695
  %v4212 = vpow.pop %v4211
  %v4213 = vmul.f32 %v3815, 1.442695
  %v4214 = vpow.pop %v4213
  %v4215 = vmul.f32 %v3816, 1.442695
  %v4216 = vpow.pop %v4215
  %v4217 = vmul.f32 %v3817, 1.442695
  %v4218 = vpow.pop %v4217
  %v4219 = vmul.f32 %v3818, 1.442695
  %v4220 = vpow.pop %v4219
  %v4221 = vmul.f32 %v3819, 1.442695
  %v4222 = vpow.pop %v4221
  %v4223 = vmul.f32 %v3820, 1.442695
  %v4224 = vpow.pop %v4223
  %v4225 = vmul.f32 %v3821, 1.442695
  %v4226 = vpow.pop %v4225
  %v4227 = vmul.f32 %v3822, 1.442695
  %v4228 = vpow.pop %v4227
  %v4229 = vmul.f32 %v3823, 1.442695
  %v4230 = vpow.pop %v4229
  %v4231 = vmul.f32 %v3824, 1.442695
  %v4232 = vpow.pop %v4231
  %v4233 = vmul.f32 %v3825, 1.442695
  %v4234 = vpow.pop %v4233
  %v4235 = vmul.f32 %v3826, 1.442695
  %v4236 = vpow.pop %v4235
  %v4237 = vmul.f32 %v3827, 1.442695
  %v4238 = vpow.pop %v4237
  %v4239 = vmul.f32 %v3828, 1.442695
  %v4240 = vpow.pop %v4239
  %v4241 = vmul.f32 %v3829, 1.442695
  %v4242 = vpow.pop %v4241
  %v4243 = vmul.f32 %v3830, 1.442695
  %v4244 = vpow.pop %v4243
  %v4245 = vmul.f32 %v3831, 1.442695
  %v4246 = vpow.pop %v4245
  %v4247 = vmul.f32 %v3832, 1.442695
  %v4248 = vpow.pop %v4247
  %v4249 = vmul.f32 %v3833, 1.442695
  %v4250 = vpow.pop %v4249
  %v4251 = vmul.f32 %v3834, 1.442695
  %v4252 = vpow.pop %v4251
  %v4253 = vmul.f32 %v3835, 1.442695
  %v4254 = vpow.pop %v4253
  %v4255 = vmul.f32 %v3836, 1.442695
  %v4256 = vpow.pop %v4255
  %v4257 = vmul.f32 %v3837, 1.442695
  %v4258 = vpow.pop %v4257
  %v4259 = vmul.f32 %v3838, 1.442695
  %v4260 = vpow.pop %v4259
  %v4261 = vmul.f32 %v3839, 1.442695
  %v4262 = vpow.pop %v4261
  %v4263 = vmul.f32 %v3840, 1.442695
  %v4264 = vpow.pop %v4263
  %v4265 = vmul.f32 %v3841, 1.442695
  %v4266 = vpow.pop %v4265
  %v4267 = vmul.f32 %v3842, 1.442695
  %v4268 = vpow.pop %v4267
  %v4269 = vmul.f32 %v3843, 1.442695
  %v4270 = vpow.pop %v4269
  %v4271 = vmul.f32 %v3844, 1.442695
  %v4272 = vpow.pop %v4271
  %v4273 = vmul.f32 %v3845, 1.442695
  %v4274 = vpow.pop %v4273
  %v4275 = vmul.f32 %v3846, 1.442695
  %v4276 = vpow.pop %v4275
  %v4277 = vmul.f32 %v3847, 1.442695
  %v4278 = vpow.pop %v4277
  %v4279 = vmul.f32 %v3848, 1.442695
  %v4280 = vpow.pop %v4279
  %v4281 = vmul.f32 %v3849, 1.442695
  %v4282 = vpow.pop %v4281
  %v4283 = vmul.f32 %v3850, 1.442695
  %v4284 = vpow.pop %v4283
  %v4285 = vmul.f32 %v3851, 1.442695
  %v4286 = vpow.pop %v4285
  %v4287 = vmul.f32 %v3852, 1.442695
  %v4288 = vpow.pop %v4287
  %v4289 = vmul.f32 %v3853, 1.442695
  %v4290 = vpow.pop %v4289
  %v4291 = vmul.f32 %v3854, 1.442695
  %v4292 = vpow.pop %v4291
  %v4293 = vmul.f32 %v3855, 1.442695
  %v4294 = vpow.pop %v4293
  %v4295 = vmul.f32 %v3856, 1.442695
  %v4296 = vpow.pop %v4295
  %v4297 = vmul.f32 %v3857, 1.442695
  %v4298 = vpow.pop %v4297
  %v4299 = vmul.f32 %v3858, 1.442695
  %v4300 = vpow.pop %v4299
  %v4301 = vmul.f32 %v3859, 1.442695
  %v4302 = vpow.pop %v4301
  %v4303 = vmul.f32 %v3860, 1.442695
  %v4304 = vpow.pop %v4303
  %v4305 = vmul.f32 %v3861, 1.442695
  %v4306 = vpow.pop %v4305
  %v4307 = vmul.f32 %v3862, 1.442695
  %v4308 = vpow.pop %v4307
  %v4309 = vmul.f32 %v3863, 1.442695
  %v4310 = vpow.pop %v4309
  %v4311 = vmul.f32 %v3864, 1.442695
  %v4312 = vpow.pop %v4311
  %v4313 = vmul.f32 %v3865, 1.442695
  %v4314 = vpow.pop %v4313
  %v4315 = vmul.f32 %v3866, 1.442695
  %v4316 = vpow.pop %v4315
  %v4317 = vmul.f32 %v3867, 1.442695
  %v4318 = vpow.pop %v4317
  %v4319 = vmul.f32 %v3868, 1.442695
  %v4320 = vpow.pop %v4319
  %v4321 = vmul.f32 %v3869, 1.442695
  %v4322 = vpow.pop %v4321
  %v4323 = vmul.f32 %v3870, 1.442695
  %v4324 = vpow.pop %v4323
  %v4325 = vmul.f32 %v3871, 1.442695
  %v4326 = vpow.pop %v4325
  %v4327 = vmul.f32 %v3872, 1.442695
  %v4328 = vpow.pop %v4327
  %v4329 = vmul.f32 %v3873, 1.442695
  %v4330 = vpow.pop %v4329
  %v4331 = vmul.f32 %v3874, 1.442695
  %v4332 = vpow.pop %v4331
  %v4333 = vmul.f32 %v3875, 1.442695
  %v4334 = vpow.pop %v4333
  %v4335 = vmul.f32 %v3876, 1.442695
  %v4336 = vpow.pop %v4335
  %v4337 = vmul.f32 %v3877, 1.442695
  %v4338 = vpow.pop %v4337
  %v4339 = vmul.f32 %v3878, 1.442695
  %v4340 = vpow.pop %v4339
  %v4341 = vmul.f32 %v3879, 1.442695
  %v4342 = vpow.pop %v4341
  %v4343 = vmul.f32 %v3880, 1.442695
  %v4344 = vpow.pop %v4343
  %v4345 = vmul.f32 %v3881, 1.442695
  %v4346 = vpow.pop %v4345
  %v4347 = vmul.f32 %v3882, 1.442695
  %v4348 = vpow.pop %v4347
  %v4349 = vmul.f32 %v3883, 1.442695
  %v4350 = vpow.pop %v4349
  %v4351 = vmul.f32 %v3884, 1.442695
  %v4352 = vpow.pop %v4351
  %v4353 = vmul.f32 %v3885, 1.442695
  %v4354 = vpow.pop %v4353
  %v4355 = vmul.f32 %v3886, 1.442695
  %v4356 = vpow.pop %v4355
  %v4357 = vmul.f32 %v3887, 1.442695
  %v4358 = vpow.pop %v4357
  %v4359 = vmul.f32 %v3888, 1.442695
  %v4360 = vpow.pop %v4359
  %v4361 = vmul.f32 %v3889, 1.442695
  %v4362 = vpow.pop %v4361
  %v4363 = vmul.f32 %v3890, 1.442695
  %v4364 = vpow.pop %v4363
  %v4365 = vmul.f32 %v3891, 1.442695
  %v4366 = vpow.pop %v4365
  %v4367 = vmul.f32 %v3892, 1.442695
  %v4368 = vpow.pop %v4367
  %v4369 = vmul.f32 %v3893, 1.442695
  %v4370 = vpow.pop %v4369
  %v4371 = vmul.f32 %v3894, 1.442695
  %v4372 = vpow.pop %v4371
  %v4373 = vmul.f32 %v3895, 1.442695
  %v4374 = vpow.pop %v4373
  %v4375 = vmul.f32 %v3896, 1.442695
  %v4376 = vpow.pop %v4375
  %v4377 = vmul.f32 %v3897, 1.442695
  %v4378 = vpow.pop %v4377
  %v4379 = vmul.f32 %v3898, 1.442695
  %v4380 = vpow.pop %v4379
  %v4381 = vmul.f32 %v3899, 1.442695
  %v4382 = vpow.pop %v4381
  %v4383 = vmul.f32 %v3900, 1.442695
  %v4384 = vpow.pop %v4383
  %v4385 = vmul.f32 %v3901, 1.442695
  %v4386 = vpow.pop %v4385
  %v4387 = vmul.f32 %v3902, 1.442695
  %v4388 = vpow.pop %v4387
  %v4389 = vmul.f32 %v3903, 1.442695
  %v4390 = vpow.pop %v4389
  %v4391 = vmul.f32 %v3904, 1.442695
  %v4392 = vpow.pop %v4391
  %v4393 = vmul.f32 %v3905, 1.442695
  %v4394 = vpow.pop %v4393
  %v4395 = vmul.f32 %v3906, 1.442695
  %v4396 = vpow.pop %v4395
  %v4397 = vmul.f32 %v3907, 1.442695
  %v4398 = vpow.pop %v4397
  %v4399 = vmul.f32 %v3908, 1.442695
  %v4400 = vpow.pop %v4399
  %v4401 = vmul.f32 %v3909, 1.442695
  %v4402 = vpow.pop %v4401
  %v4403 = vmul.f32 %v3910, 1.442695
  %v4404 = vpow.pop %v4403
  %v4405 = vmul.f32 %v3911, 1.442695
  %v4406 = vpow.pop %v4405
  %v4407 = vmul.f32 %v3912, 1.442695
  %v4408 = vpow.pop %v4407
  %v4409 = vmul.f32 %v3913, 1.442695
  %v4410 = vpow.pop %v4409
  %v4411 = vmul.f32 %v3914, 1.442695
  %v4412 = vpow.pop %v4411
  %v4413 = vmul.f32 %v3915, 1.442695
  %v4414 = vpow.pop %v4413
  %v4415 = vmul.f32 %v3916, 1.442695
  %v4416 = vpow.pop %v4415
  %v4417 = vmul.f32 %v3917, 1.442695
  %v4418 = vpow.pop %v4417
  %v4419 = vmul.f32 %v3918, 1.442695
  %v4420 = vpow.pop %v4419
  %v4421 = vmul.f32 %v3919, 1.442695
  %v4422 = vpow.pop %v4421
  %v4423 = vmul.f32 %v3920, 1.442695
  %v4424 = vpow.pop %v4423
  %v4425 = vmul.f32 %v3921, 1.442695
  %v4426 = vpow.pop %v4425
  %v4427 = vmul.f32 %v3922, 1.442695
  %v4428 = vpow.pop %v4427
  %v4429 = vmul.f32 %v3923, 1.442695
  %v4430 = vpow.pop %v4429
  %v4431 = vmul.f32 %v3924, 1.442695
  %v4432 = vpow.pop %v4431
  %v4433 = vmul.f32 %v3925, 1.442695
  %v4434 = vpow.pop %v4433
  %v4435 = vmul.f32 %v3926, 1.442695
  %v4436 = vpow.pop %v4435
  %v4437 = vmul.f32 %v3927, 1.442695
  %v4438 = vpow.pop %v4437
  %v4439 = vmul.f32 %v3928, 1.442695
  %v4440 = vpow.pop %v4439
  %v4441 = vsel %vm2904, %v3930, 0.0
  %4442 = vadd.xlane.f32.xlu0 %v4441
  %v4443 = vpop.xlane.xlu0 %4442
  %v4444 = vsel %vm2904, %v3932, 0.0
  %4445 = vadd.xlane.f32.xlu0 %v4444
  %v4446 = vpop.xlane.xlu0 %4445
  %v4447 = vsel %vm2904, %v3934, 0.0
  %4448 = vadd.xlane.f32.xlu0 %v4447
  %v4449 = vpop.xlane.xlu0 %4448
  %v4450 = vsel %vm2904, %v3936, 0.0
  %4451 = vadd.xlane.f32.xlu0 %v4450
  %v4452 = vpop.xlane.xlu0 %4451
  %v4453 = vsel %vm2904, %v3938, 0.0
  %4454 = vadd.xlane.f32.xlu0 %v4453
  %v4455 = vpop.xlane.xlu0 %4454
  %v4456 = vsel %vm2904, %v3940, 0.0
  %4457 = vadd.xlane.f32.xlu0 %v4456
  %v4458 = vpop.xlane.xlu0 %4457
  %v4459 = vsel %vm2904, %v3942, 0.0
  %4460 = vadd.xlane.f32.xlu0 %v4459
  %v4461 = vpop.xlane.xlu0 %4460
  %v4462 = vsel %vm2904, %v3944, 0.0
  %4463 = vadd.xlane.f32.xlu0 %v4462
  %v4464 = vpop.xlane.xlu0 %4463
  %v4465 = vsel %vm2904, %v3946, 0.0
  %4466 = vadd.xlane.f32.xlu0 %v4465
  %v4467 = vpop.xlane.xlu0 %4466
  %v4468 = vsel %vm2904, %v3948, 0.0
  %4469 = vadd.xlane.f32.xlu0 %v4468
  %v4470 = vpop.xlane.xlu0 %4469
  %v4471 = vsel %vm2904, %v3950, 0.0
  %4472 = vadd.xlane.f32.xlu0 %v4471
  %v4473 = vpop.xlane.xlu0 %4472
  %v4474 = vsel %vm2904, %v3952, 0.0
  %4475 = vadd.xlane.f32.xlu0 %v4474
  %v4476 = vpop.xlane.xlu0 %4475
  %v4477 = vsel %vm2904, %v3954, 0.0
  %4478 = vadd.xlane.f32.xlu0 %v4477
  %v4479 = vpop.xlane.xlu0 %4478
  %v4480 = vsel %vm2904, %v3956, 0.0
  %4481 = vadd.xlane.f32.xlu0 %v4480
  %v4482 = vpop.xlane.xlu0 %4481
  %v4483 = vsel %vm2904, %v3958, 0.0
  %4484 = vadd.xlane.f32.xlu0 %v4483
  %v4485 = vpop.xlane.xlu0 %4484
  %v4486 = vsel %vm2904, %v3960, 0.0
  %4487 = vadd.xlane.f32.xlu0 %v4486
  %v4488 = vpop.xlane.xlu0 %4487
  %v4489 = vsel %vm2904, %v3962, 0.0
  %4490 = vadd.xlane.f32.xlu0 %v4489
  %v4491 = vpop.xlane.xlu0 %4490
  %v4492 = vsel %vm2904, %v3964, 0.0
  %4493 = vadd.xlane.f32.xlu0 %v4492
  %v4494 = vpop.xlane.xlu0 %4493
  %v4495 = vsel %vm2904, %v3966, 0.0
  %4496 = vadd.xlane.f32.xlu0 %v4495
  %v4497 = vpop.xlane.xlu0 %4496
  %v4498 = vsel %vm2904, %v3968, 0.0
  %4499 = vadd.xlane.f32.xlu0 %v4498
  %v4500 = vpop.xlane.xlu0 %4499
  %v4501 = vsel %vm2904, %v3970, 0.0
  %4502 = vadd.xlane.f32.xlu0 %v4501
  %v4503 = vpop.xlane.xlu0 %4502
  %v4504 = vsel %vm2904, %v3972, 0.0
  %4505 = vadd.xlane.f32.xlu0 %v4504
  %v4506 = vpop.xlane.xlu0 %4505
  %v4507 = vsel %vm2904, %v3974, 0.0
  %4508 = vadd.xlane.f32.xlu0 %v4507
  %v4509 = vpop.xlane.xlu0 %4508
  %v4510 = vsel %vm2904, %v3976, 0.0
  %4511 = vadd.xlane.f32.xlu0 %v4510
  %v4512 = vpop.xlane.xlu0 %4511
  %v4513 = vsel %vm2904, %v3978, 0.0
  %4514 = vadd.xlane.f32.xlu0 %v4513
  %v4515 = vpop.xlane.xlu0 %4514
  %v4516 = vsel %vm2904, %v3980, 0.0
  %4517 = vadd.xlane.f32.xlu0 %v4516
  %v4518 = vpop.xlane.xlu0 %4517
  %v4519 = vsel %vm2904, %v3982, 0.0
  %4520 = vadd.xlane.f32.xlu0 %v4519
  %v4521 = vpop.xlane.xlu0 %4520
  %v4522 = vsel %vm2904, %v3984, 0.0
  %4523 = vadd.xlane.f32.xlu0 %v4522
  %v4524 = vpop.xlane.xlu0 %4523
  %v4525 = vsel %vm2904, %v3986, 0.0
  %4526 = vadd.xlane.f32.xlu0 %v4525
  %v4527 = vpop.xlane.xlu0 %4526
  %v4528 = vsel %vm2904, %v3988, 0.0
  %4529 = vadd.xlane.f32.xlu0 %v4528
  %v4530 = vpop.xlane.xlu0 %4529
  %v4531 = vsel %vm2904, %v3990, 0.0
  %4532 = vadd.xlane.f32.xlu0 %v4531
  %v4533 = vpop.xlane.xlu0 %4532
  %v4534 = vsel %vm2904, %v3992, 0.0
  %4535 = vadd.xlane.f32.xlu0 %v4534
  %v4536 = vpop.xlane.xlu0 %4535
  %v4537 = vsel %vm2904, %v3994, 0.0
  %4538 = vadd.xlane.f32.xlu0 %v4537
  %v4539 = vpop.xlane.xlu0 %4538
  %v4540 = vsel %vm2904, %v3996, 0.0
  %4541 = vadd.xlane.f32.xlu0 %v4540
  %v4542 = vpop.xlane.xlu0 %4541
  %v4543 = vsel %vm2904, %v3998, 0.0
  %4544 = vadd.xlane.f32.xlu0 %v4543
  %v4545 = vpop.xlane.xlu0 %4544
  %v4546 = vsel %vm2904, %v4000, 0.0
  %4547 = vadd.xlane.f32.xlu0 %v4546
  %v4548 = vpop.xlane.xlu0 %4547
  %v4549 = vsel %vm2904, %v4002, 0.0
  %4550 = vadd.xlane.f32.xlu0 %v4549
  %v4551 = vpop.xlane.xlu0 %4550
  %v4552 = vsel %vm2904, %v4004, 0.0
  %4553 = vadd.xlane.f32.xlu0 %v4552
  %v4554 = vpop.xlane.xlu0 %4553
  %v4555 = vsel %vm2904, %v4006, 0.0
  %4556 = vadd.xlane.f32.xlu0 %v4555
  %v4557 = vpop.xlane.xlu0 %4556
  %v4558 = vsel %vm2904, %v4008, 0.0
  %4559 = vadd.xlane.f32.xlu0 %v4558
  %v4560 = vpop.xlane.xlu0 %4559
  %v4561 = vsel %vm2904, %v4010, 0.0
  %4562 = vadd.xlane.f32.xlu0 %v4561
  %v4563 = vpop.xlane.xlu0 %4562
  %v4564 = vsel %vm2904, %v4012, 0.0
  %4565 = vadd.xlane.f32.xlu0 %v4564
  %v4566 = vpop.xlane.xlu0 %4565
  %v4567 = vsel %vm2904, %v4014, 0.0
  %4568 = vadd.xlane.f32.xlu0 %v4567
  %v4569 = vpop.xlane.xlu0 %4568
  %v4570 = vsel %vm2904, %v4016, 0.0
  %4571 = vadd.xlane.f32.xlu0 %v4570
  %v4572 = vpop.xlane.xlu0 %4571
  %v4573 = vsel %vm2904, %v4018, 0.0
  %4574 = vadd.xlane.f32.xlu0 %v4573
  %v4575 = vpop.xlane.xlu0 %4574
  %v4576 = vsel %vm2904, %v4020, 0.0
  %4577 = vadd.xlane.f32.xlu0 %v4576
  %v4578 = vpop.xlane.xlu0 %4577
  %v4579 = vsel %vm2904, %v4022, 0.0
  %4580 = vadd.xlane.f32.xlu0 %v4579
  %v4581 = vpop.xlane.xlu0 %4580
  %v4582 = vsel %vm2904, %v4024, 0.0
  %4583 = vadd.xlane.f32.xlu0 %v4582
  %v4584 = vpop.xlane.xlu0 %4583
  %v4585 = vsel %vm2904, %v4026, 0.0
  %4586 = vadd.xlane.f32.xlu0 %v4585
  %v4587 = vpop.xlane.xlu0 %4586
  %v4588 = vsel %vm2904, %v4028, 0.0
  %4589 = vadd.xlane.f32.xlu0 %v4588
  %v4590 = vpop.xlane.xlu0 %4589
  %v4591 = vsel %vm2904, %v4030, 0.0
  %4592 = vadd.xlane.f32.xlu0 %v4591
  %v4593 = vpop.xlane.xlu0 %4592
  %v4594 = vsel %vm2904, %v4032, 0.0
  %4595 = vadd.xlane.f32.xlu0 %v4594
  %v4596 = vpop.xlane.xlu0 %4595
  %v4597 = vsel %vm2904, %v4034, 0.0
  %4598 = vadd.xlane.f32.xlu0 %v4597
  %v4599 = vpop.xlane.xlu0 %4598
  %v4600 = vsel %vm2904, %v4036, 0.0
  %4601 = vadd.xlane.f32.xlu0 %v4600
  %v4602 = vpop.xlane.xlu0 %4601
  %v4603 = vsel %vm2904, %v4038, 0.0
  %4604 = vadd.xlane.f32.xlu0 %v4603
  %v4605 = vpop.xlane.xlu0 %4604
  %v4606 = vsel %vm2904, %v4040, 0.0
  %4607 = vadd.xlane.f32.xlu0 %v4606
  %v4608 = vpop.xlane.xlu0 %4607
  %v4609 = vsel %vm2904, %v4042, 0.0
  %4610 = vadd.xlane.f32.xlu0 %v4609
  %v4611 = vpop.xlane.xlu0 %4610
  %v4612 = vsel %vm2904, %v4044, 0.0
  %4613 = vadd.xlane.f32.xlu0 %v4612
  %v4614 = vpop.xlane.xlu0 %4613
  %v4615 = vsel %vm2904, %v4046, 0.0
  %4616 = vadd.xlane.f32.xlu0 %v4615
  %v4617 = vpop.xlane.xlu0 %4616
  %v4618 = vsel %vm2904, %v4048, 0.0
  %4619 = vadd.xlane.f32.xlu0 %v4618
  %v4620 = vpop.xlane.xlu0 %4619
  %v4621 = vsel %vm2904, %v4050, 0.0
  %4622 = vadd.xlane.f32.xlu0 %v4621
  %v4623 = vpop.xlane.xlu0 %4622
  %v4624 = vsel %vm2904, %v4052, 0.0
  %4625 = vadd.xlane.f32.xlu0 %v4624
  %v4626 = vpop.xlane.xlu0 %4625
  %v4627 = vsel %vm2904, %v4054, 0.0
  %4628 = vadd.xlane.f32.xlu0 %v4627
  %v4629 = vpop.xlane.xlu0 %4628
  %v4630 = vsel %vm2904, %v4056, 0.0
  %4631 = vadd.xlane.f32.xlu0 %v4630
  %v4632 = vpop.xlane.xlu0 %4631
  %v4633 = vsel %vm2904, %v4058, 0.0
  %4634 = vadd.xlane.f32.xlu0 %v4633
  %v4635 = vpop.xlane.xlu0 %4634
  %v4636 = vsel %vm2904, %v4060, 0.0
  %4637 = vadd.xlane.f32.xlu0 %v4636
  %v4638 = vpop.xlane.xlu0 %4637
  %v4639 = vsel %vm2904, %v4062, 0.0
  %4640 = vadd.xlane.f32.xlu0 %v4639
  %v4641 = vpop.xlane.xlu0 %4640
  %v4642 = vsel %vm2904, %v4064, 0.0
  %4643 = vadd.xlane.f32.xlu0 %v4642
  %v4644 = vpop.xlane.xlu0 %4643
  %v4645 = vsel %vm2904, %v4066, 0.0
  %4646 = vadd.xlane.f32.xlu0 %v4645
  %v4647 = vpop.xlane.xlu0 %4646
  %v4648 = vsel %vm2904, %v4068, 0.0
  %4649 = vadd.xlane.f32.xlu0 %v4648
  %v4650 = vpop.xlane.xlu0 %4649
  %v4651 = vsel %vm2904, %v4070, 0.0
  %4652 = vadd.xlane.f32.xlu0 %v4651
  %v4653 = vpop.xlane.xlu0 %4652
  %v4654 = vsel %vm2904, %v4072, 0.0
  %4655 = vadd.xlane.f32.xlu0 %v4654
  %v4656 = vpop.xlane.xlu0 %4655
  %v4657 = vsel %vm2904, %v4074, 0.0
  %4658 = vadd.xlane.f32.xlu0 %v4657
  %v4659 = vpop.xlane.xlu0 %4658
  %v4660 = vsel %vm2904, %v4076, 0.0
  %4661 = vadd.xlane.f32.xlu0 %v4660
  %v4662 = vpop.xlane.xlu0 %4661
  %v4663 = vsel %vm2904, %v4078, 0.0
  %4664 = vadd.xlane.f32.xlu0 %v4663
  %v4665 = vpop.xlane.xlu0 %4664
  %v4666 = vsel %vm2904, %v4080, 0.0
  %4667 = vadd.xlane.f32.xlu0 %v4666
  %v4668 = vpop.xlane.xlu0 %4667
  %v4669 = vsel %vm2904, %v4082, 0.0
  %4670 = vadd.xlane.f32.xlu0 %v4669
  %v4671 = vpop.xlane.xlu0 %4670
  %v4672 = vsel %vm2904, %v4084, 0.0
  %4673 = vadd.xlane.f32.xlu0 %v4672
  %v4674 = vpop.xlane.xlu0 %4673
  %v4675 = vsel %vm2904, %v4086, 0.0
  %4676 = vadd.xlane.f32.xlu0 %v4675
  %v4677 = vpop.xlane.xlu0 %4676
  %v4678 = vsel %vm2904, %v4088, 0.0
  %4679 = vadd.xlane.f32.xlu0 %v4678
  %v4680 = vpop.xlane.xlu0 %4679
  %v4681 = vsel %vm2904, %v4090, 0.0
  %4682 = vadd.xlane.f32.xlu0 %v4681
  %v4683 = vpop.xlane.xlu0 %4682
  %v4684 = vsel %vm2904, %v4092, 0.0
  %4685 = vadd.xlane.f32.xlu0 %v4684
  %v4686 = vpop.xlane.xlu0 %4685
  %v4687 = vsel %vm2904, %v4094, 0.0
  %4688 = vadd.xlane.f32.xlu0 %v4687
  %v4689 = vpop.xlane.xlu0 %4688
  %v4690 = vsel %vm2904, %v4096, 0.0
  %4691 = vadd.xlane.f32.xlu0 %v4690
  %v4692 = vpop.xlane.xlu0 %4691
  %v4693 = vsel %vm2904, %v4098, 0.0
  %4694 = vadd.xlane.f32.xlu0 %v4693
  %v4695 = vpop.xlane.xlu0 %4694
  %v4696 = vsel %vm2904, %v4100, 0.0
  %4697 = vadd.xlane.f32.xlu0 %v4696
  %v4698 = vpop.xlane.xlu0 %4697
  %v4699 = vsel %vm2904, %v4102, 0.0
  %4700 = vadd.xlane.f32.xlu0 %v4699
  %v4701 = vpop.xlane.xlu0 %4700
  %v4702 = vsel %vm2904, %v4104, 0.0
  %4703 = vadd.xlane.f32.xlu0 %v4702
  %v4704 = vpop.xlane.xlu0 %4703
  %v4705 = vsel %vm2904, %v4106, 0.0
  %4706 = vadd.xlane.f32.xlu0 %v4705
  %v4707 = vpop.xlane.xlu0 %4706
  %v4708 = vsel %vm2904, %v4108, 0.0
  %4709 = vadd.xlane.f32.xlu0 %v4708
  %v4710 = vpop.xlane.xlu0 %4709
  %v4711 = vsel %vm2904, %v4110, 0.0
  %4712 = vadd.xlane.f32.xlu0 %v4711
  %v4713 = vpop.xlane.xlu0 %4712
  %v4714 = vsel %vm2904, %v4112, 0.0
  %4715 = vadd.xlane.f32.xlu0 %v4714
  %v4716 = vpop.xlane.xlu0 %4715
  %v4717 = vsel %vm2904, %v4114, 0.0
  %4718 = vadd.xlane.f32.xlu0 %v4717
  %v4719 = vpop.xlane.xlu0 %4718
  %v4720 = vsel %vm2904, %v4116, 0.0
  %4721 = vadd.xlane.f32.xlu0 %v4720
  %v4722 = vpop.xlane.xlu0 %4721
  %v4723 = vsel %vm2904, %v4118, 0.0
  %4724 = vadd.xlane.f32.xlu0 %v4723
  %v4725 = vpop.xlane.xlu0 %4724
  %v4726 = vsel %vm2904, %v4120, 0.0
  %4727 = vadd.xlane.f32.xlu0 %v4726
  %v4728 = vpop.xlane.xlu0 %4727
  %v4729 = vsel %vm2904, %v4122, 0.0
  %4730 = vadd.xlane.f32.xlu0 %v4729
  %v4731 = vpop.xlane.xlu0 %4730
  %v4732 = vsel %vm2904, %v4124, 0.0
  %4733 = vadd.xlane.f32.xlu0 %v4732
  %v4734 = vpop.xlane.xlu0 %4733
  %v4735 = vsel %vm2904, %v4126, 0.0
  %4736 = vadd.xlane.f32.xlu0 %v4735
  %v4737 = vpop.xlane.xlu0 %4736
  %v4738 = vsel %vm2904, %v4128, 0.0
  %4739 = vadd.xlane.f32.xlu0 %v4738
  %v4740 = vpop.xlane.xlu0 %4739
  %v4741 = vsel %vm2904, %v4130, 0.0
  %4742 = vadd.xlane.f32.xlu0 %v4741
  %v4743 = vpop.xlane.xlu0 %4742
  %v4744 = vsel %vm2904, %v4132, 0.0
  %4745 = vadd.xlane.f32.xlu0 %v4744
  %v4746 = vpop.xlane.xlu0 %4745
  %v4747 = vsel %vm2904, %v4134, 0.0
  %4748 = vadd.xlane.f32.xlu0 %v4747
  %v4749 = vpop.xlane.xlu0 %4748
  %v4750 = vsel %vm2904, %v4136, 0.0
  %4751 = vadd.xlane.f32.xlu0 %v4750
  %v4752 = vpop.xlane.xlu0 %4751
  %v4753 = vsel %vm2904, %v4138, 0.0
  %4754 = vadd.xlane.f32.xlu0 %v4753
  %v4755 = vpop.xlane.xlu0 %4754
  %v4756 = vsel %vm2904, %v4140, 0.0
  %4757 = vadd.xlane.f32.xlu0 %v4756
  %v4758 = vpop.xlane.xlu0 %4757
  %v4759 = vsel %vm2904, %v4142, 0.0
  %4760 = vadd.xlane.f32.xlu0 %v4759
  %v4761 = vpop.xlane.xlu0 %4760
  %v4762 = vsel %vm2904, %v4144, 0.0
  %4763 = vadd.xlane.f32.xlu0 %v4762
  %v4764 = vpop.xlane.xlu0 %4763
  %v4765 = vsel %vm2904, %v4146, 0.0
  %4766 = vadd.xlane.f32.xlu0 %v4765
  %v4767 = vpop.xlane.xlu0 %4766
  %v4768 = vsel %vm2904, %v4148, 0.0
  %4769 = vadd.xlane.f32.xlu0 %v4768
  %v4770 = vpop.xlane.xlu0 %4769
  %v4771 = vsel %vm2904, %v4150, 0.0
  %4772 = vadd.xlane.f32.xlu0 %v4771
  %v4773 = vpop.xlane.xlu0 %4772
  %v4774 = vsel %vm2904, %v4152, 0.0
  %4775 = vadd.xlane.f32.xlu0 %v4774
  %v4776 = vpop.xlane.xlu0 %4775
  %v4777 = vsel %vm2904, %v4154, 0.0
  %4778 = vadd.xlane.f32.xlu0 %v4777
  %v4779 = vpop.xlane.xlu0 %4778
  %v4780 = vsel %vm2904, %v4156, 0.0
  %4781 = vadd.xlane.f32.xlu0 %v4780
  %v4782 = vpop.xlane.xlu0 %4781
  %v4783 = vsel %vm2904, %v4158, 0.0
  %4784 = vadd.xlane.f32.xlu0 %v4783
  %v4785 = vpop.xlane.xlu0 %4784
  %v4786 = vsel %vm2904, %v4160, 0.0
  %4787 = vadd.xlane.f32.xlu0 %v4786
  %v4788 = vpop.xlane.xlu0 %4787
  %v4789 = vsel %vm2904, %v4162, 0.0
  %4790 = vadd.xlane.f32.xlu0 %v4789
  %v4791 = vpop.xlane.xlu0 %4790
  %v4792 = vsel %vm2904, %v4164, 0.0
  %4793 = vadd.xlane.f32.xlu0 %v4792
  %v4794 = vpop.xlane.xlu0 %4793
  %v4795 = vsel %vm2904, %v4166, 0.0
  %4796 = vadd.xlane.f32.xlu0 %v4795
  %v4797 = vpop.xlane.xlu0 %4796
  %v4798 = vsel %vm2904, %v4168, 0.0
  %4799 = vadd.xlane.f32.xlu0 %v4798
  %v4800 = vpop.xlane.xlu0 %4799
  %v4801 = vsel %vm2904, %v4170, 0.0
  %4802 = vadd.xlane.f32.xlu0 %v4801
  %v4803 = vpop.xlane.xlu0 %4802
  %v4804 = vsel %vm2904, %v4172, 0.0
  %4805 = vadd.xlane.f32.xlu0 %v4804
  %v4806 = vpop.xlane.xlu0 %4805
  %v4807 = vsel %vm2904, %v4174, 0.0
  %4808 = vadd.xlane.f32.xlu0 %v4807
  %v4809 = vpop.xlane.xlu0 %4808
  %v4810 = vsel %vm2904, %v4176, 0.0
  %4811 = vadd.xlane.f32.xlu0 %v4810
  %v4812 = vpop.xlane.xlu0 %4811
  %v4813 = vsel %vm2904, %v4178, 0.0
  %4814 = vadd.xlane.f32.xlu0 %v4813
  %v4815 = vpop.xlane.xlu0 %4814
  %v4816 = vsel %vm2904, %v4180, 0.0
  %4817 = vadd.xlane.f32.xlu0 %v4816
  %v4818 = vpop.xlane.xlu0 %4817
  %v4819 = vsel %vm2904, %v4182, 0.0
  %4820 = vadd.xlane.f32.xlu0 %v4819
  %v4821 = vpop.xlane.xlu0 %4820
  %v4822 = vsel %vm2904, %v4184, 0.0
  %4823 = vadd.xlane.f32.xlu0 %v4822
  %v4824 = vpop.xlane.xlu0 %4823
  %v4825 = vsel %vm2904, %v4186, 0.0
  %4826 = vadd.xlane.f32.xlu0 %v4825
  %v4827 = vpop.xlane.xlu0 %4826
  %v4828 = vsel %vm2904, %v4188, 0.0
  %4829 = vadd.xlane.f32.xlu0 %v4828
  %v4830 = vpop.xlane.xlu0 %4829
  %v4831 = vsel %vm2904, %v4190, 0.0
  %4832 = vadd.xlane.f32.xlu0 %v4831
  %v4833 = vpop.xlane.xlu0 %4832
  %v4834 = vsel %vm2904, %v4192, 0.0
  %4835 = vadd.xlane.f32.xlu0 %v4834
  %v4836 = vpop.xlane.xlu0 %4835
  %v4837 = vsel %vm2904, %v4194, 0.0
  %4838 = vadd.xlane.f32.xlu0 %v4837
  %v4839 = vpop.xlane.xlu0 %4838
  %v4840 = vsel %vm2904, %v4196, 0.0
  %4841 = vadd.xlane.f32.xlu0 %v4840
  %v4842 = vpop.xlane.xlu0 %4841
  %v4843 = vsel %vm2904, %v4198, 0.0
  %4844 = vadd.xlane.f32.xlu0 %v4843
  %v4845 = vpop.xlane.xlu0 %4844
  %v4846 = vsel %vm2904, %v4200, 0.0
  %4847 = vadd.xlane.f32.xlu0 %v4846
  %v4848 = vpop.xlane.xlu0 %4847
  %v4849 = vsel %vm2904, %v4202, 0.0
  %4850 = vadd.xlane.f32.xlu0 %v4849
  %v4851 = vpop.xlane.xlu0 %4850
  %v4852 = vsel %vm2904, %v4204, 0.0
  %4853 = vadd.xlane.f32.xlu0 %v4852
  %v4854 = vpop.xlane.xlu0 %4853
  %v4855 = vsel %vm2904, %v4206, 0.0
  %4856 = vadd.xlane.f32.xlu0 %v4855
  %v4857 = vpop.xlane.xlu0 %4856
  %v4858 = vsel %vm2904, %v4208, 0.0
  %4859 = vadd.xlane.f32.xlu0 %v4858
  %v4860 = vpop.xlane.xlu0 %4859
  %v4861 = vsel %vm2904, %v4210, 0.0
  %4862 = vadd.xlane.f32.xlu0 %v4861
  %v4863 = vpop.xlane.xlu0 %4862
  %v4864 = vsel %vm2904, %v4212, 0.0
  %4865 = vadd.xlane.f32.xlu0 %v4864
  %v4866 = vpop.xlane.xlu0 %4865
  %v4867 = vsel %vm2904, %v4214, 0.0
  %4868 = vadd.xlane.f32.xlu0 %v4867
  %v4869 = vpop.xlane.xlu0 %4868
  %v4870 = vsel %vm2904, %v4216, 0.0
  %4871 = vadd.xlane.f32.xlu0 %v4870
  %v4872 = vpop.xlane.xlu0 %4871
  %v4873 = vsel %vm2904, %v4218, 0.0
  %4874 = vadd.xlane.f32.xlu0 %v4873
  %v4875 = vpop.xlane.xlu0 %4874
  %v4876 = vsel %vm2904, %v4220, 0.0
  %4877 = vadd.xlane.f32.xlu0 %v4876
  %v4878 = vpop.xlane.xlu0 %4877
  %v4879 = vsel %vm2904, %v4222, 0.0
  %4880 = vadd.xlane.f32.xlu0 %v4879
  %v4881 = vpop.xlane.xlu0 %4880
  %v4882 = vsel %vm2904, %v4224, 0.0
  %4883 = vadd.xlane.f32.xlu0 %v4882
  %v4884 = vpop.xlane.xlu0 %4883
  %v4885 = vsel %vm2904, %v4226, 0.0
  %4886 = vadd.xlane.f32.xlu0 %v4885
  %v4887 = vpop.xlane.xlu0 %4886
  %v4888 = vsel %vm2904, %v4228, 0.0
  %4889 = vadd.xlane.f32.xlu0 %v4888
  %v4890 = vpop.xlane.xlu0 %4889
  %v4891 = vsel %vm2904, %v4230, 0.0
  %4892 = vadd.xlane.f32.xlu0 %v4891
  %v4893 = vpop.xlane.xlu0 %4892
  %v4894 = vsel %vm2904, %v4232, 0.0
  %4895 = vadd.xlane.f32.xlu0 %v4894
  %v4896 = vpop.xlane.xlu0 %4895
  %v4897 = vsel %vm2904, %v4234, 0.0
  %4898 = vadd.xlane.f32.xlu0 %v4897
  %v4899 = vpop.xlane.xlu0 %4898
  %v4900 = vsel %vm2904, %v4236, 0.0
  %4901 = vadd.xlane.f32.xlu0 %v4900
  %v4902 = vpop.xlane.xlu0 %4901
  %v4903 = vsel %vm2904, %v4238, 0.0
  %4904 = vadd.xlane.f32.xlu0 %v4903
  %v4905 = vpop.xlane.xlu0 %4904
  %v4906 = vsel %vm2904, %v4240, 0.0
  %4907 = vadd.xlane.f32.xlu0 %v4906
  %v4908 = vpop.xlane.xlu0 %4907
  %v4909 = vsel %vm2904, %v4242, 0.0
  %4910 = vadd.xlane.f32.xlu0 %v4909
  %v4911 = vpop.xlane.xlu0 %4910
  %v4912 = vsel %vm2904, %v4244, 0.0
  %4913 = vadd.xlane.f32.xlu0 %v4912
  %v4914 = vpop.xlane.xlu0 %4913
  %v4915 = vsel %vm2904, %v4246, 0.0
  %4916 = vadd.xlane.f32.xlu0 %v4915
  %v4917 = vpop.xlane.xlu0 %4916
  %v4918 = vsel %vm2904, %v4248, 0.0
  %4919 = vadd.xlane.f32.xlu0 %v4918
  %v4920 = vpop.xlane.xlu0 %4919
  %v4921 = vsel %vm2904, %v4250, 0.0
  %4922 = vadd.xlane.f32.xlu0 %v4921
  %v4923 = vpop.xlane.xlu0 %4922
  %v4924 = vsel %vm2904, %v4252, 0.0
  %4925 = vadd.xlane.f32.xlu0 %v4924
  %v4926 = vpop.xlane.xlu0 %4925
  %v4927 = vsel %vm2904, %v4254, 0.0
  %4928 = vadd.xlane.f32.xlu0 %v4927
  %v4929 = vpop.xlane.xlu0 %4928
  %v4930 = vsel %vm2904, %v4256, 0.0
  %4931 = vadd.xlane.f32.xlu0 %v4930
  %v4932 = vpop.xlane.xlu0 %4931
  %v4933 = vsel %vm2904, %v4258, 0.0
  %4934 = vadd.xlane.f32.xlu0 %v4933
  %v4935 = vpop.xlane.xlu0 %4934
  %v4936 = vsel %vm2904, %v4260, 0.0
  %4937 = vadd.xlane.f32.xlu0 %v4936
  %v4938 = vpop.xlane.xlu0 %4937
  %v4939 = vsel %vm2904, %v4262, 0.0
  %4940 = vadd.xlane.f32.xlu0 %v4939
  %v4941 = vpop.xlane.xlu0 %4940
  %v4942 = vsel %vm2904, %v4264, 0.0
  %4943 = vadd.xlane.f32.xlu0 %v4942
  %v4944 = vpop.xlane.xlu0 %4943
  %v4945 = vsel %vm2904, %v4266, 0.0
  %4946 = vadd.xlane.f32.xlu0 %v4945
  %v4947 = vpop.xlane.xlu0 %4946
  %v4948 = vsel %vm2904, %v4268, 0.0
  %4949 = vadd.xlane.f32.xlu0 %v4948
  %v4950 = vpop.xlane.xlu0 %4949
  %v4951 = vsel %vm2904, %v4270, 0.0
  %4952 = vadd.xlane.f32.xlu0 %v4951
  %v4953 = vpop.xlane.xlu0 %4952
  %v4954 = vsel %vm2904, %v4272, 0.0
  %4955 = vadd.xlane.f32.xlu0 %v4954
  %v4956 = vpop.xlane.xlu0 %4955
  %v4957 = vsel %vm2904, %v4274, 0.0
  %4958 = vadd.xlane.f32.xlu0 %v4957
  %v4959 = vpop.xlane.xlu0 %4958
  %v4960 = vsel %vm2904, %v4276, 0.0
  %4961 = vadd.xlane.f32.xlu0 %v4960
  %v4962 = vpop.xlane.xlu0 %4961
  %v4963 = vsel %vm2904, %v4278, 0.0
  %4964 = vadd.xlane.f32.xlu0 %v4963
  %v4965 = vpop.xlane.xlu0 %4964
  %v4966 = vsel %vm2904, %v4280, 0.0
  %4967 = vadd.xlane.f32.xlu0 %v4966
  %v4968 = vpop.xlane.xlu0 %4967
  %v4969 = vsel %vm2904, %v4282, 0.0
  %4970 = vadd.xlane.f32.xlu0 %v4969
  %v4971 = vpop.xlane.xlu0 %4970
  %v4972 = vsel %vm2904, %v4284, 0.0
  %4973 = vadd.xlane.f32.xlu0 %v4972
  %v4974 = vpop.xlane.xlu0 %4973
  %v4975 = vsel %vm2904, %v4286, 0.0
  %4976 = vadd.xlane.f32.xlu0 %v4975
  %v4977 = vpop.xlane.xlu0 %4976
  %v4978 = vsel %vm2904, %v4288, 0.0
  %4979 = vadd.xlane.f32.xlu0 %v4978
  %v4980 = vpop.xlane.xlu0 %4979
  %v4981 = vsel %vm2904, %v4290, 0.0
  %4982 = vadd.xlane.f32.xlu0 %v4981
  %v4983 = vpop.xlane.xlu0 %4982
  %v4984 = vsel %vm2904, %v4292, 0.0
  %4985 = vadd.xlane.f32.xlu0 %v4984
  %v4986 = vpop.xlane.xlu0 %4985
  %v4987 = vsel %vm2904, %v4294, 0.0
  %4988 = vadd.xlane.f32.xlu0 %v4987
  %v4989 = vpop.xlane.xlu0 %4988
  %v4990 = vsel %vm2904, %v4296, 0.0
  %4991 = vadd.xlane.f32.xlu0 %v4990
  %v4992 = vpop.xlane.xlu0 %4991
  %v4993 = vsel %vm2904, %v4298, 0.0
  %4994 = vadd.xlane.f32.xlu0 %v4993
  %v4995 = vpop.xlane.xlu0 %4994
  %v4996 = vsel %vm2904, %v4300, 0.0
  %4997 = vadd.xlane.f32.xlu0 %v4996
  %v4998 = vpop.xlane.xlu0 %4997
  %v4999 = vsel %vm2904, %v4302, 0.0
  %5000 = vadd.xlane.f32.xlu0 %v4999
  %v5001 = vpop.xlane.xlu0 %5000
  %v5002 = vsel %vm2904, %v4304, 0.0
  %5003 = vadd.xlane.f32.xlu0 %v5002
  %v5004 = vpop.xlane.xlu0 %5003
  %v5005 = vsel %vm2904, %v4306, 0.0
  %5006 = vadd.xlane.f32.xlu0 %v5005
  %v5007 = vpop.xlane.xlu0 %5006
  %v5008 = vsel %vm2904, %v4308, 0.0
  %5009 = vadd.xlane.f32.xlu0 %v5008
  %v5010 = vpop.xlane.xlu0 %5009
  %v5011 = vsel %vm2904, %v4310, 0.0
  %5012 = vadd.xlane.f32.xlu0 %v5011
  %v5013 = vpop.xlane.xlu0 %5012
  %v5014 = vsel %vm2904, %v4312, 0.0
  %5015 = vadd.xlane.f32.xlu0 %v5014
  %v5016 = vpop.xlane.xlu0 %5015
  %v5017 = vsel %vm2904, %v4314, 0.0
  %5018 = vadd.xlane.f32.xlu0 %v5017
  %v5019 = vpop.xlane.xlu0 %5018
  %v5020 = vsel %vm2904, %v4316, 0.0
  %5021 = vadd.xlane.f32.xlu0 %v5020
  %v5022 = vpop.xlane.xlu0 %5021
  %v5023 = vsel %vm2904, %v4318, 0.0
  %5024 = vadd.xlane.f32.xlu0 %v5023
  %v5025 = vpop.xlane.xlu0 %5024
  %v5026 = vsel %vm2904, %v4320, 0.0
  %5027 = vadd.xlane.f32.xlu0 %v5026
  %v5028 = vpop.xlane.xlu0 %5027
  %v5029 = vsel %vm2904, %v4322, 0.0
  %5030 = vadd.xlane.f32.xlu0 %v5029
  %v5031 = vpop.xlane.xlu0 %5030
  %v5032 = vsel %vm2904, %v4324, 0.0
  %5033 = vadd.xlane.f32.xlu0 %v5032
  %v5034 = vpop.xlane.xlu0 %5033
  %v5035 = vsel %vm2904, %v4326, 0.0
  %5036 = vadd.xlane.f32.xlu0 %v5035
  %v5037 = vpop.xlane.xlu0 %5036
  %v5038 = vsel %vm2904, %v4328, 0.0
  %5039 = vadd.xlane.f32.xlu0 %v5038
  %v5040 = vpop.xlane.xlu0 %5039
  %v5041 = vsel %vm2904, %v4330, 0.0
  %5042 = vadd.xlane.f32.xlu0 %v5041
  %v5043 = vpop.xlane.xlu0 %5042
  %v5044 = vsel %vm2904, %v4332, 0.0
  %5045 = vadd.xlane.f32.xlu0 %v5044
  %v5046 = vpop.xlane.xlu0 %5045
  %v5047 = vsel %vm2904, %v4334, 0.0
  %5048 = vadd.xlane.f32.xlu0 %v5047
  %v5049 = vpop.xlane.xlu0 %5048
  %v5050 = vsel %vm2904, %v4336, 0.0
  %5051 = vadd.xlane.f32.xlu0 %v5050
  %v5052 = vpop.xlane.xlu0 %5051
  %v5053 = vsel %vm2904, %v4338, 0.0
  %5054 = vadd.xlane.f32.xlu0 %v5053
  %v5055 = vpop.xlane.xlu0 %5054
  %v5056 = vsel %vm2904, %v4340, 0.0
  %5057 = vadd.xlane.f32.xlu0 %v5056
  %v5058 = vpop.xlane.xlu0 %5057
  %v5059 = vsel %vm2904, %v4342, 0.0
  %5060 = vadd.xlane.f32.xlu0 %v5059
  %v5061 = vpop.xlane.xlu0 %5060
  %v5062 = vsel %vm2904, %v4344, 0.0
  %5063 = vadd.xlane.f32.xlu0 %v5062
  %v5064 = vpop.xlane.xlu0 %5063
  %v5065 = vsel %vm2904, %v4346, 0.0
  %5066 = vadd.xlane.f32.xlu0 %v5065
  %v5067 = vpop.xlane.xlu0 %5066
  %v5068 = vsel %vm2904, %v4348, 0.0
  %5069 = vadd.xlane.f32.xlu0 %v5068
  %v5070 = vpop.xlane.xlu0 %5069
  %v5071 = vsel %vm2904, %v4350, 0.0
  %5072 = vadd.xlane.f32.xlu0 %v5071
  %v5073 = vpop.xlane.xlu0 %5072
  %v5074 = vsel %vm2904, %v4352, 0.0
  %5075 = vadd.xlane.f32.xlu0 %v5074
  %v5076 = vpop.xlane.xlu0 %5075
  %v5077 = vsel %vm2904, %v4354, 0.0
  %5078 = vadd.xlane.f32.xlu0 %v5077
  %v5079 = vpop.xlane.xlu0 %5078
  %v5080 = vsel %vm2904, %v4356, 0.0
  %5081 = vadd.xlane.f32.xlu0 %v5080
  %v5082 = vpop.xlane.xlu0 %5081
  %v5083 = vsel %vm2904, %v4358, 0.0
  %5084 = vadd.xlane.f32.xlu0 %v5083
  %v5085 = vpop.xlane.xlu0 %5084
  %v5086 = vsel %vm2904, %v4360, 0.0
  %5087 = vadd.xlane.f32.xlu0 %v5086
  %v5088 = vpop.xlane.xlu0 %5087
  %v5089 = vsel %vm2904, %v4362, 0.0
  %5090 = vadd.xlane.f32.xlu0 %v5089
  %v5091 = vpop.xlane.xlu0 %5090
  %v5092 = vsel %vm2904, %v4364, 0.0
  %5093 = vadd.xlane.f32.xlu0 %v5092
  %v5094 = vpop.xlane.xlu0 %5093
  %v5095 = vsel %vm2904, %v4366, 0.0
  %5096 = vadd.xlane.f32.xlu0 %v5095
  %v5097 = vpop.xlane.xlu0 %5096
  %v5098 = vsel %vm2904, %v4368, 0.0
  %5099 = vadd.xlane.f32.xlu0 %v5098
  %v5100 = vpop.xlane.xlu0 %5099
  %v5101 = vsel %vm2904, %v4370, 0.0
  %5102 = vadd.xlane.f32.xlu0 %v5101
  %v5103 = vpop.xlane.xlu0 %5102
  %v5104 = vsel %vm2904, %v4372, 0.0
  %5105 = vadd.xlane.f32.xlu0 %v5104
  %v5106 = vpop.xlane.xlu0 %5105
  %v5107 = vsel %vm2904, %v4374, 0.0
  %5108 = vadd.xlane.f32.xlu0 %v5107
  %v5109 = vpop.xlane.xlu0 %5108
  %v5110 = vsel %vm2904, %v4376, 0.0
  %5111 = vadd.xlane.f32.xlu0 %v5110
  %v5112 = vpop.xlane.xlu0 %5111
  %v5113 = vsel %vm2904, %v4378, 0.0
  %5114 = vadd.xlane.f32.xlu0 %v5113
  %v5115 = vpop.xlane.xlu0 %5114
  %v5116 = vsel %vm2904, %v4380, 0.0
  %5117 = vadd.xlane.f32.xlu0 %v5116
  %v5118 = vpop.xlane.xlu0 %5117
  %v5119 = vsel %vm2904, %v4382, 0.0
  %5120 = vadd.xlane.f32.xlu0 %v5119
  %v5121 = vpop.xlane.xlu0 %5120
  %v5122 = vsel %vm2904, %v4384, 0.0
  %5123 = vadd.xlane.f32.xlu0 %v5122
  %v5124 = vpop.xlane.xlu0 %5123
  %v5125 = vsel %vm2904, %v4386, 0.0
  %5126 = vadd.xlane.f32.xlu0 %v5125
  %v5127 = vpop.xlane.xlu0 %5126
  %v5128 = vsel %vm2904, %v4388, 0.0
  %5129 = vadd.xlane.f32.xlu0 %v5128
  %v5130 = vpop.xlane.xlu0 %5129
  %v5131 = vsel %vm2904, %v4390, 0.0
  %5132 = vadd.xlane.f32.xlu0 %v5131
  %v5133 = vpop.xlane.xlu0 %5132
  %v5134 = vsel %vm2904, %v4392, 0.0
  %5135 = vadd.xlane.f32.xlu0 %v5134
  %v5136 = vpop.xlane.xlu0 %5135
  %v5137 = vsel %vm2904, %v4394, 0.0
  %5138 = vadd.xlane.f32.xlu0 %v5137
  %v5139 = vpop.xlane.xlu0 %5138
  %v5140 = vsel %vm2904, %v4396, 0.0
  %5141 = vadd.xlane.f32.xlu0 %v5140
  %v5142 = vpop.xlane.xlu0 %5141
  %v5143 = vsel %vm2904, %v4398, 0.0
  %5144 = vadd.xlane.f32.xlu0 %v5143
  %v5145 = vpop.xlane.xlu0 %5144
  %v5146 = vsel %vm2904, %v4400, 0.0
  %5147 = vadd.xlane.f32.xlu0 %v5146
  %v5148 = vpop.xlane.xlu0 %5147
  %v5149 = vsel %vm2904, %v4402, 0.0
  %5150 = vadd.xlane.f32.xlu0 %v5149
  %v5151 = vpop.xlane.xlu0 %5150
  %v5152 = vsel %vm2904, %v4404, 0.0
  %5153 = vadd.xlane.f32.xlu0 %v5152
  %v5154 = vpop.xlane.xlu0 %5153
  %v5155 = vsel %vm2904, %v4406, 0.0
  %5156 = vadd.xlane.f32.xlu0 %v5155
  %v5157 = vpop.xlane.xlu0 %5156
  %v5158 = vsel %vm2904, %v4408, 0.0
  %5159 = vadd.xlane.f32.xlu0 %v5158
  %v5160 = vpop.xlane.xlu0 %5159
  %v5161 = vsel %vm2904, %v4410, 0.0
  %5162 = vadd.xlane.f32.xlu0 %v5161
  %v5163 = vpop.xlane.xlu0 %5162
  %v5164 = vsel %vm2904, %v4412, 0.0
  %5165 = vadd.xlane.f32.xlu0 %v5164
  %v5166 = vpop.xlane.xlu0 %5165
  %v5167 = vsel %vm2904, %v4414, 0.0
  %5168 = vadd.xlane.f32.xlu0 %v5167
  %v5169 = vpop.xlane.xlu0 %5168
  %v5170 = vsel %vm2904, %v4416, 0.0
  %5171 = vadd.xlane.f32.xlu0 %v5170
  %v5172 = vpop.xlane.xlu0 %5171
  %v5173 = vsel %vm2904, %v4418, 0.0
  %5174 = vadd.xlane.f32.xlu0 %v5173
  %v5175 = vpop.xlane.xlu0 %5174
  %v5176 = vsel %vm2904, %v4420, 0.0
  %5177 = vadd.xlane.f32.xlu0 %v5176
  %v5178 = vpop.xlane.xlu0 %5177
  %v5179 = vsel %vm2904, %v4422, 0.0
  %5180 = vadd.xlane.f32.xlu0 %v5179
  %v5181 = vpop.xlane.xlu0 %5180
  %v5182 = vsel %vm2904, %v4424, 0.0
  %5183 = vadd.xlane.f32.xlu0 %v5182
  %v5184 = vpop.xlane.xlu0 %5183
  %v5185 = vsel %vm2904, %v4426, 0.0
  %5186 = vadd.xlane.f32.xlu0 %v5185
  %v5187 = vpop.xlane.xlu0 %5186
  %v5188 = vsel %vm2904, %v4428, 0.0
  %5189 = vadd.xlane.f32.xlu0 %v5188
  %v5190 = vpop.xlane.xlu0 %5189
  %v5191 = vsel %vm2904, %v4430, 0.0
  %5192 = vadd.xlane.f32.xlu0 %v5191
  %v5193 = vpop.xlane.xlu0 %5192
  %v5194 = vsel %vm2904, %v4432, 0.0
  %5195 = vadd.xlane.f32.xlu0 %v5194
  %v5196 = vpop.xlane.xlu0 %5195
  %v5197 = vsel %vm2904, %v4434, 0.0
  %5198 = vadd.xlane.f32.xlu0 %v5197
  %v5199 = vpop.xlane.xlu0 %5198
  %v5200 = vsel %vm2904, %v4436, 0.0
  %5201 = vadd.xlane.f32.xlu0 %v5200
  %v5202 = vpop.xlane.xlu0 %5201
  %v5203 = vsel %vm2904, %v4438, 0.0
  %5204 = vadd.xlane.f32.xlu0 %v5203
  %v5205 = vpop.xlane.xlu0 %5204
  %v5206 = vsel %vm2904, %v4440, 0.0
  %5207 = vadd.xlane.f32.xlu0 %v5206
  %v5208 = vpop.xlane.xlu0 %5207
  %v5209 = vrcp.pop %v4443
  %v5210 = vrcp.pop %v4446
  %v5211 = vrcp.pop %v4449
  %v5212 = vrcp.pop %v4452
  %v5213 = vrcp.pop %v4455
  %v5214 = vrcp.pop %v4458
  %v5215 = vrcp.pop %v4461
  %v5216 = vrcp.pop %v4464
  %v5217 = vrcp.pop %v4467
  %v5218 = vrcp.pop %v4470
  %v5219 = vrcp.pop %v4473
  %v5220 = vrcp.pop %v4476
  %v5221 = vrcp.pop %v4479
  %v5222 = vrcp.pop %v4482
  %v5223 = vrcp.pop %v4485
  %v5224 = vrcp.pop %v4488
  %v5225 = vrcp.pop %v4491
  %v5226 = vrcp.pop %v4494
  %v5227 = vrcp.pop %v4497
  %v5228 = vrcp.pop %v4500
  %v5229 = vrcp.pop %v4503
  %v5230 = vrcp.pop %v4506
  %v5231 = vrcp.pop %v4509
  %v5232 = vrcp.pop %v4512
  %v5233 = vrcp.pop %v4515
  %v5234 = vrcp.pop %v4518
  %v5235 = vrcp.pop %v4521
  %v5236 = vrcp.pop %v4524
  %v5237 = vrcp.pop %v4527
  %v5238 = vrcp.pop %v4530
  %v5239 = vrcp.pop %v4533
  %v5240 = vrcp.pop %v4536
  %v5241 = vrcp.pop %v4539
  %v5242 = vrcp.pop %v4542
  %v5243 = vrcp.pop %v4545
  %v5244 = vrcp.pop %v4548
  %v5245 = vrcp.pop %v4551
  %v5246 = vrcp.pop %v4554
  %v5247 = vrcp.pop %v4557
  %v5248 = vrcp.pop %v4560
  %v5249 = vrcp.pop %v4563
  %v5250 = vrcp.pop %v4566
  %v5251 = vrcp.pop %v4569
  %v5252 = vrcp.pop %v4572
  %v5253 = vrcp.pop %v4575
  %v5254 = vrcp.pop %v4578
  %v5255 = vrcp.pop %v4581
  %v5256 = vrcp.pop %v4584
  %v5257 = vrcp.pop %v4587
  %v5258 = vrcp.pop %v4590
  %v5259 = vrcp.pop %v4593
  %v5260 = vrcp.pop %v4596
  %v5261 = vrcp.pop %v4599
  %v5262 = vrcp.pop %v4602
  %v5263 = vrcp.pop %v4605
  %v5264 = vrcp.pop %v4608
  %v5265 = vrcp.pop %v4611
  %v5266 = vrcp.pop %v4614
  %v5267 = vrcp.pop %v4617
  %v5268 = vrcp.pop %v4620
  %v5269 = vrcp.pop %v4623
  %v5270 = vrcp.pop %v4626
  %v5271 = vrcp.pop %v4629
  %v5272 = vrcp.pop %v4632
  %v5273 = vrcp.pop %v4635
  %v5274 = vrcp.pop %v4638
  %v5275 = vrcp.pop %v4641
  %v5276 = vrcp.pop %v4644
  %v5277 = vrcp.pop %v4647
  %v5278 = vrcp.pop %v4650
  %v5279 = vrcp.pop %v4653
  %v5280 = vrcp.pop %v4656
  %v5281 = vrcp.pop %v4659
  %v5282 = vrcp.pop %v4662
  %v5283 = vrcp.pop %v4665
  %v5284 = vrcp.pop %v4668
  %v5285 = vrcp.pop %v4671
  %v5286 = vrcp.pop %v4674
  %v5287 = vrcp.pop %v4677
  %v5288 = vrcp.pop %v4680
  %v5289 = vrcp.pop %v4683
  %v5290 = vrcp.pop %v4686
  %v5291 = vrcp.pop %v4689
  %v5292 = vrcp.pop %v4692
  %v5293 = vrcp.pop %v4695
  %v5294 = vrcp.pop %v4698
  %v5295 = vrcp.pop %v4701
  %v5296 = vrcp.pop %v4704
  %v5297 = vrcp.pop %v4707
  %v5298 = vrcp.pop %v4710
  %v5299 = vrcp.pop %v4713
  %v5300 = vrcp.pop %v4716
  %v5301 = vrcp.pop %v4719
  %v5302 = vrcp.pop %v4722
  %v5303 = vrcp.pop %v4725
  %v5304 = vrcp.pop %v4728
  %v5305 = vrcp.pop %v4731
  %v5306 = vrcp.pop %v4734
  %v5307 = vrcp.pop %v4737
  %v5308 = vrcp.pop %v4740
  %v5309 = vrcp.pop %v4743
  %v5310 = vrcp.pop %v4746
  %v5311 = vrcp.pop %v4749
  %v5312 = vrcp.pop %v4752
  %v5313 = vrcp.pop %v4755
  %v5314 = vrcp.pop %v4758
  %v5315 = vrcp.pop %v4761
  %v5316 = vrcp.pop %v4764
  %v5317 = vrcp.pop %v4767
  %v5318 = vrcp.pop %v4770
  %v5319 = vrcp.pop %v4773
  %v5320 = vrcp.pop %v4776
  %v5321 = vrcp.pop %v4779
  %v5322 = vrcp.pop %v4782
  %v5323 = vrcp.pop %v4785
  %v5324 = vrcp.pop %v4788
  %v5325 = vrcp.pop %v4791
  %v5326 = vrcp.pop %v4794
  %v5327 = vrcp.pop %v4797
  %v5328 = vrcp.pop %v4800
  %v5329 = vrcp.pop %v4803
  %v5330 = vrcp.pop %v4806
  %v5331 = vrcp.pop %v4809
  %v5332 = vrcp.pop %v4812
  %v5333 = vrcp.pop %v4815
  %v5334 = vrcp.pop %v4818
  %v5335 = vrcp.pop %v4821
  %v5336 = vrcp.pop %v4824
  %v5337 = vrcp.pop %v4827
  %v5338 = vrcp.pop %v4830
  %v5339 = vrcp.pop %v4833
  %v5340 = vrcp.pop %v4836
  %v5341 = vrcp.pop %v4839
  %v5342 = vrcp.pop %v4842
  %v5343 = vrcp.pop %v4845
  %v5344 = vrcp.pop %v4848
  %v5345 = vrcp.pop %v4851
  %v5346 = vrcp.pop %v4854
  %v5347 = vrcp.pop %v4857
  %v5348 = vrcp.pop %v4860
  %v5349 = vrcp.pop %v4863
  %v5350 = vrcp.pop %v4866
  %v5351 = vrcp.pop %v4869
  %v5352 = vrcp.pop %v4872
  %v5353 = vrcp.pop %v4875
  %v5354 = vrcp.pop %v4878
  %v5355 = vrcp.pop %v4881
  %v5356 = vrcp.pop %v4884
  %v5357 = vrcp.pop %v4887
  %v5358 = vrcp.pop %v4890
  %v5359 = vrcp.pop %v4893
  %v5360 = vrcp.pop %v4896
  %v5361 = vrcp.pop %v4899
  %v5362 = vrcp.pop %v4902
  %v5363 = vrcp.pop %v4905
  %v5364 = vrcp.pop %v4908
  %v5365 = vrcp.pop %v4911
  %v5366 = vrcp.pop %v4914
  %v5367 = vrcp.pop %v4917
  %v5368 = vrcp.pop %v4920
  %v5369 = vrcp.pop %v4923
  %v5370 = vrcp.pop %v4926
  %v5371 = vrcp.pop %v4929
  %v5372 = vrcp.pop %v4932
  %v5373 = vrcp.pop %v4935
  %v5374 = vrcp.pop %v4938
  %v5375 = vrcp.pop %v4941
  %v5376 = vrcp.pop %v4944
  %v5377 = vrcp.pop %v4947
  %v5378 = vrcp.pop %v4950
  %v5379 = vrcp.pop %v4953
  %v5380 = vrcp.pop %v4956
  %v5381 = vrcp.pop %v4959
  %v5382 = vrcp.pop %v4962
  %v5383 = vrcp.pop %v4965
  %v5384 = vrcp.pop %v4968
  %v5385 = vrcp.pop %v4971
  %v5386 = vrcp.pop %v4974
  %v5387 = vrcp.pop %v4977
  %v5388 = vrcp.pop %v4980
  %v5389 = vrcp.pop %v4983
  %v5390 = vrcp.pop %v4986
  %v5391 = vrcp.pop %v4989
  %v5392 = vrcp.pop %v4992
  %v5393 = vrcp.pop %v4995
  %v5394 = vrcp.pop %v4998
  %v5395 = vrcp.pop %v5001
  %v5396 = vrcp.pop %v5004
  %v5397 = vrcp.pop %v5007
  %v5398 = vrcp.pop %v5010
  %v5399 = vrcp.pop %v5013
  %v5400 = vrcp.pop %v5016
  %v5401 = vrcp.pop %v5019
  %v5402 = vrcp.pop %v5022
  %v5403 = vrcp.pop %v5025
  %v5404 = vrcp.pop %v5028
  %v5405 = vrcp.pop %v5031
  %v5406 = vrcp.pop %v5034
  %v5407 = vrcp.pop %v5037
  %v5408 = vrcp.pop %v5040
  %v5409 = vrcp.pop %v5043
  %v5410 = vrcp.pop %v5046
  %v5411 = vrcp.pop %v5049
  %v5412 = vrcp.pop %v5052
  %v5413 = vrcp.pop %v5055
  %v5414 = vrcp.pop %v5058
  %v5415 = vrcp.pop %v5061
  %v5416 = vrcp.pop %v5064
  %v5417 = vrcp.pop %v5067
  %v5418 = vrcp.pop %v5070
  %v5419 = vrcp.pop %v5073
  %v5420 = vrcp.pop %v5076
  %v5421 = vrcp.pop %v5079
  %v5422 = vrcp.pop %v5082
  %v5423 = vrcp.pop %v5085
  %v5424 = vrcp.pop %v5088
  %v5425 = vrcp.pop %v5091
  %v5426 = vrcp.pop %v5094
  %v5427 = vrcp.pop %v5097
  %v5428 = vrcp.pop %v5100
  %v5429 = vrcp.pop %v5103
  %v5430 = vrcp.pop %v5106
  %v5431 = vrcp.pop %v5109
  %v5432 = vrcp.pop %v5112
  %v5433 = vrcp.pop %v5115
  %v5434 = vrcp.pop %v5118
  %v5435 = vrcp.pop %v5121
  %v5436 = vrcp.pop %v5124
  %v5437 = vrcp.pop %v5127
  %v5438 = vrcp.pop %v5130
  %v5439 = vrcp.pop %v5133
  %v5440 = vrcp.pop %v5136
  %v5441 = vrcp.pop %v5139
  %v5442 = vrcp.pop %v5142
  %v5443 = vrcp.pop %v5145
  %v5444 = vrcp.pop %v5148
  %v5445 = vrcp.pop %v5151
  %v5446 = vrcp.pop %v5154
  %v5447 = vrcp.pop %v5157
  %v5448 = vrcp.pop %v5160
  %v5449 = vrcp.pop %v5163
  %v5450 = vrcp.pop %v5166
  %v5451 = vrcp.pop %v5169
  %v5452 = vrcp.pop %v5172
  %v5453 = vrcp.pop %v5175
  %v5454 = vrcp.pop %v5178
  %v5455 = vrcp.pop %v5181
  %v5456 = vrcp.pop %v5184
  %v5457 = vrcp.pop %v5187
  %v5458 = vrcp.pop %v5190
  %v5459 = vrcp.pop %v5193
  %v5460 = vrcp.pop %v5196
  %v5461 = vrcp.pop %v5199
  %v5462 = vrcp.pop %v5202
  %v5463 = vrcp.pop %v5205
  %v5464 = vrcp.pop %v5208
  %v5465 = vmul.f32 %v4443, %v5209
  %v5466 = vmul.f32 %v4446, %v5210
  %v5467 = vmul.f32 %v4449, %v5211
  %v5468 = vmul.f32 %v4452, %v5212
  %v5469 = vmul.f32 %v4455, %v5213
  %v5470 = vmul.f32 %v4458, %v5214
  %v5471 = vmul.f32 %v4461, %v5215
  %v5472 = vmul.f32 %v4464, %v5216
  %v5473 = vmul.f32 %v4467, %v5217
  %v5474 = vmul.f32 %v4470, %v5218
  %v5475 = vmul.f32 %v4473, %v5219
  %v5476 = vmul.f32 %v4476, %v5220
  %v5477 = vmul.f32 %v4479, %v5221
  %v5478 = vmul.f32 %v4482, %v5222
  %v5479 = vmul.f32 %v4485, %v5223
  %v5480 = vmul.f32 %v4488, %v5224
  %v5481 = vmul.f32 %v4491, %v5225
  %v5482 = vmul.f32 %v4494, %v5226
  %v5483 = vmul.f32 %v4497, %v5227
  %v5484 = vmul.f32 %v4500, %v5228
  %v5485 = vmul.f32 %v4503, %v5229
  %v5486 = vmul.f32 %v4506, %v5230
  %v5487 = vmul.f32 %v4509, %v5231
  %v5488 = vmul.f32 %v4512, %v5232
  %v5489 = vmul.f32 %v4515, %v5233
  %v5490 = vmul.f32 %v4518, %v5234
  %v5491 = vmul.f32 %v4521, %v5235
  %v5492 = vmul.f32 %v4524, %v5236
  %v5493 = vmul.f32 %v4527, %v5237
  %v5494 = vmul.f32 %v4530, %v5238
  %v5495 = vmul.f32 %v4533, %v5239
  %v5496 = vmul.f32 %v4536, %v5240
  %v5497 = vmul.f32 %v4539, %v5241
  %v5498 = vmul.f32 %v4542, %v5242
  %v5499 = vmul.f32 %v4545, %v5243
  %v5500 = vmul.f32 %v4548, %v5244
  %v5501 = vmul.f32 %v4551, %v5245
  %v5502 = vmul.f32 %v4554, %v5246
  %v5503 = vmul.f32 %v4557, %v5247
  %v5504 = vmul.f32 %v4560, %v5248
  %v5505 = vmul.f32 %v4563, %v5249
  %v5506 = vmul.f32 %v4566, %v5250
  %v5507 = vmul.f32 %v4569, %v5251
  %v5508 = vmul.f32 %v4572, %v5252
  %v5509 = vmul.f32 %v4575, %v5253
  %v5510 = vmul.f32 %v4578, %v5254
  %v5511 = vmul.f32 %v4581, %v5255
  %v5512 = vmul.f32 %v4584, %v5256
  %v5513 = vmul.f32 %v4587, %v5257
  %v5514 = vmul.f32 %v4590, %v5258
  %v5515 = vmul.f32 %v4593, %v5259
  %v5516 = vmul.f32 %v4596, %v5260
  %v5517 = vmul.f32 %v4599, %v5261
  %v5518 = vmul.f32 %v4602, %v5262
  %v5519 = vmul.f32 %v4605, %v5263
  %v5520 = vmul.f32 %v4608, %v5264
  %v5521 = vmul.f32 %v4611, %v5265
  %v5522 = vmul.f32 %v4614, %v5266
  %v5523 = vmul.f32 %v4617, %v5267
  %v5524 = vmul.f32 %v4620, %v5268
  %v5525 = vmul.f32 %v4623, %v5269
  %v5526 = vmul.f32 %v4626, %v5270
  %v5527 = vmul.f32 %v4629, %v5271
  %v5528 = vmul.f32 %v4632, %v5272
  %v5529 = vmul.f32 %v4635, %v5273
  %v5530 = vmul.f32 %v4638, %v5274
  %v5531 = vmul.f32 %v4641, %v5275
  %v5532 = vmul.f32 %v4644, %v5276
  %v5533 = vmul.f32 %v4647, %v5277
  %v5534 = vmul.f32 %v4650, %v5278
  %v5535 = vmul.f32 %v4653, %v5279
  %v5536 = vmul.f32 %v4656, %v5280
  %v5537 = vmul.f32 %v4659, %v5281
  %v5538 = vmul.f32 %v4662, %v5282
  %v5539 = vmul.f32 %v4665, %v5283
  %v5540 = vmul.f32 %v4668, %v5284
  %v5541 = vmul.f32 %v4671, %v5285
  %v5542 = vmul.f32 %v4674, %v5286
  %v5543 = vmul.f32 %v4677, %v5287
  %v5544 = vmul.f32 %v4680, %v5288
  %v5545 = vmul.f32 %v4683, %v5289
  %v5546 = vmul.f32 %v4686, %v5290
  %v5547 = vmul.f32 %v4689, %v5291
  %v5548 = vmul.f32 %v4692, %v5292
  %v5549 = vmul.f32 %v4695, %v5293
  %v5550 = vmul.f32 %v4698, %v5294
  %v5551 = vmul.f32 %v4701, %v5295
  %v5552 = vmul.f32 %v4704, %v5296
  %v5553 = vmul.f32 %v4707, %v5297
  %v5554 = vmul.f32 %v4710, %v5298
  %v5555 = vmul.f32 %v4713, %v5299
  %v5556 = vmul.f32 %v4716, %v5300
  %v5557 = vmul.f32 %v4719, %v5301
  %v5558 = vmul.f32 %v4722, %v5302
  %v5559 = vmul.f32 %v4725, %v5303
  %v5560 = vmul.f32 %v4728, %v5304
  %v5561 = vmul.f32 %v4731, %v5305
  %v5562 = vmul.f32 %v4734, %v5306
  %v5563 = vmul.f32 %v4737, %v5307
  %v5564 = vmul.f32 %v4740, %v5308
  %v5565 = vmul.f32 %v4743, %v5309
  %v5566 = vmul.f32 %v4746, %v5310
  %v5567 = vmul.f32 %v4749, %v5311
  %v5568 = vmul.f32 %v4752, %v5312
  %v5569 = vmul.f32 %v4755, %v5313
  %v5570 = vmul.f32 %v4758, %v5314
  %v5571 = vmul.f32 %v4761, %v5315
  %v5572 = vmul.f32 %v4764, %v5316
  %v5573 = vmul.f32 %v4767, %v5317
  %v5574 = vmul.f32 %v4770, %v5318
  %v5575 = vmul.f32 %v4773, %v5319
  %v5576 = vmul.f32 %v4776, %v5320
  %v5577 = vmul.f32 %v4779, %v5321
  %v5578 = vmul.f32 %v4782, %v5322
  %v5579 = vmul.f32 %v4785, %v5323
  %v5580 = vmul.f32 %v4788, %v5324
  %v5581 = vmul.f32 %v4791, %v5325
  %v5582 = vmul.f32 %v4794, %v5326
  %v5583 = vmul.f32 %v4797, %v5327
  %v5584 = vmul.f32 %v4800, %v5328
  %v5585 = vmul.f32 %v4803, %v5329
  %v5586 = vmul.f32 %v4806, %v5330
  %v5587 = vmul.f32 %v4809, %v5331
  %v5588 = vmul.f32 %v4812, %v5332
  %v5589 = vmul.f32 %v4815, %v5333
  %v5590 = vmul.f32 %v4818, %v5334
  %v5591 = vmul.f32 %v4821, %v5335
  %v5592 = vmul.f32 %v4824, %v5336
  %v5593 = vmul.f32 %v4827, %v5337
  %v5594 = vmul.f32 %v4830, %v5338
  %v5595 = vmul.f32 %v4833, %v5339
  %v5596 = vmul.f32 %v4836, %v5340
  %v5597 = vmul.f32 %v4839, %v5341
  %v5598 = vmul.f32 %v4842, %v5342
  %v5599 = vmul.f32 %v4845, %v5343
  %v5600 = vmul.f32 %v4848, %v5344
  %v5601 = vmul.f32 %v4851, %v5345
  %v5602 = vmul.f32 %v4854, %v5346
  %v5603 = vmul.f32 %v4857, %v5347
  %v5604 = vmul.f32 %v4860, %v5348
  %v5605 = vmul.f32 %v4863, %v5349
  %v5606 = vmul.f32 %v4866, %v5350
  %v5607 = vmul.f32 %v4869, %v5351
  %v5608 = vmul.f32 %v4872, %v5352
  %v5609 = vmul.f32 %v4875, %v5353
  %v5610 = vmul.f32 %v4878, %v5354
  %v5611 = vmul.f32 %v4881, %v5355
  %v5612 = vmul.f32 %v4884, %v5356
  %v5613 = vmul.f32 %v4887, %v5357
  %v5614 = vmul.f32 %v4890, %v5358
  %v5615 = vmul.f32 %v4893, %v5359
  %v5616 = vmul.f32 %v4896, %v5360
  %v5617 = vmul.f32 %v4899, %v5361
  %v5618 = vmul.f32 %v4902, %v5362
  %v5619 = vmul.f32 %v4905, %v5363
  %v5620 = vmul.f32 %v4908, %v5364
  %v5621 = vmul.f32 %v4911, %v5365
  %v5622 = vmul.f32 %v4914, %v5366
  %v5623 = vmul.f32 %v4917, %v5367
  %v5624 = vmul.f32 %v4920, %v5368
  %v5625 = vmul.f32 %v4923, %v5369
  %v5626 = vmul.f32 %v4926, %v5370
  %v5627 = vmul.f32 %v4929, %v5371
  %v5628 = vmul.f32 %v4932, %v5372
  %v5629 = vmul.f32 %v4935, %v5373
  %v5630 = vmul.f32 %v4938, %v5374
  %v5631 = vmul.f32 %v4941, %v5375
  %v5632 = vmul.f32 %v4944, %v5376
  %v5633 = vmul.f32 %v4947, %v5377
  %v5634 = vmul.f32 %v4950, %v5378
  %v5635 = vmul.f32 %v4953, %v5379
  %v5636 = vmul.f32 %v4956, %v5380
  %v5637 = vmul.f32 %v4959, %v5381
  %v5638 = vmul.f32 %v4962, %v5382
  %v5639 = vmul.f32 %v4965, %v5383
  %v5640 = vmul.f32 %v4968, %v5384
  %v5641 = vmul.f32 %v4971, %v5385
  %v5642 = vmul.f32 %v4974, %v5386
  %v5643 = vmul.f32 %v4977, %v5387
  %v5644 = vmul.f32 %v4980, %v5388
  %v5645 = vmul.f32 %v4983, %v5389
  %v5646 = vmul.f32 %v4986, %v5390
  %v5647 = vmul.f32 %v4989, %v5391
  %v5648 = vmul.f32 %v4992, %v5392
  %v5649 = vmul.f32 %v4995, %v5393
  %v5650 = vmul.f32 %v4998, %v5394
  %v5651 = vmul.f32 %v5001, %v5395
  %v5652 = vmul.f32 %v5004, %v5396
  %v5653 = vmul.f32 %v5007, %v5397
  %v5654 = vmul.f32 %v5010, %v5398
  %v5655 = vmul.f32 %v5013, %v5399
  %v5656 = vmul.f32 %v5016, %v5400
  %v5657 = vmul.f32 %v5019, %v5401
  %v5658 = vmul.f32 %v5022, %v5402
  %v5659 = vmul.f32 %v5025, %v5403
  %v5660 = vmul.f32 %v5028, %v5404
  %v5661 = vmul.f32 %v5031, %v5405
  %v5662 = vmul.f32 %v5034, %v5406
  %v5663 = vmul.f32 %v5037, %v5407
  %v5664 = vmul.f32 %v5040, %v5408
  %v5665 = vmul.f32 %v5043, %v5409
  %v5666 = vmul.f32 %v5046, %v5410
  %v5667 = vmul.f32 %v5049, %v5411
  %v5668 = vmul.f32 %v5052, %v5412
  %v5669 = vmul.f32 %v5055, %v5413
  %v5670 = vmul.f32 %v5058, %v5414
  %v5671 = vmul.f32 %v5061, %v5415
  %v5672 = vmul.f32 %v5064, %v5416
  %v5673 = vmul.f32 %v5067, %v5417
  %v5674 = vmul.f32 %v5070, %v5418
  %v5675 = vmul.f32 %v5073, %v5419
  %v5676 = vmul.f32 %v5076, %v5420
  %v5677 = vmul.f32 %v5079, %v5421
  %v5678 = vmul.f32 %v5082, %v5422
  %v5679 = vmul.f32 %v5085, %v5423
  %v5680 = vmul.f32 %v5088, %v5424
  %v5681 = vmul.f32 %v5091, %v5425
  %v5682 = vmul.f32 %v5094, %v5426
  %v5683 = vmul.f32 %v5097, %v5427
  %v5684 = vmul.f32 %v5100, %v5428
  %v5685 = vmul.f32 %v5103, %v5429
  %v5686 = vmul.f32 %v5106, %v5430
  %v5687 = vmul.f32 %v5109, %v5431
  %v5688 = vmul.f32 %v5112, %v5432
  %v5689 = vmul.f32 %v5115, %v5433
  %v5690 = vmul.f32 %v5118, %v5434
  %v5691 = vmul.f32 %v5121, %v5435
  %v5692 = vmul.f32 %v5124, %v5436
  %v5693 = vmul.f32 %v5127, %v5437
  %v5694 = vmul.f32 %v5130, %v5438
  %v5695 = vmul.f32 %v5133, %v5439
  %v5696 = vmul.f32 %v5136, %v5440
  %v5697 = vmul.f32 %v5139, %v5441
  %v5698 = vmul.f32 %v5142, %v5442
  %v5699 = vmul.f32 %v5145, %v5443
  %v5700 = vmul.f32 %v5148, %v5444
  %v5701 = vmul.f32 %v5151, %v5445
  %v5702 = vmul.f32 %v5154, %v5446
  %v5703 = vmul.f32 %v5157, %v5447
  %v5704 = vmul.f32 %v5160, %v5448
  %v5705 = vmul.f32 %v5163, %v5449
  %v5706 = vmul.f32 %v5166, %v5450
  %v5707 = vmul.f32 %v5169, %v5451
  %v5708 = vmul.f32 %v5172, %v5452
  %v5709 = vmul.f32 %v5175, %v5453
  %v5710 = vmul.f32 %v5178, %v5454
  %v5711 = vmul.f32 %v5181, %v5455
  %v5712 = vmul.f32 %v5184, %v5456
  %v5713 = vmul.f32 %v5187, %v5457
  %v5714 = vmul.f32 %v5190, %v5458
  %v5715 = vmul.f32 %v5193, %v5459
  %v5716 = vmul.f32 %v5196, %v5460
  %v5717 = vmul.f32 %v5199, %v5461
  %v5718 = vmul.f32 %v5202, %v5462
  %v5719 = vmul.f32 %v5205, %v5463
  %v5720 = vmul.f32 %v5208, %v5464
  %v5721 = vsub.f32 2.0, %v5465
  %v5722 = vsub.f32 2.0, %v5466
  %v5723 = vsub.f32 2.0, %v5467
  %v5724 = vsub.f32 2.0, %v5468
  %v5725 = vsub.f32 2.0, %v5469
  %v5726 = vsub.f32 2.0, %v5470
  %v5727 = vsub.f32 2.0, %v5471
  %v5728 = vsub.f32 2.0, %v5472
  %v5729 = vsub.f32 2.0, %v5473
  %v5730 = vsub.f32 2.0, %v5474
  %v5731 = vsub.f32 2.0, %v5475
  %v5732 = vsub.f32 2.0, %v5476
  %v5733 = vsub.f32 2.0, %v5477
  %v5734 = vsub.f32 2.0, %v5478
  %v5735 = vsub.f32 2.0, %v5479
  %v5736 = vsub.f32 2.0, %v5480
  %v5737 = vsub.f32 2.0, %v5481
  %v5738 = vsub.f32 2.0, %v5482
  %v5739 = vsub.f32 2.0, %v5483
  %v5740 = vsub.f32 2.0, %v5484
  %v5741 = vsub.f32 2.0, %v5485
  %v5742 = vsub.f32 2.0, %v5486
  %v5743 = vsub.f32 2.0, %v5487
  %v5744 = vsub.f32 2.0, %v5488
  %v5745 = vsub.f32 2.0, %v5489
  %v5746 = vsub.f32 2.0, %v5490
  %v5747 = vsub.f32 2.0, %v5491
  %v5748 = vsub.f32 2.0, %v5492
  %v5749 = vsub.f32 2.0, %v5493
  %v5750 = vsub.f32 2.0, %v5494
  %v5751 = vsub.f32 2.0, %v5495
  %v5752 = vsub.f32 2.0, %v5496
  %v5753 = vsub.f32 2.0, %v5497
  %v5754 = vsub.f32 2.0, %v5498
  %v5755 = vsub.f32 2.0, %v5499
  %v5756 = vsub.f32 2.0, %v5500
  %v5757 = vsub.f32 2.0, %v5501
  %v5758 = vsub.f32 2.0, %v5502
  %v5759 = vsub.f32 2.0, %v5503
  %v5760 = vsub.f32 2.0, %v5504
  %v5761 = vsub.f32 2.0, %v5505
  %v5762 = vsub.f32 2.0, %v5506
  %v5763 = vsub.f32 2.0, %v5507
  %v5764 = vsub.f32 2.0, %v5508
  %v5765 = vsub.f32 2.0, %v5509
  %v5766 = vsub.f32 2.0, %v5510
  %v5767 = vsub.f32 2.0, %v5511
  %v5768 = vsub.f32 2.0, %v5512
  %v5769 = vsub.f32 2.0, %v5513
  %v5770 = vsub.f32 2.0, %v5514
  %v5771 = vsub.f32 2.0, %v5515
  %v5772 = vsub.f32 2.0, %v5516
  %v5773 = vsub.f32 2.0, %v5517
  %v5774 = vsub.f32 2.0, %v5518
  %v5775 = vsub.f32 2.0, %v5519
  %v5776 = vsub.f32 2.0, %v5520
  %v5777 = vsub.f32 2.0, %v5521
  %v5778 = vsub.f32 2.0, %v5522
  %v5779 = vsub.f32 2.0, %v5523
  %v5780 = vsub.f32 2.0, %v5524
  %v5781 = vsub.f32 2.0, %v5525
  %v5782 = vsub.f32 2.0, %v5526
  %v5783 = vsub.f32 2.0, %v5527
  %v5784 = vsub.f32 2.0, %v5528
  %v5785 = vsub.f32 2.0, %v5529
  %v5786 = vsub.f32 2.0, %v5530
  %v5787 = vsub.f32 2.0, %v5531
  %v5788 = vsub.f32 2.0, %v5532
  %v5789 = vsub.f32 2.0, %v5533
  %v5790 = vsub.f32 2.0, %v5534
  %v5791 = vsub.f32 2.0, %v5535
  %v5792 = vsub.f32 2.0, %v5536
  %v5793 = vsub.f32 2.0, %v5537
  %v5794 = vsub.f32 2.0, %v5538
  %v5795 = vsub.f32 2.0, %v5539
  %v5796 = vsub.f32 2.0, %v5540
  %v5797 = vsub.f32 2.0, %v5541
  %v5798 = vsub.f32 2.0, %v5542
  %v5799 = vsub.f32 2.0, %v5543
  %v5800 = vsub.f32 2.0, %v5544
  %v5801 = vsub.f32 2.0, %v5545
  %v5802 = vsub.f32 2.0, %v5546
  %v5803 = vsub.f32 2.0, %v5547
  %v5804 = vsub.f32 2.0, %v5548
  %v5805 = vsub.f32 2.0, %v5549
  %v5806 = vsub.f32 2.0, %v5550
  %v5807 = vsub.f32 2.0, %v5551
  %v5808 = vsub.f32 2.0, %v5552
  %v5809 = vsub.f32 2.0, %v5553
  %v5810 = vsub.f32 2.0, %v5554
  %v5811 = vsub.f32 2.0, %v5555
  %v5812 = vsub.f32 2.0, %v5556
  %v5813 = vsub.f32 2.0, %v5557
  %v5814 = vsub.f32 2.0, %v5558
  %v5815 = vsub.f32 2.0, %v5559
  %v5816 = vsub.f32 2.0, %v5560
  %v5817 = vsub.f32 2.0, %v5561
  %v5818 = vsub.f32 2.0, %v5562
  %v5819 = vsub.f32 2.0, %v5563
  %v5820 = vsub.f32 2.0, %v5564
  %v5821 = vsub.f32 2.0, %v5565
  %v5822 = vsub.f32 2.0, %v5566
  %v5823 = vsub.f32 2.0, %v5567
  %v5824 = vsub.f32 2.0, %v5568
  %v5825 = vsub.f32 2.0, %v5569
  %v5826 = vsub.f32 2.0, %v5570
  %v5827 = vsub.f32 2.0, %v5571
  %v5828 = vsub.f32 2.0, %v5572
  %v5829 = vsub.f32 2.0, %v5573
  %v5830 = vsub.f32 2.0, %v5574
  %v5831 = vsub.f32 2.0, %v5575
  %v5832 = vsub.f32 2.0, %v5576
  %v5833 = vsub.f32 2.0, %v5577
  %v5834 = vsub.f32 2.0, %v5578
  %v5835 = vsub.f32 2.0, %v5579
  %v5836 = vsub.f32 2.0, %v5580
  %v5837 = vsub.f32 2.0, %v5581
  %v5838 = vsub.f32 2.0, %v5582
  %v5839 = vsub.f32 2.0, %v5583
  %v5840 = vsub.f32 2.0, %v5584
  %v5841 = vsub.f32 2.0, %v5585
  %v5842 = vsub.f32 2.0, %v5586
  %v5843 = vsub.f32 2.0, %v5587
  %v5844 = vsub.f32 2.0, %v5588
  %v5845 = vsub.f32 2.0, %v5589
  %v5846 = vsub.f32 2.0, %v5590
  %v5847 = vsub.f32 2.0, %v5591
  %v5848 = vsub.f32 2.0, %v5592
  %v5849 = vsub.f32 2.0, %v5593
  %v5850 = vsub.f32 2.0, %v5594
  %v5851 = vsub.f32 2.0, %v5595
  %v5852 = vsub.f32 2.0, %v5596
  %v5853 = vsub.f32 2.0, %v5597
  %v5854 = vsub.f32 2.0, %v5598
  %v5855 = vsub.f32 2.0, %v5599
  %v5856 = vsub.f32 2.0, %v5600
  %v5857 = vsub.f32 2.0, %v5601
  %v5858 = vsub.f32 2.0, %v5602
  %v5859 = vsub.f32 2.0, %v5603
  %v5860 = vsub.f32 2.0, %v5604
  %v5861 = vsub.f32 2.0, %v5605
  %v5862 = vsub.f32 2.0, %v5606
  %v5863 = vsub.f32 2.0, %v5607
  %v5864 = vsub.f32 2.0, %v5608
  %v5865 = vsub.f32 2.0, %v5609
  %v5866 = vsub.f32 2.0, %v5610
  %v5867 = vsub.f32 2.0, %v5611
  %v5868 = vsub.f32 2.0, %v5612
  %v5869 = vsub.f32 2.0, %v5613
  %v5870 = vsub.f32 2.0, %v5614
  %v5871 = vsub.f32 2.0, %v5615
  %v5872 = vsub.f32 2.0, %v5616
  %v5873 = vsub.f32 2.0, %v5617
  %v5874 = vsub.f32 2.0, %v5618
  %v5875 = vsub.f32 2.0, %v5619
  %v5876 = vsub.f32 2.0, %v5620
  %v5877 = vsub.f32 2.0, %v5621
  %v5878 = vsub.f32 2.0, %v5622
  %v5879 = vsub.f32 2.0, %v5623
  %v5880 = vsub.f32 2.0, %v5624
  %v5881 = vsub.f32 2.0, %v5625
  %v5882 = vsub.f32 2.0, %v5626
  %v5883 = vsub.f32 2.0, %v5627
  %v5884 = vsub.f32 2.0, %v5628
  %v5885 = vsub.f32 2.0, %v5629
  %v5886 = vsub.f32 2.0, %v5630
  %v5887 = vsub.f32 2.0, %v5631
  %v5888 = vsub.f32 2.0, %v5632
  %v5889 = vsub.f32 2.0, %v5633
  %v5890 = vsub.f32 2.0, %v5634
  %v5891 = vsub.f32 2.0, %v5635
  %v5892 = vsub.f32 2.0, %v5636
  %v5893 = vsub.f32 2.0, %v5637
  %v5894 = vsub.f32 2.0, %v5638
  %v5895 = vsub.f32 2.0, %v5639
  %v5896 = vsub.f32 2.0, %v5640
  %v5897 = vsub.f32 2.0, %v5641
  %v5898 = vsub.f32 2.0, %v5642
  %v5899 = vsub.f32 2.0, %v5643
  %v5900 = vsub.f32 2.0, %v5644
  %v5901 = vsub.f32 2.0, %v5645
  %v5902 = vsub.f32 2.0, %v5646
  %v5903 = vsub.f32 2.0, %v5647
  %v5904 = vsub.f32 2.0, %v5648
  %v5905 = vsub.f32 2.0, %v5649
  %v5906 = vsub.f32 2.0, %v5650
  %v5907 = vsub.f32 2.0, %v5651
  %v5908 = vsub.f32 2.0, %v5652
  %v5909 = vsub.f32 2.0, %v5653
  %v5910 = vsub.f32 2.0, %v5654
  %v5911 = vsub.f32 2.0, %v5655
  %v5912 = vsub.f32 2.0, %v5656
  %v5913 = vsub.f32 2.0, %v5657
  %v5914 = vsub.f32 2.0, %v5658
  %v5915 = vsub.f32 2.0, %v5659
  %v5916 = vsub.f32 2.0, %v5660
  %v5917 = vsub.f32 2.0, %v5661
  %v5918 = vsub.f32 2.0, %v5662
  %v5919 = vsub.f32 2.0, %v5663
  %v5920 = vsub.f32 2.0, %v5664
  %v5921 = vsub.f32 2.0, %v5665
  %v5922 = vsub.f32 2.0, %v5666
  %v5923 = vsub.f32 2.0, %v5667
  %v5924 = vsub.f32 2.0, %v5668
  %v5925 = vsub.f32 2.0, %v5669
  %v5926 = vsub.f32 2.0, %v5670
  %v5927 = vsub.f32 2.0, %v5671
  %v5928 = vsub.f32 2.0, %v5672
  %v5929 = vsub.f32 2.0, %v5673
  %v5930 = vsub.f32 2.0, %v5674
  %v5931 = vsub.f32 2.0, %v5675
  %v5932 = vsub.f32 2.0, %v5676
  %v5933 = vsub.f32 2.0, %v5677
  %v5934 = vsub.f32 2.0, %v5678
  %v5935 = vsub.f32 2.0, %v5679
  %v5936 = vsub.f32 2.0, %v5680
  %v5937 = vsub.f32 2.0, %v5681
  %v5938 = vsub.f32 2.0, %v5682
  %v5939 = vsub.f32 2.0, %v5683
  %v5940 = vsub.f32 2.0, %v5684
  %v5941 = vsub.f32 2.0, %v5685
  %v5942 = vsub.f32 2.0, %v5686
  %v5943 = vsub.f32 2.0, %v5687
  %v5944 = vsub.f32 2.0, %v5688
  %v5945 = vsub.f32 2.0, %v5689
  %v5946 = vsub.f32 2.0, %v5690
  %v5947 = vsub.f32 2.0, %v5691
  %v5948 = vsub.f32 2.0, %v5692
  %v5949 = vsub.f32 2.0, %v5693
  %v5950 = vsub.f32 2.0, %v5694
  %v5951 = vsub.f32 2.0, %v5695
  %v5952 = vsub.f32 2.0, %v5696
  %v5953 = vsub.f32 2.0, %v5697
  %v5954 = vsub.f32 2.0, %v5698
  %v5955 = vsub.f32 2.0, %v5699
  %v5956 = vsub.f32 2.0, %v5700
  %v5957 = vsub.f32 2.0, %v5701
  %v5958 = vsub.f32 2.0, %v5702
  %v5959 = vsub.f32 2.0, %v5703
  %v5960 = vsub.f32 2.0, %v5704
  %v5961 = vsub.f32 2.0, %v5705
  %v5962 = vsub.f32 2.0, %v5706
  %v5963 = vsub.f32 2.0, %v5707
  %v5964 = vsub.f32 2.0, %v5708
  %v5965 = vsub.f32 2.0, %v5709
  %v5966 = vsub.f32 2.0, %v5710
  %v5967 = vsub.f32 2.0, %v5711
  %v5968 = vsub.f32 2.0, %v5712
  %v5969 = vsub.f32 2.0, %v5713
  %v5970 = vsub.f32 2.0, %v5714
  %v5971 = vsub.f32 2.0, %v5715
  %v5972 = vsub.f32 2.0, %v5716
  %v5973 = vsub.f32 2.0, %v5717
  %v5974 = vsub.f32 2.0, %v5718
  %v5975 = vsub.f32 2.0, %v5719
  %v5976 = vsub.f32 2.0, %v5720
  %v5977 = vmul.f32 %v5209, %v5721
  %v5978 = vmul.f32 %v5210, %v5722
  %v5979 = vmul.f32 %v5211, %v5723
  %v5980 = vmul.f32 %v5212, %v5724
  %v5981 = vmul.f32 %v5213, %v5725
  %v5982 = vmul.f32 %v5214, %v5726
  %v5983 = vmul.f32 %v5215, %v5727
  %v5984 = vmul.f32 %v5216, %v5728
  %v5985 = vmul.f32 %v5217, %v5729
  %v5986 = vmul.f32 %v5218, %v5730
  %v5987 = vmul.f32 %v5219, %v5731
  %v5988 = vmul.f32 %v5220, %v5732
  %v5989 = vmul.f32 %v5221, %v5733
  %v5990 = vmul.f32 %v5222, %v5734
  %v5991 = vmul.f32 %v5223, %v5735
  %v5992 = vmul.f32 %v5224, %v5736
  %v5993 = vmul.f32 %v5225, %v5737
  %v5994 = vmul.f32 %v5226, %v5738
  %v5995 = vmul.f32 %v5227, %v5739
  %v5996 = vmul.f32 %v5228, %v5740
  %v5997 = vmul.f32 %v5229, %v5741
  %v5998 = vmul.f32 %v5230, %v5742
  %v5999 = vmul.f32 %v5231, %v5743
  %v6000 = vmul.f32 %v5232, %v5744
  %v6001 = vmul.f32 %v5233, %v5745
  %v6002 = vmul.f32 %v5234, %v5746
  %v6003 = vmul.f32 %v5235, %v5747
  %v6004 = vmul.f32 %v5236, %v5748
  %v6005 = vmul.f32 %v5237, %v5749
  %v6006 = vmul.f32 %v5238, %v5750
  %v6007 = vmul.f32 %v5239, %v5751
  %v6008 = vmul.f32 %v5240, %v5752
  %v6009 = vmul.f32 %v5241, %v5753
  %v6010 = vmul.f32 %v5242, %v5754
  %v6011 = vmul.f32 %v5243, %v5755
  %v6012 = vmul.f32 %v5244, %v5756
  %v6013 = vmul.f32 %v5245, %v5757
  %v6014 = vmul.f32 %v5246, %v5758
  %v6015 = vmul.f32 %v5247, %v5759
  %v6016 = vmul.f32 %v5248, %v5760
  %v6017 = vmul.f32 %v5249, %v5761
  %v6018 = vmul.f32 %v5250, %v5762
  %v6019 = vmul.f32 %v5251, %v5763
  %v6020 = vmul.f32 %v5252, %v5764
  %v6021 = vmul.f32 %v5253, %v5765
  %v6022 = vmul.f32 %v5254, %v5766
  %v6023 = vmul.f32 %v5255, %v5767
  %v6024 = vmul.f32 %v5256, %v5768
  %v6025 = vmul.f32 %v5257, %v5769
  %v6026 = vmul.f32 %v5258, %v5770
  %v6027 = vmul.f32 %v5259, %v5771
  %v6028 = vmul.f32 %v5260, %v5772
  %v6029 = vmul.f32 %v5261, %v5773
  %v6030 = vmul.f32 %v5262, %v5774
  %v6031 = vmul.f32 %v5263, %v5775
  %v6032 = vmul.f32 %v5264, %v5776
  %v6033 = vmul.f32 %v5265, %v5777
  %v6034 = vmul.f32 %v5266, %v5778
  %v6035 = vmul.f32 %v5267, %v5779
  %v6036 = vmul.f32 %v5268, %v5780
  %v6037 = vmul.f32 %v5269, %v5781
  %v6038 = vmul.f32 %v5270, %v5782
  %v6039 = vmul.f32 %v5271, %v5783
  %v6040 = vmul.f32 %v5272, %v5784
  %v6041 = vmul.f32 %v5273, %v5785
  %v6042 = vmul.f32 %v5274, %v5786
  %v6043 = vmul.f32 %v5275, %v5787
  %v6044 = vmul.f32 %v5276, %v5788
  %v6045 = vmul.f32 %v5277, %v5789
  %v6046 = vmul.f32 %v5278, %v5790
  %v6047 = vmul.f32 %v5279, %v5791
  %v6048 = vmul.f32 %v5280, %v5792
  %v6049 = vmul.f32 %v5281, %v5793
  %v6050 = vmul.f32 %v5282, %v5794
  %v6051 = vmul.f32 %v5283, %v5795
  %v6052 = vmul.f32 %v5284, %v5796
  %v6053 = vmul.f32 %v5285, %v5797
  %v6054 = vmul.f32 %v5286, %v5798
  %v6055 = vmul.f32 %v5287, %v5799
  %v6056 = vmul.f32 %v5288, %v5800
  %v6057 = vmul.f32 %v5289, %v5801
  %v6058 = vmul.f32 %v5290, %v5802
  %v6059 = vmul.f32 %v5291, %v5803
  %v6060 = vmul.f32 %v5292, %v5804
  %v6061 = vmul.f32 %v5293, %v5805
  %v6062 = vmul.f32 %v5294, %v5806
  %v6063 = vmul.f32 %v5295, %v5807
  %v6064 = vmul.f32 %v5296, %v5808
  %v6065 = vmul.f32 %v5297, %v5809
  %v6066 = vmul.f32 %v5298, %v5810
  %v6067 = vmul.f32 %v5299, %v5811
  %v6068 = vmul.f32 %v5300, %v5812
  %v6069 = vmul.f32 %v5301, %v5813
  %v6070 = vmul.f32 %v5302, %v5814
  %v6071 = vmul.f32 %v5303, %v5815
  %v6072 = vmul.f32 %v5304, %v5816
  %v6073 = vmul.f32 %v5305, %v5817
  %v6074 = vmul.f32 %v5306, %v5818
  %v6075 = vmul.f32 %v5307, %v5819
  %v6076 = vmul.f32 %v5308, %v5820
  %v6077 = vmul.f32 %v5309, %v5821
  %v6078 = vmul.f32 %v5310, %v5822
  %v6079 = vmul.f32 %v5311, %v5823
  %v6080 = vmul.f32 %v5312, %v5824
  %v6081 = vmul.f32 %v5313, %v5825
  %v6082 = vmul.f32 %v5314, %v5826
  %v6083 = vmul.f32 %v5315, %v5827
  %v6084 = vmul.f32 %v5316, %v5828
  %v6085 = vmul.f32 %v5317, %v5829
  %v6086 = vmul.f32 %v5318, %v5830
  %v6087 = vmul.f32 %v5319, %v5831
  %v6088 = vmul.f32 %v5320, %v5832
  %v6089 = vmul.f32 %v5321, %v5833
  %v6090 = vmul.f32 %v5322, %v5834
  %v6091 = vmul.f32 %v5323, %v5835
  %v6092 = vmul.f32 %v5324, %v5836
  %v6093 = vmul.f32 %v5325, %v5837
  %v6094 = vmul.f32 %v5326, %v5838
  %v6095 = vmul.f32 %v5327, %v5839
  %v6096 = vmul.f32 %v5328, %v5840
  %v6097 = vmul.f32 %v5329, %v5841
  %v6098 = vmul.f32 %v5330, %v5842
  %v6099 = vmul.f32 %v5331, %v5843
  %v6100 = vmul.f32 %v5332, %v5844
  %v6101 = vmul.f32 %v5333, %v5845
  %v6102 = vmul.f32 %v5334, %v5846
  %v6103 = vmul.f32 %v5335, %v5847
  %v6104 = vmul.f32 %v5336, %v5848
  %v6105 = vmul.f32 %v5337, %v5849
  %v6106 = vmul.f32 %v5338, %v5850
  %v6107 = vmul.f32 %v5339, %v5851
  %v6108 = vmul.f32 %v5340, %v5852
  %v6109 = vmul.f32 %v5341, %v5853
  %v6110 = vmul.f32 %v5342, %v5854
  %v6111 = vmul.f32 %v5343, %v5855
  %v6112 = vmul.f32 %v5344, %v5856
  %v6113 = vmul.f32 %v5345, %v5857
  %v6114 = vmul.f32 %v5346, %v5858
  %v6115 = vmul.f32 %v5347, %v5859
  %v6116 = vmul.f32 %v5348, %v5860
  %v6117 = vmul.f32 %v5349, %v5861
  %v6118 = vmul.f32 %v5350, %v5862
  %v6119 = vmul.f32 %v5351, %v5863
  %v6120 = vmul.f32 %v5352, %v5864
  %v6121 = vmul.f32 %v5353, %v5865
  %v6122 = vmul.f32 %v5354, %v5866
  %v6123 = vmul.f32 %v5355, %v5867
  %v6124 = vmul.f32 %v5356, %v5868
  %v6125 = vmul.f32 %v5357, %v5869
  %v6126 = vmul.f32 %v5358, %v5870
  %v6127 = vmul.f32 %v5359, %v5871
  %v6128 = vmul.f32 %v5360, %v5872
  %v6129 = vmul.f32 %v5361, %v5873
  %v6130 = vmul.f32 %v5362, %v5874
  %v6131 = vmul.f32 %v5363, %v5875
  %v6132 = vmul.f32 %v5364, %v5876
  %v6133 = vmul.f32 %v5365, %v5877
  %v6134 = vmul.f32 %v5366, %v5878
  %v6135 = vmul.f32 %v5367, %v5879
  %v6136 = vmul.f32 %v5368, %v5880
  %v6137 = vmul.f32 %v5369, %v5881
  %v6138 = vmul.f32 %v5370, %v5882
  %v6139 = vmul.f32 %v5371, %v5883
  %v6140 = vmul.f32 %v5372, %v5884
  %v6141 = vmul.f32 %v5373, %v5885
  %v6142 = vmul.f32 %v5374, %v5886
  %v6143 = vmul.f32 %v5375, %v5887
  %v6144 = vmul.f32 %v5376, %v5888
  %v6145 = vmul.f32 %v5377, %v5889
  %v6146 = vmul.f32 %v5378, %v5890
  %v6147 = vmul.f32 %v5379, %v5891
  %v6148 = vmul.f32 %v5380, %v5892
  %v6149 = vmul.f32 %v5381, %v5893
  %v6150 = vmul.f32 %v5382, %v5894
  %v6151 = vmul.f32 %v5383, %v5895
  %v6152 = vmul.f32 %v5384, %v5896
  %v6153 = vmul.f32 %v5385, %v5897
  %v6154 = vmul.f32 %v5386, %v5898
  %v6155 = vmul.f32 %v5387, %v5899
  %v6156 = vmul.f32 %v5388, %v5900
  %v6157 = vmul.f32 %v5389, %v5901
  %v6158 = vmul.f32 %v5390, %v5902
  %v6159 = vmul.f32 %v5391, %v5903
  %v6160 = vmul.f32 %v5392, %v5904
  %v6161 = vmul.f32 %v5393, %v5905
  %v6162 = vmul.f32 %v5394, %v5906
  %v6163 = vmul.f32 %v5395, %v5907
  %v6164 = vmul.f32 %v5396, %v5908
  %v6165 = vmul.f32 %v5397, %v5909
  %v6166 = vmul.f32 %v5398, %v5910
  %v6167 = vmul.f32 %v5399, %v5911
  %v6168 = vmul.f32 %v5400, %v5912
  %v6169 = vmul.f32 %v5401, %v5913
  %v6170 = vmul.f32 %v5402, %v5914
  %v6171 = vmul.f32 %v5403, %v5915
  %v6172 = vmul.f32 %v5404, %v5916
  %v6173 = vmul.f32 %v5405, %v5917
  %v6174 = vmul.f32 %v5406, %v5918
  %v6175 = vmul.f32 %v5407, %v5919
  %v6176 = vmul.f32 %v5408, %v5920
  %v6177 = vmul.f32 %v5409, %v5921
  %v6178 = vmul.f32 %v5410, %v5922
  %v6179 = vmul.f32 %v5411, %v5923
  %v6180 = vmul.f32 %v5412, %v5924
  %v6181 = vmul.f32 %v5413, %v5925
  %v6182 = vmul.f32 %v5414, %v5926
  %v6183 = vmul.f32 %v5415, %v5927
  %v6184 = vmul.f32 %v5416, %v5928
  %v6185 = vmul.f32 %v5417, %v5929
  %v6186 = vmul.f32 %v5418, %v5930
  %v6187 = vmul.f32 %v5419, %v5931
  %v6188 = vmul.f32 %v5420, %v5932
  %v6189 = vmul.f32 %v5421, %v5933
  %v6190 = vmul.f32 %v5422, %v5934
  %v6191 = vmul.f32 %v5423, %v5935
  %v6192 = vmul.f32 %v5424, %v5936
  %v6193 = vmul.f32 %v5425, %v5937
  %v6194 = vmul.f32 %v5426, %v5938
  %v6195 = vmul.f32 %v5427, %v5939
  %v6196 = vmul.f32 %v5428, %v5940
  %v6197 = vmul.f32 %v5429, %v5941
  %v6198 = vmul.f32 %v5430, %v5942
  %v6199 = vmul.f32 %v5431, %v5943
  %v6200 = vmul.f32 %v5432, %v5944
  %v6201 = vmul.f32 %v5433, %v5945
  %v6202 = vmul.f32 %v5434, %v5946
  %v6203 = vmul.f32 %v5435, %v5947
  %v6204 = vmul.f32 %v5436, %v5948
  %v6205 = vmul.f32 %v5437, %v5949
  %v6206 = vmul.f32 %v5438, %v5950
  %v6207 = vmul.f32 %v5439, %v5951
  %v6208 = vmul.f32 %v5440, %v5952
  %v6209 = vmul.f32 %v5441, %v5953
  %v6210 = vmul.f32 %v5442, %v5954
  %v6211 = vmul.f32 %v5443, %v5955
  %v6212 = vmul.f32 %v5444, %v5956
  %v6213 = vmul.f32 %v5445, %v5957
  %v6214 = vmul.f32 %v5446, %v5958
  %v6215 = vmul.f32 %v5447, %v5959
  %v6216 = vmul.f32 %v5448, %v5960
  %v6217 = vmul.f32 %v5449, %v5961
  %v6218 = vmul.f32 %v5450, %v5962
  %v6219 = vmul.f32 %v5451, %v5963
  %v6220 = vmul.f32 %v5452, %v5964
  %v6221 = vmul.f32 %v5453, %v5965
  %v6222 = vmul.f32 %v5454, %v5966
  %v6223 = vmul.f32 %v5455, %v5967
  %v6224 = vmul.f32 %v5456, %v5968
  %v6225 = vmul.f32 %v5457, %v5969
  %v6226 = vmul.f32 %v5458, %v5970
  %v6227 = vmul.f32 %v5459, %v5971
  %v6228 = vmul.f32 %v5460, %v5972
  %v6229 = vmul.f32 %v5461, %v5973
  %v6230 = vmul.f32 %v5462, %v5974
  %v6231 = vmul.f32 %v5463, %v5975
  %v6232 = vmul.f32 %v5464, %v5976
  %v6233 = vmul.f32 %v3930, %v5977
  %v6234 = vmul.f32 %v3932, %v5978
  %v6235 = vmul.f32 %v3934, %v5979
  %v6236 = vmul.f32 %v3936, %v5980
  %v6237 = vmul.f32 %v3938, %v5981
  %v6238 = vmul.f32 %v3940, %v5982
  %v6239 = vmul.f32 %v3942, %v5983
  %v6240 = vmul.f32 %v3944, %v5984
  %v6241 = vmul.f32 %v3946, %v5985
  %v6242 = vmul.f32 %v3948, %v5986
  %v6243 = vmul.f32 %v3950, %v5987
  %v6244 = vmul.f32 %v3952, %v5988
  %v6245 = vmul.f32 %v3954, %v5989
  %v6246 = vmul.f32 %v3956, %v5990
  %v6247 = vmul.f32 %v3958, %v5991
  %v6248 = vmul.f32 %v3960, %v5992
  %v6249 = vmul.f32 %v3962, %v5993
  %v6250 = vmul.f32 %v3964, %v5994
  %v6251 = vmul.f32 %v3966, %v5995
  %v6252 = vmul.f32 %v3968, %v5996
  %v6253 = vmul.f32 %v3970, %v5997
  %v6254 = vmul.f32 %v3972, %v5998
  %v6255 = vmul.f32 %v3974, %v5999
  %v6256 = vmul.f32 %v3976, %v6000
  %v6257 = vmul.f32 %v3978, %v6001
  %v6258 = vmul.f32 %v3980, %v6002
  %v6259 = vmul.f32 %v3982, %v6003
  %v6260 = vmul.f32 %v3984, %v6004
  %v6261 = vmul.f32 %v3986, %v6005
  %v6262 = vmul.f32 %v3988, %v6006
  %v6263 = vmul.f32 %v3990, %v6007
  %v6264 = vmul.f32 %v3992, %v6008
  %v6265 = vmul.f32 %v3994, %v6009
  %v6266 = vmul.f32 %v3996, %v6010
  %v6267 = vmul.f32 %v3998, %v6011
  %v6268 = vmul.f32 %v4000, %v6012
  %v6269 = vmul.f32 %v4002, %v6013
  %v6270 = vmul.f32 %v4004, %v6014
  %v6271 = vmul.f32 %v4006, %v6015
  %v6272 = vmul.f32 %v4008, %v6016
  %v6273 = vmul.f32 %v4010, %v6017
  %v6274 = vmul.f32 %v4012, %v6018
  %v6275 = vmul.f32 %v4014, %v6019
  %v6276 = vmul.f32 %v4016, %v6020
  %v6277 = vmul.f32 %v4018, %v6021
  %v6278 = vmul.f32 %v4020, %v6022
  %v6279 = vmul.f32 %v4022, %v6023
  %v6280 = vmul.f32 %v4024, %v6024
  %v6281 = vmul.f32 %v4026, %v6025
  %v6282 = vmul.f32 %v4028, %v6026
  %v6283 = vmul.f32 %v4030, %v6027
  %v6284 = vmul.f32 %v4032, %v6028
  %v6285 = vmul.f32 %v4034, %v6029
  %v6286 = vmul.f32 %v4036, %v6030
  %v6287 = vmul.f32 %v4038, %v6031
  %v6288 = vmul.f32 %v4040, %v6032
  %v6289 = vmul.f32 %v4042, %v6033
  %v6290 = vmul.f32 %v4044, %v6034
  %v6291 = vmul.f32 %v4046, %v6035
  %v6292 = vmul.f32 %v4048, %v6036
  %v6293 = vmul.f32 %v4050, %v6037
  %v6294 = vmul.f32 %v4052, %v6038
  %v6295 = vmul.f32 %v4054, %v6039
  %v6296 = vmul.f32 %v4056, %v6040
  %v6297 = vmul.f32 %v4058, %v6041
  %v6298 = vmul.f32 %v4060, %v6042
  %v6299 = vmul.f32 %v4062, %v6043
  %v6300 = vmul.f32 %v4064, %v6044
  %v6301 = vmul.f32 %v4066, %v6045
  %v6302 = vmul.f32 %v4068, %v6046
  %v6303 = vmul.f32 %v4070, %v6047
  %v6304 = vmul.f32 %v4072, %v6048
  %v6305 = vmul.f32 %v4074, %v6049
  %v6306 = vmul.f32 %v4076, %v6050
  %v6307 = vmul.f32 %v4078, %v6051
  %v6308 = vmul.f32 %v4080, %v6052
  %v6309 = vmul.f32 %v4082, %v6053
  %v6310 = vmul.f32 %v4084, %v6054
  %v6311 = vmul.f32 %v4086, %v6055
  %v6312 = vmul.f32 %v4088, %v6056
  %v6313 = vmul.f32 %v4090, %v6057
  %v6314 = vmul.f32 %v4092, %v6058
  %v6315 = vmul.f32 %v4094, %v6059
  %v6316 = vmul.f32 %v4096, %v6060
  %v6317 = vmul.f32 %v4098, %v6061
  %v6318 = vmul.f32 %v4100, %v6062
  %v6319 = vmul.f32 %v4102, %v6063
  %v6320 = vmul.f32 %v4104, %v6064
  %v6321 = vmul.f32 %v4106, %v6065
  %v6322 = vmul.f32 %v4108, %v6066
  %v6323 = vmul.f32 %v4110, %v6067
  %v6324 = vmul.f32 %v4112, %v6068
  %v6325 = vmul.f32 %v4114, %v6069
  %v6326 = vmul.f32 %v4116, %v6070
  %v6327 = vmul.f32 %v4118, %v6071
  %v6328 = vmul.f32 %v4120, %v6072
  %v6329 = vmul.f32 %v4122, %v6073
  %v6330 = vmul.f32 %v4124, %v6074
  %v6331 = vmul.f32 %v4126, %v6075
  %v6332 = vmul.f32 %v4128, %v6076
  %v6333 = vmul.f32 %v4130, %v6077
  %v6334 = vmul.f32 %v4132, %v6078
  %v6335 = vmul.f32 %v4134, %v6079
  %v6336 = vmul.f32 %v4136, %v6080
  %v6337 = vmul.f32 %v4138, %v6081
  %v6338 = vmul.f32 %v4140, %v6082
  %v6339 = vmul.f32 %v4142, %v6083
  %v6340 = vmul.f32 %v4144, %v6084
  %v6341 = vmul.f32 %v4146, %v6085
  %v6342 = vmul.f32 %v4148, %v6086
  %v6343 = vmul.f32 %v4150, %v6087
  %v6344 = vmul.f32 %v4152, %v6088
  %v6345 = vmul.f32 %v4154, %v6089
  %v6346 = vmul.f32 %v4156, %v6090
  %v6347 = vmul.f32 %v4158, %v6091
  %v6348 = vmul.f32 %v4160, %v6092
  %v6349 = vmul.f32 %v4162, %v6093
  %v6350 = vmul.f32 %v4164, %v6094
  %v6351 = vmul.f32 %v4166, %v6095
  %v6352 = vmul.f32 %v4168, %v6096
  %v6353 = vmul.f32 %v4170, %v6097
  %v6354 = vmul.f32 %v4172, %v6098
  %v6355 = vmul.f32 %v4174, %v6099
  %v6356 = vmul.f32 %v4176, %v6100
  %v6357 = vmul.f32 %v4178, %v6101
  %v6358 = vmul.f32 %v4180, %v6102
  %v6359 = vmul.f32 %v4182, %v6103
  %v6360 = vmul.f32 %v4184, %v6104
  %v6361 = vmul.f32 %v4186, %v6105
  %v6362 = vmul.f32 %v4188, %v6106
  %v6363 = vmul.f32 %v4190, %v6107
  %v6364 = vmul.f32 %v4192, %v6108
  %v6365 = vmul.f32 %v4194, %v6109
  %v6366 = vmul.f32 %v4196, %v6110
  %v6367 = vmul.f32 %v4198, %v6111
  %v6368 = vmul.f32 %v4200, %v6112
  %v6369 = vmul.f32 %v4202, %v6113
  %v6370 = vmul.f32 %v4204, %v6114
  %v6371 = vmul.f32 %v4206, %v6115
  %v6372 = vmul.f32 %v4208, %v6116
  %v6373 = vmul.f32 %v4210, %v6117
  %v6374 = vmul.f32 %v4212, %v6118
  %v6375 = vmul.f32 %v4214, %v6119
  %v6376 = vmul.f32 %v4216, %v6120
  %v6377 = vmul.f32 %v4218, %v6121
  %v6378 = vmul.f32 %v4220, %v6122
  %v6379 = vmul.f32 %v4222, %v6123
  %v6380 = vmul.f32 %v4224, %v6124
  %v6381 = vmul.f32 %v4226, %v6125
  %v6382 = vmul.f32 %v4228, %v6126
  %v6383 = vmul.f32 %v4230, %v6127
  %v6384 = vmul.f32 %v4232, %v6128
  %v6385 = vmul.f32 %v4234, %v6129
  %v6386 = vmul.f32 %v4236, %v6130
  %v6387 = vmul.f32 %v4238, %v6131
  %v6388 = vmul.f32 %v4240, %v6132
  %v6389 = vmul.f32 %v4242, %v6133
  %v6390 = vmul.f32 %v4244, %v6134
  %v6391 = vmul.f32 %v4246, %v6135
  %v6392 = vmul.f32 %v4248, %v6136
  %v6393 = vmul.f32 %v4250, %v6137
  %v6394 = vmul.f32 %v4252, %v6138
  %v6395 = vmul.f32 %v4254, %v6139
  %v6396 = vmul.f32 %v4256, %v6140
  %v6397 = vmul.f32 %v4258, %v6141
  %v6398 = vmul.f32 %v4260, %v6142
  %v6399 = vmul.f32 %v4262, %v6143
  %v6400 = vmul.f32 %v4264, %v6144
  %v6401 = vmul.f32 %v4266, %v6145
  %v6402 = vmul.f32 %v4268, %v6146
  %v6403 = vmul.f32 %v4270, %v6147
  %v6404 = vmul.f32 %v4272, %v6148
  %v6405 = vmul.f32 %v4274, %v6149
  %v6406 = vmul.f32 %v4276, %v6150
  %v6407 = vmul.f32 %v4278, %v6151
  %v6408 = vmul.f32 %v4280, %v6152
  %v6409 = vmul.f32 %v4282, %v6153
  %v6410 = vmul.f32 %v4284, %v6154
  %v6411 = vmul.f32 %v4286, %v6155
  %v6412 = vmul.f32 %v4288, %v6156
  %v6413 = vmul.f32 %v4290, %v6157
  %v6414 = vmul.f32 %v4292, %v6158
  %v6415 = vmul.f32 %v4294, %v6159
  %v6416 = vmul.f32 %v4296, %v6160
  %v6417 = vmul.f32 %v4298, %v6161
  %v6418 = vmul.f32 %v4300, %v6162
  %v6419 = vmul.f32 %v4302, %v6163
  %v6420 = vmul.f32 %v4304, %v6164
  %v6421 = vmul.f32 %v4306, %v6165
  %v6422 = vmul.f32 %v4308, %v6166
  %v6423 = vmul.f32 %v4310, %v6167
  %v6424 = vmul.f32 %v4312, %v6168
  %v6425 = vmul.f32 %v4314, %v6169
  %v6426 = vmul.f32 %v4316, %v6170
  %v6427 = vmul.f32 %v4318, %v6171
  %v6428 = vmul.f32 %v4320, %v6172
  %v6429 = vmul.f32 %v4322, %v6173
  %v6430 = vmul.f32 %v4324, %v6174
  %v6431 = vmul.f32 %v4326, %v6175
  %v6432 = vmul.f32 %v4328, %v6176
  %v6433 = vmul.f32 %v4330, %v6177
  %v6434 = vmul.f32 %v4332, %v6178
  %v6435 = vmul.f32 %v4334, %v6179
  %v6436 = vmul.f32 %v4336, %v6180
  %v6437 = vmul.f32 %v4338, %v6181
  %v6438 = vmul.f32 %v4340, %v6182
  %v6439 = vmul.f32 %v4342, %v6183
  %v6440 = vmul.f32 %v4344, %v6184
  %v6441 = vmul.f32 %v4346, %v6185
  %v6442 = vmul.f32 %v4348, %v6186
  %v6443 = vmul.f32 %v4350, %v6187
  %v6444 = vmul.f32 %v4352, %v6188
  %v6445 = vmul.f32 %v4354, %v6189
  %v6446 = vmul.f32 %v4356, %v6190
  %v6447 = vmul.f32 %v4358, %v6191
  %v6448 = vmul.f32 %v4360, %v6192
  %v6449 = vmul.f32 %v4362, %v6193
  %v6450 = vmul.f32 %v4364, %v6194
  %v6451 = vmul.f32 %v4366, %v6195
  %v6452 = vmul.f32 %v4368, %v6196
  %v6453 = vmul.f32 %v4370, %v6197
  %v6454 = vmul.f32 %v4372, %v6198
  %v6455 = vmul.f32 %v4374, %v6199
  %v6456 = vmul.f32 %v4376, %v6200
  %v6457 = vmul.f32 %v4378, %v6201
  %v6458 = vmul.f32 %v4380, %v6202
  %v6459 = vmul.f32 %v4382, %v6203
  %v6460 = vmul.f32 %v4384, %v6204
  %v6461 = vmul.f32 %v4386, %v6205
  %v6462 = vmul.f32 %v4388, %v6206
  %v6463 = vmul.f32 %v4390, %v6207
  %v6464 = vmul.f32 %v4392, %v6208
  %v6465 = vmul.f32 %v4394, %v6209
  %v6466 = vmul.f32 %v4396, %v6210
  %v6467 = vmul.f32 %v4398, %v6211
  %v6468 = vmul.f32 %v4400, %v6212
  %v6469 = vmul.f32 %v4402, %v6213
  %v6470 = vmul.f32 %v4404, %v6214
  %v6471 = vmul.f32 %v4406, %v6215
  %v6472 = vmul.f32 %v4408, %v6216
  %v6473 = vmul.f32 %v4410, %v6217
  %v6474 = vmul.f32 %v4412, %v6218
  %v6475 = vmul.f32 %v4414, %v6219
  %v6476 = vmul.f32 %v4416, %v6220
  %v6477 = vmul.f32 %v4418, %v6221
  %v6478 = vmul.f32 %v4420, %v6222
  %v6479 = vmul.f32 %v4422, %v6223
  %v6480 = vmul.f32 %v4424, %v6224
  %v6481 = vmul.f32 %v4426, %v6225
  %v6482 = vmul.f32 %v4428, %v6226
  %v6483 = vmul.f32 %v4430, %v6227
  %v6484 = vmul.f32 %v4432, %v6228
  %v6485 = vmul.f32 %v4434, %v6229
  %v6486 = vmul.f32 %v4436, %v6230
  %v6487 = vmul.f32 %v4438, %v6231
  %v6488 = vmul.f32 %v4440, %v6232
  %v6489 = vld [vmem:[%s2] sm:$0xff]
  %v6490 = vld [vmem:[%s2 + $0x8] sm:$0xff]
  %v6491 = vld [vmem:[%s2 + $0x10] sm:$0xff]
  %v6492 = vld [vmem:[%s2 + $0x18] sm:$0xff]
  %v6493 = vld [vmem:[%s2 + $0x20] sm:$0xff]
  %v6494 = vld [vmem:[%s2 + $0x28] sm:$0xff]
  %v6495 = vld [vmem:[%s2 + $0x30] sm:$0xff]
  %v6496 = vld [vmem:[%s2 + $0x38] sm:$0xff]
  %v6497 = vld [vmem:[%s2 + $0x40] sm:$0xff]
  %v6498 = vld [vmem:[%s2 + $0x48] sm:$0xff]
  %v6499 = vld [vmem:[%s2 + $0x50] sm:$0xff]
  %v6500 = vld [vmem:[%s2 + $0x58] sm:$0xff]
  %v6501 = vld [vmem:[%s2 + $0x60] sm:$0xff]
  %v6502 = vld [vmem:[%s2 + $0x68] sm:$0xff]
  %v6503 = vld [vmem:[%s2 + $0x70] sm:$0xff]
  %v6504 = vld [vmem:[%s2 + $0x78] sm:$0xff]
  %v6505 = vld [vmem:[%s2 + $0x80] sm:$0xff]
  %v6506 = vld [vmem:[%s2 + $0x88] sm:$0xff]
  %v6507 = vld [vmem:[%s2 + $0x90] sm:$0xff]
  %v6508 = vld [vmem:[%s2 + $0x98] sm:$0xff]
  %v6509 = vld [vmem:[%s2 + $0xa0] sm:$0xff]
  %v6510 = vld [vmem:[%s2 + $0xa8] sm:$0xff]
  %v6511 = vld [vmem:[%s2 + $0xb0] sm:$0xff]
  %v6512 = vld [vmem:[%s2 + $0xb8] sm:$0xff]
  %v6513 = vld [vmem:[%s2 + $0xc0] sm:$0xff]
  %v6514 = vld [vmem:[%s2 + $0xc8] sm:$0xff]
  %v6515 = vld [vmem:[%s2 + $0xd0] sm:$0xff]
  %v6516 = vld [vmem:[%s2 + $0xd8] sm:$0xff]
  %v6517 = vld [vmem:[%s2 + $0xe0] sm:$0xff]
  %v6518 = vld [vmem:[%s2 + $0xe8] sm:$0xff]
  %v6519 = vld [vmem:[%s2 + $0xf0] sm:$0xff]
  %v6520 = vld [vmem:[%s2 + $0xf8] sm:$0xff]
  %v6521 = vld [vmem:[%s2 + $0x100] sm:$0xff]
  %v6522 = vld [vmem:[%s2 + $0x108] sm:$0xff]
  %v6523 = vld [vmem:[%s2 + $0x110] sm:$0xff]
  %v6524 = vld [vmem:[%s2 + $0x118] sm:$0xff]
  %v6525 = vld [vmem:[%s2 + $0x120] sm:$0xff]
  %v6526 = vld [vmem:[%s2 + $0x128] sm:$0xff]
  %v6527 = vld [vmem:[%s2 + $0x130] sm:$0xff]
  %v6528 = vld [vmem:[%s2 + $0x138] sm:$0xff]
  %v6529 = vld [vmem:[%s2 + $0x140] sm:$0xff]
  %v6530 = vld [vmem:[%s2 + $0x148] sm:$0xff]
  %v6531 = vld [vmem:[%s2 + $0x150] sm:$0xff]
  %v6532 = vld [vmem:[%s2 + $0x158] sm:$0xff]
  %v6533 = vld [vmem:[%s2 + $0x160] sm:$0xff]
  %v6534 = vld [vmem:[%s2 + $0x168] sm:$0xff]
  %v6535 = vld [vmem:[%s2 + $0x170] sm:$0xff]
  %v6536 = vld [vmem:[%s2 + $0x178] sm:$0xff]
  %v6537 = vld [vmem:[%s2 + $0x180] sm:$0xff]
  %v6538 = vld [vmem:[%s2 + $0x188] sm:$0xff]
  %v6539 = vld [vmem:[%s2 + $0x190] sm:$0xff]
  %v6540 = vld [vmem:[%s2 + $0x198] sm:$0xff]
  %v6541 = vld [vmem:[%s2 + $0x1a0] sm:$0xff]
  %v6542 = vld [vmem:[%s2 + $0x1a8] sm:$0xff]
  %v6543 = vld [vmem:[%s2 + $0x1b0] sm:$0xff]
  %v6544 = vld [vmem:[%s2 + $0x1b8] sm:$0xff]
  %v6545 = vld [vmem:[%s2 + $0x1c0] sm:$0xff]
  %v6546 = vld [vmem:[%s2 + $0x1c8] sm:$0xff]
  %v6547 = vld [vmem:[%s2 + $0x1d0] sm:$0xff]
  %v6548 = vld [vmem:[%s2 + $0x1d8] sm:$0xff]
  %v6549 = vld [vmem:[%s2 + $0x1e0] sm:$0xff]
  %v6550 = vld [vmem:[%s2 + $0x1e8] sm:$0xff]
  %v6551 = vld [vmem:[%s2 + $0x1f0] sm:$0xff]
  %v6552 = vld [vmem:[%s2 + $0x1f8] sm:$0xff]
  %v6553 = vld [vmem:[%s2 + $0x200] sm:$0xff]
  %v6554 = vld [vmem:[%s2 + $0x208] sm:$0xff]
  %v6555 = vld [vmem:[%s2 + $0x210] sm:$0xff]
  %v6556 = vld [vmem:[%s2 + $0x218] sm:$0xff]
  %v6557 = vld [vmem:[%s2 + $0x220] sm:$0xff]
  %v6558 = vld [vmem:[%s2 + $0x228] sm:$0xff]
  %v6559 = vld [vmem:[%s2 + $0x230] sm:$0xff]
  %v6560 = vld [vmem:[%s2 + $0x238] sm:$0xff]
  %v6561 = vld [vmem:[%s2 + $0x240] sm:$0xff]
  %v6562 = vld [vmem:[%s2 + $0x248] sm:$0xff]
  %v6563 = vld [vmem:[%s2 + $0x250] sm:$0xff]
  %v6564 = vld [vmem:[%s2 + $0x258] sm:$0xff]
  %v6565 = vld [vmem:[%s2 + $0x260] sm:$0xff]
  %v6566 = vld [vmem:[%s2 + $0x268] sm:$0xff]
  %v6567 = vld [vmem:[%s2 + $0x270] sm:$0xff]
  %v6568 = vld [vmem:[%s2 + $0x278] sm:$0xff]
  %v6569 = vld [vmem:[%s2 + $0x280] sm:$0xff]
  %v6570 = vld [vmem:[%s2 + $0x288] sm:$0xff]
  %v6571 = vld [vmem:[%s2 + $0x290] sm:$0xff]
  %v6572 = vld [vmem:[%s2 + $0x298] sm:$0xff]
  %v6573 = vld [vmem:[%s2 + $0x2a0] sm:$0xff]
  %v6574 = vld [vmem:[%s2 + $0x2a8] sm:$0xff]
  %v6575 = vld [vmem:[%s2 + $0x2b0] sm:$0xff]
  %v6576 = vld [vmem:[%s2 + $0x2b8] sm:$0xff]
  %v6577 = vld [vmem:[%s2 + $0x2c0] sm:$0xff]
  %v6578 = vld [vmem:[%s2 + $0x2c8] sm:$0xff]
  %v6579 = vld [vmem:[%s2 + $0x2d0] sm:$0xff]
  %v6580 = vld [vmem:[%s2 + $0x2d8] sm:$0xff]
  %v6581 = vld [vmem:[%s2 + $0x2e0] sm:$0xff]
  %v6582 = vld [vmem:[%s2 + $0x2e8] sm:$0xff]
  %v6583 = vld [vmem:[%s2 + $0x2f0] sm:$0xff]
  %v6584 = vld [vmem:[%s2 + $0x2f8] sm:$0xff]
  %v6585 = vld [vmem:[%s2 + $0x300] sm:$0xff]
  %v6586 = vld [vmem:[%s2 + $0x308] sm:$0xff]
  %v6587 = vld [vmem:[%s2 + $0x310] sm:$0xff]
  %v6588 = vld [vmem:[%s2 + $0x318] sm:$0xff]
  %v6589 = vld [vmem:[%s2 + $0x320] sm:$0xff]
  %v6590 = vld [vmem:[%s2 + $0x328] sm:$0xff]
  %v6591 = vld [vmem:[%s2 + $0x330] sm:$0xff]
  %v6592 = vld [vmem:[%s2 + $0x338] sm:$0xff]
  %v6593 = vld [vmem:[%s2 + $0x340] sm:$0xff]
  %v6594 = vld [vmem:[%s2 + $0x348] sm:$0xff]
  %v6595 = vld [vmem:[%s2 + $0x350] sm:$0xff]
  %v6596 = vld [vmem:[%s2 + $0x358] sm:$0xff]
  %v6597 = vld [vmem:[%s2 + $0x360] sm:$0xff]
  %v6598 = vld [vmem:[%s2 + $0x368] sm:$0xff]
  %v6599 = vld [vmem:[%s2 + $0x370] sm:$0xff]
  %v6600 = vld [vmem:[%s2 + $0x378] sm:$0xff]
  %v6601 = vld [vmem:[%s2 + $0x380] sm:$0xff]
  %v6602 = vld [vmem:[%s2 + $0x388] sm:$0xff]
  %v6603 = vld [vmem:[%s2 + $0x390] sm:$0xff]
  %v6604 = vld [vmem:[%s2 + $0x398] sm:$0xff]
  %v6605 = vld [vmem:[%s2 + $0x3a0] sm:$0xff]
  %v6606 = vld [vmem:[%s2 + $0x3a8] sm:$0xff]
  %v6607 = vld [vmem:[%s2 + $0x3b0] sm:$0xff]
  %v6608 = vld [vmem:[%s2 + $0x3b8] sm:$0xff]
  %v6609 = vld [vmem:[%s2 + $0x3c0] sm:$0xff]
  %v6610 = vld [vmem:[%s2 + $0x3c8] sm:$0xff]
  %v6611 = vld [vmem:[%s2 + $0x3d0] sm:$0xff]
  %v6612 = vld [vmem:[%s2 + $0x3d8] sm:$0xff]
  %v6613 = vld [vmem:[%s2 + $0x3e0] sm:$0xff]
  %v6614 = vld [vmem:[%s2 + $0x3e8] sm:$0xff]
  %v6615 = vld [vmem:[%s2 + $0x3f0] sm:$0xff]
  %v6616 = vld [vmem:[%s2 + $0x3f8] sm:$0xff]
  %v6617 = vld [vmem:[%s2 + $0x400] sm:$0xff]
  %v6618 = vld [vmem:[%s2 + $0x408] sm:$0xff]
  %v6619 = vld [vmem:[%s2 + $0x410] sm:$0xff]
  %v6620 = vld [vmem:[%s2 + $0x418] sm:$0xff]
  %v6621 = vld [vmem:[%s2 + $0x420] sm:$0xff]
  %v6622 = vld [vmem:[%s2 + $0x428] sm:$0xff]
  %v6623 = vld [vmem:[%s2 + $0x430] sm:$0xff]
  %v6624 = vld [vmem:[%s2 + $0x438] sm:$0xff]
  %v6625 = vld [vmem:[%s2 + $0x440] sm:$0xff]
  %v6626 = vld [vmem:[%s2 + $0x448] sm:$0xff]
  %v6627 = vld [vmem:[%s2 + $0x450] sm:$0xff]
  %v6628 = vld [vmem:[%s2 + $0x458] sm:$0xff]
  %v6629 = vld [vmem:[%s2 + $0x460] sm:$0xff]
  %v6630 = vld [vmem:[%s2 + $0x468] sm:$0xff]
  %v6631 = vld [vmem:[%s2 + $0x470] sm:$0xff]
  %v6632 = vld [vmem:[%s2 + $0x478] sm:$0xff]
  %v6633 = vld [vmem:[%s2 + $0x480] sm:$0xff]
  %v6634 = vld [vmem:[%s2 + $0x488] sm:$0xff]
  %v6635 = vld [vmem:[%s2 + $0x490] sm:$0xff]
  %v6636 = vld [vmem:[%s2 + $0x498] sm:$0xff]
  %v6637 = vld [vmem:[%s2 + $0x4a0] sm:$0xff]
  %v6638 = vld [vmem:[%s2 + $0x4a8] sm:$0xff]
  %v6639 = vld [vmem:[%s2 + $0x4b0] sm:$0xff]
  %v6640 = vld [vmem:[%s2 + $0x4b8] sm:$0xff]
  %v6641 = vld [vmem:[%s2 + $0x4c0] sm:$0xff]
  %v6642 = vld [vmem:[%s2 + $0x4c8] sm:$0xff]
  %v6643 = vld [vmem:[%s2 + $0x4d0] sm:$0xff]
  %v6644 = vld [vmem:[%s2 + $0x4d8] sm:$0xff]
  %v6645 = vld [vmem:[%s2 + $0x4e0] sm:$0xff]
  %v6646 = vld [vmem:[%s2 + $0x4e8] sm:$0xff]
  %v6647 = vld [vmem:[%s2 + $0x4f0] sm:$0xff]
  %v6648 = vld [vmem:[%s2 + $0x4f8] sm:$0xff]
  %v6649 = vld [vmem:[%s2 + $0x500] sm:$0xff]
  %v6650 = vld [vmem:[%s2 + $0x508] sm:$0xff]
  %v6651 = vld [vmem:[%s2 + $0x510] sm:$0xff]
  %v6652 = vld [vmem:[%s2 + $0x518] sm:$0xff]
  %v6653 = vld [vmem:[%s2 + $0x520] sm:$0xff]
  %v6654 = vld [vmem:[%s2 + $0x528] sm:$0xff]
  %v6655 = vld [vmem:[%s2 + $0x530] sm:$0xff]
  %v6656 = vld [vmem:[%s2 + $0x538] sm:$0xff]
  %v6657 = vld [vmem:[%s2 + $0x540] sm:$0xff]
  %v6658 = vld [vmem:[%s2 + $0x548] sm:$0xff]
  %v6659 = vld [vmem:[%s2 + $0x550] sm:$0xff]
  %v6660 = vld [vmem:[%s2 + $0x558] sm:$0xff]
  %v6661 = vld [vmem:[%s2 + $0x560] sm:$0xff]
  %v6662 = vld [vmem:[%s2 + $0x568] sm:$0xff]
  %v6663 = vld [vmem:[%s2 + $0x570] sm:$0xff]
  %v6664 = vld [vmem:[%s2 + $0x578] sm:$0xff]
  %v6665 = vld [vmem:[%s2 + $0x580] sm:$0xff]
  %v6666 = vld [vmem:[%s2 + $0x588] sm:$0xff]
  %v6667 = vld [vmem:[%s2 + $0x590] sm:$0xff]
  %v6668 = vld [vmem:[%s2 + $0x598] sm:$0xff]
  %v6669 = vld [vmem:[%s2 + $0x5a0] sm:$0xff]
  %v6670 = vld [vmem:[%s2 + $0x5a8] sm:$0xff]
  %v6671 = vld [vmem:[%s2 + $0x5b0] sm:$0xff]
  %v6672 = vld [vmem:[%s2 + $0x5b8] sm:$0xff]
  %v6673 = vld [vmem:[%s2 + $0x5c0] sm:$0xff]
  %v6674 = vld [vmem:[%s2 + $0x5c8] sm:$0xff]
  %v6675 = vld [vmem:[%s2 + $0x5d0] sm:$0xff]
  %v6676 = vld [vmem:[%s2 + $0x5d8] sm:$0xff]
  %v6677 = vld [vmem:[%s2 + $0x5e0] sm:$0xff]
  %v6678 = vld [vmem:[%s2 + $0x5e8] sm:$0xff]
  %v6679 = vld [vmem:[%s2 + $0x5f0] sm:$0xff]
  %v6680 = vld [vmem:[%s2 + $0x5f8] sm:$0xff]
  %v6681 = vld [vmem:[%s2 + $0x600] sm:$0xff]
  %v6682 = vld [vmem:[%s2 + $0x608] sm:$0xff]
  %v6683 = vld [vmem:[%s2 + $0x610] sm:$0xff]
  %v6684 = vld [vmem:[%s2 + $0x618] sm:$0xff]
  %v6685 = vld [vmem:[%s2 + $0x620] sm:$0xff]
  %v6686 = vld [vmem:[%s2 + $0x628] sm:$0xff]
  %v6687 = vld [vmem:[%s2 + $0x630] sm:$0xff]
  %v6688 = vld [vmem:[%s2 + $0x638] sm:$0xff]
  %v6689 = vld [vmem:[%s2 + $0x640] sm:$0xff]
  %v6690 = vld [vmem:[%s2 + $0x648] sm:$0xff]
  %v6691 = vld [vmem:[%s2 + $0x650] sm:$0xff]
  %v6692 = vld [vmem:[%s2 + $0x658] sm:$0xff]
  %v6693 = vld [vmem:[%s2 + $0x660] sm:$0xff]
  %v6694 = vld [vmem:[%s2 + $0x668] sm:$0xff]
  %v6695 = vld [vmem:[%s2 + $0x670] sm:$0xff]
  %v6696 = vld [vmem:[%s2 + $0x678] sm:$0xff]
  %v6697 = vld [vmem:[%s2 + $0x680] sm:$0xff]
  %v6698 = vld [vmem:[%s2 + $0x688] sm:$0xff]
  %v6699 = vld [vmem:[%s2 + $0x690] sm:$0xff]
  %v6700 = vld [vmem:[%s2 + $0x698] sm:$0xff]
  %v6701 = vld [vmem:[%s2 + $0x6a0] sm:$0xff]
  %v6702 = vld [vmem:[%s2 + $0x6a8] sm:$0xff]
  %v6703 = vld [vmem:[%s2 + $0x6b0] sm:$0xff]
  %v6704 = vld [vmem:[%s2 + $0x6b8] sm:$0xff]
  %v6705 = vld [vmem:[%s2 + $0x6c0] sm:$0xff]
  %v6706 = vld [vmem:[%s2 + $0x6c8] sm:$0xff]
  %v6707 = vld [vmem:[%s2 + $0x6d0] sm:$0xff]
  %v6708 = vld [vmem:[%s2 + $0x6d8] sm:$0xff]
  %v6709 = vld [vmem:[%s2 + $0x6e0] sm:$0xff]
  %v6710 = vld [vmem:[%s2 + $0x6e8] sm:$0xff]
  %v6711 = vld [vmem:[%s2 + $0x6f0] sm:$0xff]
  %v6712 = vld [vmem:[%s2 + $0x6f8] sm:$0xff]
  %v6713 = vld [vmem:[%s2 + $0x700] sm:$0xff]
  %v6714 = vld [vmem:[%s2 + $0x708] sm:$0xff]
  %v6715 = vld [vmem:[%s2 + $0x710] sm:$0xff]
  %v6716 = vld [vmem:[%s2 + $0x718] sm:$0xff]
  %v6717 = vld [vmem:[%s2 + $0x720] sm:$0xff]
  %v6718 = vld [vmem:[%s2 + $0x728] sm:$0xff]
  %v6719 = vld [vmem:[%s2 + $0x730] sm:$0xff]
  %v6720 = vld [vmem:[%s2 + $0x738] sm:$0xff]
  %v6721 = vld [vmem:[%s2 + $0x740] sm:$0xff]
  %v6722 = vld [vmem:[%s2 + $0x748] sm:$0xff]
  %v6723 = vld [vmem:[%s2 + $0x750] sm:$0xff]
  %v6724 = vld [vmem:[%s2 + $0x758] sm:$0xff]
  %v6725 = vld [vmem:[%s2 + $0x760] sm:$0xff]
  %v6726 = vld [vmem:[%s2 + $0x768] sm:$0xff]
  %v6727 = vld [vmem:[%s2 + $0x770] sm:$0xff]
  %v6728 = vld [vmem:[%s2 + $0x778] sm:$0xff]
  %v6729 = vld [vmem:[%s2 + $0x780] sm:$0xff]
  %v6730 = vld [vmem:[%s2 + $0x788] sm:$0xff]
  %v6731 = vld [vmem:[%s2 + $0x790] sm:$0xff]
  %v6732 = vld [vmem:[%s2 + $0x798] sm:$0xff]
  %v6733 = vld [vmem:[%s2 + $0x7a0] sm:$0xff]
  %v6734 = vld [vmem:[%s2 + $0x7a8] sm:$0xff]
  %v6735 = vld [vmem:[%s2 + $0x7b0] sm:$0xff]
  %v6736 = vld [vmem:[%s2 + $0x7b8] sm:$0xff]
  %v6737 = vld [vmem:[%s2 + $0x7c0] sm:$0xff]
  %v6738 = vld [vmem:[%s2 + $0x7c8] sm:$0xff]
  %v6739 = vld [vmem:[%s2 + $0x7d0] sm:$0xff]
  %v6740 = vld [vmem:[%s2 + $0x7d8] sm:$0xff]
  %v6741 = vld [vmem:[%s2 + $0x7e0] sm:$0xff]
  %v6742 = vld [vmem:[%s2 + $0x7e8] sm:$0xff]
  %v6743 = vld [vmem:[%s2 + $0x7f0] sm:$0xff]
  %v6744 = vld [vmem:[%s2 + $0x7f8] sm:$0xff]
  %v6746 = vsel %vm2904, %v6233, 0
  %v6749 = vsel %vm2904, %v6234, 0
  %v6752 = vsel %vm2904, %v6235, 0
  %v6755 = vsel %vm2904, %v6236, 0
  %v6758 = vsel %vm2904, %v6237, 0
  %v6761 = vsel %vm2904, %v6238, 0
  %v6764 = vsel %vm2904, %v6239, 0
  %v6767 = vsel %vm2904, %v6240, 0
  %6769 = vmatpush.msra.mxu0 0.0
  %6770 = vmatpush.msra.mxu0 0.0
  %6771 = vmatpush.msra.mxu0 0.0
  %6772 = vmatpush.msra.mxu0 0.0
  %6773 = vmatpush.msra.mxu0 0.0
  %6774 = vmatpush.msra.mxu0 0.0
  %6775 = vmatpush.msra.mxu0 0.0
  %6776 = vmatpush.msra.mxu0 0.0
  %6777 = vmatpush.msra.mxu0 %v6496
  %6778 = vmatpush.msra.mxu0 %v6495
  %6779 = vmatpush.msra.mxu0 %v6494
  %6780 = vmatpush.msra.mxu0 %v6493
  %6781 = vmatpush.msra.mxu0 %v6492
  %6782 = vmatpush.msra.mxu0 %v6491
  %6783 = vmatpush.msra.mxu0 %v6490
  %6784 = vmatpush.msra.mxu0 %v6489
  %6785 = vmatmul.f32.gmra.mxu0 %v6746
  %v6786 = vpop.f32.mrf.mxu0
  %v6787 = vadd.f32 0.0, %v6786
  %6788 = vmatmul.f32.gmra.mxu0 %v6749
  %v6789 = vpop.f32.mrf.mxu0
  %v6790 = vadd.f32 0.0, %v6789
  %6791 = vmatmul.f32.gmra.mxu0 %v6752
  %v6792 = vpop.f32.mrf.mxu0
  %v6793 = vadd.f32 0.0, %v6792
  %6794 = vmatmul.f32.gmra.mxu0 %v6755
  %v6795 = vpop.f32.mrf.mxu0
  %v6796 = vadd.f32 0.0, %v6795
  %6797 = vmatmul.f32.gmra.mxu0 %v6758
  %v6798 = vpop.f32.mrf.mxu0
  %v6799 = vadd.f32 0.0, %v6798
  %6800 = vmatmul.f32.gmra.mxu0 %v6761
  %v6801 = vpop.f32.mrf.mxu0
  %v6802 = vadd.f32 0.0, %v6801
  %6803 = vmatmul.f32.gmra.mxu0 %v6764
  %v6804 = vpop.f32.mrf.mxu0
  %v6805 = vadd.f32 0.0, %v6804
  %6806 = vmatmul.f32.gmra.mxu0 %v6767
  %v6807 = vpop.f32.mrf.mxu0
  %v6808 = vadd.f32 0.0, %v6807
  %6809 = vdwg.mxu0
  %v6811 = vsel %vm2904, %v6241, 0
  %v6814 = vsel %vm2904, %v6242, 0
  %v6817 = vsel %vm2904, %v6243, 0
  %v6820 = vsel %vm2904, %v6244, 0
  %v6823 = vsel %vm2904, %v6245, 0
  %v6826 = vsel %vm2904, %v6246, 0
  %v6829 = vsel %vm2904, %v6247, 0
  %v6832 = vsel %vm2904, %v6248, 0
  %6834 = vmatpush.msra.mxu0 0.0
  %6835 = vmatpush.msra.mxu0 0.0
  %6836 = vmatpush.msra.mxu0 0.0
  %6837 = vmatpush.msra.mxu0 0.0
  %6838 = vmatpush.msra.mxu0 0.0
  %6839 = vmatpush.msra.mxu0 0.0
  %6840 = vmatpush.msra.mxu0 0.0
  %6841 = vmatpush.msra.mxu0 0.0
  %6842 = vmatpush.msra.mxu0 %v6504
  %6843 = vmatpush.msra.mxu0 %v6503
  %6844 = vmatpush.msra.mxu0 %v6502
  %6845 = vmatpush.msra.mxu0 %v6501
  %6846 = vmatpush.msra.mxu0 %v6500
  %6847 = vmatpush.msra.mxu0 %v6499
  %6848 = vmatpush.msra.mxu0 %v6498
  %6849 = vmatpush.msra.mxu0 %v6497
  %6850 = vmatmul.f32.gmra.mxu0 %v6811
  %v6851 = vpop.f32.mrf.mxu0
  %v6852 = vadd.f32 0.0, %v6851
  %6853 = vmatmul.f32.gmra.mxu0 %v6814
  %v6854 = vpop.f32.mrf.mxu0
  %v6855 = vadd.f32 0.0, %v6854
  %6856 = vmatmul.f32.gmra.mxu0 %v6817
  %v6857 = vpop.f32.mrf.mxu0
  %v6858 = vadd.f32 0.0, %v6857
  %6859 = vmatmul.f32.gmra.mxu0 %v6820
  %v6860 = vpop.f32.mrf.mxu0
  %v6861 = vadd.f32 0.0, %v6860
  %6862 = vmatmul.f32.gmra.mxu0 %v6823
  %v6863 = vpop.f32.mrf.mxu0
  %v6864 = vadd.f32 0.0, %v6863
  %6865 = vmatmul.f32.gmra.mxu0 %v6826
  %v6866 = vpop.f32.mrf.mxu0
  %v6867 = vadd.f32 0.0, %v6866
  %6868 = vmatmul.f32.gmra.mxu0 %v6829
  %v6869 = vpop.f32.mrf.mxu0
  %v6870 = vadd.f32 0.0, %v6869
  %6871 = vmatmul.f32.gmra.mxu0 %v6832
  %v6872 = vpop.f32.mrf.mxu0
  %v6873 = vadd.f32 0.0, %v6872
  %6874 = vdwg.mxu0
  %v6876 = vsel %vm2904, %v6249, 0
  %v6879 = vsel %vm2904, %v6250, 0
  %v6882 = vsel %vm2904, %v6251, 0
  %v6885 = vsel %vm2904, %v6252, 0
  %v6888 = vsel %vm2904, %v6253, 0
  %v6891 = vsel %vm2904, %v6254, 0
  %v6894 = vsel %vm2904, %v6255, 0
  %v6897 = vsel %vm2904, %v6256, 0
  %6899 = vmatpush.msra.mxu0 0.0
  %6900 = vmatpush.msra.mxu0 0.0
  %6901 = vmatpush.msra.mxu0 0.0
  %6902 = vmatpush.msra.mxu0 0.0
  %6903 = vmatpush.msra.mxu0 0.0
  %6904 = vmatpush.msra.mxu0 0.0
  %6905 = vmatpush.msra.mxu0 0.0
  %6906 = vmatpush.msra.mxu0 0.0
  %6907 = vmatpush.msra.mxu0 %v6512
  %6908 = vmatpush.msra.mxu0 %v6511
  %6909 = vmatpush.msra.mxu0 %v6510
  %6910 = vmatpush.msra.mxu0 %v6509
  %6911 = vmatpush.msra.mxu0 %v6508
  %6912 = vmatpush.msra.mxu0 %v6507
  %6913 = vmatpush.msra.mxu0 %v6506
  %6914 = vmatpush.msra.mxu0 %v6505
  %6915 = vmatmul.f32.gmra.mxu0 %v6876
  %v6916 = vpop.f32.mrf.mxu0
  %v6917 = vadd.f32 0.0, %v6916
  %6918 = vmatmul.f32.gmra.mxu0 %v6879
  %v6919 = vpop.f32.mrf.mxu0
  %v6920 = vadd.f32 0.0, %v6919
  %6921 = vmatmul.f32.gmra.mxu0 %v6882
  %v6922 = vpop.f32.mrf.mxu0
  %v6923 = vadd.f32 0.0, %v6922
  %6924 = vmatmul.f32.gmra.mxu0 %v6885
  %v6925 = vpop.f32.mrf.mxu0
  %v6926 = vadd.f32 0.0, %v6925
  %6927 = vmatmul.f32.gmra.mxu0 %v6888
  %v6928 = vpop.f32.mrf.mxu0
  %v6929 = vadd.f32 0.0, %v6928
  %6930 = vmatmul.f32.gmra.mxu0 %v6891
  %v6931 = vpop.f32.mrf.mxu0
  %v6932 = vadd.f32 0.0, %v6931
  %6933 = vmatmul.f32.gmra.mxu0 %v6894
  %v6934 = vpop.f32.mrf.mxu0
  %v6935 = vadd.f32 0.0, %v6934
  %6936 = vmatmul.f32.gmra.mxu0 %v6897
  %v6937 = vpop.f32.mrf.mxu0
  %v6938 = vadd.f32 0.0, %v6937
  %6939 = vdwg.mxu0
  %v6941 = vsel %vm2904, %v6257, 0
  %v6944 = vsel %vm2904, %v6258, 0
  %v6947 = vsel %vm2904, %v6259, 0
  %v6950 = vsel %vm2904, %v6260, 0
  %v6953 = vsel %vm2904, %v6261, 0
  %v6956 = vsel %vm2904, %v6262, 0
  %v6959 = vsel %vm2904, %v6263, 0
  %v6962 = vsel %vm2904, %v6264, 0
  %6964 = vmatpush.msra.mxu0 0.0
  %6965 = vmatpush.msra.mxu0 0.0
  %6966 = vmatpush.msra.mxu0 0.0
  %6967 = vmatpush.msra.mxu0 0.0
  %6968 = vmatpush.msra.mxu0 0.0
  %6969 = vmatpush.msra.mxu0 0.0
  %6970 = vmatpush.msra.mxu0 0.0
  %6971 = vmatpush.msra.mxu0 0.0
  %6972 = vmatpush.msra.mxu0 %v6520
  %6973 = vmatpush.msra.mxu0 %v6519
  %6974 = vmatpush.msra.mxu0 %v6518
  %6975 = vmatpush.msra.mxu0 %v6517
  %6976 = vmatpush.msra.mxu0 %v6516
  %6977 = vmatpush.msra.mxu0 %v6515
  %6978 = vmatpush.msra.mxu0 %v6514
  %6979 = vmatpush.msra.mxu0 %v6513
  %6980 = vmatmul.f32.gmra.mxu0 %v6941
  %v6981 = vpop.f32.mrf.mxu0
  %v6982 = vadd.f32 0.0, %v6981
  %6983 = vmatmul.f32.gmra.mxu0 %v6944
  %v6984 = vpop.f32.mrf.mxu0
  %v6985 = vadd.f32 0.0, %v6984
  %6986 = vmatmul.f32.gmra.mxu0 %v6947
  %v6987 = vpop.f32.mrf.mxu0
  %v6988 = vadd.f32 0.0, %v6987
  %6989 = vmatmul.f32.gmra.mxu0 %v6950
  %v6990 = vpop.f32.mrf.mxu0
  %v6991 = vadd.f32 0.0, %v6990
  %6992 = vmatmul.f32.gmra.mxu0 %v6953
  %v6993 = vpop.f32.mrf.mxu0
  %v6994 = vadd.f32 0.0, %v6993
  %6995 = vmatmul.f32.gmra.mxu0 %v6956
  %v6996 = vpop.f32.mrf.mxu0
  %v6997 = vadd.f32 0.0, %v6996
  %6998 = vmatmul.f32.gmra.mxu0 %v6959
  %v6999 = vpop.f32.mrf.mxu0
  %v7000 = vadd.f32 0.0, %v6999
  %7001 = vmatmul.f32.gmra.mxu0 %v6962
  %v7002 = vpop.f32.mrf.mxu0
  %v7003 = vadd.f32 0.0, %v7002
  %7004 = vdwg.mxu0
  %v7006 = vsel %vm2904, %v6265, 0
  %v7009 = vsel %vm2904, %v6266, 0
  %v7012 = vsel %vm2904, %v6267, 0
  %v7015 = vsel %vm2904, %v6268, 0
  %v7018 = vsel %vm2904, %v6269, 0
  %v7021 = vsel %vm2904, %v6270, 0
  %v7024 = vsel %vm2904, %v6271, 0
  %v7027 = vsel %vm2904, %v6272, 0
  %7029 = vmatpush.msra.mxu0 0.0
  %7030 = vmatpush.msra.mxu0 0.0
  %7031 = vmatpush.msra.mxu0 0.0
  %7032 = vmatpush.msra.mxu0 0.0
  %7033 = vmatpush.msra.mxu0 0.0
  %7034 = vmatpush.msra.mxu0 0.0
  %7035 = vmatpush.msra.mxu0 0.0
  %7036 = vmatpush.msra.mxu0 0.0
  %7037 = vmatpush.msra.mxu0 %v6528
  %7038 = vmatpush.msra.mxu0 %v6527
  %7039 = vmatpush.msra.mxu0 %v6526
  %7040 = vmatpush.msra.mxu0 %v6525
  %7041 = vmatpush.msra.mxu0 %v6524
  %7042 = vmatpush.msra.mxu0 %v6523
  %7043 = vmatpush.msra.mxu0 %v6522
  %7044 = vmatpush.msra.mxu0 %v6521
  %7045 = vmatmul.f32.gmra.mxu0 %v7006
  %v7046 = vpop.f32.mrf.mxu0
  %v7047 = vadd.f32 0.0, %v7046
  %7048 = vmatmul.f32.gmra.mxu0 %v7009
  %v7049 = vpop.f32.mrf.mxu0
  %v7050 = vadd.f32 0.0, %v7049
  %7051 = vmatmul.f32.gmra.mxu0 %v7012
  %v7052 = vpop.f32.mrf.mxu0
  %v7053 = vadd.f32 0.0, %v7052
  %7054 = vmatmul.f32.gmra.mxu0 %v7015
  %v7055 = vpop.f32.mrf.mxu0
  %v7056 = vadd.f32 0.0, %v7055
  %7057 = vmatmul.f32.gmra.mxu0 %v7018
  %v7058 = vpop.f32.mrf.mxu0
  %v7059 = vadd.f32 0.0, %v7058
  %7060 = vmatmul.f32.gmra.mxu0 %v7021
  %v7061 = vpop.f32.mrf.mxu0
  %v7062 = vadd.f32 0.0, %v7061
  %7063 = vmatmul.f32.gmra.mxu0 %v7024
  %v7064 = vpop.f32.mrf.mxu0
  %v7065 = vadd.f32 0.0, %v7064
  %7066 = vmatmul.f32.gmra.mxu0 %v7027
  %v7067 = vpop.f32.mrf.mxu0
  %v7068 = vadd.f32 0.0, %v7067
  %7069 = vdwg.mxu0
  %v7071 = vsel %vm2904, %v6273, 0
  %v7074 = vsel %vm2904, %v6274, 0
  %v7077 = vsel %vm2904, %v6275, 0
  %v7080 = vsel %vm2904, %v6276, 0
  %v7083 = vsel %vm2904, %v6277, 0
  %v7086 = vsel %vm2904, %v6278, 0
  %v7089 = vsel %vm2904, %v6279, 0
  %v7092 = vsel %vm2904, %v6280, 0
  %7094 = vmatpush.msra.mxu0 0.0
  %7095 = vmatpush.msra.mxu0 0.0
  %7096 = vmatpush.msra.mxu0 0.0
  %7097 = vmatpush.msra.mxu0 0.0
  %7098 = vmatpush.msra.mxu0 0.0
  %7099 = vmatpush.msra.mxu0 0.0
  %7100 = vmatpush.msra.mxu0 0.0
  %7101 = vmatpush.msra.mxu0 0.0
  %7102 = vmatpush.msra.mxu0 %v6536
  %7103 = vmatpush.msra.mxu0 %v6535
  %7104 = vmatpush.msra.mxu0 %v6534
  %7105 = vmatpush.msra.mxu0 %v6533
  %7106 = vmatpush.msra.mxu0 %v6532
  %7107 = vmatpush.msra.mxu0 %v6531
  %7108 = vmatpush.msra.mxu0 %v6530
  %7109 = vmatpush.msra.mxu0 %v6529
  %7110 = vmatmul.f32.gmra.mxu0 %v7071
  %v7111 = vpop.f32.mrf.mxu0
  %v7112 = vadd.f32 0.0, %v7111
  %7113 = vmatmul.f32.gmra.mxu0 %v7074
  %v7114 = vpop.f32.mrf.mxu0
  %v7115 = vadd.f32 0.0, %v7114
  %7116 = vmatmul.f32.gmra.mxu0 %v7077
  %v7117 = vpop.f32.mrf.mxu0
  %v7118 = vadd.f32 0.0, %v7117
  %7119 = vmatmul.f32.gmra.mxu0 %v7080
  %v7120 = vpop.f32.mrf.mxu0
  %v7121 = vadd.f32 0.0, %v7120
  %7122 = vmatmul.f32.gmra.mxu0 %v7083
  %v7123 = vpop.f32.mrf.mxu0
  %v7124 = vadd.f32 0.0, %v7123
  %7125 = vmatmul.f32.gmra.mxu0 %v7086
  %v7126 = vpop.f32.mrf.mxu0
  %v7127 = vadd.f32 0.0, %v7126
  %7128 = vmatmul.f32.gmra.mxu0 %v7089
  %v7129 = vpop.f32.mrf.mxu0
  %v7130 = vadd.f32 0.0, %v7129
  %7131 = vmatmul.f32.gmra.mxu0 %v7092
  %v7132 = vpop.f32.mrf.mxu0
  %v7133 = vadd.f32 0.0, %v7132
  %7134 = vdwg.mxu0
  %v7136 = vsel %vm2904, %v6281, 0
  %v7139 = vsel %vm2904, %v6282, 0
  %v7142 = vsel %vm2904, %v6283, 0
  %v7145 = vsel %vm2904, %v6284, 0
  %v7148 = vsel %vm2904, %v6285, 0
  %v7151 = vsel %vm2904, %v6286, 0
  %v7154 = vsel %vm2904, %v6287, 0
  %v7157 = vsel %vm2904, %v6288, 0
  %7159 = vmatpush.msra.mxu0 0.0
  %7160 = vmatpush.msra.mxu0 0.0
  %7161 = vmatpush.msra.mxu0 0.0
  %7162 = vmatpush.msra.mxu0 0.0
  %7163 = vmatpush.msra.mxu0 0.0
  %7164 = vmatpush.msra.mxu0 0.0
  %7165 = vmatpush.msra.mxu0 0.0
  %7166 = vmatpush.msra.mxu0 0.0
  %7167 = vmatpush.msra.mxu0 %v6544
  %7168 = vmatpush.msra.mxu0 %v6543
  %7169 = vmatpush.msra.mxu0 %v6542
  %7170 = vmatpush.msra.mxu0 %v6541
  %7171 = vmatpush.msra.mxu0 %v6540
  %7172 = vmatpush.msra.mxu0 %v6539
  %7173 = vmatpush.msra.mxu0 %v6538
  %7174 = vmatpush.msra.mxu0 %v6537
  %7175 = vmatmul.f32.gmra.mxu0 %v7136
  %v7176 = vpop.f32.mrf.mxu0
  %v7177 = vadd.f32 0.0, %v7176
  %7178 = vmatmul.f32.gmra.mxu0 %v7139
  %v7179 = vpop.f32.mrf.mxu0
  %v7180 = vadd.f32 0.0, %v7179
  %7181 = vmatmul.f32.gmra.mxu0 %v7142
  %v7182 = vpop.f32.mrf.mxu0
  %v7183 = vadd.f32 0.0, %v7182
  %7184 = vmatmul.f32.gmra.mxu0 %v7145
  %v7185 = vpop.f32.mrf.mxu0
  %v7186 = vadd.f32 0.0, %v7185
  %7187 = vmatmul.f32.gmra.mxu0 %v7148
  %v7188 = vpop.f32.mrf.mxu0
  %v7189 = vadd.f32 0.0, %v7188
  %7190 = vmatmul.f32.gmra.mxu0 %v7151
  %v7191 = vpop.f32.mrf.mxu0
  %v7192 = vadd.f32 0.0, %v7191
  %7193 = vmatmul.f32.gmra.mxu0 %v7154
  %v7194 = vpop.f32.mrf.mxu0
  %v7195 = vadd.f32 0.0, %v7194
  %7196 = vmatmul.f32.gmra.mxu0 %v7157
  %v7197 = vpop.f32.mrf.mxu0
  %v7198 = vadd.f32 0.0, %v7197
  %7199 = vdwg.mxu0
  %v7201 = vsel %vm2904, %v6289, 0
  %v7204 = vsel %vm2904, %v6290, 0
  %v7207 = vsel %vm2904, %v6291, 0
  %v7210 = vsel %vm2904, %v6292, 0
  %v7213 = vsel %vm2904, %v6293, 0
  %v7216 = vsel %vm2904, %v6294, 0
  %v7219 = vsel %vm2904, %v6295, 0
  %v7222 = vsel %vm2904, %v6296, 0
  %7224 = vmatpush.msra.mxu0 0.0
  %7225 = vmatpush.msra.mxu0 0.0
  %7226 = vmatpush.msra.mxu0 0.0
  %7227 = vmatpush.msra.mxu0 0.0
  %7228 = vmatpush.msra.mxu0 0.0
  %7229 = vmatpush.msra.mxu0 0.0
  %7230 = vmatpush.msra.mxu0 0.0
  %7231 = vmatpush.msra.mxu0 0.0
  %7232 = vmatpush.msra.mxu0 %v6552
  %7233 = vmatpush.msra.mxu0 %v6551
  %7234 = vmatpush.msra.mxu0 %v6550
  %7235 = vmatpush.msra.mxu0 %v6549
  %7236 = vmatpush.msra.mxu0 %v6548
  %7237 = vmatpush.msra.mxu0 %v6547
  %7238 = vmatpush.msra.mxu0 %v6546
  %7239 = vmatpush.msra.mxu0 %v6545
  %7240 = vmatmul.f32.gmra.mxu0 %v7201
  %v7241 = vpop.f32.mrf.mxu0
  %v7242 = vadd.f32 0.0, %v7241
  %7243 = vmatmul.f32.gmra.mxu0 %v7204
  %v7244 = vpop.f32.mrf.mxu0
  %v7245 = vadd.f32 0.0, %v7244
  %7246 = vmatmul.f32.gmra.mxu0 %v7207
  %v7247 = vpop.f32.mrf.mxu0
  %v7248 = vadd.f32 0.0, %v7247
  %7249 = vmatmul.f32.gmra.mxu0 %v7210
  %v7250 = vpop.f32.mrf.mxu0
  %v7251 = vadd.f32 0.0, %v7250
  %7252 = vmatmul.f32.gmra.mxu0 %v7213
  %v7253 = vpop.f32.mrf.mxu0
  %v7254 = vadd.f32 0.0, %v7253
  %7255 = vmatmul.f32.gmra.mxu0 %v7216
  %v7256 = vpop.f32.mrf.mxu0
  %v7257 = vadd.f32 0.0, %v7256
  %7258 = vmatmul.f32.gmra.mxu0 %v7219
  %v7259 = vpop.f32.mrf.mxu0
  %v7260 = vadd.f32 0.0, %v7259
  %7261 = vmatmul.f32.gmra.mxu0 %v7222
  %v7262 = vpop.f32.mrf.mxu0
  %v7263 = vadd.f32 0.0, %v7262
  %7264 = vdwg.mxu0
  %v7266 = vsel %vm2904, %v6297, 0
  %v7269 = vsel %vm2904, %v6298, 0
  %v7272 = vsel %vm2904, %v6299, 0
  %v7275 = vsel %vm2904, %v6300, 0
  %v7278 = vsel %vm2904, %v6301, 0
  %v7281 = vsel %vm2904, %v6302, 0
  %v7284 = vsel %vm2904, %v6303, 0
  %v7287 = vsel %vm2904, %v6304, 0
  %7289 = vmatpush.msra.mxu0 0.0
  %7290 = vmatpush.msra.mxu0 0.0
  %7291 = vmatpush.msra.mxu0 0.0
  %7292 = vmatpush.msra.mxu0 0.0
  %7293 = vmatpush.msra.mxu0 0.0
  %7294 = vmatpush.msra.mxu0 0.0
  %7295 = vmatpush.msra.mxu0 0.0
  %7296 = vmatpush.msra.mxu0 0.0
  %7297 = vmatpush.msra.mxu0 %v6560
  %7298 = vmatpush.msra.mxu0 %v6559
  %7299 = vmatpush.msra.mxu0 %v6558
  %7300 = vmatpush.msra.mxu0 %v6557
  %7301 = vmatpush.msra.mxu0 %v6556
  %7302 = vmatpush.msra.mxu0 %v6555
  %7303 = vmatpush.msra.mxu0 %v6554
  %7304 = vmatpush.msra.mxu0 %v6553
  %7305 = vmatmul.f32.gmra.mxu0 %v7266
  %v7306 = vpop.f32.mrf.mxu0
  %v7307 = vadd.f32 0.0, %v7306
  %7308 = vmatmul.f32.gmra.mxu0 %v7269
  %v7309 = vpop.f32.mrf.mxu0
  %v7310 = vadd.f32 0.0, %v7309
  %7311 = vmatmul.f32.gmra.mxu0 %v7272
  %v7312 = vpop.f32.mrf.mxu0
  %v7313 = vadd.f32 0.0, %v7312
  %7314 = vmatmul.f32.gmra.mxu0 %v7275
  %v7315 = vpop.f32.mrf.mxu0
  %v7316 = vadd.f32 0.0, %v7315
  %7317 = vmatmul.f32.gmra.mxu0 %v7278
  %v7318 = vpop.f32.mrf.mxu0
  %v7319 = vadd.f32 0.0, %v7318
  %7320 = vmatmul.f32.gmra.mxu0 %v7281
  %v7321 = vpop.f32.mrf.mxu0
  %v7322 = vadd.f32 0.0, %v7321
  %7323 = vmatmul.f32.gmra.mxu0 %v7284
  %v7324 = vpop.f32.mrf.mxu0
  %v7325 = vadd.f32 0.0, %v7324
  %7326 = vmatmul.f32.gmra.mxu0 %v7287
  %v7327 = vpop.f32.mrf.mxu0
  %v7328 = vadd.f32 0.0, %v7327
  %7329 = vdwg.mxu0
  %v7331 = vsel %vm2904, %v6305, 0
  %v7334 = vsel %vm2904, %v6306, 0
  %v7337 = vsel %vm2904, %v6307, 0
  %v7340 = vsel %vm2904, %v6308, 0
  %v7343 = vsel %vm2904, %v6309, 0
  %v7346 = vsel %vm2904, %v6310, 0
  %v7349 = vsel %vm2904, %v6311, 0
  %v7352 = vsel %vm2904, %v6312, 0
  %7354 = vmatpush.msra.mxu0 0.0
  %7355 = vmatpush.msra.mxu0 0.0
  %7356 = vmatpush.msra.mxu0 0.0
  %7357 = vmatpush.msra.mxu0 0.0
  %7358 = vmatpush.msra.mxu0 0.0
  %7359 = vmatpush.msra.mxu0 0.0
  %7360 = vmatpush.msra.mxu0 0.0
  %7361 = vmatpush.msra.mxu0 0.0
  %7362 = vmatpush.msra.mxu0 %v6568
  %7363 = vmatpush.msra.mxu0 %v6567
  %7364 = vmatpush.msra.mxu0 %v6566
  %7365 = vmatpush.msra.mxu0 %v6565
  %7366 = vmatpush.msra.mxu0 %v6564
  %7367 = vmatpush.msra.mxu0 %v6563
  %7368 = vmatpush.msra.mxu0 %v6562
  %7369 = vmatpush.msra.mxu0 %v6561
  %7370 = vmatmul.f32.gmra.mxu0 %v7331
  %v7371 = vpop.f32.mrf.mxu0
  %v7372 = vadd.f32 0.0, %v7371
  %7373 = vmatmul.f32.gmra.mxu0 %v7334
  %v7374 = vpop.f32.mrf.mxu0
  %v7375 = vadd.f32 0.0, %v7374
  %7376 = vmatmul.f32.gmra.mxu0 %v7337
  %v7377 = vpop.f32.mrf.mxu0
  %v7378 = vadd.f32 0.0, %v7377
  %7379 = vmatmul.f32.gmra.mxu0 %v7340
  %v7380 = vpop.f32.mrf.mxu0
  %v7381 = vadd.f32 0.0, %v7380
  %7382 = vmatmul.f32.gmra.mxu0 %v7343
  %v7383 = vpop.f32.mrf.mxu0
  %v7384 = vadd.f32 0.0, %v7383
  %7385 = vmatmul.f32.gmra.mxu0 %v7346
  %v7386 = vpop.f32.mrf.mxu0
  %v7387 = vadd.f32 0.0, %v7386
  %7388 = vmatmul.f32.gmra.mxu0 %v7349
  %v7389 = vpop.f32.mrf.mxu0
  %v7390 = vadd.f32 0.0, %v7389
  %7391 = vmatmul.f32.gmra.mxu0 %v7352
  %v7392 = vpop.f32.mrf.mxu0
  %v7393 = vadd.f32 0.0, %v7392
  %7394 = vdwg.mxu0
  %v7396 = vsel %vm2904, %v6313, 0
  %v7399 = vsel %vm2904, %v6314, 0
  %v7402 = vsel %vm2904, %v6315, 0
  %v7405 = vsel %vm2904, %v6316, 0
  %v7408 = vsel %vm2904, %v6317, 0
  %v7411 = vsel %vm2904, %v6318, 0
  %v7414 = vsel %vm2904, %v6319, 0
  %v7417 = vsel %vm2904, %v6320, 0
  %7419 = vmatpush.msra.mxu0 0.0
  %7420 = vmatpush.msra.mxu0 0.0
  %7421 = vmatpush.msra.mxu0 0.0
  %7422 = vmatpush.msra.mxu0 0.0
  %7423 = vmatpush.msra.mxu0 0.0
  %7424 = vmatpush.msra.mxu0 0.0
  %7425 = vmatpush.msra.mxu0 0.0
  %7426 = vmatpush.msra.mxu0 0.0
  %7427 = vmatpush.msra.mxu0 %v6576
  %7428 = vmatpush.msra.mxu0 %v6575
  %7429 = vmatpush.msra.mxu0 %v6574
  %7430 = vmatpush.msra.mxu0 %v6573
  %7431 = vmatpush.msra.mxu0 %v6572
  %7432 = vmatpush.msra.mxu0 %v6571
  %7433 = vmatpush.msra.mxu0 %v6570
  %7434 = vmatpush.msra.mxu0 %v6569
  %7435 = vmatmul.f32.gmra.mxu0 %v7396
  %v7436 = vpop.f32.mrf.mxu0
  %v7437 = vadd.f32 0.0, %v7436
  %7438 = vmatmul.f32.gmra.mxu0 %v7399
  %v7439 = vpop.f32.mrf.mxu0
  %v7440 = vadd.f32 0.0, %v7439
  %7441 = vmatmul.f32.gmra.mxu0 %v7402
  %v7442 = vpop.f32.mrf.mxu0
  %v7443 = vadd.f32 0.0, %v7442
  %7444 = vmatmul.f32.gmra.mxu0 %v7405
  %v7445 = vpop.f32.mrf.mxu0
  %v7446 = vadd.f32 0.0, %v7445
  %7447 = vmatmul.f32.gmra.mxu0 %v7408
  %v7448 = vpop.f32.mrf.mxu0
  %v7449 = vadd.f32 0.0, %v7448
  %7450 = vmatmul.f32.gmra.mxu0 %v7411
  %v7451 = vpop.f32.mrf.mxu0
  %v7452 = vadd.f32 0.0, %v7451
  %7453 = vmatmul.f32.gmra.mxu0 %v7414
  %v7454 = vpop.f32.mrf.mxu0
  %v7455 = vadd.f32 0.0, %v7454
  %7456 = vmatmul.f32.gmra.mxu0 %v7417
  %v7457 = vpop.f32.mrf.mxu0
  %v7458 = vadd.f32 0.0, %v7457
  %7459 = vdwg.mxu0
  %v7461 = vsel %vm2904, %v6321, 0
  %v7464 = vsel %vm2904, %v6322, 0
  %v7467 = vsel %vm2904, %v6323, 0
  %v7470 = vsel %vm2904, %v6324, 0
  %v7473 = vsel %vm2904, %v6325, 0
  %v7476 = vsel %vm2904, %v6326, 0
  %v7479 = vsel %vm2904, %v6327, 0
  %v7482 = vsel %vm2904, %v6328, 0
  %7484 = vmatpush.msra.mxu0 0.0
  %7485 = vmatpush.msra.mxu0 0.0
  %7486 = vmatpush.msra.mxu0 0.0
  %7487 = vmatpush.msra.mxu0 0.0
  %7488 = vmatpush.msra.mxu0 0.0
  %7489 = vmatpush.msra.mxu0 0.0
  %7490 = vmatpush.msra.mxu0 0.0
  %7491 = vmatpush.msra.mxu0 0.0
  %7492 = vmatpush.msra.mxu0 %v6584
  %7493 = vmatpush.msra.mxu0 %v6583
  %7494 = vmatpush.msra.mxu0 %v6582
  %7495 = vmatpush.msra.mxu0 %v6581
  %7496 = vmatpush.msra.mxu0 %v6580
  %7497 = vmatpush.msra.mxu0 %v6579
  %7498 = vmatpush.msra.mxu0 %v6578
  %7499 = vmatpush.msra.mxu0 %v6577
  %7500 = vmatmul.f32.gmra.mxu0 %v7461
  %v7501 = vpop.f32.mrf.mxu0
  %v7502 = vadd.f32 0.0, %v7501
  %7503 = vmatmul.f32.gmra.mxu0 %v7464
  %v7504 = vpop.f32.mrf.mxu0
  %v7505 = vadd.f32 0.0, %v7504
  %7506 = vmatmul.f32.gmra.mxu0 %v7467
  %v7507 = vpop.f32.mrf.mxu0
  %v7508 = vadd.f32 0.0, %v7507
  %7509 = vmatmul.f32.gmra.mxu0 %v7470
  %v7510 = vpop.f32.mrf.mxu0
  %v7511 = vadd.f32 0.0, %v7510
  %7512 = vmatmul.f32.gmra.mxu0 %v7473
  %v7513 = vpop.f32.mrf.mxu0
  %v7514 = vadd.f32 0.0, %v7513
  %7515 = vmatmul.f32.gmra.mxu0 %v7476
  %v7516 = vpop.f32.mrf.mxu0
  %v7517 = vadd.f32 0.0, %v7516
  %7518 = vmatmul.f32.gmra.mxu0 %v7479
  %v7519 = vpop.f32.mrf.mxu0
  %v7520 = vadd.f32 0.0, %v7519
  %7521 = vmatmul.f32.gmra.mxu0 %v7482
  %v7522 = vpop.f32.mrf.mxu0
  %v7523 = vadd.f32 0.0, %v7522
  %7524 = vdwg.mxu0
  %v7526 = vsel %vm2904, %v6329, 0
  %v7529 = vsel %vm2904, %v6330, 0
  %v7532 = vsel %vm2904, %v6331, 0
  %v7535 = vsel %vm2904, %v6332, 0
  %v7538 = vsel %vm2904, %v6333, 0
  %v7541 = vsel %vm2904, %v6334, 0
  %v7544 = vsel %vm2904, %v6335, 0
  %v7547 = vsel %vm2904, %v6336, 0
  %7549 = vmatpush.msra.mxu0 0.0
  %7550 = vmatpush.msra.mxu0 0.0
  %7551 = vmatpush.msra.mxu0 0.0
  %7552 = vmatpush.msra.mxu0 0.0
  %7553 = vmatpush.msra.mxu0 0.0
  %7554 = vmatpush.msra.mxu0 0.0
  %7555 = vmatpush.msra.mxu0 0.0
  %7556 = vmatpush.msra.mxu0 0.0
  %7557 = vmatpush.msra.mxu0 %v6592
  %7558 = vmatpush.msra.mxu0 %v6591
  %7559 = vmatpush.msra.mxu0 %v6590
  %7560 = vmatpush.msra.mxu0 %v6589
  %7561 = vmatpush.msra.mxu0 %v6588
  %7562 = vmatpush.msra.mxu0 %v6587
  %7563 = vmatpush.msra.mxu0 %v6586
  %7564 = vmatpush.msra.mxu0 %v6585
  %7565 = vmatmul.f32.gmra.mxu0 %v7526
  %v7566 = vpop.f32.mrf.mxu0
  %v7567 = vadd.f32 0.0, %v7566
  %7568 = vmatmul.f32.gmra.mxu0 %v7529
  %v7569 = vpop.f32.mrf.mxu0
  %v7570 = vadd.f32 0.0, %v7569
  %7571 = vmatmul.f32.gmra.mxu0 %v7532
  %v7572 = vpop.f32.mrf.mxu0
  %v7573 = vadd.f32 0.0, %v7572
  %7574 = vmatmul.f32.gmra.mxu0 %v7535
  %v7575 = vpop.f32.mrf.mxu0
  %v7576 = vadd.f32 0.0, %v7575
  %7577 = vmatmul.f32.gmra.mxu0 %v7538
  %v7578 = vpop.f32.mrf.mxu0
  %v7579 = vadd.f32 0.0, %v7578
  %7580 = vmatmul.f32.gmra.mxu0 %v7541
  %v7581 = vpop.f32.mrf.mxu0
  %v7582 = vadd.f32 0.0, %v7581
  %7583 = vmatmul.f32.gmra.mxu0 %v7544
  %v7584 = vpop.f32.mrf.mxu0
  %v7585 = vadd.f32 0.0, %v7584
  %7586 = vmatmul.f32.gmra.mxu0 %v7547
  %v7587 = vpop.f32.mrf.mxu0
  %v7588 = vadd.f32 0.0, %v7587
  %7589 = vdwg.mxu0
  %v7591 = vsel %vm2904, %v6337, 0
  %v7594 = vsel %vm2904, %v6338, 0
  %v7597 = vsel %vm2904, %v6339, 0
  %v7600 = vsel %vm2904, %v6340, 0
  %v7603 = vsel %vm2904, %v6341, 0
  %v7606 = vsel %vm2904, %v6342, 0
  %v7609 = vsel %vm2904, %v6343, 0
  %v7612 = vsel %vm2904, %v6344, 0
  %7614 = vmatpush.msra.mxu0 0.0
  %7615 = vmatpush.msra.mxu0 0.0
  %7616 = vmatpush.msra.mxu0 0.0
  %7617 = vmatpush.msra.mxu0 0.0
  %7618 = vmatpush.msra.mxu0 0.0
  %7619 = vmatpush.msra.mxu0 0.0
  %7620 = vmatpush.msra.mxu0 0.0
  %7621 = vmatpush.msra.mxu0 0.0
  %7622 = vmatpush.msra.mxu0 %v6600
  %7623 = vmatpush.msra.mxu0 %v6599
  %7624 = vmatpush.msra.mxu0 %v6598
  %7625 = vmatpush.msra.mxu0 %v6597
  %7626 = vmatpush.msra.mxu0 %v6596
  %7627 = vmatpush.msra.mxu0 %v6595
  %7628 = vmatpush.msra.mxu0 %v6594
  %7629 = vmatpush.msra.mxu0 %v6593
  %7630 = vmatmul.f32.gmra.mxu0 %v7591
  %v7631 = vpop.f32.mrf.mxu0
  %v7632 = vadd.f32 0.0, %v7631
  %7633 = vmatmul.f32.gmra.mxu0 %v7594
  %v7634 = vpop.f32.mrf.mxu0
  %v7635 = vadd.f32 0.0, %v7634
  %7636 = vmatmul.f32.gmra.mxu0 %v7597
  %v7637 = vpop.f32.mrf.mxu0
  %v7638 = vadd.f32 0.0, %v7637
  %7639 = vmatmul.f32.gmra.mxu0 %v7600
  %v7640 = vpop.f32.mrf.mxu0
  %v7641 = vadd.f32 0.0, %v7640
  %7642 = vmatmul.f32.gmra.mxu0 %v7603
  %v7643 = vpop.f32.mrf.mxu0
  %v7644 = vadd.f32 0.0, %v7643
  %7645 = vmatmul.f32.gmra.mxu0 %v7606
  %v7646 = vpop.f32.mrf.mxu0
  %v7647 = vadd.f32 0.0, %v7646
  %7648 = vmatmul.f32.gmra.mxu0 %v7609
  %v7649 = vpop.f32.mrf.mxu0
  %v7650 = vadd.f32 0.0, %v7649
  %7651 = vmatmul.f32.gmra.mxu0 %v7612
  %v7652 = vpop.f32.mrf.mxu0
  %v7653 = vadd.f32 0.0, %v7652
  %7654 = vdwg.mxu0
  %v7656 = vsel %vm2904, %v6345, 0
  %v7659 = vsel %vm2904, %v6346, 0
  %v7662 = vsel %vm2904, %v6347, 0
  %v7665 = vsel %vm2904, %v6348, 0
  %v7668 = vsel %vm2904, %v6349, 0
  %v7671 = vsel %vm2904, %v6350, 0
  %v7674 = vsel %vm2904, %v6351, 0
  %v7677 = vsel %vm2904, %v6352, 0
  %7679 = vmatpush.msra.mxu0 0.0
  %7680 = vmatpush.msra.mxu0 0.0
  %7681 = vmatpush.msra.mxu0 0.0
  %7682 = vmatpush.msra.mxu0 0.0
  %7683 = vmatpush.msra.mxu0 0.0
  %7684 = vmatpush.msra.mxu0 0.0
  %7685 = vmatpush.msra.mxu0 0.0
  %7686 = vmatpush.msra.mxu0 0.0
  %7687 = vmatpush.msra.mxu0 %v6608
  %7688 = vmatpush.msra.mxu0 %v6607
  %7689 = vmatpush.msra.mxu0 %v6606
  %7690 = vmatpush.msra.mxu0 %v6605
  %7691 = vmatpush.msra.mxu0 %v6604
  %7692 = vmatpush.msra.mxu0 %v6603
  %7693 = vmatpush.msra.mxu0 %v6602
  %7694 = vmatpush.msra.mxu0 %v6601
  %7695 = vmatmul.f32.gmra.mxu0 %v7656
  %v7696 = vpop.f32.mrf.mxu0
  %v7697 = vadd.f32 0.0, %v7696
  %7698 = vmatmul.f32.gmra.mxu0 %v7659
  %v7699 = vpop.f32.mrf.mxu0
  %v7700 = vadd.f32 0.0, %v7699
  %7701 = vmatmul.f32.gmra.mxu0 %v7662
  %v7702 = vpop.f32.mrf.mxu0
  %v7703 = vadd.f32 0.0, %v7702
  %7704 = vmatmul.f32.gmra.mxu0 %v7665
  %v7705 = vpop.f32.mrf.mxu0
  %v7706 = vadd.f32 0.0, %v7705
  %7707 = vmatmul.f32.gmra.mxu0 %v7668
  %v7708 = vpop.f32.mrf.mxu0
  %v7709 = vadd.f32 0.0, %v7708
  %7710 = vmatmul.f32.gmra.mxu0 %v7671
  %v7711 = vpop.f32.mrf.mxu0
  %v7712 = vadd.f32 0.0, %v7711
  %7713 = vmatmul.f32.gmra.mxu0 %v7674
  %v7714 = vpop.f32.mrf.mxu0
  %v7715 = vadd.f32 0.0, %v7714
  %7716 = vmatmul.f32.gmra.mxu0 %v7677
  %v7717 = vpop.f32.mrf.mxu0
  %v7718 = vadd.f32 0.0, %v7717
  %7719 = vdwg.mxu0
  %v7721 = vsel %vm2904, %v6353, 0
  %v7724 = vsel %vm2904, %v6354, 0
  %v7727 = vsel %vm2904, %v6355, 0
  %v7730 = vsel %vm2904, %v6356, 0
  %v7733 = vsel %vm2904, %v6357, 0
  %v7736 = vsel %vm2904, %v6358, 0
  %v7739 = vsel %vm2904, %v6359, 0
  %v7742 = vsel %vm2904, %v6360, 0
  %7744 = vmatpush.msra.mxu0 0.0
  %7745 = vmatpush.msra.mxu0 0.0
  %7746 = vmatpush.msra.mxu0 0.0
  %7747 = vmatpush.msra.mxu0 0.0
  %7748 = vmatpush.msra.mxu0 0.0
  %7749 = vmatpush.msra.mxu0 0.0
  %7750 = vmatpush.msra.mxu0 0.0
  %7751 = vmatpush.msra.mxu0 0.0
  %7752 = vmatpush.msra.mxu0 %v6616
  %7753 = vmatpush.msra.mxu0 %v6615
  %7754 = vmatpush.msra.mxu0 %v6614
  %7755 = vmatpush.msra.mxu0 %v6613
  %7756 = vmatpush.msra.mxu0 %v6612
  %7757 = vmatpush.msra.mxu0 %v6611
  %7758 = vmatpush.msra.mxu0 %v6610
  %7759 = vmatpush.msra.mxu0 %v6609
  %7760 = vmatmul.f32.gmra.mxu0 %v7721
  %v7761 = vpop.f32.mrf.mxu0
  %v7762 = vadd.f32 0.0, %v7761
  %7763 = vmatmul.f32.gmra.mxu0 %v7724
  %v7764 = vpop.f32.mrf.mxu0
  %v7765 = vadd.f32 0.0, %v7764
  %7766 = vmatmul.f32.gmra.mxu0 %v7727
  %v7767 = vpop.f32.mrf.mxu0
  %v7768 = vadd.f32 0.0, %v7767
  %7769 = vmatmul.f32.gmra.mxu0 %v7730
  %v7770 = vpop.f32.mrf.mxu0
  %v7771 = vadd.f32 0.0, %v7770
  %7772 = vmatmul.f32.gmra.mxu0 %v7733
  %v7773 = vpop.f32.mrf.mxu0
  %v7774 = vadd.f32 0.0, %v7773
  %7775 = vmatmul.f32.gmra.mxu0 %v7736
  %v7776 = vpop.f32.mrf.mxu0
  %v7777 = vadd.f32 0.0, %v7776
  %7778 = vmatmul.f32.gmra.mxu0 %v7739
  %v7779 = vpop.f32.mrf.mxu0
  %v7780 = vadd.f32 0.0, %v7779
  %7781 = vmatmul.f32.gmra.mxu0 %v7742
  %v7782 = vpop.f32.mrf.mxu0
  %v7783 = vadd.f32 0.0, %v7782
  %7784 = vdwg.mxu0
  %v7786 = vsel %vm2904, %v6361, 0
  %v7789 = vsel %vm2904, %v6362, 0
  %v7792 = vsel %vm2904, %v6363, 0
  %v7795 = vsel %vm2904, %v6364, 0
  %v7798 = vsel %vm2904, %v6365, 0
  %v7801 = vsel %vm2904, %v6366, 0
  %v7804 = vsel %vm2904, %v6367, 0
  %v7807 = vsel %vm2904, %v6368, 0
  %7809 = vmatpush.msra.mxu0 0.0
  %7810 = vmatpush.msra.mxu0 0.0
  %7811 = vmatpush.msra.mxu0 0.0
  %7812 = vmatpush.msra.mxu0 0.0
  %7813 = vmatpush.msra.mxu0 0.0
  %7814 = vmatpush.msra.mxu0 0.0
  %7815 = vmatpush.msra.mxu0 0.0
  %7816 = vmatpush.msra.mxu0 0.0
  %7817 = vmatpush.msra.mxu0 %v6624
  %7818 = vmatpush.msra.mxu0 %v6623
  %7819 = vmatpush.msra.mxu0 %v6622
  %7820 = vmatpush.msra.mxu0 %v6621
  %7821 = vmatpush.msra.mxu0 %v6620
  %7822 = vmatpush.msra.mxu0 %v6619
  %7823 = vmatpush.msra.mxu0 %v6618
  %7824 = vmatpush.msra.mxu0 %v6617
  %7825 = vmatmul.f32.gmra.mxu0 %v7786
  %v7826 = vpop.f32.mrf.mxu0
  %v7827 = vadd.f32 0.0, %v7826
  %7828 = vmatmul.f32.gmra.mxu0 %v7789
  %v7829 = vpop.f32.mrf.mxu0
  %v7830 = vadd.f32 0.0, %v7829
  %7831 = vmatmul.f32.gmra.mxu0 %v7792
  %v7832 = vpop.f32.mrf.mxu0
  %v7833 = vadd.f32 0.0, %v7832
  %7834 = vmatmul.f32.gmra.mxu0 %v7795
  %v7835 = vpop.f32.mrf.mxu0
  %v7836 = vadd.f32 0.0, %v7835
  %7837 = vmatmul.f32.gmra.mxu0 %v7798
  %v7838 = vpop.f32.mrf.mxu0
  %v7839 = vadd.f32 0.0, %v7838
  %7840 = vmatmul.f32.gmra.mxu0 %v7801
  %v7841 = vpop.f32.mrf.mxu0
  %v7842 = vadd.f32 0.0, %v7841
  %7843 = vmatmul.f32.gmra.mxu0 %v7804
  %v7844 = vpop.f32.mrf.mxu0
  %v7845 = vadd.f32 0.0, %v7844
  %7846 = vmatmul.f32.gmra.mxu0 %v7807
  %v7847 = vpop.f32.mrf.mxu0
  %v7848 = vadd.f32 0.0, %v7847
  %7849 = vdwg.mxu0
  %v7851 = vsel %vm2904, %v6369, 0
  %v7854 = vsel %vm2904, %v6370, 0
  %v7857 = vsel %vm2904, %v6371, 0
  %v7860 = vsel %vm2904, %v6372, 0
  %v7863 = vsel %vm2904, %v6373, 0
  %v7866 = vsel %vm2904, %v6374, 0
  %v7869 = vsel %vm2904, %v6375, 0
  %v7872 = vsel %vm2904, %v6376, 0
  %7874 = vmatpush.msra.mxu0 0.0
  %7875 = vmatpush.msra.mxu0 0.0
  %7876 = vmatpush.msra.mxu0 0.0
  %7877 = vmatpush.msra.mxu0 0.0
  %7878 = vmatpush.msra.mxu0 0.0
  %7879 = vmatpush.msra.mxu0 0.0
  %7880 = vmatpush.msra.mxu0 0.0
  %7881 = vmatpush.msra.mxu0 0.0
  %7882 = vmatpush.msra.mxu0 %v6632
  %7883 = vmatpush.msra.mxu0 %v6631
  %7884 = vmatpush.msra.mxu0 %v6630
  %7885 = vmatpush.msra.mxu0 %v6629
  %7886 = vmatpush.msra.mxu0 %v6628
  %7887 = vmatpush.msra.mxu0 %v6627
  %7888 = vmatpush.msra.mxu0 %v6626
  %7889 = vmatpush.msra.mxu0 %v6625
  %7890 = vmatmul.f32.gmra.mxu0 %v7851
  %v7891 = vpop.f32.mrf.mxu0
  %v7892 = vadd.f32 0.0, %v7891
  %7893 = vmatmul.f32.gmra.mxu0 %v7854
  %v7894 = vpop.f32.mrf.mxu0
  %v7895 = vadd.f32 0.0, %v7894
  %7896 = vmatmul.f32.gmra.mxu0 %v7857
  %v7897 = vpop.f32.mrf.mxu0
  %v7898 = vadd.f32 0.0, %v7897
  %7899 = vmatmul.f32.gmra.mxu0 %v7860
  %v7900 = vpop.f32.mrf.mxu0
  %v7901 = vadd.f32 0.0, %v7900
  %7902 = vmatmul.f32.gmra.mxu0 %v7863
  %v7903 = vpop.f32.mrf.mxu0
  %v7904 = vadd.f32 0.0, %v7903
  %7905 = vmatmul.f32.gmra.mxu0 %v7866
  %v7906 = vpop.f32.mrf.mxu0
  %v7907 = vadd.f32 0.0, %v7906
  %7908 = vmatmul.f32.gmra.mxu0 %v7869
  %v7909 = vpop.f32.mrf.mxu0
  %v7910 = vadd.f32 0.0, %v7909
  %7911 = vmatmul.f32.gmra.mxu0 %v7872
  %v7912 = vpop.f32.mrf.mxu0
  %v7913 = vadd.f32 0.0, %v7912
  %7914 = vdwg.mxu0
  %v7916 = vsel %vm2904, %v6377, 0
  %v7919 = vsel %vm2904, %v6378, 0
  %v7922 = vsel %vm2904, %v6379, 0
  %v7925 = vsel %vm2904, %v6380, 0
  %v7928 = vsel %vm2904, %v6381, 0
  %v7931 = vsel %vm2904, %v6382, 0
  %v7934 = vsel %vm2904, %v6383, 0
  %v7937 = vsel %vm2904, %v6384, 0
  %7939 = vmatpush.msra.mxu0 0.0
  %7940 = vmatpush.msra.mxu0 0.0
  %7941 = vmatpush.msra.mxu0 0.0
  %7942 = vmatpush.msra.mxu0 0.0
  %7943 = vmatpush.msra.mxu0 0.0
  %7944 = vmatpush.msra.mxu0 0.0
  %7945 = vmatpush.msra.mxu0 0.0
  %7946 = vmatpush.msra.mxu0 0.0
  %7947 = vmatpush.msra.mxu0 %v6640
  %7948 = vmatpush.msra.mxu0 %v6639
  %7949 = vmatpush.msra.mxu0 %v6638
  %7950 = vmatpush.msra.mxu0 %v6637
  %7951 = vmatpush.msra.mxu0 %v6636
  %7952 = vmatpush.msra.mxu0 %v6635
  %7953 = vmatpush.msra.mxu0 %v6634
  %7954 = vmatpush.msra.mxu0 %v6633
  %7955 = vmatmul.f32.gmra.mxu0 %v7916
  %v7956 = vpop.f32.mrf.mxu0
  %v7957 = vadd.f32 0.0, %v7956
  %7958 = vmatmul.f32.gmra.mxu0 %v7919
  %v7959 = vpop.f32.mrf.mxu0
  %v7960 = vadd.f32 0.0, %v7959
  %7961 = vmatmul.f32.gmra.mxu0 %v7922
  %v7962 = vpop.f32.mrf.mxu0
  %v7963 = vadd.f32 0.0, %v7962
  %7964 = vmatmul.f32.gmra.mxu0 %v7925
  %v7965 = vpop.f32.mrf.mxu0
  %v7966 = vadd.f32 0.0, %v7965
  %7967 = vmatmul.f32.gmra.mxu0 %v7928
  %v7968 = vpop.f32.mrf.mxu0
  %v7969 = vadd.f32 0.0, %v7968
  %7970 = vmatmul.f32.gmra.mxu0 %v7931
  %v7971 = vpop.f32.mrf.mxu0
  %v7972 = vadd.f32 0.0, %v7971
  %7973 = vmatmul.f32.gmra.mxu0 %v7934
  %v7974 = vpop.f32.mrf.mxu0
  %v7975 = vadd.f32 0.0, %v7974
  %7976 = vmatmul.f32.gmra.mxu0 %v7937
  %v7977 = vpop.f32.mrf.mxu0
  %v7978 = vadd.f32 0.0, %v7977
  %7979 = vdwg.mxu0
  %v7981 = vsel %vm2904, %v6385, 0
  %v7984 = vsel %vm2904, %v6386, 0
  %v7987 = vsel %vm2904, %v6387, 0
  %v7990 = vsel %vm2904, %v6388, 0
  %v7993 = vsel %vm2904, %v6389, 0
  %v7996 = vsel %vm2904, %v6390, 0
  %v7999 = vsel %vm2904, %v6391, 0
  %v8002 = vsel %vm2904, %v6392, 0
  %8004 = vmatpush.msra.mxu0 0.0
  %8005 = vmatpush.msra.mxu0 0.0
  %8006 = vmatpush.msra.mxu0 0.0
  %8007 = vmatpush.msra.mxu0 0.0
  %8008 = vmatpush.msra.mxu0 0.0
  %8009 = vmatpush.msra.mxu0 0.0
  %8010 = vmatpush.msra.mxu0 0.0
  %8011 = vmatpush.msra.mxu0 0.0
  %8012 = vmatpush.msra.mxu0 %v6648
  %8013 = vmatpush.msra.mxu0 %v6647
  %8014 = vmatpush.msra.mxu0 %v6646
  %8015 = vmatpush.msra.mxu0 %v6645
  %8016 = vmatpush.msra.mxu0 %v6644
  %8017 = vmatpush.msra.mxu0 %v6643
  %8018 = vmatpush.msra.mxu0 %v6642
  %8019 = vmatpush.msra.mxu0 %v6641
  %8020 = vmatmul.f32.gmra.mxu0 %v7981
  %v8021 = vpop.f32.mrf.mxu0
  %v8022 = vadd.f32 0.0, %v8021
  %8023 = vmatmul.f32.gmra.mxu0 %v7984
  %v8024 = vpop.f32.mrf.mxu0
  %v8025 = vadd.f32 0.0, %v8024
  %8026 = vmatmul.f32.gmra.mxu0 %v7987
  %v8027 = vpop.f32.mrf.mxu0
  %v8028 = vadd.f32 0.0, %v8027
  %8029 = vmatmul.f32.gmra.mxu0 %v7990
  %v8030 = vpop.f32.mrf.mxu0
  %v8031 = vadd.f32 0.0, %v8030
  %8032 = vmatmul.f32.gmra.mxu0 %v7993
  %v8033 = vpop.f32.mrf.mxu0
  %v8034 = vadd.f32 0.0, %v8033
  %8035 = vmatmul.f32.gmra.mxu0 %v7996
  %v8036 = vpop.f32.mrf.mxu0
  %v8037 = vadd.f32 0.0, %v8036
  %8038 = vmatmul.f32.gmra.mxu0 %v7999
  %v8039 = vpop.f32.mrf.mxu0
  %v8040 = vadd.f32 0.0, %v8039
  %8041 = vmatmul.f32.gmra.mxu0 %v8002
  %v8042 = vpop.f32.mrf.mxu0
  %v8043 = vadd.f32 0.0, %v8042
  %8044 = vdwg.mxu0
  %v8046 = vsel %vm2904, %v6393, 0
  %v8049 = vsel %vm2904, %v6394, 0
  %v8052 = vsel %vm2904, %v6395, 0
  %v8055 = vsel %vm2904, %v6396, 0
  %v8058 = vsel %vm2904, %v6397, 0
  %v8061 = vsel %vm2904, %v6398, 0
  %v8064 = vsel %vm2904, %v6399, 0
  %v8067 = vsel %vm2904, %v6400, 0
  %8069 = vmatpush.msra.mxu0 0.0
  %8070 = vmatpush.msra.mxu0 0.0
  %8071 = vmatpush.msra.mxu0 0.0
  %8072 = vmatpush.msra.mxu0 0.0
  %8073 = vmatpush.msra.mxu0 0.0
  %8074 = vmatpush.msra.mxu0 0.0
  %8075 = vmatpush.msra.mxu0 0.0
  %8076 = vmatpush.msra.mxu0 0.0
  %8077 = vmatpush.msra.mxu0 %v6656
  %8078 = vmatpush.msra.mxu0 %v6655
  %8079 = vmatpush.msra.mxu0 %v6654
  %8080 = vmatpush.msra.mxu0 %v6653
  %8081 = vmatpush.msra.mxu0 %v6652
  %8082 = vmatpush.msra.mxu0 %v6651
  %8083 = vmatpush.msra.mxu0 %v6650
  %8084 = vmatpush.msra.mxu0 %v6649
  %8085 = vmatmul.f32.gmra.mxu0 %v8046
  %v8086 = vpop.f32.mrf.mxu0
  %v8087 = vadd.f32 0.0, %v8086
  %8088 = vmatmul.f32.gmra.mxu0 %v8049
  %v8089 = vpop.f32.mrf.mxu0
  %v8090 = vadd.f32 0.0, %v8089
  %8091 = vmatmul.f32.gmra.mxu0 %v8052
  %v8092 = vpop.f32.mrf.mxu0
  %v8093 = vadd.f32 0.0, %v8092
  %8094 = vmatmul.f32.gmra.mxu0 %v8055
  %v8095 = vpop.f32.mrf.mxu0
  %v8096 = vadd.f32 0.0, %v8095
  %8097 = vmatmul.f32.gmra.mxu0 %v8058
  %v8098 = vpop.f32.mrf.mxu0
  %v8099 = vadd.f32 0.0, %v8098
  %8100 = vmatmul.f32.gmra.mxu0 %v8061
  %v8101 = vpop.f32.mrf.mxu0
  %v8102 = vadd.f32 0.0, %v8101
  %8103 = vmatmul.f32.gmra.mxu0 %v8064
  %v8104 = vpop.f32.mrf.mxu0
  %v8105 = vadd.f32 0.0, %v8104
  %8106 = vmatmul.f32.gmra.mxu0 %v8067
  %v8107 = vpop.f32.mrf.mxu0
  %v8108 = vadd.f32 0.0, %v8107
  %8109 = vdwg.mxu0
  %v8111 = vsel %vm2904, %v6401, 0
  %v8114 = vsel %vm2904, %v6402, 0
  %v8117 = vsel %vm2904, %v6403, 0
  %v8120 = vsel %vm2904, %v6404, 0
  %v8123 = vsel %vm2904, %v6405, 0
  %v8126 = vsel %vm2904, %v6406, 0
  %v8129 = vsel %vm2904, %v6407, 0
  %v8132 = vsel %vm2904, %v6408, 0
  %8134 = vmatpush.msra.mxu0 0.0
  %8135 = vmatpush.msra.mxu0 0.0
  %8136 = vmatpush.msra.mxu0 0.0
  %8137 = vmatpush.msra.mxu0 0.0
  %8138 = vmatpush.msra.mxu0 0.0
  %8139 = vmatpush.msra.mxu0 0.0
  %8140 = vmatpush.msra.mxu0 0.0
  %8141 = vmatpush.msra.mxu0 0.0
  %8142 = vmatpush.msra.mxu0 %v6664
  %8143 = vmatpush.msra.mxu0 %v6663
  %8144 = vmatpush.msra.mxu0 %v6662
  %8145 = vmatpush.msra.mxu0 %v6661
  %8146 = vmatpush.msra.mxu0 %v6660
  %8147 = vmatpush.msra.mxu0 %v6659
  %8148 = vmatpush.msra.mxu0 %v6658
  %8149 = vmatpush.msra.mxu0 %v6657
  %8150 = vmatmul.f32.gmra.mxu0 %v8111
  %v8151 = vpop.f32.mrf.mxu0
  %v8152 = vadd.f32 0.0, %v8151
  %8153 = vmatmul.f32.gmra.mxu0 %v8114
  %v8154 = vpop.f32.mrf.mxu0
  %v8155 = vadd.f32 0.0, %v8154
  %8156 = vmatmul.f32.gmra.mxu0 %v8117
  %v8157 = vpop.f32.mrf.mxu0
  %v8158 = vadd.f32 0.0, %v8157
  %8159 = vmatmul.f32.gmra.mxu0 %v8120
  %v8160 = vpop.f32.mrf.mxu0
  %v8161 = vadd.f32 0.0, %v8160
  %8162 = vmatmul.f32.gmra.mxu0 %v8123
  %v8163 = vpop.f32.mrf.mxu0
  %v8164 = vadd.f32 0.0, %v8163
  %8165 = vmatmul.f32.gmra.mxu0 %v8126
  %v8166 = vpop.f32.mrf.mxu0
  %v8167 = vadd.f32 0.0, %v8166
  %8168 = vmatmul.f32.gmra.mxu0 %v8129
  %v8169 = vpop.f32.mrf.mxu0
  %v8170 = vadd.f32 0.0, %v8169
  %8171 = vmatmul.f32.gmra.mxu0 %v8132
  %v8172 = vpop.f32.mrf.mxu0
  %v8173 = vadd.f32 0.0, %v8172
  %8174 = vdwg.mxu0
  %v8176 = vsel %vm2904, %v6409, 0
  %v8179 = vsel %vm2904, %v6410, 0
  %v8182 = vsel %vm2904, %v6411, 0
  %v8185 = vsel %vm2904, %v6412, 0
  %v8188 = vsel %vm2904, %v6413, 0
  %v8191 = vsel %vm2904, %v6414, 0
  %v8194 = vsel %vm2904, %v6415, 0
  %v8197 = vsel %vm2904, %v6416, 0
  %8199 = vmatpush.msra.mxu0 0.0
  %8200 = vmatpush.msra.mxu0 0.0
  %8201 = vmatpush.msra.mxu0 0.0
  %8202 = vmatpush.msra.mxu0 0.0
  %8203 = vmatpush.msra.mxu0 0.0
  %8204 = vmatpush.msra.mxu0 0.0
  %8205 = vmatpush.msra.mxu0 0.0
  %8206 = vmatpush.msra.mxu0 0.0
  %8207 = vmatpush.msra.mxu0 %v6672
  %8208 = vmatpush.msra.mxu0 %v6671
  %8209 = vmatpush.msra.mxu0 %v6670
  %8210 = vmatpush.msra.mxu0 %v6669
  %8211 = vmatpush.msra.mxu0 %v6668
  %8212 = vmatpush.msra.mxu0 %v6667
  %8213 = vmatpush.msra.mxu0 %v6666
  %8214 = vmatpush.msra.mxu0 %v6665
  %8215 = vmatmul.f32.gmra.mxu0 %v8176
  %v8216 = vpop.f32.mrf.mxu0
  %v8217 = vadd.f32 0.0, %v8216
  %8218 = vmatmul.f32.gmra.mxu0 %v8179
  %v8219 = vpop.f32.mrf.mxu0
  %v8220 = vadd.f32 0.0, %v8219
  %8221 = vmatmul.f32.gmra.mxu0 %v8182
  %v8222 = vpop.f32.mrf.mxu0
  %v8223 = vadd.f32 0.0, %v8222
  %8224 = vmatmul.f32.gmra.mxu0 %v8185
  %v8225 = vpop.f32.mrf.mxu0
  %v8226 = vadd.f32 0.0, %v8225
  %8227 = vmatmul.f32.gmra.mxu0 %v8188
  %v8228 = vpop.f32.mrf.mxu0
  %v8229 = vadd.f32 0.0, %v8228
  %8230 = vmatmul.f32.gmra.mxu0 %v8191
  %v8231 = vpop.f32.mrf.mxu0
  %v8232 = vadd.f32 0.0, %v8231
  %8233 = vmatmul.f32.gmra.mxu0 %v8194
  %v8234 = vpop.f32.mrf.mxu0
  %v8235 = vadd.f32 0.0, %v8234
  %8236 = vmatmul.f32.gmra.mxu0 %v8197
  %v8237 = vpop.f32.mrf.mxu0
  %v8238 = vadd.f32 0.0, %v8237
  %8239 = vdwg.mxu0
  %v8241 = vsel %vm2904, %v6417, 0
  %v8244 = vsel %vm2904, %v6418, 0
  %v8247 = vsel %vm2904, %v6419, 0
  %v8250 = vsel %vm2904, %v6420, 0
  %v8253 = vsel %vm2904, %v6421, 0
  %v8256 = vsel %vm2904, %v6422, 0
  %v8259 = vsel %vm2904, %v6423, 0
  %v8262 = vsel %vm2904, %v6424, 0
  %8264 = vmatpush.msra.mxu0 0.0
  %8265 = vmatpush.msra.mxu0 0.0
  %8266 = vmatpush.msra.mxu0 0.0
  %8267 = vmatpush.msra.mxu0 0.0
  %8268 = vmatpush.msra.mxu0 0.0
  %8269 = vmatpush.msra.mxu0 0.0
  %8270 = vmatpush.msra.mxu0 0.0
  %8271 = vmatpush.msra.mxu0 0.0
  %8272 = vmatpush.msra.mxu0 %v6680
  %8273 = vmatpush.msra.mxu0 %v6679
  %8274 = vmatpush.msra.mxu0 %v6678
  %8275 = vmatpush.msra.mxu0 %v6677
  %8276 = vmatpush.msra.mxu0 %v6676
  %8277 = vmatpush.msra.mxu0 %v6675
  %8278 = vmatpush.msra.mxu0 %v6674
  %8279 = vmatpush.msra.mxu0 %v6673
  %8280 = vmatmul.f32.gmra.mxu0 %v8241
  %v8281 = vpop.f32.mrf.mxu0
  %v8282 = vadd.f32 0.0, %v8281
  %8283 = vmatmul.f32.gmra.mxu0 %v8244
  %v8284 = vpop.f32.mrf.mxu0
  %v8285 = vadd.f32 0.0, %v8284
  %8286 = vmatmul.f32.gmra.mxu0 %v8247
  %v8287 = vpop.f32.mrf.mxu0
  %v8288 = vadd.f32 0.0, %v8287
  %8289 = vmatmul.f32.gmra.mxu0 %v8250
  %v8290 = vpop.f32.mrf.mxu0
  %v8291 = vadd.f32 0.0, %v8290
  %8292 = vmatmul.f32.gmra.mxu0 %v8253
  %v8293 = vpop.f32.mrf.mxu0
  %v8294 = vadd.f32 0.0, %v8293
  %8295 = vmatmul.f32.gmra.mxu0 %v8256
  %v8296 = vpop.f32.mrf.mxu0
  %v8297 = vadd.f32 0.0, %v8296
  %8298 = vmatmul.f32.gmra.mxu0 %v8259
  %v8299 = vpop.f32.mrf.mxu0
  %v8300 = vadd.f32 0.0, %v8299
  %8301 = vmatmul.f32.gmra.mxu0 %v8262
  %v8302 = vpop.f32.mrf.mxu0
  %v8303 = vadd.f32 0.0, %v8302
  %8304 = vdwg.mxu0
  %v8306 = vsel %vm2904, %v6425, 0
  %v8309 = vsel %vm2904, %v6426, 0
  %v8312 = vsel %vm2904, %v6427, 0
  %v8315 = vsel %vm2904, %v6428, 0
  %v8318 = vsel %vm2904, %v6429, 0
  %v8321 = vsel %vm2904, %v6430, 0
  %v8324 = vsel %vm2904, %v6431, 0
  %v8327 = vsel %vm2904, %v6432, 0
  %8329 = vmatpush.msra.mxu0 0.0
  %8330 = vmatpush.msra.mxu0 0.0
  %8331 = vmatpush.msra.mxu0 0.0
  %8332 = vmatpush.msra.mxu0 0.0
  %8333 = vmatpush.msra.mxu0 0.0
  %8334 = vmatpush.msra.mxu0 0.0
  %8335 = vmatpush.msra.mxu0 0.0
  %8336 = vmatpush.msra.mxu0 0.0
  %8337 = vmatpush.msra.mxu0 %v6688
  %8338 = vmatpush.msra.mxu0 %v6687
  %8339 = vmatpush.msra.mxu0 %v6686
  %8340 = vmatpush.msra.mxu0 %v6685
  %8341 = vmatpush.msra.mxu0 %v6684
  %8342 = vmatpush.msra.mxu0 %v6683
  %8343 = vmatpush.msra.mxu0 %v6682
  %8344 = vmatpush.msra.mxu0 %v6681
  %8345 = vmatmul.f32.gmra.mxu0 %v8306
  %v8346 = vpop.f32.mrf.mxu0
  %v8347 = vadd.f32 0.0, %v8346
  %8348 = vmatmul.f32.gmra.mxu0 %v8309
  %v8349 = vpop.f32.mrf.mxu0
  %v8350 = vadd.f32 0.0, %v8349
  %8351 = vmatmul.f32.gmra.mxu0 %v8312
  %v8352 = vpop.f32.mrf.mxu0
  %v8353 = vadd.f32 0.0, %v8352
  %8354 = vmatmul.f32.gmra.mxu0 %v8315
  %v8355 = vpop.f32.mrf.mxu0
  %v8356 = vadd.f32 0.0, %v8355
  %8357 = vmatmul.f32.gmra.mxu0 %v8318
  %v8358 = vpop.f32.mrf.mxu0
  %v8359 = vadd.f32 0.0, %v8358
  %8360 = vmatmul.f32.gmra.mxu0 %v8321
  %v8361 = vpop.f32.mrf.mxu0
  %v8362 = vadd.f32 0.0, %v8361
  %8363 = vmatmul.f32.gmra.mxu0 %v8324
  %v8364 = vpop.f32.mrf.mxu0
  %v8365 = vadd.f32 0.0, %v8364
  %8366 = vmatmul.f32.gmra.mxu0 %v8327
  %v8367 = vpop.f32.mrf.mxu0
  %v8368 = vadd.f32 0.0, %v8367
  %8369 = vdwg.mxu0
  %v8371 = vsel %vm2904, %v6433, 0
  %v8374 = vsel %vm2904, %v6434, 0
  %v8377 = vsel %vm2904, %v6435, 0
  %v8380 = vsel %vm2904, %v6436, 0
  %v8383 = vsel %vm2904, %v6437, 0
  %v8386 = vsel %vm2904, %v6438, 0
  %v8389 = vsel %vm2904, %v6439, 0
  %v8392 = vsel %vm2904, %v6440, 0
  %8394 = vmatpush.msra.mxu0 0.0
  %8395 = vmatpush.msra.mxu0 0.0
  %8396 = vmatpush.msra.mxu0 0.0
  %8397 = vmatpush.msra.mxu0 0.0
  %8398 = vmatpush.msra.mxu0 0.0
  %8399 = vmatpush.msra.mxu0 0.0
  %8400 = vmatpush.msra.mxu0 0.0
  %8401 = vmatpush.msra.mxu0 0.0
  %8402 = vmatpush.msra.mxu0 %v6696
  %8403 = vmatpush.msra.mxu0 %v6695
  %8404 = vmatpush.msra.mxu0 %v6694
  %8405 = vmatpush.msra.mxu0 %v6693
  %8406 = vmatpush.msra.mxu0 %v6692
  %8407 = vmatpush.msra.mxu0 %v6691
  %8408 = vmatpush.msra.mxu0 %v6690
  %8409 = vmatpush.msra.mxu0 %v6689
  %8410 = vmatmul.f32.gmra.mxu0 %v8371
  %v8411 = vpop.f32.mrf.mxu0
  %v8412 = vadd.f32 0.0, %v8411
  %8413 = vmatmul.f32.gmra.mxu0 %v8374
  %v8414 = vpop.f32.mrf.mxu0
  %v8415 = vadd.f32 0.0, %v8414
  %8416 = vmatmul.f32.gmra.mxu0 %v8377
  %v8417 = vpop.f32.mrf.mxu0
  %v8418 = vadd.f32 0.0, %v8417
  %8419 = vmatmul.f32.gmra.mxu0 %v8380
  %v8420 = vpop.f32.mrf.mxu0
  %v8421 = vadd.f32 0.0, %v8420
  %8422 = vmatmul.f32.gmra.mxu0 %v8383
  %v8423 = vpop.f32.mrf.mxu0
  %v8424 = vadd.f32 0.0, %v8423
  %8425 = vmatmul.f32.gmra.mxu0 %v8386
  %v8426 = vpop.f32.mrf.mxu0
  %v8427 = vadd.f32 0.0, %v8426
  %8428 = vmatmul.f32.gmra.mxu0 %v8389
  %v8429 = vpop.f32.mrf.mxu0
  %v8430 = vadd.f32 0.0, %v8429
  %8431 = vmatmul.f32.gmra.mxu0 %v8392
  %v8432 = vpop.f32.mrf.mxu0
  %v8433 = vadd.f32 0.0, %v8432
  %8434 = vdwg.mxu0
  %v8436 = vsel %vm2904, %v6441, 0
  %v8439 = vsel %vm2904, %v6442, 0
  %v8442 = vsel %vm2904, %v6443, 0
  %v8445 = vsel %vm2904, %v6444, 0
  %v8448 = vsel %vm2904, %v6445, 0
  %v8451 = vsel %vm2904, %v6446, 0
  %v8454 = vsel %vm2904, %v6447, 0
  %v8457 = vsel %vm2904, %v6448, 0
  %8459 = vmatpush.msra.mxu0 0.0
  %8460 = vmatpush.msra.mxu0 0.0
  %8461 = vmatpush.msra.mxu0 0.0
  %8462 = vmatpush.msra.mxu0 0.0
  %8463 = vmatpush.msra.mxu0 0.0
  %8464 = vmatpush.msra.mxu0 0.0
  %8465 = vmatpush.msra.mxu0 0.0
  %8466 = vmatpush.msra.mxu0 0.0
  %8467 = vmatpush.msra.mxu0 %v6704
  %8468 = vmatpush.msra.mxu0 %v6703
  %8469 = vmatpush.msra.mxu0 %v6702
  %8470 = vmatpush.msra.mxu0 %v6701
  %8471 = vmatpush.msra.mxu0 %v6700
  %8472 = vmatpush.msra.mxu0 %v6699
  %8473 = vmatpush.msra.mxu0 %v6698
  %8474 = vmatpush.msra.mxu0 %v6697
  %8475 = vmatmul.f32.gmra.mxu0 %v8436
  %v8476 = vpop.f32.mrf.mxu0
  %v8477 = vadd.f32 0.0, %v8476
  %8478 = vmatmul.f32.gmra.mxu0 %v8439
  %v8479 = vpop.f32.mrf.mxu0
  %v8480 = vadd.f32 0.0, %v8479
  %8481 = vmatmul.f32.gmra.mxu0 %v8442
  %v8482 = vpop.f32.mrf.mxu0
  %v8483 = vadd.f32 0.0, %v8482
  %8484 = vmatmul.f32.gmra.mxu0 %v8445
  %v8485 = vpop.f32.mrf.mxu0
  %v8486 = vadd.f32 0.0, %v8485
  %8487 = vmatmul.f32.gmra.mxu0 %v8448
  %v8488 = vpop.f32.mrf.mxu0
  %v8489 = vadd.f32 0.0, %v8488
  %8490 = vmatmul.f32.gmra.mxu0 %v8451
  %v8491 = vpop.f32.mrf.mxu0
  %v8492 = vadd.f32 0.0, %v8491
  %8493 = vmatmul.f32.gmra.mxu0 %v8454
  %v8494 = vpop.f32.mrf.mxu0
  %v8495 = vadd.f32 0.0, %v8494
  %8496 = vmatmul.f32.gmra.mxu0 %v8457
  %v8497 = vpop.f32.mrf.mxu0
  %v8498 = vadd.f32 0.0, %v8497
  %8499 = vdwg.mxu0
  %v8501 = vsel %vm2904, %v6449, 0
  %v8504 = vsel %vm2904, %v6450, 0
  %v8507 = vsel %vm2904, %v6451, 0
  %v8510 = vsel %vm2904, %v6452, 0
  %v8513 = vsel %vm2904, %v6453, 0
  %v8516 = vsel %vm2904, %v6454, 0
  %v8519 = vsel %vm2904, %v6455, 0
  %v8522 = vsel %vm2904, %v6456, 0
  %8524 = vmatpush.msra.mxu0 0.0
  %8525 = vmatpush.msra.mxu0 0.0
  %8526 = vmatpush.msra.mxu0 0.0
  %8527 = vmatpush.msra.mxu0 0.0
  %8528 = vmatpush.msra.mxu0 0.0
  %8529 = vmatpush.msra.mxu0 0.0
  %8530 = vmatpush.msra.mxu0 0.0
  %8531 = vmatpush.msra.mxu0 0.0
  %8532 = vmatpush.msra.mxu0 %v6712
  %8533 = vmatpush.msra.mxu0 %v6711
  %8534 = vmatpush.msra.mxu0 %v6710
  %8535 = vmatpush.msra.mxu0 %v6709
  %8536 = vmatpush.msra.mxu0 %v6708
  %8537 = vmatpush.msra.mxu0 %v6707
  %8538 = vmatpush.msra.mxu0 %v6706
  %8539 = vmatpush.msra.mxu0 %v6705
  %8540 = vmatmul.f32.gmra.mxu0 %v8501
  %v8541 = vpop.f32.mrf.mxu0
  %v8542 = vadd.f32 0.0, %v8541
  %8543 = vmatmul.f32.gmra.mxu0 %v8504
  %v8544 = vpop.f32.mrf.mxu0
  %v8545 = vadd.f32 0.0, %v8544
  %8546 = vmatmul.f32.gmra.mxu0 %v8507
  %v8547 = vpop.f32.mrf.mxu0
  %v8548 = vadd.f32 0.0, %v8547
  %8549 = vmatmul.f32.gmra.mxu0 %v8510
  %v8550 = vpop.f32.mrf.mxu0
  %v8551 = vadd.f32 0.0, %v8550
  %8552 = vmatmul.f32.gmra.mxu0 %v8513
  %v8553 = vpop.f32.mrf.mxu0
  %v8554 = vadd.f32 0.0, %v8553
  %8555 = vmatmul.f32.gmra.mxu0 %v8516
  %v8556 = vpop.f32.mrf.mxu0
  %v8557 = vadd.f32 0.0, %v8556
  %8558 = vmatmul.f32.gmra.mxu0 %v8519
  %v8559 = vpop.f32.mrf.mxu0
  %v8560 = vadd.f32 0.0, %v8559
  %8561 = vmatmul.f32.gmra.mxu0 %v8522
  %v8562 = vpop.f32.mrf.mxu0
  %v8563 = vadd.f32 0.0, %v8562
  %8564 = vdwg.mxu0
  %v8566 = vsel %vm2904, %v6457, 0
  %v8569 = vsel %vm2904, %v6458, 0
  %v8572 = vsel %vm2904, %v6459, 0
  %v8575 = vsel %vm2904, %v6460, 0
  %v8578 = vsel %vm2904, %v6461, 0
  %v8581 = vsel %vm2904, %v6462, 0
  %v8584 = vsel %vm2904, %v6463, 0
  %v8587 = vsel %vm2904, %v6464, 0
  %8589 = vmatpush.msra.mxu0 0.0
  %8590 = vmatpush.msra.mxu0 0.0
  %8591 = vmatpush.msra.mxu0 0.0
  %8592 = vmatpush.msra.mxu0 0.0
  %8593 = vmatpush.msra.mxu0 0.0
  %8594 = vmatpush.msra.mxu0 0.0
  %8595 = vmatpush.msra.mxu0 0.0
  %8596 = vmatpush.msra.mxu0 0.0
  %8597 = vmatpush.msra.mxu0 %v6720
  %8598 = vmatpush.msra.mxu0 %v6719
  %8599 = vmatpush.msra.mxu0 %v6718
  %8600 = vmatpush.msra.mxu0 %v6717
  %8601 = vmatpush.msra.mxu0 %v6716
  %8602 = vmatpush.msra.mxu0 %v6715
  %8603 = vmatpush.msra.mxu0 %v6714
  %8604 = vmatpush.msra.mxu0 %v6713
  %8605 = vmatmul.f32.gmra.mxu0 %v8566
  %v8606 = vpop.f32.mrf.mxu0
  %v8607 = vadd.f32 0.0, %v8606
  %8608 = vmatmul.f32.gmra.mxu0 %v8569
  %v8609 = vpop.f32.mrf.mxu0
  %v8610 = vadd.f32 0.0, %v8609
  %8611 = vmatmul.f32.gmra.mxu0 %v8572
  %v8612 = vpop.f32.mrf.mxu0
  %v8613 = vadd.f32 0.0, %v8612
  %8614 = vmatmul.f32.gmra.mxu0 %v8575
  %v8615 = vpop.f32.mrf.mxu0
  %v8616 = vadd.f32 0.0, %v8615
  %8617 = vmatmul.f32.gmra.mxu0 %v8578
  %v8618 = vpop.f32.mrf.mxu0
  %v8619 = vadd.f32 0.0, %v8618
  %8620 = vmatmul.f32.gmra.mxu0 %v8581
  %v8621 = vpop.f32.mrf.mxu0
  %v8622 = vadd.f32 0.0, %v8621
  %8623 = vmatmul.f32.gmra.mxu0 %v8584
  %v8624 = vpop.f32.mrf.mxu0
  %v8625 = vadd.f32 0.0, %v8624
  %8626 = vmatmul.f32.gmra.mxu0 %v8587
  %v8627 = vpop.f32.mrf.mxu0
  %v8628 = vadd.f32 0.0, %v8627
  %8629 = vdwg.mxu0
  %v8631 = vsel %vm2904, %v6465, 0
  %v8634 = vsel %vm2904, %v6466, 0
  %v8637 = vsel %vm2904, %v6467, 0
  %v8640 = vsel %vm2904, %v6468, 0
  %v8643 = vsel %vm2904, %v6469, 0
  %v8646 = vsel %vm2904, %v6470, 0
  %v8649 = vsel %vm2904, %v6471, 0
  %v8652 = vsel %vm2904, %v6472, 0
  %8654 = vmatpush.msra.mxu0 0.0
  %8655 = vmatpush.msra.mxu0 0.0
  %8656 = vmatpush.msra.mxu0 0.0
  %8657 = vmatpush.msra.mxu0 0.0
  %8658 = vmatpush.msra.mxu0 0.0
  %8659 = vmatpush.msra.mxu0 0.0
  %8660 = vmatpush.msra.mxu0 0.0
  %8661 = vmatpush.msra.mxu0 0.0
  %8662 = vmatpush.msra.mxu0 %v6728
  %8663 = vmatpush.msra.mxu0 %v6727
  %8664 = vmatpush.msra.mxu0 %v6726
  %8665 = vmatpush.msra.mxu0 %v6725
  %8666 = vmatpush.msra.mxu0 %v6724
  %8667 = vmatpush.msra.mxu0 %v6723
  %8668 = vmatpush.msra.mxu0 %v6722
  %8669 = vmatpush.msra.mxu0 %v6721
  %8670 = vmatmul.f32.gmra.mxu0 %v8631
  %v8671 = vpop.f32.mrf.mxu0
  %v8672 = vadd.f32 0.0, %v8671
  %8673 = vmatmul.f32.gmra.mxu0 %v8634
  %v8674 = vpop.f32.mrf.mxu0
  %v8675 = vadd.f32 0.0, %v8674
  %8676 = vmatmul.f32.gmra.mxu0 %v8637
  %v8677 = vpop.f32.mrf.mxu0
  %v8678 = vadd.f32 0.0, %v8677
  %8679 = vmatmul.f32.gmra.mxu0 %v8640
  %v8680 = vpop.f32.mrf.mxu0
  %v8681 = vadd.f32 0.0, %v8680
  %8682 = vmatmul.f32.gmra.mxu0 %v8643
  %v8683 = vpop.f32.mrf.mxu0
  %v8684 = vadd.f32 0.0, %v8683
  %8685 = vmatmul.f32.gmra.mxu0 %v8646
  %v8686 = vpop.f32.mrf.mxu0
  %v8687 = vadd.f32 0.0, %v8686
  %8688 = vmatmul.f32.gmra.mxu0 %v8649
  %v8689 = vpop.f32.mrf.mxu0
  %v8690 = vadd.f32 0.0, %v8689
  %8691 = vmatmul.f32.gmra.mxu0 %v8652
  %v8692 = vpop.f32.mrf.mxu0
  %v8693 = vadd.f32 0.0, %v8692
  %8694 = vdwg.mxu0
  %v8696 = vsel %vm2904, %v6473, 0
  %v8699 = vsel %vm2904, %v6474, 0
  %v8702 = vsel %vm2904, %v6475, 0
  %v8705 = vsel %vm2904, %v6476, 0
  %v8708 = vsel %vm2904, %v6477, 0
  %v8711 = vsel %vm2904, %v6478, 0
  %v8714 = vsel %vm2904, %v6479, 0
  %v8717 = vsel %vm2904, %v6480, 0
  %8719 = vmatpush.msra.mxu0 0.0
  %8720 = vmatpush.msra.mxu0 0.0
  %8721 = vmatpush.msra.mxu0 0.0
  %8722 = vmatpush.msra.mxu0 0.0
  %8723 = vmatpush.msra.mxu0 0.0
  %8724 = vmatpush.msra.mxu0 0.0
  %8725 = vmatpush.msra.mxu0 0.0
  %8726 = vmatpush.msra.mxu0 0.0
  %8727 = vmatpush.msra.mxu0 %v6736
  %8728 = vmatpush.msra.mxu0 %v6735
  %8729 = vmatpush.msra.mxu0 %v6734
  %8730 = vmatpush.msra.mxu0 %v6733
  %8731 = vmatpush.msra.mxu0 %v6732
  %8732 = vmatpush.msra.mxu0 %v6731
  %8733 = vmatpush.msra.mxu0 %v6730
  %8734 = vmatpush.msra.mxu0 %v6729
  %8735 = vmatmul.f32.gmra.mxu0 %v8696
  %v8736 = vpop.f32.mrf.mxu0
  %v8737 = vadd.f32 0.0, %v8736
  %8738 = vmatmul.f32.gmra.mxu0 %v8699
  %v8739 = vpop.f32.mrf.mxu0
  %v8740 = vadd.f32 0.0, %v8739
  %8741 = vmatmul.f32.gmra.mxu0 %v8702
  %v8742 = vpop.f32.mrf.mxu0
  %v8743 = vadd.f32 0.0, %v8742
  %8744 = vmatmul.f32.gmra.mxu0 %v8705
  %v8745 = vpop.f32.mrf.mxu0
  %v8746 = vadd.f32 0.0, %v8745
  %8747 = vmatmul.f32.gmra.mxu0 %v8708
  %v8748 = vpop.f32.mrf.mxu0
  %v8749 = vadd.f32 0.0, %v8748
  %8750 = vmatmul.f32.gmra.mxu0 %v8711
  %v8751 = vpop.f32.mrf.mxu0
  %v8752 = vadd.f32 0.0, %v8751
  %8753 = vmatmul.f32.gmra.mxu0 %v8714
  %v8754 = vpop.f32.mrf.mxu0
  %v8755 = vadd.f32 0.0, %v8754
  %8756 = vmatmul.f32.gmra.mxu0 %v8717
  %v8757 = vpop.f32.mrf.mxu0
  %v8758 = vadd.f32 0.0, %v8757
  %8759 = vdwg.mxu0
  %v8761 = vsel %vm2904, %v6481, 0
  %v8764 = vsel %vm2904, %v6482, 0
  %v8767 = vsel %vm2904, %v6483, 0
  %v8770 = vsel %vm2904, %v6484, 0
  %v8773 = vsel %vm2904, %v6485, 0
  %v8776 = vsel %vm2904, %v6486, 0
  %v8779 = vsel %vm2904, %v6487, 0
  %v8782 = vsel %vm2904, %v6488, 0
  %8784 = vmatpush.msra.mxu0 0.0
  %8785 = vmatpush.msra.mxu0 0.0
  %8786 = vmatpush.msra.mxu0 0.0
  %8787 = vmatpush.msra.mxu0 0.0
  %8788 = vmatpush.msra.mxu0 0.0
  %8789 = vmatpush.msra.mxu0 0.0
  %8790 = vmatpush.msra.mxu0 0.0
  %8791 = vmatpush.msra.mxu0 0.0
  %8792 = vmatpush.msra.mxu0 %v6744
  %8793 = vmatpush.msra.mxu0 %v6743
  %8794 = vmatpush.msra.mxu0 %v6742
  %8795 = vmatpush.msra.mxu0 %v6741
  %8796 = vmatpush.msra.mxu0 %v6740
  %8797 = vmatpush.msra.mxu0 %v6739
  %8798 = vmatpush.msra.mxu0 %v6738
  %8799 = vmatpush.msra.mxu0 %v6737
  %8800 = vmatmul.f32.gmra.mxu0 %v8761
  %v8801 = vpop.f32.mrf.mxu0
  %v8802 = vadd.f32 0.0, %v8801
  %8803 = vmatmul.f32.gmra.mxu0 %v8764
  %v8804 = vpop.f32.mrf.mxu0
  %v8805 = vadd.f32 0.0, %v8804
  %8806 = vmatmul.f32.gmra.mxu0 %v8767
  %v8807 = vpop.f32.mrf.mxu0
  %v8808 = vadd.f32 0.0, %v8807
  %8809 = vmatmul.f32.gmra.mxu0 %v8770
  %v8810 = vpop.f32.mrf.mxu0
  %v8811 = vadd.f32 0.0, %v8810
  %8812 = vmatmul.f32.gmra.mxu0 %v8773
  %v8813 = vpop.f32.mrf.mxu0
  %v8814 = vadd.f32 0.0, %v8813
  %8815 = vmatmul.f32.gmra.mxu0 %v8776
  %v8816 = vpop.f32.mrf.mxu0
  %v8817 = vadd.f32 0.0, %v8816
  %8818 = vmatmul.f32.gmra.mxu0 %v8779
  %v8819 = vpop.f32.mrf.mxu0
  %v8820 = vadd.f32 0.0, %v8819
  %8821 = vmatmul.f32.gmra.mxu0 %v8782
  %v8822 = vpop.f32.mrf.mxu0
  %v8823 = vadd.f32 0.0, %v8822
  %8824 = vdwg.mxu0
  %v8825 = vld [vmem:[%s4] sm:$0xff]
  %s8826 = scalar_lea.vmem %s4, 8
  %v8827 = vld [vmem:[%s8826] sm:$0xff]
  %v8829 = vsel %vm823, %v6852, 0
  %v8832 = vsel %vm823, %v6855, 0
  %v8835 = vsel %vm823, %v6858, 0
  %v8838 = vsel %vm823, %v6861, 0
  %v8841 = vsel %vm823, %v6864, 0
  %v8844 = vsel %vm823, %v6867, 0
  %v8847 = vsel %vm823, %v6870, 0
  %v8850 = vsel %vm823, %v6873, 0
  %v8853 = vsel %vm823, %v7112, 0
  %v8856 = vsel %vm823, %v7115, 0
  %v8859 = vsel %vm823, %v7118, 0
  %v8862 = vsel %vm823, %v7121, 0
  %v8865 = vsel %vm823, %v7124, 0
  %v8868 = vsel %vm823, %v7127, 0
  %v8871 = vsel %vm823, %v7130, 0
  %v8874 = vsel %vm823, %v7133, 0
  %v8877 = vsel %vm823, %v7372, 0
  %v8880 = vsel %vm823, %v7375, 0
  %v8883 = vsel %vm823, %v7378, 0
  %v8886 = vsel %vm823, %v7381, 0
  %v8889 = vsel %vm823, %v7384, 0
  %v8892 = vsel %vm823, %v7387, 0
  %v8895 = vsel %vm823, %v7390, 0
  %v8898 = vsel %vm823, %v7393, 0
  %v8901 = vsel %vm823, %v7632, 0
  %v8904 = vsel %vm823, %v7635, 0
  %v8907 = vsel %vm823, %v7638, 0
  %v8910 = vsel %vm823, %v7641, 0
  %v8913 = vsel %vm823, %v7644, 0
  %v8916 = vsel %vm823, %v7647, 0
  %v8919 = vsel %vm823, %v7650, 0
  %v8922 = vsel %vm823, %v7653, 0
  %v8925 = vsel %vm823, %v7892, 0
  %v8928 = vsel %vm823, %v7895, 0
  %v8931 = vsel %vm823, %v7898, 0
  %v8934 = vsel %vm823, %v7901, 0
  %v8937 = vsel %vm823, %v7904, 0
  %v8940 = vsel %vm823, %v7907, 0
  %v8943 = vsel %vm823, %v7910, 0
  %v8946 = vsel %vm823, %v7913, 0
  %v8949 = vsel %vm823, %v8152, 0
  %v8952 = vsel %vm823, %v8155, 0
  %v8955 = vsel %vm823, %v8158, 0
  %v8958 = vsel %vm823, %v8161, 0
  %v8961 = vsel %vm823, %v8164, 0
  %v8964 = vsel %vm823, %v8167, 0
  %v8967 = vsel %vm823, %v8170, 0
  %v8970 = vsel %vm823, %v8173, 0
  %v8973 = vsel %vm823, %v8412, 0
  %v8976 = vsel %vm823, %v8415, 0
  %v8979 = vsel %vm823, %v8418, 0
  %v8982 = vsel %vm823, %v8421, 0
  %v8985 = vsel %vm823, %v8424, 0
  %v8988 = vsel %vm823, %v8427, 0
  %v8991 = vsel %vm823, %v8430, 0
  %v8994 = vsel %vm823, %v8433, 0
  %v8997 = vsel %vm823, %v8672, 0
  %v9000 = vsel %vm823, %v8675, 0
  %v9003 = vsel %vm823, %v8678, 0
  %v9006 = vsel %vm823, %v8681, 0
  %v9009 = vsel %vm823, %v8684, 0
  %v9012 = vsel %vm823, %v8687, 0
  %v9015 = vsel %vm823, %v8690, 0
  %v9018 = vsel %vm823, %v8693, 0
  %9020 = vmatpush.msra.mxu0 0.0
  %9021 = vmatpush.msra.mxu0 0.0
  %9022 = vmatpush.msra.mxu0 0.0
  %9023 = vmatpush.msra.mxu0 0.0
  %9024 = vmatpush.msra.mxu0 0.0
  %9025 = vmatpush.msra.mxu0 0.0
  %9026 = vmatpush.msra.mxu0 0.0
  %9027 = vmatpush.msra.mxu0 0.0
  %9028 = vmatpush.msra.mxu0 0.0
  %9029 = vmatpush.msra.mxu0 0.0
  %9030 = vmatpush.msra.mxu0 0.0
  %9031 = vmatpush.msra.mxu0 0.0
  %9032 = vmatpush.msra.mxu0 0.0
  %9033 = vmatpush.msra.mxu0 0.0
  %9034 = vmatpush.msra.mxu0 0.0
  %9035 = vmatpush.msra.mxu0 %v8827
  %9036 = vmatmul.f32.gmra.mxu0 %v8829
  %v9037 = vpop.f32.mrf.mxu0
  %v9038 = vadd.f32 0.0, %v9037
  %9039 = vmatmul.f32.gmra.mxu0 %v8832
  %v9040 = vpop.f32.mrf.mxu0
  %v9041 = vadd.f32 0.0, %v9040
  %9042 = vmatmul.f32.gmra.mxu0 %v8835
  %v9043 = vpop.f32.mrf.mxu0
  %v9044 = vadd.f32 0.0, %v9043
  %9045 = vmatmul.f32.gmra.mxu0 %v8838
  %v9046 = vpop.f32.mrf.mxu0
  %v9047 = vadd.f32 0.0, %v9046
  %9048 = vmatmul.f32.gmra.mxu0 %v8841
  %v9049 = vpop.f32.mrf.mxu0
  %v9050 = vadd.f32 0.0, %v9049
  %9051 = vmatmul.f32.gmra.mxu0 %v8844
  %v9052 = vpop.f32.mrf.mxu0
  %v9053 = vadd.f32 0.0, %v9052
  %9054 = vmatmul.f32.gmra.mxu0 %v8847
  %v9055 = vpop.f32.mrf.mxu0
  %v9056 = vadd.f32 0.0, %v9055
  %9057 = vmatmul.f32.gmra.mxu0 %v8850
  %v9058 = vpop.f32.mrf.mxu0
  %v9059 = vadd.f32 0.0, %v9058
  %9060 = vmatmul.f32.gmra.mxu0 %v8853
  %v9061 = vpop.f32.mrf.mxu0
  %v9062 = vadd.f32 0.0, %v9061
  %9063 = vmatmul.f32.gmra.mxu0 %v8856
  %v9064 = vpop.f32.mrf.mxu0
  %v9065 = vadd.f32 0.0, %v9064
  %9066 = vmatmul.f32.gmra.mxu0 %v8859
  %v9067 = vpop.f32.mrf.mxu0
  %v9068 = vadd.f32 0.0, %v9067
  %9069 = vmatmul.f32.gmra.mxu0 %v8862
  %v9070 = vpop.f32.mrf.mxu0
  %v9071 = vadd.f32 0.0, %v9070
  %9072 = vmatmul.f32.gmra.mxu0 %v8865
  %v9073 = vpop.f32.mrf.mxu0
  %v9074 = vadd.f32 0.0, %v9073
  %9075 = vmatmul.f32.gmra.mxu0 %v8868
  %v9076 = vpop.f32.mrf.mxu0
  %v9077 = vadd.f32 0.0, %v9076
  %9078 = vmatmul.f32.gmra.mxu0 %v8871
  %v9079 = vpop.f32.mrf.mxu0
  %v9080 = vadd.f32 0.0, %v9079
  %9081 = vmatmul.f32.gmra.mxu0 %v8874
  %v9082 = vpop.f32.mrf.mxu0
  %v9083 = vadd.f32 0.0, %v9082
  %9084 = vmatmul.f32.gmra.mxu0 %v8877
  %v9085 = vpop.f32.mrf.mxu0
  %v9086 = vadd.f32 0.0, %v9085
  %9087 = vmatmul.f32.gmra.mxu0 %v8880
  %v9088 = vpop.f32.mrf.mxu0
  %v9089 = vadd.f32 0.0, %v9088
  %9090 = vmatmul.f32.gmra.mxu0 %v8883
  %v9091 = vpop.f32.mrf.mxu0
  %v9092 = vadd.f32 0.0, %v9091
  %9093 = vmatmul.f32.gmra.mxu0 %v8886
  %v9094 = vpop.f32.mrf.mxu0
  %v9095 = vadd.f32 0.0, %v9094
  %9096 = vmatmul.f32.gmra.mxu0 %v8889
  %v9097 = vpop.f32.mrf.mxu0
  %v9098 = vadd.f32 0.0, %v9097
  %9099 = vmatmul.f32.gmra.mxu0 %v8892
  %v9100 = vpop.f32.mrf.mxu0
  %v9101 = vadd.f32 0.0, %v9100
  %9102 = vmatmul.f32.gmra.mxu0 %v8895
  %v9103 = vpop.f32.mrf.mxu0
  %v9104 = vadd.f32 0.0, %v9103
  %9105 = vmatmul.f32.gmra.mxu0 %v8898
  %v9106 = vpop.f32.mrf.mxu0
  %v9107 = vadd.f32 0.0, %v9106
  %9108 = vmatmul.f32.gmra.mxu0 %v8901
  %v9109 = vpop.f32.mrf.mxu0
  %v9110 = vadd.f32 0.0, %v9109
  %9111 = vmatmul.f32.gmra.mxu0 %v8904
  %v9112 = vpop.f32.mrf.mxu0
  %v9113 = vadd.f32 0.0, %v9112
  %9114 = vmatmul.f32.gmra.mxu0 %v8907
  %v9115 = vpop.f32.mrf.mxu0
  %v9116 = vadd.f32 0.0, %v9115
  %9117 = vmatmul.f32.gmra.mxu0 %v8910
  %v9118 = vpop.f32.mrf.mxu0
  %v9119 = vadd.f32 0.0, %v9118
  %9120 = vmatmul.f32.gmra.mxu0 %v8913
  %v9121 = vpop.f32.mrf.mxu0
  %v9122 = vadd.f32 0.0, %v9121
  %9123 = vmatmul.f32.gmra.mxu0 %v8916
  %v9124 = vpop.f32.mrf.mxu0
  %v9125 = vadd.f32 0.0, %v9124
  %9126 = vmatmul.f32.gmra.mxu0 %v8919
  %v9127 = vpop.f32.mrf.mxu0
  %v9128 = vadd.f32 0.0, %v9127
  %9129 = vmatmul.f32.gmra.mxu0 %v8922
  %v9130 = vpop.f32.mrf.mxu0
  %v9131 = vadd.f32 0.0, %v9130
  %9132 = vmatmul.f32.gmra.mxu0 %v8925
  %v9133 = vpop.f32.mrf.mxu0
  %v9134 = vadd.f32 0.0, %v9133
  %9135 = vmatmul.f32.gmra.mxu0 %v8928
  %v9136 = vpop.f32.mrf.mxu0
  %v9137 = vadd.f32 0.0, %v9136
  %9138 = vmatmul.f32.gmra.mxu0 %v8931
  %v9139 = vpop.f32.mrf.mxu0
  %v9140 = vadd.f32 0.0, %v9139
  %9141 = vmatmul.f32.gmra.mxu0 %v8934
  %v9142 = vpop.f32.mrf.mxu0
  %v9143 = vadd.f32 0.0, %v9142
  %9144 = vmatmul.f32.gmra.mxu0 %v8937
  %v9145 = vpop.f32.mrf.mxu0
  %v9146 = vadd.f32 0.0, %v9145
  %9147 = vmatmul.f32.gmra.mxu0 %v8940
  %v9148 = vpop.f32.mrf.mxu0
  %v9149 = vadd.f32 0.0, %v9148
  %9150 = vmatmul.f32.gmra.mxu0 %v8943
  %v9151 = vpop.f32.mrf.mxu0
  %v9152 = vadd.f32 0.0, %v9151
  %9153 = vmatmul.f32.gmra.mxu0 %v8946
  %v9154 = vpop.f32.mrf.mxu0
  %v9155 = vadd.f32 0.0, %v9154
  %9156 = vmatmul.f32.gmra.mxu0 %v8949
  %v9157 = vpop.f32.mrf.mxu0
  %v9158 = vadd.f32 0.0, %v9157
  %9159 = vmatmul.f32.gmra.mxu0 %v8952
  %v9160 = vpop.f32.mrf.mxu0
  %v9161 = vadd.f32 0.0, %v9160
  %9162 = vmatmul.f32.gmra.mxu0 %v8955
  %v9163 = vpop.f32.mrf.mxu0
  %v9164 = vadd.f32 0.0, %v9163
  %9165 = vmatmul.f32.gmra.mxu0 %v8958
  %v9166 = vpop.f32.mrf.mxu0
  %v9167 = vadd.f32 0.0, %v9166
  %9168 = vmatmul.f32.gmra.mxu0 %v8961
  %v9169 = vpop.f32.mrf.mxu0
  %v9170 = vadd.f32 0.0, %v9169
  %9171 = vmatmul.f32.gmra.mxu0 %v8964
  %v9172 = vpop.f32.mrf.mxu0
  %v9173 = vadd.f32 0.0, %v9172
  %9174 = vmatmul.f32.gmra.mxu0 %v8967
  %v9175 = vpop.f32.mrf.mxu0
  %v9176 = vadd.f32 0.0, %v9175
  %9177 = vmatmul.f32.gmra.mxu0 %v8970
  %v9178 = vpop.f32.mrf.mxu0
  %v9179 = vadd.f32 0.0, %v9178
  %9180 = vmatmul.f32.gmra.mxu0 %v8973
  %v9181 = vpop.f32.mrf.mxu0
  %v9182 = vadd.f32 0.0, %v9181
  %9183 = vmatmul.f32.gmra.mxu0 %v8976
  %v9184 = vpop.f32.mrf.mxu0
  %v9185 = vadd.f32 0.0, %v9184
  %9186 = vmatmul.f32.gmra.mxu0 %v8979
  %v9187 = vpop.f32.mrf.mxu0
  %v9188 = vadd.f32 0.0, %v9187
  %9189 = vmatmul.f32.gmra.mxu0 %v8982
  %v9190 = vpop.f32.mrf.mxu0
  %v9191 = vadd.f32 0.0, %v9190
  %9192 = vmatmul.f32.gmra.mxu0 %v8985
  %v9193 = vpop.f32.mrf.mxu0
  %v9194 = vadd.f32 0.0, %v9193
  %9195 = vmatmul.f32.gmra.mxu0 %v8988
  %v9196 = vpop.f32.mrf.mxu0
  %v9197 = vadd.f32 0.0, %v9196
  %9198 = vmatmul.f32.gmra.mxu0 %v8991
  %v9199 = vpop.f32.mrf.mxu0
  %v9200 = vadd.f32 0.0, %v9199
  %9201 = vmatmul.f32.gmra.mxu0 %v8994
  %v9202 = vpop.f32.mrf.mxu0
  %v9203 = vadd.f32 0.0, %v9202
  %9204 = vmatmul.f32.gmra.mxu0 %v8997
  %v9205 = vpop.f32.mrf.mxu0
  %v9206 = vadd.f32 0.0, %v9205
  %9207 = vmatmul.f32.gmra.mxu0 %v9000
  %v9208 = vpop.f32.mrf.mxu0
  %v9209 = vadd.f32 0.0, %v9208
  %9210 = vmatmul.f32.gmra.mxu0 %v9003
  %v9211 = vpop.f32.mrf.mxu0
  %v9212 = vadd.f32 0.0, %v9211
  %9213 = vmatmul.f32.gmra.mxu0 %v9006
  %v9214 = vpop.f32.mrf.mxu0
  %v9215 = vadd.f32 0.0, %v9214
  %9216 = vmatmul.f32.gmra.mxu0 %v9009
  %v9217 = vpop.f32.mrf.mxu0
  %v9218 = vadd.f32 0.0, %v9217
  %9219 = vmatmul.f32.gmra.mxu0 %v9012
  %v9220 = vpop.f32.mrf.mxu0
  %v9221 = vadd.f32 0.0, %v9220
  %9222 = vmatmul.f32.gmra.mxu0 %v9015
  %v9223 = vpop.f32.mrf.mxu0
  %v9224 = vadd.f32 0.0, %v9223
  %9225 = vmatmul.f32.gmra.mxu0 %v9018
  %v9226 = vpop.f32.mrf.mxu0
  %v9227 = vadd.f32 0.0, %v9226
  %9228 = vdwg.mxu0
  %v9230 = vsel %vm823, %v6787, 0
  %v9233 = vsel %vm823, %v6790, 0
  %v9236 = vsel %vm823, %v6793, 0
  %v9239 = vsel %vm823, %v6796, 0
  %v9242 = vsel %vm823, %v6799, 0
  %v9245 = vsel %vm823, %v6802, 0
  %v9248 = vsel %vm823, %v6805, 0
  %v9251 = vsel %vm823, %v6808, 0
  %v9254 = vsel %vm823, %v7047, 0
  %v9257 = vsel %vm823, %v7050, 0
  %v9260 = vsel %vm823, %v7053, 0
  %v9263 = vsel %vm823, %v7056, 0
  %v9266 = vsel %vm823, %v7059, 0
  %v9269 = vsel %vm823, %v7062, 0
  %v9272 = vsel %vm823, %v7065, 0
  %v9275 = vsel %vm823, %v7068, 0
  %v9278 = vsel %vm823, %v7307, 0
  %v9281 = vsel %vm823, %v7310, 0
  %v9284 = vsel %vm823, %v7313, 0
  %v9287 = vsel %vm823, %v7316, 0
  %v9290 = vsel %vm823, %v7319, 0
  %v9293 = vsel %vm823, %v7322, 0
  %v9296 = vsel %vm823, %v7325, 0
  %v9299 = vsel %vm823, %v7328, 0
  %v9302 = vsel %vm823, %v7567, 0
  %v9305 = vsel %vm823, %v7570, 0
  %v9308 = vsel %vm823, %v7573, 0
  %v9311 = vsel %vm823, %v7576, 0
  %v9314 = vsel %vm823, %v7579, 0
  %v9317 = vsel %vm823, %v7582, 0
  %v9320 = vsel %vm823, %v7585, 0
  %v9323 = vsel %vm823, %v7588, 0
  %v9326 = vsel %vm823, %v7827, 0
  %v9329 = vsel %vm823, %v7830, 0
  %v9332 = vsel %vm823, %v7833, 0
  %v9335 = vsel %vm823, %v7836, 0
  %v9338 = vsel %vm823, %v7839, 0
  %v9341 = vsel %vm823, %v7842, 0
  %v9344 = vsel %vm823, %v7845, 0
  %v9347 = vsel %vm823, %v7848, 0
  %v9350 = vsel %vm823, %v8087, 0
  %v9353 = vsel %vm823, %v8090, 0
  %v9356 = vsel %vm823, %v8093, 0
  %v9359 = vsel %vm823, %v8096, 0
  %v9362 = vsel %vm823, %v8099, 0
  %v9365 = vsel %vm823, %v8102, 0
  %v9368 = vsel %vm823, %v8105, 0
  %v9371 = vsel %vm823, %v8108, 0
  %v9374 = vsel %vm823, %v8347, 0
  %v9377 = vsel %vm823, %v8350, 0
  %v9380 = vsel %vm823, %v8353, 0
  %v9383 = vsel %vm823, %v8356, 0
  %v9386 = vsel %vm823, %v8359, 0
  %v9389 = vsel %vm823, %v8362, 0
  %v9392 = vsel %vm823, %v8365, 0
  %v9395 = vsel %vm823, %v8368, 0
  %v9398 = vsel %vm823, %v8607, 0
  %v9401 = vsel %vm823, %v8610, 0
  %v9404 = vsel %vm823, %v8613, 0
  %v9407 = vsel %vm823, %v8616, 0
  %v9410 = vsel %vm823, %v8619, 0
  %v9413 = vsel %vm823, %v8622, 0
  %v9416 = vsel %vm823, %v8625, 0
  %v9419 = vsel %vm823, %v8628, 0
  %9421 = vmatpush.msra.mxu0 0.0
  %9422 = vmatpush.msra.mxu0 0.0
  %9423 = vmatpush.msra.mxu0 0.0
  %9424 = vmatpush.msra.mxu0 0.0
  %9425 = vmatpush.msra.mxu0 0.0
  %9426 = vmatpush.msra.mxu0 0.0
  %9427 = vmatpush.msra.mxu0 0.0
  %9428 = vmatpush.msra.mxu0 0.0
  %9429 = vmatpush.msra.mxu0 0.0
  %9430 = vmatpush.msra.mxu0 0.0
  %9431 = vmatpush.msra.mxu0 0.0
  %9432 = vmatpush.msra.mxu0 0.0
  %9433 = vmatpush.msra.mxu0 0.0
  %9434 = vmatpush.msra.mxu0 0.0
  %9435 = vmatpush.msra.mxu0 0.0
  %9436 = vmatpush.msra.mxu0 %v8825
  %9437 = vmatmul.f32.gmra.mxu0 %v9230
  %v9438 = vpop.f32.mrf.mxu0
  %v9439 = vadd.f32 %v9038, %v9438
  %9440 = vmatmul.f32.gmra.mxu0 %v9233
  %v9441 = vpop.f32.mrf.mxu0
  %v9442 = vadd.f32 %v9041, %v9441
  %9443 = vmatmul.f32.gmra.mxu0 %v9236
  %v9444 = vpop.f32.mrf.mxu0
  %v9445 = vadd.f32 %v9044, %v9444
  %9446 = vmatmul.f32.gmra.mxu0 %v9239
  %v9447 = vpop.f32.mrf.mxu0
  %v9448 = vadd.f32 %v9047, %v9447
  %9449 = vmatmul.f32.gmra.mxu0 %v9242
  %v9450 = vpop.f32.mrf.mxu0
  %v9451 = vadd.f32 %v9050, %v9450
  %9452 = vmatmul.f32.gmra.mxu0 %v9245
  %v9453 = vpop.f32.mrf.mxu0
  %v9454 = vadd.f32 %v9053, %v9453
  %9455 = vmatmul.f32.gmra.mxu0 %v9248
  %v9456 = vpop.f32.mrf.mxu0
  %v9457 = vadd.f32 %v9056, %v9456
  %9458 = vmatmul.f32.gmra.mxu0 %v9251
  %v9459 = vpop.f32.mrf.mxu0
  %v9460 = vadd.f32 %v9059, %v9459
  %9461 = vmatmul.f32.gmra.mxu0 %v9254
  %v9462 = vpop.f32.mrf.mxu0
  %v9463 = vadd.f32 %v9062, %v9462
  %9464 = vmatmul.f32.gmra.mxu0 %v9257
  %v9465 = vpop.f32.mrf.mxu0
  %v9466 = vadd.f32 %v9065, %v9465
  %9467 = vmatmul.f32.gmra.mxu0 %v9260
  %v9468 = vpop.f32.mrf.mxu0
  %v9469 = vadd.f32 %v9068, %v9468
  %9470 = vmatmul.f32.gmra.mxu0 %v9263
  %v9471 = vpop.f32.mrf.mxu0
  %v9472 = vadd.f32 %v9071, %v9471
  %9473 = vmatmul.f32.gmra.mxu0 %v9266
  %v9474 = vpop.f32.mrf.mxu0
  %v9475 = vadd.f32 %v9074, %v9474
  %9476 = vmatmul.f32.gmra.mxu0 %v9269
  %v9477 = vpop.f32.mrf.mxu0
  %v9478 = vadd.f32 %v9077, %v9477
  %9479 = vmatmul.f32.gmra.mxu0 %v9272
  %v9480 = vpop.f32.mrf.mxu0
  %v9481 = vadd.f32 %v9080, %v9480
  %9482 = vmatmul.f32.gmra.mxu0 %v9275
  %v9483 = vpop.f32.mrf.mxu0
  %v9484 = vadd.f32 %v9083, %v9483
  %9485 = vmatmul.f32.gmra.mxu0 %v9278
  %v9486 = vpop.f32.mrf.mxu0
  %v9487 = vadd.f32 %v9086, %v9486
  %9488 = vmatmul.f32.gmra.mxu0 %v9281
  %v9489 = vpop.f32.mrf.mxu0
  %v9490 = vadd.f32 %v9089, %v9489
  %9491 = vmatmul.f32.gmra.mxu0 %v9284
  %v9492 = vpop.f32.mrf.mxu0
  %v9493 = vadd.f32 %v9092, %v9492
  %9494 = vmatmul.f32.gmra.mxu0 %v9287
  %v9495 = vpop.f32.mrf.mxu0
  %v9496 = vadd.f32 %v9095, %v9495
  %9497 = vmatmul.f32.gmra.mxu0 %v9290
  %v9498 = vpop.f32.mrf.mxu0
  %v9499 = vadd.f32 %v9098, %v9498
  %9500 = vmatmul.f32.gmra.mxu0 %v9293
  %v9501 = vpop.f32.mrf.mxu0
  %v9502 = vadd.f32 %v9101, %v9501
  %9503 = vmatmul.f32.gmra.mxu0 %v9296
  %v9504 = vpop.f32.mrf.mxu0
  %v9505 = vadd.f32 %v9104, %v9504
  %9506 = vmatmul.f32.gmra.mxu0 %v9299
  %v9507 = vpop.f32.mrf.mxu0
  %v9508 = vadd.f32 %v9107, %v9507
  %9509 = vmatmul.f32.gmra.mxu0 %v9302
  %v9510 = vpop.f32.mrf.mxu0
  %v9511 = vadd.f32 %v9110, %v9510
  %9512 = vmatmul.f32.gmra.mxu0 %v9305
  %v9513 = vpop.f32.mrf.mxu0
  %v9514 = vadd.f32 %v9113, %v9513
  %9515 = vmatmul.f32.gmra.mxu0 %v9308
  %v9516 = vpop.f32.mrf.mxu0
  %v9517 = vadd.f32 %v9116, %v9516
  %9518 = vmatmul.f32.gmra.mxu0 %v9311
  %v9519 = vpop.f32.mrf.mxu0
  %v9520 = vadd.f32 %v9119, %v9519
  %9521 = vmatmul.f32.gmra.mxu0 %v9314
  %v9522 = vpop.f32.mrf.mxu0
  %v9523 = vadd.f32 %v9122, %v9522
  %9524 = vmatmul.f32.gmra.mxu0 %v9317
  %v9525 = vpop.f32.mrf.mxu0
  %v9526 = vadd.f32 %v9125, %v9525
  %9527 = vmatmul.f32.gmra.mxu0 %v9320
  %v9528 = vpop.f32.mrf.mxu0
  %v9529 = vadd.f32 %v9128, %v9528
  %9530 = vmatmul.f32.gmra.mxu0 %v9323
  %v9531 = vpop.f32.mrf.mxu0
  %v9532 = vadd.f32 %v9131, %v9531
  %9533 = vmatmul.f32.gmra.mxu0 %v9326
  %v9534 = vpop.f32.mrf.mxu0
  %v9535 = vadd.f32 %v9134, %v9534
  %9536 = vmatmul.f32.gmra.mxu0 %v9329
  %v9537 = vpop.f32.mrf.mxu0
  %v9538 = vadd.f32 %v9137, %v9537
  %9539 = vmatmul.f32.gmra.mxu0 %v9332
  %v9540 = vpop.f32.mrf.mxu0
  %v9541 = vadd.f32 %v9140, %v9540
  %9542 = vmatmul.f32.gmra.mxu0 %v9335
  %v9543 = vpop.f32.mrf.mxu0
  %v9544 = vadd.f32 %v9143, %v9543
  %9545 = vmatmul.f32.gmra.mxu0 %v9338
  %v9546 = vpop.f32.mrf.mxu0
  %v9547 = vadd.f32 %v9146, %v9546
  %9548 = vmatmul.f32.gmra.mxu0 %v9341
  %v9549 = vpop.f32.mrf.mxu0
  %v9550 = vadd.f32 %v9149, %v9549
  %9551 = vmatmul.f32.gmra.mxu0 %v9344
  %v9552 = vpop.f32.mrf.mxu0
  %v9553 = vadd.f32 %v9152, %v9552
  %9554 = vmatmul.f32.gmra.mxu0 %v9347
  %v9555 = vpop.f32.mrf.mxu0
  %v9556 = vadd.f32 %v9155, %v9555
  %9557 = vmatmul.f32.gmra.mxu0 %v9350
  %v9558 = vpop.f32.mrf.mxu0
  %v9559 = vadd.f32 %v9158, %v9558
  %9560 = vmatmul.f32.gmra.mxu0 %v9353
  %v9561 = vpop.f32.mrf.mxu0
  %v9562 = vadd.f32 %v9161, %v9561
  %9563 = vmatmul.f32.gmra.mxu0 %v9356
  %v9564 = vpop.f32.mrf.mxu0
  %v9565 = vadd.f32 %v9164, %v9564
  %9566 = vmatmul.f32.gmra.mxu0 %v9359
  %v9567 = vpop.f32.mrf.mxu0
  %v9568 = vadd.f32 %v9167, %v9567
  %9569 = vmatmul.f32.gmra.mxu0 %v9362
  %v9570 = vpop.f32.mrf.mxu0
  %v9571 = vadd.f32 %v9170, %v9570
  %9572 = vmatmul.f32.gmra.mxu0 %v9365
  %v9573 = vpop.f32.mrf.mxu0
  %v9574 = vadd.f32 %v9173, %v9573
  %9575 = vmatmul.f32.gmra.mxu0 %v9368
  %v9576 = vpop.f32.mrf.mxu0
  %v9577 = vadd.f32 %v9176, %v9576
  %9578 = vmatmul.f32.gmra.mxu0 %v9371
  %v9579 = vpop.f32.mrf.mxu0
  %v9580 = vadd.f32 %v9179, %v9579
  %9581 = vmatmul.f32.gmra.mxu0 %v9374
  %v9582 = vpop.f32.mrf.mxu0
  %v9583 = vadd.f32 %v9182, %v9582
  %9584 = vmatmul.f32.gmra.mxu0 %v9377
  %v9585 = vpop.f32.mrf.mxu0
  %v9586 = vadd.f32 %v9185, %v9585
  %9587 = vmatmul.f32.gmra.mxu0 %v9380
  %v9588 = vpop.f32.mrf.mxu0
  %v9589 = vadd.f32 %v9188, %v9588
  %9590 = vmatmul.f32.gmra.mxu0 %v9383
  %v9591 = vpop.f32.mrf.mxu0
  %v9592 = vadd.f32 %v9191, %v9591
  %9593 = vmatmul.f32.gmra.mxu0 %v9386
  %v9594 = vpop.f32.mrf.mxu0
  %v9595 = vadd.f32 %v9194, %v9594
  %9596 = vmatmul.f32.gmra.mxu0 %v9389
  %v9597 = vpop.f32.mrf.mxu0
  %v9598 = vadd.f32 %v9197, %v9597
  %9599 = vmatmul.f32.gmra.mxu0 %v9392
  %v9600 = vpop.f32.mrf.mxu0
  %v9601 = vadd.f32 %v9200, %v9600
  %9602 = vmatmul.f32.gmra.mxu0 %v9395
  %v9603 = vpop.f32.mrf.mxu0
  %v9604 = vadd.f32 %v9203, %v9603
  %9605 = vmatmul.f32.gmra.mxu0 %v9398
  %v9606 = vpop.f32.mrf.mxu0
  %v9607 = vadd.f32 %v9206, %v9606
  %9608 = vmatmul.f32.gmra.mxu0 %v9401
  %v9609 = vpop.f32.mrf.mxu0
  %v9610 = vadd.f32 %v9209, %v9609
  %9611 = vmatmul.f32.gmra.mxu0 %v9404
  %v9612 = vpop.f32.mrf.mxu0
  %v9613 = vadd.f32 %v9212, %v9612
  %9614 = vmatmul.f32.gmra.mxu0 %v9407
  %v9615 = vpop.f32.mrf.mxu0
  %v9616 = vadd.f32 %v9215, %v9615
  %9617 = vmatmul.f32.gmra.mxu0 %v9410
  %v9618 = vpop.f32.mrf.mxu0
  %v9619 = vadd.f32 %v9218, %v9618
  %9620 = vmatmul.f32.gmra.mxu0 %v9413
  %v9621 = vpop.f32.mrf.mxu0
  %v9622 = vadd.f32 %v9221, %v9621
  %9623 = vmatmul.f32.gmra.mxu0 %v9416
  %v9624 = vpop.f32.mrf.mxu0
  %v9625 = vadd.f32 %v9224, %v9624
  %9626 = vmatmul.f32.gmra.mxu0 %v9419
  %v9627 = vpop.f32.mrf.mxu0
  %v9628 = vadd.f32 %v9227, %v9627
  %9629 = vdwg.mxu0
  %s9630 = scalar_lea.vmem %s4, 16
  %v9631 = vld [vmem:[%s9630] sm:$0xff]
  %v9633 = vsel %vm823, %v6917, 0
  %v9636 = vsel %vm823, %v6920, 0
  %v9639 = vsel %vm823, %v6923, 0
  %v9642 = vsel %vm823, %v6926, 0
  %v9645 = vsel %vm823, %v6929, 0
  %v9648 = vsel %vm823, %v6932, 0
  %v9651 = vsel %vm823, %v6935, 0
  %v9654 = vsel %vm823, %v6938, 0
  %v9657 = vsel %vm823, %v7177, 0
  %v9660 = vsel %vm823, %v7180, 0
  %v9663 = vsel %vm823, %v7183, 0
  %v9666 = vsel %vm823, %v7186, 0
  %v9669 = vsel %vm823, %v7189, 0
  %v9672 = vsel %vm823, %v7192, 0
  %v9675 = vsel %vm823, %v7195, 0
  %v9678 = vsel %vm823, %v7198, 0
  %v9681 = vsel %vm823, %v7437, 0
  %v9684 = vsel %vm823, %v7440, 0
  %v9687 = vsel %vm823, %v7443, 0
  %v9690 = vsel %vm823, %v7446, 0
  %v9693 = vsel %vm823, %v7449, 0
  %v9696 = vsel %vm823, %v7452, 0
  %v9699 = vsel %vm823, %v7455, 0
  %v9702 = vsel %vm823, %v7458, 0
  %v9705 = vsel %vm823, %v7697, 0
  %v9708 = vsel %vm823, %v7700, 0
  %v9711 = vsel %vm823, %v7703, 0
  %v9714 = vsel %vm823, %v7706, 0
  %v9717 = vsel %vm823, %v7709, 0
  %v9720 = vsel %vm823, %v7712, 0
  %v9723 = vsel %vm823, %v7715, 0
  %v9726 = vsel %vm823, %v7718, 0
  %v9729 = vsel %vm823, %v7957, 0
  %v9732 = vsel %vm823, %v7960, 0
  %v9735 = vsel %vm823, %v7963, 0
  %v9738 = vsel %vm823, %v7966, 0
  %v9741 = vsel %vm823, %v7969, 0
  %v9744 = vsel %vm823, %v7972, 0
  %v9747 = vsel %vm823, %v7975, 0
  %v9750 = vsel %vm823, %v7978, 0
  %v9753 = vsel %vm823, %v8217, 0
  %v9756 = vsel %vm823, %v8220, 0
  %v9759 = vsel %vm823, %v8223, 0
  %v9762 = vsel %vm823, %v8226, 0
  %v9765 = vsel %vm823, %v8229, 0
  %v9768 = vsel %vm823, %v8232, 0
  %v9771 = vsel %vm823, %v8235, 0
  %v9774 = vsel %vm823, %v8238, 0
  %v9777 = vsel %vm823, %v8477, 0
  %v9780 = vsel %vm823, %v8480, 0
  %v9783 = vsel %vm823, %v8483, 0
  %v9786 = vsel %vm823, %v8486, 0
  %v9789 = vsel %vm823, %v8489, 0
  %v9792 = vsel %vm823, %v8492, 0
  %v9795 = vsel %vm823, %v8495, 0
  %v9798 = vsel %vm823, %v8498, 0
  %v9801 = vsel %vm823, %v8737, 0
  %v9804 = vsel %vm823, %v8740, 0
  %v9807 = vsel %vm823, %v8743, 0
  %v9810 = vsel %vm823, %v8746, 0
  %v9813 = vsel %vm823, %v8749, 0
  %v9816 = vsel %vm823, %v8752, 0
  %v9819 = vsel %vm823, %v8755, 0
  %v9822 = vsel %vm823, %v8758, 0
  %9824 = vmatpush.msra.mxu0 0.0
  %9825 = vmatpush.msra.mxu0 0.0
  %9826 = vmatpush.msra.mxu0 0.0
  %9827 = vmatpush.msra.mxu0 0.0
  %9828 = vmatpush.msra.mxu0 0.0
  %9829 = vmatpush.msra.mxu0 0.0
  %9830 = vmatpush.msra.mxu0 0.0
  %9831 = vmatpush.msra.mxu0 0.0
  %9832 = vmatpush.msra.mxu0 0.0
  %9833 = vmatpush.msra.mxu0 0.0
  %9834 = vmatpush.msra.mxu0 0.0
  %9835 = vmatpush.msra.mxu0 0.0
  %9836 = vmatpush.msra.mxu0 0.0
  %9837 = vmatpush.msra.mxu0 0.0
  %9838 = vmatpush.msra.mxu0 0.0
  %9839 = vmatpush.msra.mxu0 %v9631
  %9840 = vmatmul.f32.gmra.mxu0 %v9633
  %v9841 = vpop.f32.mrf.mxu0
  %v9842 = vadd.f32 0.0, %v9841
  %9843 = vmatmul.f32.gmra.mxu0 %v9636
  %v9844 = vpop.f32.mrf.mxu0
  %v9845 = vadd.f32 0.0, %v9844
  %9846 = vmatmul.f32.gmra.mxu0 %v9639
  %v9847 = vpop.f32.mrf.mxu0
  %v9848 = vadd.f32 0.0, %v9847
  %9849 = vmatmul.f32.gmra.mxu0 %v9642
  %v9850 = vpop.f32.mrf.mxu0
  %v9851 = vadd.f32 0.0, %v9850
  %9852 = vmatmul.f32.gmra.mxu0 %v9645
  %v9853 = vpop.f32.mrf.mxu0
  %v9854 = vadd.f32 0.0, %v9853
  %9855 = vmatmul.f32.gmra.mxu0 %v9648
  %v9856 = vpop.f32.mrf.mxu0
  %v9857 = vadd.f32 0.0, %v9856
  %9858 = vmatmul.f32.gmra.mxu0 %v9651
  %v9859 = vpop.f32.mrf.mxu0
  %v9860 = vadd.f32 0.0, %v9859
  %9861 = vmatmul.f32.gmra.mxu0 %v9654
  %v9862 = vpop.f32.mrf.mxu0
  %v9863 = vadd.f32 0.0, %v9862
  %9864 = vmatmul.f32.gmra.mxu0 %v9657
  %v9865 = vpop.f32.mrf.mxu0
  %v9866 = vadd.f32 0.0, %v9865
  %9867 = vmatmul.f32.gmra.mxu0 %v9660
  %v9868 = vpop.f32.mrf.mxu0
  %v9869 = vadd.f32 0.0, %v9868
  %9870 = vmatmul.f32.gmra.mxu0 %v9663
  %v9871 = vpop.f32.mrf.mxu0
  %v9872 = vadd.f32 0.0, %v9871
  %9873 = vmatmul.f32.gmra.mxu0 %v9666
  %v9874 = vpop.f32.mrf.mxu0
  %v9875 = vadd.f32 0.0, %v9874
  %9876 = vmatmul.f32.gmra.mxu0 %v9669
  %v9877 = vpop.f32.mrf.mxu0
  %v9878 = vadd.f32 0.0, %v9877
  %9879 = vmatmul.f32.gmra.mxu0 %v9672
  %v9880 = vpop.f32.mrf.mxu0
  %v9881 = vadd.f32 0.0, %v9880
  %9882 = vmatmul.f32.gmra.mxu0 %v9675
  %v9883 = vpop.f32.mrf.mxu0
  %v9884 = vadd.f32 0.0, %v9883
  %9885 = vmatmul.f32.gmra.mxu0 %v9678
  %v9886 = vpop.f32.mrf.mxu0
  %v9887 = vadd.f32 0.0, %v9886
  %9888 = vmatmul.f32.gmra.mxu0 %v9681
  %v9889 = vpop.f32.mrf.mxu0
  %v9890 = vadd.f32 0.0, %v9889
  %9891 = vmatmul.f32.gmra.mxu0 %v9684
  %v9892 = vpop.f32.mrf.mxu0
  %v9893 = vadd.f32 0.0, %v9892
  %9894 = vmatmul.f32.gmra.mxu0 %v9687
  %v9895 = vpop.f32.mrf.mxu0
  %v9896 = vadd.f32 0.0, %v9895
  %9897 = vmatmul.f32.gmra.mxu0 %v9690
  %v9898 = vpop.f32.mrf.mxu0
  %v9899 = vadd.f32 0.0, %v9898
  %9900 = vmatmul.f32.gmra.mxu0 %v9693
  %v9901 = vpop.f32.mrf.mxu0
  %v9902 = vadd.f32 0.0, %v9901
  %9903 = vmatmul.f32.gmra.mxu0 %v9696
  %v9904 = vpop.f32.mrf.mxu0
  %v9905 = vadd.f32 0.0, %v9904
  %9906 = vmatmul.f32.gmra.mxu0 %v9699
  %v9907 = vpop.f32.mrf.mxu0
  %v9908 = vadd.f32 0.0, %v9907
  %9909 = vmatmul.f32.gmra.mxu0 %v9702
  %v9910 = vpop.f32.mrf.mxu0
  %v9911 = vadd.f32 0.0, %v9910
  %9912 = vmatmul.f32.gmra.mxu0 %v9705
  %v9913 = vpop.f32.mrf.mxu0
  %v9914 = vadd.f32 0.0, %v9913
  %9915 = vmatmul.f32.gmra.mxu0 %v9708
  %v9916 = vpop.f32.mrf.mxu0
  %v9917 = vadd.f32 0.0, %v9916
  %9918 = vmatmul.f32.gmra.mxu0 %v9711
  %v9919 = vpop.f32.mrf.mxu0
  %v9920 = vadd.f32 0.0, %v9919
  %9921 = vmatmul.f32.gmra.mxu0 %v9714
  %v9922 = vpop.f32.mrf.mxu0
  %v9923 = vadd.f32 0.0, %v9922
  %9924 = vmatmul.f32.gmra.mxu0 %v9717
  %v9925 = vpop.f32.mrf.mxu0
  %v9926 = vadd.f32 0.0, %v9925
  %9927 = vmatmul.f32.gmra.mxu0 %v9720
  %v9928 = vpop.f32.mrf.mxu0
  %v9929 = vadd.f32 0.0, %v9928
  %9930 = vmatmul.f32.gmra.mxu0 %v9723
  %v9931 = vpop.f32.mrf.mxu0
  %v9932 = vadd.f32 0.0, %v9931
  %9933 = vmatmul.f32.gmra.mxu0 %v9726
  %v9934 = vpop.f32.mrf.mxu0
  %v9935 = vadd.f32 0.0, %v9934
  %9936 = vmatmul.f32.gmra.mxu0 %v9729
  %v9937 = vpop.f32.mrf.mxu0
  %v9938 = vadd.f32 0.0, %v9937
  %9939 = vmatmul.f32.gmra.mxu0 %v9732
  %v9940 = vpop.f32.mrf.mxu0
  %v9941 = vadd.f32 0.0, %v9940
  %9942 = vmatmul.f32.gmra.mxu0 %v9735
  %v9943 = vpop.f32.mrf.mxu0
  %v9944 = vadd.f32 0.0, %v9943
  %9945 = vmatmul.f32.gmra.mxu0 %v9738
  %v9946 = vpop.f32.mrf.mxu0
  %v9947 = vadd.f32 0.0, %v9946
  %9948 = vmatmul.f32.gmra.mxu0 %v9741
  %v9949 = vpop.f32.mrf.mxu0
  %v9950 = vadd.f32 0.0, %v9949
  %9951 = vmatmul.f32.gmra.mxu0 %v9744
  %v9952 = vpop.f32.mrf.mxu0
  %v9953 = vadd.f32 0.0, %v9952
  %9954 = vmatmul.f32.gmra.mxu0 %v9747
  %v9955 = vpop.f32.mrf.mxu0
  %v9956 = vadd.f32 0.0, %v9955
  %9957 = vmatmul.f32.gmra.mxu0 %v9750
  %v9958 = vpop.f32.mrf.mxu0
  %v9959 = vadd.f32 0.0, %v9958
  %9960 = vmatmul.f32.gmra.mxu0 %v9753
  %v9961 = vpop.f32.mrf.mxu0
  %v9962 = vadd.f32 0.0, %v9961
  %9963 = vmatmul.f32.gmra.mxu0 %v9756
  %v9964 = vpop.f32.mrf.mxu0
  %v9965 = vadd.f32 0.0, %v9964
  %9966 = vmatmul.f32.gmra.mxu0 %v9759
  %v9967 = vpop.f32.mrf.mxu0
  %v9968 = vadd.f32 0.0, %v9967
  %9969 = vmatmul.f32.gmra.mxu0 %v9762
  %v9970 = vpop.f32.mrf.mxu0
  %v9971 = vadd.f32 0.0, %v9970
  %9972 = vmatmul.f32.gmra.mxu0 %v9765
  %v9973 = vpop.f32.mrf.mxu0
  %v9974 = vadd.f32 0.0, %v9973
  %9975 = vmatmul.f32.gmra.mxu0 %v9768
  %v9976 = vpop.f32.mrf.mxu0
  %v9977 = vadd.f32 0.0, %v9976
  %9978 = vmatmul.f32.gmra.mxu0 %v9771
  %v9979 = vpop.f32.mrf.mxu0
  %v9980 = vadd.f32 0.0, %v9979
  %9981 = vmatmul.f32.gmra.mxu0 %v9774
  %v9982 = vpop.f32.mrf.mxu0
  %v9983 = vadd.f32 0.0, %v9982
  %9984 = vmatmul.f32.gmra.mxu0 %v9777
  %v9985 = vpop.f32.mrf.mxu0
  %v9986 = vadd.f32 0.0, %v9985
  %9987 = vmatmul.f32.gmra.mxu0 %v9780
  %v9988 = vpop.f32.mrf.mxu0
  %v9989 = vadd.f32 0.0, %v9988
  %9990 = vmatmul.f32.gmra.mxu0 %v9783
  %v9991 = vpop.f32.mrf.mxu0
  %v9992 = vadd.f32 0.0, %v9991
  %9993 = vmatmul.f32.gmra.mxu0 %v9786
  %v9994 = vpop.f32.mrf.mxu0
  %v9995 = vadd.f32 0.0, %v9994
  %9996 = vmatmul.f32.gmra.mxu0 %v9789
  %v9997 = vpop.f32.mrf.mxu0
  %v9998 = vadd.f32 0.0, %v9997
  %9999 = vmatmul.f32.gmra.mxu0 %v9792
  %v10000 = vpop.f32.mrf.mxu0
  %v10001 = vadd.f32 0.0, %v10000
  %10002 = vmatmul.f32.gmra.mxu0 %v9795
  %v10003 = vpop.f32.mrf.mxu0
  %v10004 = vadd.f32 0.0, %v10003
  %10005 = vmatmul.f32.gmra.mxu0 %v9798
  %v10006 = vpop.f32.mrf.mxu0
  %v10007 = vadd.f32 0.0, %v10006
  %10008 = vmatmul.f32.gmra.mxu0 %v9801
  %v10009 = vpop.f32.mrf.mxu0
  %v10010 = vadd.f32 0.0, %v10009
  %10011 = vmatmul.f32.gmra.mxu0 %v9804
  %v10012 = vpop.f32.mrf.mxu0
  %v10013 = vadd.f32 0.0, %v10012
  %10014 = vmatmul.f32.gmra.mxu0 %v9807
  %v10015 = vpop.f32.mrf.mxu0
  %v10016 = vadd.f32 0.0, %v10015
  %10017 = vmatmul.f32.gmra.mxu0 %v9810
  %v10018 = vpop.f32.mrf.mxu0
  %v10019 = vadd.f32 0.0, %v10018
  %10020 = vmatmul.f32.gmra.mxu0 %v9813
  %v10021 = vpop.f32.mrf.mxu0
  %v10022 = vadd.f32 0.0, %v10021
  %10023 = vmatmul.f32.gmra.mxu0 %v9816
  %v10024 = vpop.f32.mrf.mxu0
  %v10025 = vadd.f32 0.0, %v10024
  %10026 = vmatmul.f32.gmra.mxu0 %v9819
  %v10027 = vpop.f32.mrf.mxu0
  %v10028 = vadd.f32 0.0, %v10027
  %10029 = vmatmul.f32.gmra.mxu0 %v9822
  %v10030 = vpop.f32.mrf.mxu0
  %v10031 = vadd.f32 0.0, %v10030
  %10032 = vdwg.mxu0
  %v10033 = vadd.f32 %v9439, %v9842
  %v10034 = vadd.f32 %v9442, %v9845
  %v10035 = vadd.f32 %v9445, %v9848
  %v10036 = vadd.f32 %v9448, %v9851
  %v10037 = vadd.f32 %v9451, %v9854
  %v10038 = vadd.f32 %v9454, %v9857
  %v10039 = vadd.f32 %v9457, %v9860
  %v10040 = vadd.f32 %v9460, %v9863
  %v10041 = vadd.f32 %v9463, %v9866
  %v10042 = vadd.f32 %v9466, %v9869
  %v10043 = vadd.f32 %v9469, %v9872
  %v10044 = vadd.f32 %v9472, %v9875
  %v10045 = vadd.f32 %v9475, %v9878
  %v10046 = vadd.f32 %v9478, %v9881
  %v10047 = vadd.f32 %v9481, %v9884
  %v10048 = vadd.f32 %v9484, %v9887
  %v10049 = vadd.f32 %v9487, %v9890
  %v10050 = vadd.f32 %v9490, %v9893
  %v10051 = vadd.f32 %v9493, %v9896
  %v10052 = vadd.f32 %v9496, %v9899
  %v10053 = vadd.f32 %v9499, %v9902
  %v10054 = vadd.f32 %v9502, %v9905
  %v10055 = vadd.f32 %v9505, %v9908
  %v10056 = vadd.f32 %v9508, %v9911
  %v10057 = vadd.f32 %v9511, %v9914
  %v10058 = vadd.f32 %v9514, %v9917
  %v10059 = vadd.f32 %v9517, %v9920
  %v10060 = vadd.f32 %v9520, %v9923
  %v10061 = vadd.f32 %v9523, %v9926
  %v10062 = vadd.f32 %v9526, %v9929
  %v10063 = vadd.f32 %v9529, %v9932
  %v10064 = vadd.f32 %v9532, %v9935
  %v10065 = vadd.f32 %v9535, %v9938
  %v10066 = vadd.f32 %v9538, %v9941
  %v10067 = vadd.f32 %v9541, %v9944
  %v10068 = vadd.f32 %v9544, %v9947
  %v10069 = vadd.f32 %v9547, %v9950
  %v10070 = vadd.f32 %v9550, %v9953
  %v10071 = vadd.f32 %v9553, %v9956
  %v10072 = vadd.f32 %v9556, %v9959
  %v10073 = vadd.f32 %v9559, %v9962
  %v10074 = vadd.f32 %v9562, %v9965
  %v10075 = vadd.f32 %v9565, %v9968
  %v10076 = vadd.f32 %v9568, %v9971
  %v10077 = vadd.f32 %v9571, %v9974
  %v10078 = vadd.f32 %v9574, %v9977
  %v10079 = vadd.f32 %v9577, %v9980
  %v10080 = vadd.f32 %v9580, %v9983
  %v10081 = vadd.f32 %v9583, %v9986
  %v10082 = vadd.f32 %v9586, %v9989
  %v10083 = vadd.f32 %v9589, %v9992
  %v10084 = vadd.f32 %v9592, %v9995
  %v10085 = vadd.f32 %v9595, %v9998
  %v10086 = vadd.f32 %v9598, %v10001
  %v10087 = vadd.f32 %v9601, %v10004
  %v10088 = vadd.f32 %v9604, %v10007
  %v10089 = vadd.f32 %v9607, %v10010
  %v10090 = vadd.f32 %v9610, %v10013
  %v10091 = vadd.f32 %v9613, %v10016
  %v10092 = vadd.f32 %v9616, %v10019
  %v10093 = vadd.f32 %v9619, %v10022
  %v10094 = vadd.f32 %v9622, %v10025
  %v10095 = vadd.f32 %v9625, %v10028
  %v10096 = vadd.f32 %v9628, %v10031
  %s10097 = scalar_lea.vmem %s4, 24
  %v10098 = vld [vmem:[%s10097] sm:$0xff]
  %v10100 = vsel %vm823, %v6982, 0
  %v10103 = vsel %vm823, %v6985, 0
  %v10106 = vsel %vm823, %v6988, 0
  %v10109 = vsel %vm823, %v6991, 0
  %v10112 = vsel %vm823, %v6994, 0
  %v10115 = vsel %vm823, %v6997, 0
  %v10118 = vsel %vm823, %v7000, 0
  %v10121 = vsel %vm823, %v7003, 0
  %v10124 = vsel %vm823, %v7242, 0
  %v10127 = vsel %vm823, %v7245, 0
  %v10130 = vsel %vm823, %v7248, 0
  %v10133 = vsel %vm823, %v7251, 0
  %v10136 = vsel %vm823, %v7254, 0
  %v10139 = vsel %vm823, %v7257, 0
  %v10142 = vsel %vm823, %v7260, 0
  %v10145 = vsel %vm823, %v7263, 0
  %v10148 = vsel %vm823, %v7502, 0
  %v10151 = vsel %vm823, %v7505, 0
  %v10154 = vsel %vm823, %v7508, 0
  %v10157 = vsel %vm823, %v7511, 0
  %v10160 = vsel %vm823, %v7514, 0
  %v10163 = vsel %vm823, %v7517, 0
  %v10166 = vsel %vm823, %v7520, 0
  %v10169 = vsel %vm823, %v7523, 0
  %v10172 = vsel %vm823, %v7762, 0
  %v10175 = vsel %vm823, %v7765, 0
  %v10178 = vsel %vm823, %v7768, 0
  %v10181 = vsel %vm823, %v7771, 0
  %v10184 = vsel %vm823, %v7774, 0
  %v10187 = vsel %vm823, %v7777, 0
  %v10190 = vsel %vm823, %v7780, 0
  %v10193 = vsel %vm823, %v7783, 0
  %v10196 = vsel %vm823, %v8022, 0
  %v10199 = vsel %vm823, %v8025, 0
  %v10202 = vsel %vm823, %v8028, 0
  %v10205 = vsel %vm823, %v8031, 0
  %v10208 = vsel %vm823, %v8034, 0
  %v10211 = vsel %vm823, %v8037, 0
  %v10214 = vsel %vm823, %v8040, 0
  %v10217 = vsel %vm823, %v8043, 0
  %v10220 = vsel %vm823, %v8282, 0
  %v10223 = vsel %vm823, %v8285, 0
  %v10226 = vsel %vm823, %v8288, 0
  %v10229 = vsel %vm823, %v8291, 0
  %v10232 = vsel %vm823, %v8294, 0
  %v10235 = vsel %vm823, %v8297, 0
  %v10238 = vsel %vm823, %v8300, 0
  %v10241 = vsel %vm823, %v8303, 0
  %v10244 = vsel %vm823, %v8542, 0
  %v10247 = vsel %vm823, %v8545, 0
  %v10250 = vsel %vm823, %v8548, 0
  %v10253 = vsel %vm823, %v8551, 0
  %v10256 = vsel %vm823, %v8554, 0
  %v10259 = vsel %vm823, %v8557, 0
  %v10262 = vsel %vm823, %v8560, 0
  %v10265 = vsel %vm823, %v8563, 0
  %v10268 = vsel %vm823, %v8802, 0
  %v10271 = vsel %vm823, %v8805, 0
  %v10274 = vsel %vm823, %v8808, 0
  %v10277 = vsel %vm823, %v8811, 0
  %v10280 = vsel %vm823, %v8814, 0
  %v10283 = vsel %vm823, %v8817, 0
  %v10286 = vsel %vm823, %v8820, 0
  %v10289 = vsel %vm823, %v8823, 0
  %10291 = vmatpush.msra.mxu0 0.0
  %10292 = vmatpush.msra.mxu0 0.0
  %10293 = vmatpush.msra.mxu0 0.0
  %10294 = vmatpush.msra.mxu0 0.0
  %10295 = vmatpush.msra.mxu0 0.0
  %10296 = vmatpush.msra.mxu0 0.0
  %10297 = vmatpush.msra.mxu0 0.0
  %10298 = vmatpush.msra.mxu0 0.0
  %10299 = vmatpush.msra.mxu0 0.0
  %10300 = vmatpush.msra.mxu0 0.0
  %10301 = vmatpush.msra.mxu0 0.0
  %10302 = vmatpush.msra.mxu0 0.0
  %10303 = vmatpush.msra.mxu0 0.0
  %10304 = vmatpush.msra.mxu0 0.0
  %10305 = vmatpush.msra.mxu0 0.0
  %10306 = vmatpush.msra.mxu0 %v10098
  %10307 = vmatmul.f32.gmra.mxu0 %v10100
  %v10308 = vpop.f32.mrf.mxu0
  %v10309 = vadd.f32 0.0, %v10308
  %10310 = vmatmul.f32.gmra.mxu0 %v10103
  %v10311 = vpop.f32.mrf.mxu0
  %v10312 = vadd.f32 0.0, %v10311
  %10313 = vmatmul.f32.gmra.mxu0 %v10106
  %v10314 = vpop.f32.mrf.mxu0
  %v10315 = vadd.f32 0.0, %v10314
  %10316 = vmatmul.f32.gmra.mxu0 %v10109
  %v10317 = vpop.f32.mrf.mxu0
  %v10318 = vadd.f32 0.0, %v10317
  %10319 = vmatmul.f32.gmra.mxu0 %v10112
  %v10320 = vpop.f32.mrf.mxu0
  %v10321 = vadd.f32 0.0, %v10320
  %10322 = vmatmul.f32.gmra.mxu0 %v10115
  %v10323 = vpop.f32.mrf.mxu0
  %v10324 = vadd.f32 0.0, %v10323
  %10325 = vmatmul.f32.gmra.mxu0 %v10118
  %v10326 = vpop.f32.mrf.mxu0
  %v10327 = vadd.f32 0.0, %v10326
  %10328 = vmatmul.f32.gmra.mxu0 %v10121
  %v10329 = vpop.f32.mrf.mxu0
  %v10330 = vadd.f32 0.0, %v10329
  %10331 = vmatmul.f32.gmra.mxu0 %v10124
  %v10332 = vpop.f32.mrf.mxu0
  %v10333 = vadd.f32 0.0, %v10332
  %10334 = vmatmul.f32.gmra.mxu0 %v10127
  %v10335 = vpop.f32.mrf.mxu0
  %v10336 = vadd.f32 0.0, %v10335
  %10337 = vmatmul.f32.gmra.mxu0 %v10130
  %v10338 = vpop.f32.mrf.mxu0
  %v10339 = vadd.f32 0.0, %v10338
  %10340 = vmatmul.f32.gmra.mxu0 %v10133
  %v10341 = vpop.f32.mrf.mxu0
  %v10342 = vadd.f32 0.0, %v10341
  %10343 = vmatmul.f32.gmra.mxu0 %v10136
  %v10344 = vpop.f32.mrf.mxu0
  %v10345 = vadd.f32 0.0, %v10344
  %10346 = vmatmul.f32.gmra.mxu0 %v10139
  %v10347 = vpop.f32.mrf.mxu0
  %v10348 = vadd.f32 0.0, %v10347
  %10349 = vmatmul.f32.gmra.mxu0 %v10142
  %v10350 = vpop.f32.mrf.mxu0
  %v10351 = vadd.f32 0.0, %v10350
  %10352 = vmatmul.f32.gmra.mxu0 %v10145
  %v10353 = vpop.f32.mrf.mxu0
  %v10354 = vadd.f32 0.0, %v10353
  %10355 = vmatmul.f32.gmra.mxu0 %v10148
  %v10356 = vpop.f32.mrf.mxu0
  %v10357 = vadd.f32 0.0, %v10356
  %10358 = vmatmul.f32.gmra.mxu0 %v10151
  %v10359 = vpop.f32.mrf.mxu0
  %v10360 = vadd.f32 0.0, %v10359
  %10361 = vmatmul.f32.gmra.mxu0 %v10154
  %v10362 = vpop.f32.mrf.mxu0
  %v10363 = vadd.f32 0.0, %v10362
  %10364 = vmatmul.f32.gmra.mxu0 %v10157
  %v10365 = vpop.f32.mrf.mxu0
  %v10366 = vadd.f32 0.0, %v10365
  %10367 = vmatmul.f32.gmra.mxu0 %v10160
  %v10368 = vpop.f32.mrf.mxu0
  %v10369 = vadd.f32 0.0, %v10368
  %10370 = vmatmul.f32.gmra.mxu0 %v10163
  %v10371 = vpop.f32.mrf.mxu0
  %v10372 = vadd.f32 0.0, %v10371
  %10373 = vmatmul.f32.gmra.mxu0 %v10166
  %v10374 = vpop.f32.mrf.mxu0
  %v10375 = vadd.f32 0.0, %v10374
  %10376 = vmatmul.f32.gmra.mxu0 %v10169
  %v10377 = vpop.f32.mrf.mxu0
  %v10378 = vadd.f32 0.0, %v10377
  %10379 = vmatmul.f32.gmra.mxu0 %v10172
  %v10380 = vpop.f32.mrf.mxu0
  %v10381 = vadd.f32 0.0, %v10380
  %10382 = vmatmul.f32.gmra.mxu0 %v10175
  %v10383 = vpop.f32.mrf.mxu0
  %v10384 = vadd.f32 0.0, %v10383
  %10385 = vmatmul.f32.gmra.mxu0 %v10178
  %v10386 = vpop.f32.mrf.mxu0
  %v10387 = vadd.f32 0.0, %v10386
  %10388 = vmatmul.f32.gmra.mxu0 %v10181
  %v10389 = vpop.f32.mrf.mxu0
  %v10390 = vadd.f32 0.0, %v10389
  %10391 = vmatmul.f32.gmra.mxu0 %v10184
  %v10392 = vpop.f32.mrf.mxu0
  %v10393 = vadd.f32 0.0, %v10392
  %10394 = vmatmul.f32.gmra.mxu0 %v10187
  %v10395 = vpop.f32.mrf.mxu0
  %v10396 = vadd.f32 0.0, %v10395
  %10397 = vmatmul.f32.gmra.mxu0 %v10190
  %v10398 = vpop.f32.mrf.mxu0
  %v10399 = vadd.f32 0.0, %v10398
  %10400 = vmatmul.f32.gmra.mxu0 %v10193
  %v10401 = vpop.f32.mrf.mxu0
  %v10402 = vadd.f32 0.0, %v10401
  %10403 = vmatmul.f32.gmra.mxu0 %v10196
  %v10404 = vpop.f32.mrf.mxu0
  %v10405 = vadd.f32 0.0, %v10404
  %10406 = vmatmul.f32.gmra.mxu0 %v10199
  %v10407 = vpop.f32.mrf.mxu0
  %v10408 = vadd.f32 0.0, %v10407
  %10409 = vmatmul.f32.gmra.mxu0 %v10202
  %v10410 = vpop.f32.mrf.mxu0
  %v10411 = vadd.f32 0.0, %v10410
  %10412 = vmatmul.f32.gmra.mxu0 %v10205
  %v10413 = vpop.f32.mrf.mxu0
  %v10414 = vadd.f32 0.0, %v10413
  %10415 = vmatmul.f32.gmra.mxu0 %v10208
  %v10416 = vpop.f32.mrf.mxu0
  %v10417 = vadd.f32 0.0, %v10416
  %10418 = vmatmul.f32.gmra.mxu0 %v10211
  %v10419 = vpop.f32.mrf.mxu0
  %v10420 = vadd.f32 0.0, %v10419
  %10421 = vmatmul.f32.gmra.mxu0 %v10214
  %v10422 = vpop.f32.mrf.mxu0
  %v10423 = vadd.f32 0.0, %v10422
  %10424 = vmatmul.f32.gmra.mxu0 %v10217
  %v10425 = vpop.f32.mrf.mxu0
  %v10426 = vadd.f32 0.0, %v10425
  %10427 = vmatmul.f32.gmra.mxu0 %v10220
  %v10428 = vpop.f32.mrf.mxu0
  %v10429 = vadd.f32 0.0, %v10428
  %10430 = vmatmul.f32.gmra.mxu0 %v10223
  %v10431 = vpop.f32.mrf.mxu0
  %v10432 = vadd.f32 0.0, %v10431
  %10433 = vmatmul.f32.gmra.mxu0 %v10226
  %v10434 = vpop.f32.mrf.mxu0
  %v10435 = vadd.f32 0.0, %v10434
  %10436 = vmatmul.f32.gmra.mxu0 %v10229
  %v10437 = vpop.f32.mrf.mxu0
  %v10438 = vadd.f32 0.0, %v10437
  %10439 = vmatmul.f32.gmra.mxu0 %v10232
  %v10440 = vpop.f32.mrf.mxu0
  %v10441 = vadd.f32 0.0, %v10440
  %10442 = vmatmul.f32.gmra.mxu0 %v10235
  %v10443 = vpop.f32.mrf.mxu0
  %v10444 = vadd.f32 0.0, %v10443
  %10445 = vmatmul.f32.gmra.mxu0 %v10238
  %v10446 = vpop.f32.mrf.mxu0
  %v10447 = vadd.f32 0.0, %v10446
  %10448 = vmatmul.f32.gmra.mxu0 %v10241
  %v10449 = vpop.f32.mrf.mxu0
  %v10450 = vadd.f32 0.0, %v10449
  %10451 = vmatmul.f32.gmra.mxu0 %v10244
  %v10452 = vpop.f32.mrf.mxu0
  %v10453 = vadd.f32 0.0, %v10452
  %10454 = vmatmul.f32.gmra.mxu0 %v10247
  %v10455 = vpop.f32.mrf.mxu0
  %v10456 = vadd.f32 0.0, %v10455
  %10457 = vmatmul.f32.gmra.mxu0 %v10250
  %v10458 = vpop.f32.mrf.mxu0
  %v10459 = vadd.f32 0.0, %v10458
  %10460 = vmatmul.f32.gmra.mxu0 %v10253
  %v10461 = vpop.f32.mrf.mxu0
  %v10462 = vadd.f32 0.0, %v10461
  %10463 = vmatmul.f32.gmra.mxu0 %v10256
  %v10464 = vpop.f32.mrf.mxu0
  %v10465 = vadd.f32 0.0, %v10464
  %10466 = vmatmul.f32.gmra.mxu0 %v10259
  %v10467 = vpop.f32.mrf.mxu0
  %v10468 = vadd.f32 0.0, %v10467
  %10469 = vmatmul.f32.gmra.mxu0 %v10262
  %v10470 = vpop.f32.mrf.mxu0
  %v10471 = vadd.f32 0.0, %v10470
  %10472 = vmatmul.f32.gmra.mxu0 %v10265
  %v10473 = vpop.f32.mrf.mxu0
  %v10474 = vadd.f32 0.0, %v10473
  %10475 = vmatmul.f32.gmra.mxu0 %v10268
  %v10476 = vpop.f32.mrf.mxu0
  %v10477 = vadd.f32 0.0, %v10476
  %10478 = vmatmul.f32.gmra.mxu0 %v10271
  %v10479 = vpop.f32.mrf.mxu0
  %v10480 = vadd.f32 0.0, %v10479
  %10481 = vmatmul.f32.gmra.mxu0 %v10274
  %v10482 = vpop.f32.mrf.mxu0
  %v10483 = vadd.f32 0.0, %v10482
  %10484 = vmatmul.f32.gmra.mxu0 %v10277
  %v10485 = vpop.f32.mrf.mxu0
  %v10486 = vadd.f32 0.0, %v10485
  %10487 = vmatmul.f32.gmra.mxu0 %v10280
  %v10488 = vpop.f32.mrf.mxu0
  %v10489 = vadd.f32 0.0, %v10488
  %10490 = vmatmul.f32.gmra.mxu0 %v10283
  %v10491 = vpop.f32.mrf.mxu0
  %v10492 = vadd.f32 0.0, %v10491
  %10493 = vmatmul.f32.gmra.mxu0 %v10286
  %v10494 = vpop.f32.mrf.mxu0
  %v10495 = vadd.f32 0.0, %v10494
  %10496 = vmatmul.f32.gmra.mxu0 %v10289
  %v10497 = vpop.f32.mrf.mxu0
  %v10498 = vadd.f32 0.0, %v10497
  %10499 = vdwg.mxu0
  %v10500 = vadd.f32 %v10033, %v10309
  %v10501 = vadd.f32 %v10034, %v10312
  %v10502 = vadd.f32 %v10035, %v10315
  %v10503 = vadd.f32 %v10036, %v10318
  %v10504 = vadd.f32 %v10037, %v10321
  %v10505 = vadd.f32 %v10038, %v10324
  %v10506 = vadd.f32 %v10039, %v10327
  %v10507 = vadd.f32 %v10040, %v10330
  %v10508 = vadd.f32 %v10041, %v10333
  %v10509 = vadd.f32 %v10042, %v10336
  %v10510 = vadd.f32 %v10043, %v10339
  %v10511 = vadd.f32 %v10044, %v10342
  %v10512 = vadd.f32 %v10045, %v10345
  %v10513 = vadd.f32 %v10046, %v10348
  %v10514 = vadd.f32 %v10047, %v10351
  %v10515 = vadd.f32 %v10048, %v10354
  %v10516 = vadd.f32 %v10049, %v10357
  %v10517 = vadd.f32 %v10050, %v10360
  %v10518 = vadd.f32 %v10051, %v10363
  %v10519 = vadd.f32 %v10052, %v10366
  %v10520 = vadd.f32 %v10053, %v10369
  %v10521 = vadd.f32 %v10054, %v10372
  %v10522 = vadd.f32 %v10055, %v10375
  %v10523 = vadd.f32 %v10056, %v10378
  %v10524 = vadd.f32 %v10057, %v10381
  %v10525 = vadd.f32 %v10058, %v10384
  %v10526 = vadd.f32 %v10059, %v10387
  %v10527 = vadd.f32 %v10060, %v10390
  %v10528 = vadd.f32 %v10061, %v10393
  %v10529 = vadd.f32 %v10062, %v10396
  %v10530 = vadd.f32 %v10063, %v10399
  %v10531 = vadd.f32 %v10064, %v10402
  %v10532 = vadd.f32 %v10065, %v10405
  %v10533 = vadd.f32 %v10066, %v10408
  %v10534 = vadd.f32 %v10067, %v10411
  %v10535 = vadd.f32 %v10068, %v10414
  %v10536 = vadd.f32 %v10069, %v10417
  %v10537 = vadd.f32 %v10070, %v10420
  %v10538 = vadd.f32 %v10071, %v10423
  %v10539 = vadd.f32 %v10072, %v10426
  %v10540 = vadd.f32 %v10073, %v10429
  %v10541 = vadd.f32 %v10074, %v10432
  %v10542 = vadd.f32 %v10075, %v10435
  %v10543 = vadd.f32 %v10076, %v10438
  %v10544 = vadd.f32 %v10077, %v10441
  %v10545 = vadd.f32 %v10078, %v10444
  %v10546 = vadd.f32 %v10079, %v10447
  %v10547 = vadd.f32 %v10080, %v10450
  %v10548 = vadd.f32 %v10081, %v10453
  %v10549 = vadd.f32 %v10082, %v10456
  %v10550 = vadd.f32 %v10083, %v10459
  %v10551 = vadd.f32 %v10084, %v10462
  %v10552 = vadd.f32 %v10085, %v10465
  %v10553 = vadd.f32 %v10086, %v10468
  %v10554 = vadd.f32 %v10087, %v10471
  %v10555 = vadd.f32 %v10088, %v10474
  %v10556 = vadd.f32 %v10089, %v10477
  %v10557 = vadd.f32 %v10090, %v10480
  %v10558 = vadd.f32 %v10091, %v10483
  %v10559 = vadd.f32 %v10092, %v10486
  %v10560 = vadd.f32 %v10093, %v10489
  %v10561 = vadd.f32 %v10094, %v10492
  %v10562 = vadd.f32 %v10095, %v10495
  %v10563 = vadd.f32 %v10096, %v10498
  %v10564 = vld [vmem:[%s5] sm:$0x1]
  %v10566 = vperm.slane %v10564, 0
  %v10568 = vadd.f32 %v10500, %v10566
  %v10569 = vadd.f32 %v10501, %v10566
  %v10570 = vadd.f32 %v10502, %v10566
  %v10571 = vadd.f32 %v10503, %v10566
  %v10572 = vadd.f32 %v10504, %v10566
  %v10573 = vadd.f32 %v10505, %v10566
  %v10574 = vadd.f32 %v10506, %v10566
  %v10575 = vadd.f32 %v10507, %v10566
  %v10576 = vadd.f32 %v10508, %v10566
  %v10577 = vadd.f32 %v10509, %v10566
  %v10578 = vadd.f32 %v10510, %v10566
  %v10579 = vadd.f32 %v10511, %v10566
  %v10580 = vadd.f32 %v10512, %v10566
  %v10581 = vadd.f32 %v10513, %v10566
  %v10582 = vadd.f32 %v10514, %v10566
  %v10583 = vadd.f32 %v10515, %v10566
  %v10584 = vadd.f32 %v10516, %v10566
  %v10585 = vadd.f32 %v10517, %v10566
  %v10586 = vadd.f32 %v10518, %v10566
  %v10587 = vadd.f32 %v10519, %v10566
  %v10588 = vadd.f32 %v10520, %v10566
  %v10589 = vadd.f32 %v10521, %v10566
  %v10590 = vadd.f32 %v10522, %v10566
  %v10591 = vadd.f32 %v10523, %v10566
  %v10592 = vadd.f32 %v10524, %v10566
  %v10593 = vadd.f32 %v10525, %v10566
  %v10594 = vadd.f32 %v10526, %v10566
  %v10595 = vadd.f32 %v10527, %v10566
  %v10596 = vadd.f32 %v10528, %v10566
  %v10597 = vadd.f32 %v10529, %v10566
  %v10598 = vadd.f32 %v10530, %v10566
  %v10599 = vadd.f32 %v10531, %v10566
  %v10600 = vadd.f32 %v10532, %v10566
  %v10601 = vadd.f32 %v10533, %v10566
  %v10602 = vadd.f32 %v10534, %v10566
  %v10603 = vadd.f32 %v10535, %v10566
  %v10604 = vadd.f32 %v10536, %v10566
  %v10605 = vadd.f32 %v10537, %v10566
  %v10606 = vadd.f32 %v10538, %v10566
  %v10607 = vadd.f32 %v10539, %v10566
  %v10608 = vadd.f32 %v10540, %v10566
  %v10609 = vadd.f32 %v10541, %v10566
  %v10610 = vadd.f32 %v10542, %v10566
  %v10611 = vadd.f32 %v10543, %v10566
  %v10612 = vadd.f32 %v10544, %v10566
  %v10613 = vadd.f32 %v10545, %v10566
  %v10614 = vadd.f32 %v10546, %v10566
  %v10615 = vadd.f32 %v10547, %v10566
  %v10616 = vadd.f32 %v10548, %v10566
  %v10617 = vadd.f32 %v10549, %v10566
  %v10618 = vadd.f32 %v10550, %v10566
  %v10619 = vadd.f32 %v10551, %v10566
  %v10620 = vadd.f32 %v10552, %v10566
  %v10621 = vadd.f32 %v10553, %v10566
  %v10622 = vadd.f32 %v10554, %v10566
  %v10623 = vadd.f32 %v10555, %v10566
  %v10624 = vadd.f32 %v10556, %v10566
  %v10625 = vadd.f32 %v10557, %v10566
  %v10626 = vadd.f32 %v10558, %v10566
  %v10627 = vadd.f32 %v10559, %v10566
  %v10628 = vadd.f32 %v10560, %v10566
  %v10629 = vadd.f32 %v10561, %v10566
  %v10630 = vadd.f32 %v10562, %v10566
  %v10631 = vadd.f32 %v10563, %v10566
  %vm10632 = vcmask 261120
  %10633 = vst.msk [vmem:[%s6] sm:$0xff] %vm10632, %v10568
  %10634 = vst.msk [vmem:[%s6 + $0x8] sm:$0xff] %vm10632, %v10569
  %10635 = vst.msk [vmem:[%s6 + $0x10] sm:$0xff] %vm10632, %v10570
  %10636 = vst.msk [vmem:[%s6 + $0x18] sm:$0xff] %vm10632, %v10571
  %10637 = vst.msk [vmem:[%s6 + $0x20] sm:$0xff] %vm10632, %v10572
  %10638 = vst.msk [vmem:[%s6 + $0x28] sm:$0xff] %vm10632, %v10573
  %10639 = vst.msk [vmem:[%s6 + $0x30] sm:$0xff] %vm10632, %v10574
  %10640 = vst.msk [vmem:[%s6 + $0x38] sm:$0xff] %vm10632, %v10575
  %10641 = vst.msk [vmem:[%s6 + $0x40] sm:$0xff] %vm10632, %v10576
  %10642 = vst.msk [vmem:[%s6 + $0x48] sm:$0xff] %vm10632, %v10577
  %10643 = vst.msk [vmem:[%s6 + $0x50] sm:$0xff] %vm10632, %v10578
  %10644 = vst.msk [vmem:[%s6 + $0x58] sm:$0xff] %vm10632, %v10579
  %10645 = vst.msk [vmem:[%s6 + $0x60] sm:$0xff] %vm10632, %v10580
  %10646 = vst.msk [vmem:[%s6 + $0x68] sm:$0xff] %vm10632, %v10581
  %10647 = vst.msk [vmem:[%s6 + $0x70] sm:$0xff] %vm10632, %v10582
  %10648 = vst.msk [vmem:[%s6 + $0x78] sm:$0xff] %vm10632, %v10583
  %10649 = vst.msk [vmem:[%s6 + $0x80] sm:$0xff] %vm10632, %v10584
  %10650 = vst.msk [vmem:[%s6 + $0x88] sm:$0xff] %vm10632, %v10585
  %10651 = vst.msk [vmem:[%s6 + $0x90] sm:$0xff] %vm10632, %v10586
  %10652 = vst.msk [vmem:[%s6 + $0x98] sm:$0xff] %vm10632, %v10587
  %10653 = vst.msk [vmem:[%s6 + $0xa0] sm:$0xff] %vm10632, %v10588
  %10654 = vst.msk [vmem:[%s6 + $0xa8] sm:$0xff] %vm10632, %v10589
  %10655 = vst.msk [vmem:[%s6 + $0xb0] sm:$0xff] %vm10632, %v10590
  %10656 = vst.msk [vmem:[%s6 + $0xb8] sm:$0xff] %vm10632, %v10591
  %10657 = vst.msk [vmem:[%s6 + $0xc0] sm:$0xff] %vm10632, %v10592
  %10658 = vst.msk [vmem:[%s6 + $0xc8] sm:$0xff] %vm10632, %v10593
  %10659 = vst.msk [vmem:[%s6 + $0xd0] sm:$0xff] %vm10632, %v10594
  %10660 = vst.msk [vmem:[%s6 + $0xd8] sm:$0xff] %vm10632, %v10595
  %10661 = vst.msk [vmem:[%s6 + $0xe0] sm:$0xff] %vm10632, %v10596
  %10662 = vst.msk [vmem:[%s6 + $0xe8] sm:$0xff] %vm10632, %v10597
  %10663 = vst.msk [vmem:[%s6 + $0xf0] sm:$0xff] %vm10632, %v10598
  %10664 = vst.msk [vmem:[%s6 + $0xf8] sm:$0xff] %vm10632, %v10599
  %10665 = vst.msk [vmem:[%s6 + $0x100] sm:$0xff] %vm10632, %v10600
  %10666 = vst.msk [vmem:[%s6 + $0x108] sm:$0xff] %vm10632, %v10601
  %10667 = vst.msk [vmem:[%s6 + $0x110] sm:$0xff] %vm10632, %v10602
  %10668 = vst.msk [vmem:[%s6 + $0x118] sm:$0xff] %vm10632, %v10603
  %10669 = vst.msk [vmem:[%s6 + $0x120] sm:$0xff] %vm10632, %v10604
  %10670 = vst.msk [vmem:[%s6 + $0x128] sm:$0xff] %vm10632, %v10605
  %10671 = vst.msk [vmem:[%s6 + $0x130] sm:$0xff] %vm10632, %v10606
  %10672 = vst.msk [vmem:[%s6 + $0x138] sm:$0xff] %vm10632, %v10607
  %10673 = vst.msk [vmem:[%s6 + $0x140] sm:$0xff] %vm10632, %v10608
  %10674 = vst.msk [vmem:[%s6 + $0x148] sm:$0xff] %vm10632, %v10609
  %10675 = vst.msk [vmem:[%s6 + $0x150] sm:$0xff] %vm10632, %v10610
  %10676 = vst.msk [vmem:[%s6 + $0x158] sm:$0xff] %vm10632, %v10611
  %10677 = vst.msk [vmem:[%s6 + $0x160] sm:$0xff] %vm10632, %v10612
  %10678 = vst.msk [vmem:[%s6 + $0x168] sm:$0xff] %vm10632, %v10613
  %10679 = vst.msk [vmem:[%s6 + $0x170] sm:$0xff] %vm10632, %v10614
  %10680 = vst.msk [vmem:[%s6 + $0x178] sm:$0xff] %vm10632, %v10615
  %10681 = vst.msk [vmem:[%s6 + $0x180] sm:$0xff] %vm10632, %v10616
  %10682 = vst.msk [vmem:[%s6 + $0x188] sm:$0xff] %vm10632, %v10617
  %10683 = vst.msk [vmem:[%s6 + $0x190] sm:$0xff] %vm10632, %v10618
  %10684 = vst.msk [vmem:[%s6 + $0x198] sm:$0xff] %vm10632, %v10619
  %10685 = vst.msk [vmem:[%s6 + $0x1a0] sm:$0xff] %vm10632, %v10620
  %10686 = vst.msk [vmem:[%s6 + $0x1a8] sm:$0xff] %vm10632, %v10621
  %10687 = vst.msk [vmem:[%s6 + $0x1b0] sm:$0xff] %vm10632, %v10622
  %10688 = vst.msk [vmem:[%s6 + $0x1b8] sm:$0xff] %vm10632, %v10623
  %10689 = vst.msk [vmem:[%s6 + $0x1c0] sm:$0xff] %vm10632, %v10624
  %10690 = vst.msk [vmem:[%s6 + $0x1c8] sm:$0xff] %vm10632, %v10625
  %10691 = vst.msk [vmem:[%s6 + $0x1d0] sm:$0xff] %vm10632, %v10626
  %10692 = vst.msk [vmem:[%s6 + $0x1d8] sm:$0xff] %vm10632, %v10627
  %10693 = vst.msk [vmem:[%s6 + $0x1e0] sm:$0xff] %vm10632, %v10628
  %10694 = vst.msk [vmem:[%s6 + $0x1e8] sm:$0xff] %vm10632, %v10629
  %10695 = vst.msk [vmem:[%s6 + $0x1f0] sm:$0xff] %vm10632, %v10630
  %10696 = vst.msk [vmem:[%s6 + $0x1f8] sm:$0xff] %vm10632, %v10631
  // Predicated region
  $region26: #{tpu_custom_call.1} parent=0 // pred_check
    _
  $region27: #{tpu_custom_call.1} parent=0 // pred_check_branch
    %10698 = sbr.rel (0) target = $region29
  $region28: #{tpu_custom_call.1} parent=0 // pred_region
    _
  $region29: #{tpu_custom_call.1} parent=0 // pred_fallthru
    _
  // Predicated region
  $region30: #{tpu_custom_call.1} parent=0 // pred_check
    _
  $region31: #{tpu_custom_call.1} parent=0 // pred_check_branch
    %10700 = sbr.rel (0) target = $region33
  $region32: #{tpu_custom_call.1} parent=0 // pred_region
    _
  $region33: #{tpu_custom_call.1} parent=0 // pred_fallthru
    _

</llo_original>
